<compile_context>
chip_gen: v7x
topology: tpu7x:2x2x1
jax: 0.10.0
libtpu: 0.0.40
codegen_flags: <defaults>
</compile_context>

<pallas_src>
import functools

import numpy as np
import jax
import jax.numpy as jnp
from jax.experimental import pallas as pl
from jax.experimental.pallas import tpu as pltpu


# (in_channels, out_channels, kernel_size, stride) for the five conv layers.
CONV_DEFS = (
    (8, 32, 64, 2),
    (32, 32, 48, 2),
    (32, 64, 32, 1),
    (64, 64, 16, 1),
    (64, 128, 8, 1),
)
POOL_OUT = 102
NUM_CLASSES = 64
FC_HIDDEN = 2048
FC_IN = 128 * POOL_OUT  # 13056 (see TODO above)
BN_EPS = 1e-5

WEIGHT_DTYPE = jnp.bfloat16   # streamed weights (f32 accumulation in the kernel)
ACT_DTYPE = jnp.bfloat16      # streamed activations
MAX_TK = 1024                 # K-tile cap (bf16 (1024,256) weight tile = 0.5 MB)


def _round_up(x, m):
    return (x + m - 1) // m * m


def _tiles_for(Kp, Np, M):
    """Derive tile sizes from padded weight shape (so prep + call agree)."""
    tk = min(MAX_TK, Kp)
    tn = 256 if Np % 256 == 0 else 128
    Mp8 = _round_up(M, 8)
    tm = Mp8 if Mp8 <= 512 else 256
    Mp = _round_up(M, tm)
    return tm, tn, tk, Mp


# ---------------------------------------------------------------------------
# Fused GEMM Pallas kernel:  y = act(x @ w + bias) * scale + shift
#   bias/scale/shift packed as rows 0/1/2 of a single (3, Np) f32 array.
#   The output block IS the accumulator (f32); its index_map ignores k, so the
#   block stays resident in VMEM across the whole reduction.
# ---------------------------------------------------------------------------
def _fused_gemm_kernel(x_ref, w_ref, bst_ref, o_ref, *, act):
    k = pl.program_id(2)  # reduction axis MUST stay the last grid axis ("arbitrary")

    @pl.when(k == 0)
    def _():
        o_ref[...] = jnp.zeros_like(o_ref)

    o_ref[...] += jnp.dot(x_ref[...], w_ref[...],
                          preferred_element_type=jnp.float32)

    @pl.when(k == pl.num_programs(2) - 1)
    def _():
        y = o_ref[...] + bst_ref[0:1, :]
        if act == "relu":
            y = jnp.maximum(y, 0.0)
        elif act == "sigmoid":
            y = jax.nn.sigmoid(y)
        o_ref[...] = y * bst_ref[1:2, :] + bst_ref[2:3, :]


def fused_matmul(x, wp, bst, n_out, act="none"):
    """x: (M, K); wp: pre-padded (Kp, Np) bf16 weight; bst: (3, Np) f32 bias/scale/shift."""
    M, K = x.shape
    Kp, Np = wp.shape
    assert K <= Kp and n_out <= Np
    tm, tn, tk, Mp = _tiles_for(Kp, Np, M)

    xp = x.astype(wp.dtype)
    if Mp > M or Kp > K:
        xp = jnp.pad(xp, ((0, Mp - M), (0, Kp - K)))

    grid = (Mp // tm, Np // tn, Kp // tk)  # k (reduction) innermost
    out = pl.pallas_call(
        functools.partial(_fused_gemm_kernel, act=act),
        out_shape=jax.ShapeDtypeStruct((Mp, Np), jnp.float32),
        grid_spec=pltpu.PrefetchScalarGridSpec(
            num_scalar_prefetch=0,
            grid=grid,
            in_specs=[
                pl.BlockSpec((tm, tk), lambda m, n, k: (m, k)),
                pl.BlockSpec((tk, tn), lambda m, n, k: (k, n)),
                pl.BlockSpec((3, tn), lambda m, n, k: (0, n)),
            ],
            out_specs=pl.BlockSpec((tm, tn), lambda m, n, k: (m, n)),
        ),
        compiler_params=pltpu.CompilerParams(
            # NOTE: the k axis must remain last and "arbitrary"; the @pl.when(k==0)
            # accumulator init relies on it.
            dimension_semantics=("parallel", "parallel", "arbitrary")),
    )(xp, wp, bst)
    return out[:M, :n_out]


# ---------------------------------------------------------------------------
# One-time parameter preparation (hoisted OUT of the per-call forward):
#   transpose -> pad to tile multiples -> cast to bf16, pack bias/scale/shift.
# ---------------------------------------------------------------------------
def prep_gemm(w2d, bias=None, scale=None, shift=None, dtype=WEIGHT_DTYPE):
    K, N = w2d.shape
    Kp128 = _round_up(K, 128)
    tk = min(MAX_TK, Kp128)
    Kp = _round_up(K, tk)
    Np = _round_up(N, 128)
    wp = jnp.pad(w2d.astype(dtype), ((0, Kp - K), (0, Np - N)))
    bst = jnp.zeros((3, Np), jnp.float32)
    bst = bst.at[0, :N].set(0.0 if bias is None else bias)    # bias   (pre-activation)
    bst = bst.at[1, :N].set(1.0 if scale is None else scale)  # BN scale (post-activation)
    bst = bst.at[2, :N].set(0.0 if shift is None else shift)  # BN shift
    return {"w": wp, "bst": bst}


def prepare_params(params):
    prepped = {"convs": []}
    for (cin, cout, K, _s), lp in zip(CONV_DEFS, params["convs"]):
        # im2col contraction axis ordered (tap, channel): w2d[kk*C + c, o] = w[o, c, kk]
        w2d = jnp.transpose(lp["w"], (2, 1, 0)).reshape(K * cin, cout)
        scale = lp["gamma"] / jnp.sqrt(lp["rvar"] + BN_EPS)
        shift = lp["beta"] - lp["rmean"] * scale
        prepped["convs"].append(prep_gemm(w2d, lp["b"], scale, shift))
    prepped["fc1"] = prep_gemm(params["fc1_w"].T, params["fc1_b"])
    prepped["fc2"] = prep_gemm(params["fc2_w"].T, params["fc2_b"])
    return prepped


# ---------------------------------------------------------------------------
# Glue: adaptive-pool matrix, parameter init
# ---------------------------------------------------------------------------
def adaptive_pool_matrix(l_in, l_out):
    """P (l_in, l_out) such that x @ P == AdaptiveAvgPool1d(l_out)(x) per row."""
    P = np.zeros((l_in, l_out), np.float32)
    for i in range(l_out):
        s = (i * l_in) // l_out
        e = -((-(i + 1) * l_in) // l_out)  # ceil
        P[s:e, i] = 1.0 / (e - s)
    return jnp.asarray(P)


def init_params(key):
    params = {"convs": []}
    for (cin, cout, k, _s) in CONV_DEFS:
        key, k1, k2, k3, k4, k5, k6 = jax.random.split(key, 7)
        params["convs"].append(dict(
            w=jax.random.normal(k1, (cout, cin, k), jnp.float32) / np.sqrt(cin * k),
            b=0.01 * jax.random.normal(k2, (cout,), jnp.float32),
            gamma=1.0 + 0.1 * jax.random.normal(k3, (cout,), jnp.float32),
            beta=0.1 * jax.random.normal(k4, (cout,), jnp.float32),
            rmean=0.1 * jax.random.normal(k5, (cout,), jnp.float32),
            rvar=1.0 + 0.1 * jax.random.uniform(k6, (cout,), jnp.float32),
        ))
    key, k1, k2, k3, k4 = jax.random.split(key, 5)
    params["fc1_w"] = jax.random.normal(k1, (FC_HIDDEN, FC_IN), jnp.float32) / np.sqrt(FC_IN)
    params["fc1_b"] = 0.01 * jax.random.normal(k2, (FC_HIDDEN,), jnp.float32)
    params["fc2_w"] = jax.random.normal(k3, (NUM_CLASSES, FC_HIDDEN), jnp.float32) / np.sqrt(FC_HIDDEN)
    params["fc2_b"] = 0.01 * jax.random.normal(k4, (NUM_CLASSES,), jnp.float32)
    return params


# ---------------------------------------------------------------------------
# Forward (matches Conv1DBaseNet.forward, eval mode).  `prepped` = prepare_params(...)
# ---------------------------------------------------------------------------
def conv1d_base_net_forward(prepped, x):
    # x: (B, C, L) NCL like torch; a leading singleton dim is squeezed like torch squeeze(0)
    if x.ndim == 4 and x.shape[0] == 1:
        x = x[0]
    x = jnp.transpose(x, (0, 2, 1)).astype(ACT_DTYPE)  # channels-last (B, L, C), bf16

    for (cin, cout, K, stride), layer in zip(CONV_DEFS, prepped["convs"]):
        B, L, C = x.shape
        assert C == cin
        L_out = (L - K) // stride + 1
        idx = np.arange(L_out)[:, None] * stride + np.arange(K)[None, :]   # (L_out, K)
        # TODO(synk): im2col materializes a K-fold duplicated patch tensor in HBM; an
        # in-kernel gather (scalar-prefetch / Element index maps) would keep HBM reads
        # at ~1x the input for large batch.  At these shapes the fused GEMM dominates.
        patches = x[:, idx, :].reshape(B * L_out, K * C)                   # (B*L_out, K*C) bf16
        # Conv -> ReLU -> BatchNorm (eval) fused in one Pallas GEMM (matches torch order).
        y = fused_matmul(patches, layer["w"], layer["bst"], cout, act="relu")
        x = y.reshape(B, L_out, cout).astype(ACT_DTYPE)
        # Dropout: identity in eval mode

    # AdaptiveAvgPool1d(102) along length, expressed as a small-K matmul (tk adapts to K).
    B, L, C = x.shape
    pool = prep_gemm(adaptive_pool_matrix(L, POOL_OUT))    # trace-time constant, tiny
    xt = jnp.transpose(x, (0, 2, 1)).reshape(B * C, L)     # (B*C, L)
    pooled = fused_matmul(xt, pool["w"], pool["bst"], POOL_OUT)            # (B*C, 102)
    flat = pooled.reshape(B, C * POOL_OUT).astype(ACT_DTYPE)  # == torch .view(B, -1)

    h = fused_matmul(flat, prepped["fc1"]["w"], prepped["fc1"]["bst"], FC_HIDDEN, act="sigmoid")
    logits = fused_matmul(h, prepped["fc2"]["w"], prepped["fc2"]["bst"], NUM_CLASSES)
    return logits  # softmax is defined in the module but not applied in forward()


if __name__ == "__main__":
    key = jax.random.PRNGKey(0)
    pkey, xkey = jax.random.split(key)
    params = init_params(pkey)
    prepped = prepare_params(params)   # one-time: pad/transpose/cast weights, fold BN

    # Smallest convenient shape: L=400 is near the minimum length for which all five
    # convolutions leave a non-empty output (400 -> 169 -> 61 -> 30 -> 15 -> 8).
    B, C_in, L = 2, 8, 400
    x = jax.random.normal(xkey, (B, C_in, L), jnp.float32)

    fwd = jax.jit(conv1d_base_net_forward)
    logits = jax.block_until_ready(fwd(prepped, x))

    assert logits.shape == (B, NUM_CLASSES), logits.shape
    assert bool(jnp.all(jnp.isfinite(logits)))
    print("KERNEL_OK")
</pallas_src>

<mosaic_0001>
module attributes {stable_mosaic.version = 11 : i64} {
  func.func @_fused_gemm_kernel(%arg0: i32, %arg1: i32, %arg2: i32, %arg3: memref<344x512xbf16, #tpu.memory_space<vmem>>, %arg4: memref<512x128xbf16, #tpu.memory_space<vmem>>, %arg5: memref<3x128xf32, #tpu.memory_space<vmem>>, %arg6: memref<344x128xf32, #tpu.memory_space<vmem>>) attributes {dimension_semantics = [#tpu.dimension_semantics<parallel>, #tpu.dimension_semantics<parallel>, #tpu.dimension_semantics<arbitrary>], iteration_bounds = array<i64: 1, 1, 1>, scalar_prefetch = 0 : i64, scratch_operands = 0 : i64, tpu.core_type = #tpu.core_type<tc>, window_params = [{transform_indices = @transform_0, window_bounds = array<i64: 344, 512>}, {transform_indices = @transform_1, window_bounds = array<i64: 512, 128>}, {transform_indices = @transform_2, window_bounds = array<i64: 3, 128>}, {transform_indices = @transform_3, window_bounds = array<i64: 344, 128>}]} {
    %c0_i32 = arith.constant 0 : i32
    %0 = arith.cmpi eq, %arg2, %c0_i32 : i32
    %1 = arith.extui %0 : i1 to i32
    %c0_i32_0 = arith.constant 0 : i32
    %2 = arith.cmpi ne, %1, %c0_i32_0 : i32
    scf.if %2 {
      %cst_10 = arith.constant 0.000000e+00 : f32
      %12 = vector.broadcast %cst_10 : f32 to vector<344x128xf32>
      %c0_11 = arith.constant 0 : index
      %c0_12 = arith.constant 0 : index
      %13 = vector.load %arg6[%c0_11, %c0_12] : memref<344x128xf32, #tpu.memory_space<vmem>>, vector<344x128xf32>
      tpu.vector_store %arg6[%c0_11, %c0_12], %12 {strides = array<i32>} : memref<344x128xf32, #tpu.memory_space<vmem>>, vector<344x128xf32>,
    } else {
    }
    %c0 = arith.constant 0 : index
    %c0_1 = arith.constant 0 : index
    %3 = vector.load %arg6[%c0, %c0_1] : memref<344x128xf32, #tpu.memory_space<vmem>>, vector<344x128xf32>
    %c0_2 = arith.constant 0 : index
    %c0_3 = arith.constant 0 : index
    %4 = vector.load %arg3[%c0_2, %c0_3] : memref<344x512xbf16, #tpu.memory_space<vmem>>, vector<344x512xbf16>
    %c0_4 = arith.constant 0 : index
    %c0_5 = arith.constant 0 : index
    %5 = vector.load %arg4[%c0_4, %c0_5] : memref<512x128xbf16, #tpu.memory_space<vmem>>, vector<512x128xbf16>
    %cst = arith.constant dense<0.000000e+00> : vector<344x128xf32>
    %6 = tpu.matmul %4, %5, %cst {dimension_numbers = #tpu.dot_dimension_numbers<[1], [0], [0], [1], [0, 0, 1, 1], [], []>} : vector<344x512xbf16>, vector<512x128xbf16>, vector<344x128xf32> -> vector<344x128xf32>
    %7 = arith.addf %3, %6 : vector<344x128xf32>
    %c0_6 = arith.constant 0 : index
    %c0_7 = arith.constant 0 : index
    %8 = vector.load %arg6[%c0_6, %c0_7] : memref<344x128xf32, #tpu.memory_space<vmem>>, vector<344x128xf32>
    tpu.vector_store %arg6[%c0_6, %c0_7], %7 {strides = array<i32>} : memref<344x128xf32, #tpu.memory_space<vmem>>, vector<344x128xf32>,
    %c0_i32_8 = arith.constant 0 : i32
    %9 = arith.cmpi eq, %arg2, %c0_i32_8 : i32
    %10 = arith.extui %9 : i1 to i32
    %c0_i32_9 = arith.constant 0 : i32
    %11 = arith.cmpi ne, %10, %c0_i32_9 : i32
    scf.if %11 {
      %c0_10 = arith.constant 0 : index
      %c0_11 = arith.constant 0 : index
      %12 = vector.load %arg6[%c0_10, %c0_11] : memref<344x128xf32, #tpu.memory_space<vmem>>, vector<344x128xf32>
      %c0_12 = arith.constant 0 : index
      %c0_13 = arith.constant 0 : index
      %13 = vector.load %arg5[%c0_12, %c0_13] : memref<3x128xf32, #tpu.memory_space<vmem>>, vector<1x128xf32>
      %14 = vector.broadcast %13 : vector<1x128xf32> to vector<344x128xf32>
      %15 = arith.addf %12, %14 : vector<344x128xf32>
      %cst_14 = arith.constant 0.000000e+00 : f32
      %16 = vector.broadcast %cst_14 : f32 to vector<344x128xf32>
      %17 = arith.maximumf %15, %16 : vector<344x128xf32>
      %c1 = arith.constant 1 : index
      %c0_15 = arith.constant 0 : index
      %18 = vector.load %arg5[%c1, %c0_15] : memref<3x128xf32, #tpu.memory_space<vmem>>, vector<1x128xf32>
      %19 = vector.broadcast %18 : vector<1x128xf32> to vector<344x128xf32>
      %20 = arith.mulf %17, %19 : vector<344x128xf32>
      %c2 = arith.constant 2 : index
      %c0_16 = arith.constant 0 : index
      %21 = vector.load %arg5[%c2, %c0_16] : memref<3x128xf32, #tpu.memory_space<vmem>>, vector<1x128xf32>
      %22 = vector.broadcast %21 : vector<1x128xf32> to vector<344x128xf32>
      %23 = arith.addf %20, %22 : vector<344x128xf32>
      %c0_17 = arith.constant 0 : index
      %c0_18 = arith.constant 0 : index
      %24 = vector.load %arg6[%c0_17, %c0_18] : memref<344x128xf32, #tpu.memory_space<vmem>>, vector<344x128xf32>
      tpu.vector_store %arg6[%c0_17, %c0_18], %23 {strides = array<i32>} : memref<344x128xf32, #tpu.memory_space<vmem>>, vector<344x128xf32>,
    } else {
    }
    return
  }
  func.func @transform_0(%arg0: i32, %arg1: i32, %arg2: i32) -> (i32, i32) {
    %c0_i32 = arith.constant 0 : i32
    return %arg0, %arg2 : i32, i32
  }
  func.func @transform_1(%arg0: i32, %arg1: i32, %arg2: i32) -> (i32, i32) {
    %c0_i32 = arith.constant 0 : i32
    return %arg2, %arg1 : i32, i32
  }
  func.func @transform_2(%arg0: i32, %arg1: i32, %arg2: i32) -> (i32, i32) {
    %c0_i32 = arith.constant 0 : i32
    %c0_i32_0 = arith.constant 0 : i32
    return %c0_i32, %arg1 : i32, i32
  }
  func.func @transform_3(%arg0: i32, %arg1: i32, %arg2: i32) -> (i32, i32) {
    %c0_i32 = arith.constant 0 : i32
    return %arg0, %arg1 : i32, i32
  }
}

module attributes {stable_mosaic.version = 11 : i64} {
  func.func @_fused_gemm_kernel(%arg0: i32, %arg1: i32, %arg2: i32, %arg3: memref<128x1024xbf16, #tpu.memory_space<vmem>>, %arg4: memref<1024x128xbf16, #tpu.memory_space<vmem>>, %arg5: memref<3x128xf32, #tpu.memory_space<vmem>>, %arg6: memref<128x128xf32, #tpu.memory_space<vmem>>) attributes {dimension_semantics = [#tpu.dimension_semantics<parallel>, #tpu.dimension_semantics<parallel>, #tpu.dimension_semantics<arbitrary>], iteration_bounds = array<i64: 1, 1, 2>, scalar_prefetch = 0 : i64, scratch_operands = 0 : i64, tpu.core_type = #tpu.core_type<tc>, window_params = [{transform_indices = @transform_0, window_bounds = array<i64: 128, 1024>}, {transform_indices = @transform_1, window_bounds = array<i64: 1024, 128>}, {transform_indices = @transform_2, window_bounds = array<i64: 3, 128>}, {transform_indices = @transform_3, window_bounds = array<i64: 128, 128>}]} {
    %c0_i32 = arith.constant 0 : i32
    %0 = arith.cmpi eq, %arg2, %c0_i32 : i32
    %1 = arith.extui %0 : i1 to i32
    %c0_i32_0 = arith.constant 0 : i32
    %2 = arith.cmpi ne, %1, %c0_i32_0 : i32
    scf.if %2 {
      %cst_9 = arith.constant 0.000000e+00 : f32
      %12 = vector.broadcast %cst_9 : f32 to vector<128x128xf32>
      %c0_10 = arith.constant 0 : index
      %c0_11 = arith.constant 0 : index
      %13 = vector.load %arg6[%c0_10, %c0_11] : memref<128x128xf32, #tpu.memory_space<vmem>>, vector<128x128xf32>
      tpu.vector_store %arg6[%c0_10, %c0_11], %12 {strides = array<i32>} : memref<128x128xf32, #tpu.memory_space<vmem>>, vector<128x128xf32>,
    } else {
    }
    %c0 = arith.constant 0 : index
    %c0_1 = arith.constant 0 : index
    %3 = vector.load %arg6[%c0, %c0_1] : memref<128x128xf32, #tpu.memory_space<vmem>>, vector<128x128xf32>
    %c0_2 = arith.constant 0 : index
    %c0_3 = arith.constant 0 : index
    %4 = vector.load %arg3[%c0_2, %c0_3] : memref<128x1024xbf16, #tpu.memory_space<vmem>>, vector<128x1024xbf16>
    %c0_4 = arith.constant 0 : index
    %c0_5 = arith.constant 0 : index
    %5 = vector.load %arg4[%c0_4, %c0_5] : memref<1024x128xbf16, #tpu.memory_space<vmem>>, vector<1024x128xbf16>
    %cst = arith.constant dense<0.000000e+00> : vector<128x128xf32>
    %6 = tpu.matmul %4, %5, %cst {dimension_numbers = #tpu.dot_dimension_numbers<[1], [0], [0], [1], [0, 0, 1, 1], [], []>} : vector<128x1024xbf16>, vector<1024x128xbf16>, vector<128x128xf32> -> vector<128x128xf32>
    %7 = arith.addf %3, %6 : vector<128x128xf32>
    %c0_6 = arith.constant 0 : index
    %c0_7 = arith.constant 0 : index
    %8 = vector.load %arg6[%c0_6, %c0_7] : memref<128x128xf32, #tpu.memory_space<vmem>>, vector<128x128xf32>
    tpu.vector_store %arg6[%c0_6, %c0_7], %7 {strides = array<i32>} : memref<128x128xf32, #tpu.memory_space<vmem>>, vector<128x128xf32>,
    %c1_i32 = arith.constant 1 : i32
    %9 = arith.cmpi eq, %arg2, %c1_i32 : i32
    %10 = arith.extui %9 : i1 to i32
    %c0_i32_8 = arith.constant 0 : i32
    %11 = arith.cmpi ne, %10, %c0_i32_8 : i32
    scf.if %11 {
      %c0_9 = arith.constant 0 : index
      %c0_10 = arith.constant 0 : index
      %12 = vector.load %arg6[%c0_9, %c0_10] : memref<128x128xf32, #tpu.memory_space<vmem>>, vector<128x128xf32>
      %c0_11 = arith.constant 0 : index
      %c0_12 = arith.constant 0 : index
      %13 = vector.load %arg5[%c0_11, %c0_12] : memref<3x128xf32, #tpu.memory_space<vmem>>, vector<1x128xf32>
      %14 = vector.broadcast %13 : vector<1x128xf32> to vector<128x128xf32>
      %15 = arith.addf %12, %14 : vector<128x128xf32>
      %cst_13 = arith.constant 0.000000e+00 : f32
      %16 = vector.broadcast %cst_13 : f32 to vector<128x128xf32>
      %17 = arith.maximumf %15, %16 : vector<128x128xf32>
      %c1 = arith.constant 1 : index
      %c0_14 = arith.constant 0 : index
      %18 = vector.load %arg5[%c1, %c0_14] : memref<3x128xf32, #tpu.memory_space<vmem>>, vector<1x128xf32>
      %19 = vector.broadcast %18 : vector<1x128xf32> to vector<128x128xf32>
      %20 = arith.mulf %17, %19 : vector<128x128xf32>
      %c2 = arith.constant 2 : index
      %c0_15 = arith.constant 0 : index
      %21 = vector.load %arg5[%c2, %c0_15] : memref<3x128xf32, #tpu.memory_space<vmem>>, vector<1x128xf32>
      %22 = vector.broadcast %21 : vector<1x128xf32> to vector<128x128xf32>
      %23 = arith.addf %20, %22 : vector<128x128xf32>
      %c0_16 = arith.constant 0 : index
      %c0_17 = arith.constant 0 : index
      %24 = vector.load %arg6[%c0_16, %c0_17] : memref<128x128xf32, #tpu.memory_space<vmem>>, vector<128x128xf32>
      tpu.vector_store %arg6[%c0_16, %c0_17], %23 {strides = array<i32>} : memref<128x128xf32, #tpu.memory_space<vmem>>, vector<128x128xf32>,
    } else {
    }
    return
  }
  func.func @transform_0(%arg0: i32, %arg1: i32, %arg2: i32) -> (i32, i32) {
    %c0_i32 = arith.constant 0 : i32
    return %arg0, %arg2 : i32, i32
  }
  func.func @transform_1(%arg0: i32, %arg1: i32, %arg2: i32) -> (i32, i32) {
    %c0_i32 = arith.constant 0 : i32
    return %arg2, %arg1 : i32, i32
  }
  func.func @transform_2(%arg0: i32, %arg1: i32, %arg2: i32) -> (i32, i32) {
    %c0_i32 = arith.constant 0 : i32
    %c0_i32_0 = arith.constant 0 : i32
    return %c0_i32, %arg1 : i32, i32
  }
  func.func @transform_3(%arg0: i32, %arg1: i32, %arg2: i32) -> (i32, i32) {
    %c0_i32 = arith.constant 0 : i32
    return %arg0, %arg1 : i32, i32
  }
}

module attributes {stable_mosaic.version = 11 : i64} {
  func.func @_fused_gemm_kernel(%arg0: i32, %arg1: i32, %arg2: i32, %arg3: memref<64x1024xbf16, #tpu.memory_space<vmem>>, %arg4: memref<1024x128xbf16, #tpu.memory_space<vmem>>, %arg5: memref<3x128xf32, #tpu.memory_space<vmem>>, %arg6: memref<64x128xf32, #tpu.memory_space<vmem>>) attributes {dimension_semantics = [#tpu.dimension_semantics<parallel>, #tpu.dimension_semantics<parallel>, #tpu.dimension_semantics<arbitrary>], iteration_bounds = array<i64: 1, 1, 1>, scalar_prefetch = 0 : i64, scratch_operands = 0 : i64, tpu.core_type = #tpu.core_type<tc>, window_params = [{transform_indices = @transform_0, window_bounds = array<i64: 64, 1024>}, {transform_indices = @transform_1, window_bounds = array<i64: 1024, 128>}, {transform_indices = @transform_2, window_bounds = array<i64: 3, 128>}, {transform_indices = @transform_3, window_bounds = array<i64: 64, 128>}]} {
    %c0_i32 = arith.constant 0 : i32
    %0 = arith.cmpi eq, %arg2, %c0_i32 : i32
    %1 = arith.extui %0 : i1 to i32
    %c0_i32_0 = arith.constant 0 : i32
    %2 = arith.cmpi ne, %1, %c0_i32_0 : i32
    scf.if %2 {
      %cst_10 = arith.constant 0.000000e+00 : f32
      %12 = vector.broadcast %cst_10 : f32 to vector<64x128xf32>
      %c0_11 = arith.constant 0 : index
      %c0_12 = arith.constant 0 : index
      %13 = vector.load %arg6[%c0_11, %c0_12] : memref<64x128xf32, #tpu.memory_space<vmem>>, vector<64x128xf32>
      tpu.vector_store %arg6[%c0_11, %c0_12], %12 {strides = array<i32>} : memref<64x128xf32, #tpu.memory_space<vmem>>, vector<64x128xf32>,
    } else {
    }
    %c0 = arith.constant 0 : index
    %c0_1 = arith.constant 0 : index
    %3 = vector.load %arg6[%c0, %c0_1] : memref<64x128xf32, #tpu.memory_space<vmem>>, vector<64x128xf32>
    %c0_2 = arith.constant 0 : index
    %c0_3 = arith.constant 0 : index
    %4 = vector.load %arg3[%c0_2, %c0_3] : memref<64x1024xbf16, #tpu.memory_space<vmem>>, vector<64x1024xbf16>
    %c0_4 = arith.constant 0 : index
    %c0_5 = arith.constant 0 : index
    %5 = vector.load %arg4[%c0_4, %c0_5] : memref<1024x128xbf16, #tpu.memory_space<vmem>>, vector<1024x128xbf16>
    %cst = arith.constant dense<0.000000e+00> : vector<64x128xf32>
    %6 = tpu.matmul %4, %5, %cst {dimension_numbers = #tpu.dot_dimension_numbers<[1], [0], [0], [1], [0, 0, 1, 1], [], []>} : vector<64x1024xbf16>, vector<1024x128xbf16>, vector<64x128xf32> -> vector<64x128xf32>
    %7 = arith.addf %3, %6 : vector<64x128xf32>
    %c0_6 = arith.constant 0 : index
    %c0_7 = arith.constant 0 : index
    %8 = vector.load %arg6[%c0_6, %c0_7] : memref<64x128xf32, #tpu.memory_space<vmem>>, vector<64x128xf32>
    tpu.vector_store %arg6[%c0_6, %c0_7], %7 {strides = array<i32>} : memref<64x128xf32, #tpu.memory_space<vmem>>, vector<64x128xf32>,
    %c0_i32_8 = arith.constant 0 : i32
    %9 = arith.cmpi eq, %arg2, %c0_i32_8 : i32
    %10 = arith.extui %9 : i1 to i32
    %c0_i32_9 = arith.constant 0 : i32
    %11 = arith.cmpi ne, %10, %c0_i32_9 : i32
    scf.if %11 {
      %c0_10 = arith.constant 0 : index
      %c0_11 = arith.constant 0 : index
      %12 = vector.load %arg6[%c0_10, %c0_11] : memref<64x128xf32, #tpu.memory_space<vmem>>, vector<64x128xf32>
      %c0_12 = arith.constant 0 : index
      %c0_13 = arith.constant 0 : index
      %13 = vector.load %arg5[%c0_12, %c0_13] : memref<3x128xf32, #tpu.memory_space<vmem>>, vector<1x128xf32>
      %14 = vector.broadcast %13 : vector<1x128xf32> to vector<64x128xf32>
      %15 = arith.addf %12, %14 : vector<64x128xf32>
      %cst_14 = arith.constant 0.000000e+00 : f32
      %16 = vector.broadcast %cst_14 : f32 to vector<64x128xf32>
      %17 = arith.maximumf %15, %16 : vector<64x128xf32>
      %c1 = arith.constant 1 : index
      %c0_15 = arith.constant 0 : index
      %18 = vector.load %arg5[%c1, %c0_15] : memref<3x128xf32, #tpu.memory_space<vmem>>, vector<1x128xf32>
      %19 = vector.broadcast %18 : vector<1x128xf32> to vector<64x128xf32>
      %20 = arith.mulf %17, %19 : vector<64x128xf32>
      %c2 = arith.constant 2 : index
      %c0_16 = arith.constant 0 : index
      %21 = vector.load %arg5[%c2, %c0_16] : memref<3x128xf32, #tpu.memory_space<vmem>>, vector<1x128xf32>
      %22 = vector.broadcast %21 : vector<1x128xf32> to vector<64x128xf32>
      %23 = arith.addf %20, %22 : vector<64x128xf32>
      %c0_17 = arith.constant 0 : index
      %c0_18 = arith.constant 0 : index
      %24 = vector.load %arg6[%c0_17, %c0_18] : memref<64x128xf32, #tpu.memory_space<vmem>>, vector<64x128xf32>
      tpu.vector_store %arg6[%c0_17, %c0_18], %23 {strides = array<i32>} : memref<64x128xf32, #tpu.memory_space<vmem>>, vector<64x128xf32>,
    } else {
    }
    return
  }
  func.func @transform_0(%arg0: i32, %arg1: i32, %arg2: i32) -> (i32, i32) {
    %c0_i32 = arith.constant 0 : i32
    return %arg0, %arg2 : i32, i32
  }
  func.func @transform_1(%arg0: i32, %arg1: i32, %arg2: i32) -> (i32, i32) {
    %c0_i32 = arith.constant 0 : i32
    return %arg2, %arg1 : i32, i32
  }
  func.func @transform_2(%arg0: i32, %arg1: i32, %arg2: i32) -> (i32, i32) {
    %c0_i32 = arith.constant 0 : i32
    %c0_i32_0 = arith.constant 0 : i32
    return %c0_i32, %arg1 : i32, i32
  }
  func.func @transform_3(%arg0: i32, %arg1: i32, %arg2: i32) -> (i32, i32) {
    %c0_i32 = arith.constant 0 : i32
    return %arg0, %arg1 : i32, i32
  }
}

module attributes {stable_mosaic.version = 11 : i64} {
  func.func @_fused_gemm_kernel(%arg0: i32, %arg1: i32, %arg2: i32, %arg3: memref<32x1024xbf16, #tpu.memory_space<vmem>>, %arg4: memref<1024x128xbf16, #tpu.memory_space<vmem>>, %arg5: memref<3x128xf32, #tpu.memory_space<vmem>>, %arg6: memref<32x128xf32, #tpu.memory_space<vmem>>) attributes {dimension_semantics = [#tpu.dimension_semantics<parallel>, #tpu.dimension_semantics<parallel>, #tpu.dimension_semantics<arbitrary>], iteration_bounds = array<i64: 1, 1, 1>, scalar_prefetch = 0 : i64, scratch_operands = 0 : i64, tpu.core_type = #tpu.core_type<tc>, window_params = [{transform_indices = @transform_0, window_bounds = array<i64: 32, 1024>}, {transform_indices = @transform_1, window_bounds = array<i64: 1024, 128>}, {transform_indices = @transform_2, window_bounds = array<i64: 3, 128>}, {transform_indices = @transform_3, window_bounds = array<i64: 32, 128>}]} {
    %c0_i32 = arith.constant 0 : i32
    %0 = arith.cmpi eq, %arg2, %c0_i32 : i32
    %1 = arith.extui %0 : i1 to i32
    %c0_i32_0 = arith.constant 0 : i32
    %2 = arith.cmpi ne, %1, %c0_i32_0 : i32
    scf.if %2 {
      %cst_10 = arith.constant 0.000000e+00 : f32
      %12 = vector.broadcast %cst_10 : f32 to vector<32x128xf32>
      %c0_11 = arith.constant 0 : index
      %c0_12 = arith.constant 0 : index
      %13 = vector.load %arg6[%c0_11, %c0_12] : memref<32x128xf32, #tpu.memory_space<vmem>>, vector<32x128xf32>
      tpu.vector_store %arg6[%c0_11, %c0_12], %12 {strides = array<i32>} : memref<32x128xf32, #tpu.memory_space<vmem>>, vector<32x128xf32>,
    } else {
    }
    %c0 = arith.constant 0 : index
    %c0_1 = arith.constant 0 : index
    %3 = vector.load %arg6[%c0, %c0_1] : memref<32x128xf32, #tpu.memory_space<vmem>>, vector<32x128xf32>
    %c0_2 = arith.constant 0 : index
    %c0_3 = arith.constant 0 : index
    %4 = vector.load %arg3[%c0_2, %c0_3] : memref<32x1024xbf16, #tpu.memory_space<vmem>>, vector<32x1024xbf16>
    %c0_4 = arith.constant 0 : index
    %c0_5 = arith.constant 0 : index
    %5 = vector.load %arg4[%c0_4, %c0_5] : memref<1024x128xbf16, #tpu.memory_space<vmem>>, vector<1024x128xbf16>
    %cst = arith.constant dense<0.000000e+00> : vector<32x128xf32>
    %6 = tpu.matmul %4, %5, %cst {dimension_numbers = #tpu.dot_dimension_numbers<[1], [0], [0], [1], [0, 0, 1, 1], [], []>} : vector<32x1024xbf16>, vector<1024x128xbf16>, vector<32x128xf32> -> vector<32x128xf32>
    %7 = arith.addf %3, %6 : vector<32x128xf32>
    %c0_6 = arith.constant 0 : index
    %c0_7 = arith.constant 0 : index
    %8 = vector.load %arg6[%c0_6, %c0_7] : memref<32x128xf32, #tpu.memory_space<vmem>>, vector<32x128xf32>
    tpu.vector_store %arg6[%c0_6, %c0_7], %7 {strides = array<i32>} : memref<32x128xf32, #tpu.memory_space<vmem>>, vector<32x128xf32>,
    %c0_i32_8 = arith.constant 0 : i32
    %9 = arith.cmpi eq, %arg2, %c0_i32_8 : i32
    %10 = arith.extui %9 : i1 to i32
    %c0_i32_9 = arith.constant 0 : i32
    %11 = arith.cmpi ne, %10, %c0_i32_9 : i32
    scf.if %11 {
      %c0_10 = arith.constant 0 : index
      %c0_11 = arith.constant 0 : index
      %12 = vector.load %arg6[%c0_10, %c0_11] : memref<32x128xf32, #tpu.memory_space<vmem>>, vector<32x128xf32>
      %c0_12 = arith.constant 0 : index
      %c0_13 = arith.constant 0 : index
      %13 = vector.load %arg5[%c0_12, %c0_13] : memref<3x128xf32, #tpu.memory_space<vmem>>, vector<1x128xf32>
      %14 = vector.broadcast %13 : vector<1x128xf32> to vector<32x128xf32>
      %15 = arith.addf %12, %14 : vector<32x128xf32>
      %cst_14 = arith.constant 0.000000e+00 : f32
      %16 = vector.broadcast %cst_14 : f32 to vector<32x128xf32>
      %17 = arith.maximumf %15, %16 : vector<32x128xf32>
      %c1 = arith.constant 1 : index
      %c0_15 = arith.constant 0 : index
      %18 = vector.load %arg5[%c1, %c0_15] : memref<3x128xf32, #tpu.memory_space<vmem>>, vector<1x128xf32>
      %19 = vector.broadcast %18 : vector<1x128xf32> to vector<32x128xf32>
      %20 = arith.mulf %17, %19 : vector<32x128xf32>
      %c2 = arith.constant 2 : index
      %c0_16 = arith.constant 0 : index
      %21 = vector.load %arg5[%c2, %c0_16] : memref<3x128xf32, #tpu.memory_space<vmem>>, vector<1x128xf32>
      %22 = vector.broadcast %21 : vector<1x128xf32> to vector<32x128xf32>
      %23 = arith.addf %20, %22 : vector<32x128xf32>
      %c0_17 = arith.constant 0 : index
      %c0_18 = arith.constant 0 : index
      %24 = vector.load %arg6[%c0_17, %c0_18] : memref<32x128xf32, #tpu.memory_space<vmem>>, vector<32x128xf32>
      tpu.vector_store %arg6[%c0_17, %c0_18], %23 {strides = array<i32>} : memref<32x128xf32, #tpu.memory_space<vmem>>, vector<32x128xf32>,
    } else {
    }
    return
  }
  func.func @transform_0(%arg0: i32, %arg1: i32, %arg2: i32) -> (i32, i32) {
    %c0_i32 = arith.constant 0 : i32
    return %arg0, %arg2 : i32, i32
  }
  func.func @transform_1(%arg0: i32, %arg1: i32, %arg2: i32) -> (i32, i32) {
    %c0_i32 = arith.constant 0 : i32
    return %arg2, %arg1 : i32, i32
  }
  func.func @transform_2(%arg0: i32, %arg1: i32, %arg2: i32) -> (i32, i32) {
    %c0_i32 = arith.constant 0 : i32
    %c0_i32_0 = arith.constant 0 : i32
    return %c0_i32, %arg1 : i32, i32
  }
  func.func @transform_3(%arg0: i32, %arg1: i32, %arg2: i32) -> (i32, i32) {
    %c0_i32 = arith.constant 0 : i32
    return %arg0, %arg1 : i32, i32
  }
}

module attributes {stable_mosaic.version = 11 : i64} {
  func.func @_fused_gemm_kernel(%arg0: i32, %arg1: i32, %arg2: i32, %arg3: memref<16x512xbf16, #tpu.memory_space<vmem>>, %arg4: memref<512x128xbf16, #tpu.memory_space<vmem>>, %arg5: memref<3x128xf32, #tpu.memory_space<vmem>>, %arg6: memref<16x128xf32, #tpu.memory_space<vmem>>) attributes {dimension_semantics = [#tpu.dimension_semantics<parallel>, #tpu.dimension_semantics<parallel>, #tpu.dimension_semantics<arbitrary>], iteration_bounds = array<i64: 1, 1, 1>, scalar_prefetch = 0 : i64, scratch_operands = 0 : i64, tpu.core_type = #tpu.core_type<tc>, window_params = [{transform_indices = @transform_0, window_bounds = array<i64: 16, 512>}, {transform_indices = @transform_1, window_bounds = array<i64: 512, 128>}, {transform_indices = @transform_2, window_bounds = array<i64: 3, 128>}, {transform_indices = @transform_3, window_bounds = array<i64: 16, 128>}]} {
    %c0_i32 = arith.constant 0 : i32
    %0 = arith.cmpi eq, %arg2, %c0_i32 : i32
    %1 = arith.extui %0 : i1 to i32
    %c0_i32_0 = arith.constant 0 : i32
    %2 = arith.cmpi ne, %1, %c0_i32_0 : i32
    scf.if %2 {
      %cst_10 = arith.constant 0.000000e+00 : f32
      %12 = vector.broadcast %cst_10 : f32 to vector<16x128xf32>
      %c0_11 = arith.constant 0 : index
      %c0_12 = arith.constant 0 : index
      %13 = vector.load %arg6[%c0_11, %c0_12] : memref<16x128xf32, #tpu.memory_space<vmem>>, vector<16x128xf32>
      tpu.vector_store %arg6[%c0_11, %c0_12], %12 {strides = array<i32>} : memref<16x128xf32, #tpu.memory_space<vmem>>, vector<16x128xf32>,
    } else {
    }
    %c0 = arith.constant 0 : index
    %c0_1 = arith.constant 0 : index
    %3 = vector.load %arg6[%c0, %c0_1] : memref<16x128xf32, #tpu.memory_space<vmem>>, vector<16x128xf32>
    %c0_2 = arith.constant 0 : index
    %c0_3 = arith.constant 0 : index
    %4 = vector.load %arg3[%c0_2, %c0_3] : memref<16x512xbf16, #tpu.memory_space<vmem>>, vector<16x512xbf16>
    %c0_4 = arith.constant 0 : index
    %c0_5 = arith.constant 0 : index
    %5 = vector.load %arg4[%c0_4, %c0_5] : memref<512x128xbf16, #tpu.memory_space<vmem>>, vector<512x128xbf16>
    %cst = arith.constant dense<0.000000e+00> : vector<16x128xf32>
    %6 = tpu.matmul %4, %5, %cst {dimension_numbers = #tpu.dot_dimension_numbers<[1], [0], [0], [1], [0, 0, 1, 1], [], []>} : vector<16x512xbf16>, vector<512x128xbf16>, vector<16x128xf32> -> vector<16x128xf32>
    %7 = arith.addf %3, %6 : vector<16x128xf32>
    %c0_6 = arith.constant 0 : index
    %c0_7 = arith.constant 0 : index
    %8 = vector.load %arg6[%c0_6, %c0_7] : memref<16x128xf32, #tpu.memory_space<vmem>>, vector<16x128xf32>
    tpu.vector_store %arg6[%c0_6, %c0_7], %7 {strides = array<i32>} : memref<16x128xf32, #tpu.memory_space<vmem>>, vector<16x128xf32>,
    %c0_i32_8 = arith.constant 0 : i32
    %9 = arith.cmpi eq, %arg2, %c0_i32_8 : i32
    %10 = arith.extui %9 : i1 to i32
    %c0_i32_9 = arith.constant 0 : i32
    %11 = arith.cmpi ne, %10, %c0_i32_9 : i32
    scf.if %11 {
      %c0_10 = arith.constant 0 : index
      %c0_11 = arith.constant 0 : index
      %12 = vector.load %arg6[%c0_10, %c0_11] : memref<16x128xf32, #tpu.memory_space<vmem>>, vector<16x128xf32>
      %c0_12 = arith.constant 0 : index
      %c0_13 = arith.constant 0 : index
      %13 = vector.load %arg5[%c0_12, %c0_13] : memref<3x128xf32, #tpu.memory_space<vmem>>, vector<1x128xf32>
      %14 = vector.broadcast %13 : vector<1x128xf32> to vector<16x128xf32>
      %15 = arith.addf %12, %14 : vector<16x128xf32>
      %cst_14 = arith.constant 0.000000e+00 : f32
      %16 = vector.broadcast %cst_14 : f32 to vector<16x128xf32>
      %17 = arith.maximumf %15, %16 : vector<16x128xf32>
      %c1 = arith.constant 1 : index
      %c0_15 = arith.constant 0 : index
      %18 = vector.load %arg5[%c1, %c0_15] : memref<3x128xf32, #tpu.memory_space<vmem>>, vector<1x128xf32>
      %19 = vector.broadcast %18 : vector<1x128xf32> to vector<16x128xf32>
      %20 = arith.mulf %17, %19 : vector<16x128xf32>
      %c2 = arith.constant 2 : index
      %c0_16 = arith.constant 0 : index
      %21 = vector.load %arg5[%c2, %c0_16] : memref<3x128xf32, #tpu.memory_space<vmem>>, vector<1x128xf32>
      %22 = vector.broadcast %21 : vector<1x128xf32> to vector<16x128xf32>
      %23 = arith.addf %20, %22 : vector<16x128xf32>
      %c0_17 = arith.constant 0 : index
      %c0_18 = arith.constant 0 : index
      %24 = vector.load %arg6[%c0_17, %c0_18] : memref<16x128xf32, #tpu.memory_space<vmem>>, vector<16x128xf32>
      tpu.vector_store %arg6[%c0_17, %c0_18], %23 {strides = array<i32>} : memref<16x128xf32, #tpu.memory_space<vmem>>, vector<16x128xf32>,
    } else {
    }
    return
  }
  func.func @transform_0(%arg0: i32, %arg1: i32, %arg2: i32) -> (i32, i32) {
    %c0_i32 = arith.constant 0 : i32
    return %arg0, %arg2 : i32, i32
  }
  func.func @transform_1(%arg0: i32, %arg1: i32, %arg2: i32) -> (i32, i32) {
    %c0_i32 = arith.constant 0 : i32
    return %arg2, %arg1 : i32, i32
  }
  func.func @transform_2(%arg0: i32, %arg1: i32, %arg2: i32) -> (i32, i32) {
    %c0_i32 = arith.constant 0 : i32
    %c0_i32_0 = arith.constant 0 : i32
    return %c0_i32, %arg1 : i32, i32
  }
  func.func @transform_3(%arg0: i32, %arg1: i32, %arg2: i32) -> (i32, i32) {
    %c0_i32 = arith.constant 0 : i32
    return %arg0, %arg1 : i32, i32
  }
}

module attributes {stable_mosaic.version = 11 : i64} {
  func.func @_fused_gemm_kernel(%arg0: i32, %arg1: i32, %arg2: i32, %arg3: memref<256x128xbf16, #tpu.memory_space<vmem>>, %arg4: memref<128x128xbf16, #tpu.memory_space<vmem>>, %arg5: memref<3x128xf32, #tpu.memory_space<vmem>>, %arg6: memref<256x128xf32, #tpu.memory_space<vmem>>) attributes {dimension_semantics = [#tpu.dimension_semantics<parallel>, #tpu.dimension_semantics<parallel>, #tpu.dimension_semantics<arbitrary>], iteration_bounds = array<i64: 1, 1, 1>, scalar_prefetch = 0 : i64, scratch_operands = 0 : i64, tpu.core_type = #tpu.core_type<tc>, window_params = [{transform_indices = @transform_0, window_bounds = array<i64: 256, 128>}, {transform_indices = @transform_1, window_bounds = array<i64: 128, 128>}, {transform_indices = @transform_2, window_bounds = array<i64: 3, 128>}, {transform_indices = @transform_3, window_bounds = array<i64: 256, 128>}]} {
    %c0_i32 = arith.constant 0 : i32
    %0 = arith.cmpi eq, %arg2, %c0_i32 : i32
    %1 = arith.extui %0 : i1 to i32
    %c0_i32_0 = arith.constant 0 : i32
    %2 = arith.cmpi ne, %1, %c0_i32_0 : i32
    scf.if %2 {
      %cst_10 = arith.constant 0.000000e+00 : f32
      %12 = vector.broadcast %cst_10 : f32 to vector<256x128xf32>
      %c0_11 = arith.constant 0 : index
      %c0_12 = arith.constant 0 : index
      %13 = vector.load %arg6[%c0_11, %c0_12] : memref<256x128xf32, #tpu.memory_space<vmem>>, vector<256x128xf32>
      tpu.vector_store %arg6[%c0_11, %c0_12], %12 {strides = array<i32>} : memref<256x128xf32, #tpu.memory_space<vmem>>, vector<256x128xf32>,
    } else {
    }
    %c0 = arith.constant 0 : index
    %c0_1 = arith.constant 0 : index
    %3 = vector.load %arg6[%c0, %c0_1] : memref<256x128xf32, #tpu.memory_space<vmem>>, vector<256x128xf32>
    %c0_2 = arith.constant 0 : index
    %c0_3 = arith.constant 0 : index
    %4 = vector.load %arg3[%c0_2, %c0_3] : memref<256x128xbf16, #tpu.memory_space<vmem>>, vector<256x128xbf16>
    %c0_4 = arith.constant 0 : index
    %c0_5 = arith.constant 0 : index
    %5 = vector.load %arg4[%c0_4, %c0_5] : memref<128x128xbf16, #tpu.memory_space<vmem>>, vector<128x128xbf16>
    %cst = arith.constant dense<0.000000e+00> : vector<256x128xf32>
    %6 = tpu.matmul %4, %5, %cst {dimension_numbers = #tpu.dot_dimension_numbers<[1], [0], [0], [1], [0, 0, 1, 1], [], []>} : vector<256x128xbf16>, vector<128x128xbf16>, vector<256x128xf32> -> vector<256x128xf32>
    %7 = arith.addf %3, %6 : vector<256x128xf32>
    %c0_6 = arith.constant 0 : index
    %c0_7 = arith.constant 0 : index
    %8 = vector.load %arg6[%c0_6, %c0_7] : memref<256x128xf32, #tpu.memory_space<vmem>>, vector<256x128xf32>
    tpu.vector_store %arg6[%c0_6, %c0_7], %7 {strides = array<i32>} : memref<256x128xf32, #tpu.memory_space<vmem>>, vector<256x128xf32>,
    %c0_i32_8 = arith.constant 0 : i32
    %9 = arith.cmpi eq, %arg2, %c0_i32_8 : i32
    %10 = arith.extui %9 : i1 to i32
    %c0_i32_9 = arith.constant 0 : i32
    %11 = arith.cmpi ne, %10, %c0_i32_9 : i32
    scf.if %11 {
      %c0_10 = arith.constant 0 : index
      %c0_11 = arith.constant 0 : index
      %12 = vector.load %arg6[%c0_10, %c0_11] : memref<256x128xf32, #tpu.memory_space<vmem>>, vector<256x128xf32>
      %c0_12 = arith.constant 0 : index
      %c0_13 = arith.constant 0 : index
      %13 = vector.load %arg5[%c0_12, %c0_13] : memref<3x128xf32, #tpu.memory_space<vmem>>, vector<1x128xf32>
      %14 = vector.broadcast %13 : vector<1x128xf32> to vector<256x128xf32>
      %15 = arith.addf %12, %14 : vector<256x128xf32>
      %c1 = arith.constant 1 : index
      %c0_14 = arith.constant 0 : index
      %16 = vector.load %arg5[%c1, %c0_14] : memref<3x128xf32, #tpu.memory_space<vmem>>, vector<1x128xf32>
      %17 = vector.broadcast %16 : vector<1x128xf32> to vector<256x128xf32>
      %18 = arith.mulf %15, %17 : vector<256x128xf32>
      %c2 = arith.constant 2 : index
      %c0_15 = arith.constant 0 : index
      %19 = vector.load %arg5[%c2, %c0_15] : memref<3x128xf32, #tpu.memory_space<vmem>>, vector<1x128xf32>
      %20 = vector.broadcast %19 : vector<1x128xf32> to vector<256x128xf32>
      %21 = arith.addf %18, %20 : vector<256x128xf32>
      %c0_16 = arith.constant 0 : index
      %c0_17 = arith.constant 0 : index
      %22 = vector.load %arg6[%c0_16, %c0_17] : memref<256x128xf32, #tpu.memory_space<vmem>>, vector<256x128xf32>
      tpu.vector_store %arg6[%c0_16, %c0_17], %21 {strides = array<i32>} : memref<256x128xf32, #tpu.memory_space<vmem>>, vector<256x128xf32>,
    } else {
    }
    return
  }
  func.func @transform_0(%arg0: i32, %arg1: i32, %arg2: i32) -> (i32, i32) {
    %c0_i32 = arith.constant 0 : i32
    return %arg0, %arg2 : i32, i32
  }
  func.func @transform_1(%arg0: i32, %arg1: i32, %arg2: i32) -> (i32, i32) {
    %c0_i32 = arith.constant 0 : i32
    return %arg2, %arg1 : i32, i32
  }
  func.func @transform_2(%arg0: i32, %arg1: i32, %arg2: i32) -> (i32, i32) {
    %c0_i32 = arith.constant 0 : i32
    %c0_i32_0 = arith.constant 0 : i32
    return %c0_i32, %arg1 : i32, i32
  }
  func.func @transform_3(%arg0: i32, %arg1: i32, %arg2: i32) -> (i32, i32) {
    %c0_i32 = arith.constant 0 : i32
    return %arg0, %arg1 : i32, i32
  }
}

module attributes {stable_mosaic.version = 11 : i64} {
  func.func @_fused_gemm_kernel(%arg0: i32, %arg1: i32, %arg2: i32, %arg3: memref<8x1024xbf16, #tpu.memory_space<vmem>>, %arg4: memref<1024x256xbf16, #tpu.memory_space<vmem>>, %arg5: memref<3x256xf32, #tpu.memory_space<vmem>>, %arg6: memref<8x256xf32, #tpu.memory_space<vmem>>) attributes {dimension_semantics = [#tpu.dimension_semantics<parallel>, #tpu.dimension_semantics<parallel>, #tpu.dimension_semantics<arbitrary>], iteration_bounds = array<i64: 1, 8, 13>, scalar_prefetch = 0 : i64, scratch_operands = 0 : i64, tpu.core_type = #tpu.core_type<tc>, window_params = [{transform_indices = @transform_0, window_bounds = array<i64: 8, 1024>}, {transform_indices = @transform_1, window_bounds = array<i64: 1024, 256>}, {transform_indices = @transform_2, window_bounds = array<i64: 3, 256>}, {transform_indices = @transform_3, window_bounds = array<i64: 8, 256>}]} {
    %c0_i32 = arith.constant 0 : i32
    %0 = arith.cmpi eq, %arg2, %c0_i32 : i32
    %1 = arith.extui %0 : i1 to i32
    %c0_i32_0 = arith.constant 0 : i32
    %2 = arith.cmpi ne, %1, %c0_i32_0 : i32
    scf.if %2 {
      %cst_9 = arith.constant 0.000000e+00 : f32
      %12 = vector.broadcast %cst_9 : f32 to vector<8x256xf32>
      %c0_10 = arith.constant 0 : index
      %c0_11 = arith.constant 0 : index
      %13 = vector.load %arg6[%c0_10, %c0_11] : memref<8x256xf32, #tpu.memory_space<vmem>>, vector<8x256xf32>
      tpu.vector_store %arg6[%c0_10, %c0_11], %12 {strides = array<i32>} : memref<8x256xf32, #tpu.memory_space<vmem>>, vector<8x256xf32>,
    } else {
    }
    %c0 = arith.constant 0 : index
    %c0_1 = arith.constant 0 : index
    %3 = vector.load %arg6[%c0, %c0_1] : memref<8x256xf32, #tpu.memory_space<vmem>>, vector<8x256xf32>
    %c0_2 = arith.constant 0 : index
    %c0_3 = arith.constant 0 : index
    %4 = vector.load %arg3[%c0_2, %c0_3] : memref<8x1024xbf16, #tpu.memory_space<vmem>>, vector<8x1024xbf16>
    %c0_4 = arith.constant 0 : index
    %c0_5 = arith.constant 0 : index
    %5 = vector.load %arg4[%c0_4, %c0_5] : memref<1024x256xbf16, #tpu.memory_space<vmem>>, vector<1024x256xbf16>
    %cst = arith.constant dense<0.000000e+00> : vector<8x256xf32>
    %6 = tpu.matmul %4, %5, %cst {dimension_numbers = #tpu.dot_dimension_numbers<[1], [0], [0], [1], [0, 0, 1, 1], [], []>} : vector<8x1024xbf16>, vector<1024x256xbf16>, vector<8x256xf32> -> vector<8x256xf32>
    %7 = arith.addf %3, %6 : vector<8x256xf32>
    %c0_6 = arith.constant 0 : index
    %c0_7 = arith.constant 0 : index
    %8 = vector.load %arg6[%c0_6, %c0_7] : memref<8x256xf32, #tpu.memory_space<vmem>>, vector<8x256xf32>
    tpu.vector_store %arg6[%c0_6, %c0_7], %7 {strides = array<i32>} : memref<8x256xf32, #tpu.memory_space<vmem>>, vector<8x256xf32>,
    %c12_i32 = arith.constant 12 : i32
    %9 = arith.cmpi eq, %arg2, %c12_i32 : i32
    %10 = arith.extui %9 : i1 to i32
    %c0_i32_8 = arith.constant 0 : i32
    %11 = arith.cmpi ne, %10, %c0_i32_8 : i32
    scf.if %11 {
      %c0_9 = arith.constant 0 : index
      %c0_10 = arith.constant 0 : index
      %12 = vector.load %arg6[%c0_9, %c0_10] : memref<8x256xf32, #tpu.memory_space<vmem>>, vector<8x256xf32>
      %c0_11 = arith.constant 0 : index
      %c0_12 = arith.constant 0 : index
      %13 = vector.load %arg5[%c0_11, %c0_12] : memref<3x256xf32, #tpu.memory_space<vmem>>, vector<1x256xf32>
      %14 = vector.broadcast %13 : vector<1x256xf32> to vector<8x256xf32>
      %15 = arith.addf %12, %14 : vector<8x256xf32>
      %16 = arith.negf %15 : vector<8x256xf32>
      %17 = math.exp %16 : vector<8x256xf32>
      %cst_13 = arith.constant 1.000000e+00 : f32
      %18 = vector.broadcast %cst_13 : f32 to vector<8x256xf32>
      %19 = arith.addf %18, %17 : vector<8x256xf32>
      %20 = arith.divf %18, %19 : vector<8x256xf32>
      %c1 = arith.constant 1 : index
      %c0_14 = arith.constant 0 : index
      %21 = vector.load %arg5[%c1, %c0_14] : memref<3x256xf32, #tpu.memory_space<vmem>>, vector<1x256xf32>
      %22 = vector.broadcast %21 : vector<1x256xf32> to vector<8x256xf32>
      %23 = arith.mulf %20, %22 : vector<8x256xf32>
      %c2 = arith.constant 2 : index
      %c0_15 = arith.constant 0 : index
      %24 = vector.load %arg5[%c2, %c0_15] : memref<3x256xf32, #tpu.memory_space<vmem>>, vector<1x256xf32>
      %25 = vector.broadcast %24 : vector<1x256xf32> to vector<8x256xf32>
      %26 = arith.addf %23, %25 : vector<8x256xf32>
      %c0_16 = arith.constant 0 : index
      %c0_17 = arith.constant 0 : index
      %27 = vector.load %arg6[%c0_16, %c0_17] : memref<8x256xf32, #tpu.memory_space<vmem>>, vector<8x256xf32>
      tpu.vector_store %arg6[%c0_16, %c0_17], %26 {strides = array<i32>} : memref<8x256xf32, #tpu.memory_space<vmem>>, vector<8x256xf32>,
    } else {
    }
    return
  }
  func.func @transform_0(%arg0: i32, %arg1: i32, %arg2: i32) -> (i32, i32) {
    %c0_i32 = arith.constant 0 : i32
    return %arg0, %arg2 : i32, i32
  }
  func.func @transform_1(%arg0: i32, %arg1: i32, %arg2: i32) -> (i32, i32) {
    %c0_i32 = arith.constant 0 : i32
    return %arg2, %arg1 : i32, i32
  }
  func.func @transform_2(%arg0: i32, %arg1: i32, %arg2: i32) -> (i32, i32) {
    %c0_i32 = arith.constant 0 : i32
    %c0_i32_0 = arith.constant 0 : i32
    return %c0_i32, %arg1 : i32, i32
  }
  func.func @transform_3(%arg0: i32, %arg1: i32, %arg2: i32) -> (i32, i32) {
    %c0_i32 = arith.constant 0 : i32
    return %arg0, %arg1 : i32, i32
  }
}

module attributes {stable_mosaic.version = 11 : i64} {
  func.func @_fused_gemm_kernel(%arg0: i32, %arg1: i32, %arg2: i32, %arg3: memref<8x1024xbf16, #tpu.memory_space<vmem>>, %arg4: memref<1024x128xbf16, #tpu.memory_space<vmem>>, %arg5: memref<3x128xf32, #tpu.memory_space<vmem>>, %arg6: memref<8x128xf32, #tpu.memory_space<vmem>>) attributes {dimension_semantics = [#tpu.dimension_semantics<parallel>, #tpu.dimension_semantics<parallel>, #tpu.dimension_semantics<arbitrary>], iteration_bounds = array<i64: 1, 1, 2>, scalar_prefetch = 0 : i64, scratch_operands = 0 : i64, tpu.core_type = #tpu.core_type<tc>, window_params = [{transform_indices = @transform_0, window_bounds = array<i64: 8, 1024>}, {transform_indices = @transform_1, window_bounds = array<i64: 1024, 128>}, {transform_indices = @transform_2, window_bounds = array<i64: 3, 128>}, {transform_indices = @transform_3, window_bounds = array<i64: 8, 128>}]} {
    %c0_i32 = arith.constant 0 : i32
    %0 = arith.cmpi eq, %arg2, %c0_i32 : i32
    %1 = arith.extui %0 : i1 to i32
    %c0_i32_0 = arith.constant 0 : i32
    %2 = arith.cmpi ne, %1, %c0_i32_0 : i32
    scf.if %2 {
      %cst_9 = arith.constant 0.000000e+00 : f32
      %12 = vector.broadcast %cst_9 : f32 to vector<8x128xf32>
      %c0_10 = arith.constant 0 : index
      %c0_11 = arith.constant 0 : index
      %13 = vector.load %arg6[%c0_10, %c0_11] : memref<8x128xf32, #tpu.memory_space<vmem>>, vector<8x128xf32>
      tpu.vector_store %arg6[%c0_10, %c0_11], %12 {strides = array<i32>} : memref<8x128xf32, #tpu.memory_space<vmem>>, vector<8x128xf32>,
    } else {
    }
    %c0 = arith.constant 0 : index
    %c0_1 = arith.constant 0 : index
    %3 = vector.load %arg6[%c0, %c0_1] : memref<8x128xf32, #tpu.memory_space<vmem>>, vector<8x128xf32>
    %c0_2 = arith.constant 0 : index
    %c0_3 = arith.constant 0 : index
    %4 = vector.load %arg3[%c0_2, %c0_3] : memref<8x1024xbf16, #tpu.memory_space<vmem>>, vector<8x1024xbf16>
    %c0_4 = arith.constant 0 : index
    %c0_5 = arith.constant 0 : index
    %5 = vector.load %arg4[%c0_4, %c0_5] : memref<1024x128xbf16, #tpu.memory_space<vmem>>, vector<1024x128xbf16>
    %cst = arith.constant dense<0.000000e+00> : vector<8x128xf32>
    %6 = tpu.matmul %4, %5, %cst {dimension_numbers = #tpu.dot_dimension_numbers<[1], [0], [0], [1], [0, 0, 1, 1], [], []>} : vector<8x1024xbf16>, vector<1024x128xbf16>, vector<8x128xf32> -> vector<8x128xf32>
    %7 = arith.addf %3, %6 : vector<8x128xf32>
    %c0_6 = arith.constant 0 : index
    %c0_7 = arith.constant 0 : index
    %8 = vector.load %arg6[%c0_6, %c0_7] : memref<8x128xf32, #tpu.memory_space<vmem>>, vector<8x128xf32>
    tpu.vector_store %arg6[%c0_6, %c0_7], %7 {strides = array<i32>} : memref<8x128xf32, #tpu.memory_space<vmem>>, vector<8x128xf32>,
    %c1_i32 = arith.constant 1 : i32
    %9 = arith.cmpi eq, %arg2, %c1_i32 : i32
    %10 = arith.extui %9 : i1 to i32
    %c0_i32_8 = arith.constant 0 : i32
    %11 = arith.cmpi ne, %10, %c0_i32_8 : i32
    scf.if %11 {
      %c0_9 = arith.constant 0 : index
      %c0_10 = arith.constant 0 : index
      %12 = vector.load %arg6[%c0_9, %c0_10] : memref<8x128xf32, #tpu.memory_space<vmem>>, vector<8x128xf32>
      %c0_11 = arith.constant 0 : index
      %c0_12 = arith.constant 0 : index
      %13 = vector.load %arg5[%c0_11, %c0_12] : memref<3x128xf32, #tpu.memory_space<vmem>>, vector<1x128xf32>
      %14 = vector.broadcast %13 : vector<1x128xf32> to vector<8x128xf32>
      %15 = arith.addf %12, %14 : vector<8x128xf32>
      %c1 = arith.constant 1 : index
      %c0_13 = arith.constant 0 : index
      %16 = vector.load %arg5[%c1, %c0_13] : memref<3x128xf32, #tpu.memory_space<vmem>>, vector<1x128xf32>
      %17 = vector.broadcast %16 : vector<1x128xf32> to vector<8x128xf32>
      %18 = arith.mulf %15, %17 : vector<8x128xf32>
      %c2 = arith.constant 2 : index
      %c0_14 = arith.constant 0 : index
      %19 = vector.load %arg5[%c2, %c0_14] : memref<3x128xf32, #tpu.memory_space<vmem>>, vector<1x128xf32>
      %20 = vector.broadcast %19 : vector<1x128xf32> to vector<8x128xf32>
      %21 = arith.addf %18, %20 : vector<8x128xf32>
      %c0_15 = arith.constant 0 : index
      %c0_16 = arith.constant 0 : index
      %22 = vector.load %arg6[%c0_15, %c0_16] : memref<8x128xf32, #tpu.memory_space<vmem>>, vector<8x128xf32>
      tpu.vector_store %arg6[%c0_15, %c0_16], %21 {strides = array<i32>} : memref<8x128xf32, #tpu.memory_space<vmem>>, vector<8x128xf32>,
    } else {
    }
    return
  }
  func.func @transform_0(%arg0: i32, %arg1: i32, %arg2: i32) -> (i32, i32) {
    %c0_i32 = arith.constant 0 : i32
    return %arg0, %arg2 : i32, i32
  }
  func.func @transform_1(%arg0: i32, %arg1: i32, %arg2: i32) -> (i32, i32) {
    %c0_i32 = arith.constant 0 : i32
    return %arg2, %arg1 : i32, i32
  }
  func.func @transform_2(%arg0: i32, %arg1: i32, %arg2: i32) -> (i32, i32) {
    %c0_i32 = arith.constant 0 : i32
    %c0_i32_0 = arith.constant 0 : i32
    return %c0_i32, %arg1 : i32, i32
  }
  func.func @transform_3(%arg0: i32, %arg1: i32, %arg2: i32) -> (i32, i32) {
    %c0_i32 = arith.constant 0 : i32
    return %arg0, %arg1 : i32, i32
  }
}

</mosaic_0001>

<llo_original>
// kernel: conv1d_base_net_forward.8
$region0: #{conv1d_base_net_forward.8}
  #allocation0 [shape = 'u32[]', space=smem, size = 0x4, offset = 0x4, fixed_abs, tag = 'smem constant byte address 0x4 - core index']
  #allocation1 [shape = 'u32[144,128]{1,0:T(1,128)}', space=vmem, size = 0x12000, scoped, tag = 'internal scratch']
  %s0 = inlined_call_operand.vmem [shape: bf16[344,512], index: 0, kind: input, shape index: {}]
  %s1 = inlined_call_operand.vmem [shape: bf16[512,128], index: 1, kind: input, shape index: {}]
  %s2 = inlined_call_operand.vmem [shape: f32[3,128], index: 2, kind: input, shape index: {}]
  %s3 = inlined_call_operand.vmem [shape: f32[344,128], index: 3, kind: output, shape index: {}]
  %s4 = sld [smem:[#allocation0]]
  $region30: #{conv1d_base_net_forward.8} parent=0
    _
  %s6 = ssub.s32 1, %s4
  %s7 = scalar_select 0, %s6, %s4
  // Predicated region
  $region2: #{conv1d_base_net_forward.8} parent=0 // pred_check
    _
  $region3: #{conv1d_base_net_forward.8} parent=0 // pred_check_branch
    %9 = sbr.rel (0) target = $region5
  $region4: #{conv1d_base_net_forward.8} parent=0 // pred_region
    _
  $region5: #{conv1d_base_net_forward.8} parent=0 // pred_fallthru
    _
  // Predicated region
  $region6: #{conv1d_base_net_forward.8} parent=0 // pred_check
    _
  $region7: #{conv1d_base_net_forward.8} parent=0 // pred_check_branch
    %11 = sbr.rel (0) target = $region9
  $region8: #{conv1d_base_net_forward.8} parent=0 // pred_region
    _
  $region9: #{conv1d_base_net_forward.8} parent=0 // pred_fallthru
    _
  // Predicated region
  $region10: #{conv1d_base_net_forward.8} parent=0 // pred_check
    _
  $region11: #{conv1d_base_net_forward.8} parent=0 // pred_check_branch
    %13 = sbr.rel (0) target = $region13
  $region12: #{conv1d_base_net_forward.8} parent=0 // pred_region
    _
  $region13: #{conv1d_base_net_forward.8} parent=0 // pred_fallthru
    _
  %p15 = scmp.eq.s32.totalorder 0, 0
  // Predicated region
  $region14: #{conv1d_base_net_forward.8} parent=0 // pred_check
    %p16 = pneg %p15
  $region15: #{conv1d_base_net_forward.8} parent=0 // pred_check_branch
    %18 = sbr.rel (%p16) target = $region17
  $region16: #{conv1d_base_net_forward.8} parent=0 // pred_region
    %19 = vst [vmem:[%s3] sm:$0xff] 0.0
    %20 = vst [vmem:[%s3 + $0x8] sm:$0xff] 0.0
    %21 = vst [vmem:[%s3 + $0x10] sm:$0xff] 0.0
    %22 = vst [vmem:[%s3 + $0x18] sm:$0xff] 0.0
    %23 = vst [vmem:[%s3 + $0x20] sm:$0xff] 0.0
    %24 = vst [vmem:[%s3 + $0x28] sm:$0xff] 0.0
    %25 = vst [vmem:[%s3 + $0x30] sm:$0xff] 0.0
    %26 = vst [vmem:[%s3 + $0x38] sm:$0xff] 0.0
    %27 = vst [vmem:[%s3 + $0x40] sm:$0xff] 0.0
    %28 = vst [vmem:[%s3 + $0x48] sm:$0xff] 0.0
    %29 = vst [vmem:[%s3 + $0x50] sm:$0xff] 0.0
    %30 = vst [vmem:[%s3 + $0x58] sm:$0xff] 0.0
    %31 = vst [vmem:[%s3 + $0x60] sm:$0xff] 0.0
    %32 = vst [vmem:[%s3 + $0x68] sm:$0xff] 0.0
    %33 = vst [vmem:[%s3 + $0x70] sm:$0xff] 0.0
    %34 = vst [vmem:[%s3 + $0x78] sm:$0xff] 0.0
    %35 = vst [vmem:[%s3 + $0x80] sm:$0xff] 0.0
    %36 = vst [vmem:[%s3 + $0x88] sm:$0xff] 0.0
    %37 = vst [vmem:[%s3 + $0x90] sm:$0xff] 0.0
    %38 = vst [vmem:[%s3 + $0x98] sm:$0xff] 0.0
    %39 = vst [vmem:[%s3 + $0xa0] sm:$0xff] 0.0
    %40 = vst [vmem:[%s3 + $0xa8] sm:$0xff] 0.0
    %41 = vst [vmem:[%s3 + $0xb0] sm:$0xff] 0.0
    %42 = vst [vmem:[%s3 + $0xb8] sm:$0xff] 0.0
    %43 = vst [vmem:[%s3 + $0xc0] sm:$0xff] 0.0
    %44 = vst [vmem:[%s3 + $0xc8] sm:$0xff] 0.0
    %45 = vst [vmem:[%s3 + $0xd0] sm:$0xff] 0.0
    %46 = vst [vmem:[%s3 + $0xd8] sm:$0xff] 0.0
    %47 = vst [vmem:[%s3 + $0xe0] sm:$0xff] 0.0
    %48 = vst [vmem:[%s3 + $0xe8] sm:$0xff] 0.0
    %49 = vst [vmem:[%s3 + $0xf0] sm:$0xff] 0.0
    %50 = vst [vmem:[%s3 + $0xf8] sm:$0xff] 0.0
    %51 = vst [vmem:[%s3 + $0x100] sm:$0xff] 0.0
    %52 = vst [vmem:[%s3 + $0x108] sm:$0xff] 0.0
    %53 = vst [vmem:[%s3 + $0x110] sm:$0xff] 0.0
    %54 = vst [vmem:[%s3 + $0x118] sm:$0xff] 0.0
    %55 = vst [vmem:[%s3 + $0x120] sm:$0xff] 0.0
    %56 = vst [vmem:[%s3 + $0x128] sm:$0xff] 0.0
    %57 = vst [vmem:[%s3 + $0x130] sm:$0xff] 0.0
    %58 = vst [vmem:[%s3 + $0x138] sm:$0xff] 0.0
    %59 = vst [vmem:[%s3 + $0x140] sm:$0xff] 0.0
    %60 = vst [vmem:[%s3 + $0x148] sm:$0xff] 0.0
    %61 = vst [vmem:[%s3 + $0x150] sm:$0xff] 0.0
  $region17: #{conv1d_base_net_forward.8} parent=0 // pred_fallthru
    _
  %v62 = vld [vmem:[%s3] sm:$0xff]
  %v63 = vld [vmem:[%s3 + $0x8] sm:$0xff]
  %v64 = vld [vmem:[%s3 + $0x10] sm:$0xff]
  %v65 = vld [vmem:[%s3 + $0x18] sm:$0xff]
  %v66 = vld [vmem:[%s3 + $0x20] sm:$0xff]
  %v67 = vld [vmem:[%s3 + $0x28] sm:$0xff]
  %v68 = vld [vmem:[%s3 + $0x30] sm:$0xff]
  %v69 = vld [vmem:[%s3 + $0x38] sm:$0xff]
  %v70 = vld [vmem:[%s3 + $0x40] sm:$0xff]
  %v71 = vld [vmem:[%s3 + $0x48] sm:$0xff]
  %v72 = vld [vmem:[%s3 + $0x50] sm:$0xff]
  %v73 = vld [vmem:[%s3 + $0x58] sm:$0xff]
  %v74 = vld [vmem:[%s3 + $0x60] sm:$0xff]
  %v75 = vld [vmem:[%s3 + $0x68] sm:$0xff]
  %v76 = vld [vmem:[%s3 + $0x70] sm:$0xff]
  %v77 = vld [vmem:[%s3 + $0x78] sm:$0xff]
  %v78 = vld [vmem:[%s3 + $0x80] sm:$0xff]
  %v79 = vld [vmem:[%s3 + $0x88] sm:$0xff]
  %v80 = vld [vmem:[%s3 + $0x90] sm:$0xff]
  %v81 = vld [vmem:[%s3 + $0x98] sm:$0xff]
  %v82 = vld [vmem:[%s3 + $0xa0] sm:$0xff]
  %v83 = vld [vmem:[%s3 + $0xa8] sm:$0xff]
  %v84 = vld [vmem:[%s3 + $0xb0] sm:$0xff]
  %v85 = vld [vmem:[%s3 + $0xb8] sm:$0xff]
  %v86 = vld [vmem:[%s3 + $0xc0] sm:$0xff]
  %v87 = vld [vmem:[%s3 + $0xc8] sm:$0xff]
  %v88 = vld [vmem:[%s3 + $0xd0] sm:$0xff]
  %v89 = vld [vmem:[%s3 + $0xd8] sm:$0xff]
  %v90 = vld [vmem:[%s3 + $0xe0] sm:$0xff]
  %v91 = vld [vmem:[%s3 + $0xe8] sm:$0xff]
  %v92 = vld [vmem:[%s3 + $0xf0] sm:$0xff]
  %v93 = vld [vmem:[%s3 + $0xf8] sm:$0xff]
  %v94 = vld [vmem:[%s3 + $0x100] sm:$0xff]
  %v95 = vld [vmem:[%s3 + $0x108] sm:$0xff]
  %v96 = vld [vmem:[%s3 + $0x110] sm:$0xff]
  %v97 = vld [vmem:[%s3 + $0x118] sm:$0xff]
  %v98 = vld [vmem:[%s3 + $0x120] sm:$0xff]
  %v99 = vld [vmem:[%s3 + $0x128] sm:$0xff]
  %v100 = vld [vmem:[%s3 + $0x130] sm:$0xff]
  %v101 = vld [vmem:[%s3 + $0x138] sm:$0xff]
  %v102 = vld [vmem:[%s3 + $0x140] sm:$0xff]
  %v103 = vld [vmem:[%s3 + $0x148] sm:$0xff]
  %v104 = vld [vmem:[%s3 + $0x150] sm:$0xff]
  %v105 = vld [vmem:[%s0] sm:$0xff]
  %v106 = vld [vmem:[%s0 + $0x8] sm:$0xff]
  %v107 = vld [vmem:[%s0 + $0x10] sm:$0xff]
  %v108 = vld [vmem:[%s0 + $0x18] sm:$0xff]
  %v109 = vld [vmem:[%s0 + $0x20] sm:$0xff]
  %v110 = vld [vmem:[%s0 + $0x28] sm:$0xff]
  %v111 = vld [vmem:[%s0 + $0x30] sm:$0xff]
  %v112 = vld [vmem:[%s0 + $0x38] sm:$0xff]
  %v113 = vld [vmem:[%s0 + $0x40] sm:$0xff]
  %v114 = vld [vmem:[%s0 + $0x48] sm:$0xff]
  %v115 = vld [vmem:[%s0 + $0x50] sm:$0xff]
  %v116 = vld [vmem:[%s0 + $0x58] sm:$0xff]
  %v117 = vld [vmem:[%s0 + $0x60] sm:$0xff]
  %v118 = vld [vmem:[%s0 + $0x68] sm:$0xff]
  %v119 = vld [vmem:[%s0 + $0x70] sm:$0xff]
  %v120 = vld [vmem:[%s0 + $0x78] sm:$0xff]
  %v121 = vld [vmem:[%s0 + $0x80] sm:$0xff]
  %v122 = vld [vmem:[%s0 + $0x88] sm:$0xff]
  %v123 = vld [vmem:[%s0 + $0x90] sm:$0xff]
  %v124 = vld [vmem:[%s0 + $0x98] sm:$0xff]
  %v125 = vld [vmem:[%s0 + $0xa0] sm:$0xff]
  %v126 = vld [vmem:[%s0 + $0xa8] sm:$0xff]
  %v127 = vld [vmem:[%s0 + $0xb0] sm:$0xff]
  %v128 = vld [vmem:[%s0 + $0xb8] sm:$0xff]
  %v129 = vld [vmem:[%s0 + $0xc0] sm:$0xff]
  %v130 = vld [vmem:[%s0 + $0xc8] sm:$0xff]
  %v131 = vld [vmem:[%s0 + $0xd0] sm:$0xff]
  %v132 = vld [vmem:[%s0 + $0xd8] sm:$0xff]
  %v133 = vld [vmem:[%s0 + $0xe0] sm:$0xff]
  %v134 = vld [vmem:[%s0 + $0xe8] sm:$0xff]
  %v135 = vld [vmem:[%s0 + $0xf0] sm:$0xff]
  %v136 = vld [vmem:[%s0 + $0xf8] sm:$0xff]
  %v137 = vld [vmem:[%s0 + $0x100] sm:$0xff]
  %v138 = vld [vmem:[%s0 + $0x108] sm:$0xff]
  %v139 = vld [vmem:[%s0 + $0x110] sm:$0xff]
  %v140 = vld [vmem:[%s0 + $0x118] sm:$0xff]
  %v141 = vld [vmem:[%s0 + $0x120] sm:$0xff]
  %v142 = vld [vmem:[%s0 + $0x128] sm:$0xff]
  %v143 = vld [vmem:[%s0 + $0x130] sm:$0xff]
  %v144 = vld [vmem:[%s0 + $0x138] sm:$0xff]
  %v145 = vld [vmem:[%s0 + $0x140] sm:$0xff]
  %v146 = vld [vmem:[%s0 + $0x148] sm:$0xff]
  %v147 = vld [vmem:[%s0 + $0x150] sm:$0xff]
  %v148 = vld [vmem:[%s0 + $0x158] sm:$0xff]
  %v149 = vld [vmem:[%s0 + $0x160] sm:$0xff]
  %v150 = vld [vmem:[%s0 + $0x168] sm:$0xff]
  %v151 = vld [vmem:[%s0 + $0x170] sm:$0xff]
  %v152 = vld [vmem:[%s0 + $0x178] sm:$0xff]
  %v153 = vld [vmem:[%s0 + $0x180] sm:$0xff]
  %v154 = vld [vmem:[%s0 + $0x188] sm:$0xff]
  %v155 = vld [vmem:[%s0 + $0x190] sm:$0xff]
  %v156 = vld [vmem:[%s0 + $0x198] sm:$0xff]
  %v157 = vld [vmem:[%s0 + $0x1a0] sm:$0xff]
  %v158 = vld [vmem:[%s0 + $0x1a8] sm:$0xff]
  %v159 = vld [vmem:[%s0 + $0x1b0] sm:$0xff]
  %v160 = vld [vmem:[%s0 + $0x1b8] sm:$0xff]
  %v161 = vld [vmem:[%s0 + $0x1c0] sm:$0xff]
  %v162 = vld [vmem:[%s0 + $0x1c8] sm:$0xff]
  %v163 = vld [vmem:[%s0 + $0x1d0] sm:$0xff]
  %v164 = vld [vmem:[%s0 + $0x1d8] sm:$0xff]
  %v165 = vld [vmem:[%s0 + $0x1e0] sm:$0xff]
  %v166 = vld [vmem:[%s0 + $0x1e8] sm:$0xff]
  %v167 = vld [vmem:[%s0 + $0x1f0] sm:$0xff]
  %v168 = vld [vmem:[%s0 + $0x1f8] sm:$0xff]
  %v169 = vld [vmem:[%s0 + $0x200] sm:$0xff]
  %v170 = vld [vmem:[%s0 + $0x208] sm:$0xff]
  %v171 = vld [vmem:[%s0 + $0x210] sm:$0xff]
  %v172 = vld [vmem:[%s0 + $0x218] sm:$0xff]
  %v173 = vld [vmem:[%s0 + $0x220] sm:$0xff]
  %v174 = vld [vmem:[%s0 + $0x228] sm:$0xff]
  %v175 = vld [vmem:[%s0 + $0x230] sm:$0xff]
  %v176 = vld [vmem:[%s0 + $0x238] sm:$0xff]
  %v177 = vld [vmem:[%s0 + $0x240] sm:$0xff]
  %v178 = vld [vmem:[%s0 + $0x248] sm:$0xff]
  %v179 = vld [vmem:[%s0 + $0x250] sm:$0xff]
  %v180 = vld [vmem:[%s0 + $0x258] sm:$0xff]
  %v181 = vld [vmem:[%s0 + $0x260] sm:$0xff]
  %v182 = vld [vmem:[%s0 + $0x268] sm:$0xff]
  %v183 = vld [vmem:[%s0 + $0x270] sm:$0xff]
  %v184 = vld [vmem:[%s0 + $0x278] sm:$0xff]
  %v185 = vld [vmem:[%s0 + $0x280] sm:$0xff]
  %v186 = vld [vmem:[%s0 + $0x288] sm:$0xff]
  %v187 = vld [vmem:[%s0 + $0x290] sm:$0xff]
  %v188 = vld [vmem:[%s0 + $0x298] sm:$0xff]
  %v189 = vld [vmem:[%s0 + $0x2a0] sm:$0xff]
  %v190 = vld [vmem:[%s0 + $0x2a8] sm:$0xff]
  %v191 = vld [vmem:[%s1] sm:$0xf]
  %v192 = vld [vmem:[%s1 + $0x4] sm:$0xf]
  %v193 = vld [vmem:[%s1 + $0x8] sm:$0xf]
  %v194 = vld [vmem:[%s1 + $0xc] sm:$0xf]
  %v195 = vld [vmem:[%s1 + $0x10] sm:$0xf]
  %v196 = vld [vmem:[%s1 + $0x14] sm:$0xf]
  %v197 = vld [vmem:[%s1 + $0x18] sm:$0xf]
  %v198 = vld [vmem:[%s1 + $0x1c] sm:$0xf]
  %v199 = vld [vmem:[%s1 + $0x20] sm:$0xf]
  %v200 = vld [vmem:[%s1 + $0x24] sm:$0xf]
  %v201 = vld [vmem:[%s1 + $0x28] sm:$0xf]
  %v202 = vld [vmem:[%s1 + $0x2c] sm:$0xf]
  %v203 = vld [vmem:[%s1 + $0x30] sm:$0xf]
  %v204 = vld [vmem:[%s1 + $0x34] sm:$0xf]
  %v205 = vld [vmem:[%s1 + $0x38] sm:$0xf]
  %v206 = vld [vmem:[%s1 + $0x3c] sm:$0xf]
  %v207 = vld [vmem:[%s1 + $0x40] sm:$0xf]
  %v208 = vld [vmem:[%s1 + $0x44] sm:$0xf]
  %v209 = vld [vmem:[%s1 + $0x48] sm:$0xf]
  %v210 = vld [vmem:[%s1 + $0x4c] sm:$0xf]
  %v211 = vld [vmem:[%s1 + $0x50] sm:$0xf]
  %v212 = vld [vmem:[%s1 + $0x54] sm:$0xf]
  %v213 = vld [vmem:[%s1 + $0x58] sm:$0xf]
  %v214 = vld [vmem:[%s1 + $0x5c] sm:$0xf]
  %v215 = vld [vmem:[%s1 + $0x60] sm:$0xf]
  %v216 = vld [vmem:[%s1 + $0x64] sm:$0xf]
  %v217 = vld [vmem:[%s1 + $0x68] sm:$0xf]
  %v218 = vld [vmem:[%s1 + $0x6c] sm:$0xf]
  %v219 = vld [vmem:[%s1 + $0x70] sm:$0xf]
  %v220 = vld [vmem:[%s1 + $0x74] sm:$0xf]
  %v221 = vld [vmem:[%s1 + $0x78] sm:$0xf]
  %v222 = vld [vmem:[%s1 + $0x7c] sm:$0xf]
  %v223 = vld [vmem:[%s1 + $0x80] sm:$0xf]
  %v224 = vld [vmem:[%s1 + $0x84] sm:$0xf]
  %v225 = vld [vmem:[%s1 + $0x88] sm:$0xf]
  %v226 = vld [vmem:[%s1 + $0x8c] sm:$0xf]
  %v227 = vld [vmem:[%s1 + $0x90] sm:$0xf]
  %v228 = vld [vmem:[%s1 + $0x94] sm:$0xf]
  %v229 = vld [vmem:[%s1 + $0x98] sm:$0xf]
  %v230 = vld [vmem:[%s1 + $0x9c] sm:$0xf]
  %v231 = vld [vmem:[%s1 + $0xa0] sm:$0xf]
  %v232 = vld [vmem:[%s1 + $0xa4] sm:$0xf]
  %v233 = vld [vmem:[%s1 + $0xa8] sm:$0xf]
  %v234 = vld [vmem:[%s1 + $0xac] sm:$0xf]
  %v235 = vld [vmem:[%s1 + $0xb0] sm:$0xf]
  %v236 = vld [vmem:[%s1 + $0xb4] sm:$0xf]
  %v237 = vld [vmem:[%s1 + $0xb8] sm:$0xf]
  %v238 = vld [vmem:[%s1 + $0xbc] sm:$0xf]
  %v239 = vld [vmem:[%s1 + $0xc0] sm:$0xf]
  %v240 = vld [vmem:[%s1 + $0xc4] sm:$0xf]
  %v241 = vld [vmem:[%s1 + $0xc8] sm:$0xf]
  %v242 = vld [vmem:[%s1 + $0xcc] sm:$0xf]
  %v243 = vld [vmem:[%s1 + $0xd0] sm:$0xf]
  %v244 = vld [vmem:[%s1 + $0xd4] sm:$0xf]
  %v245 = vld [vmem:[%s1 + $0xd8] sm:$0xf]
  %v246 = vld [vmem:[%s1 + $0xdc] sm:$0xf]
  %v247 = vld [vmem:[%s1 + $0xe0] sm:$0xf]
  %v248 = vld [vmem:[%s1 + $0xe4] sm:$0xf]
  %v249 = vld [vmem:[%s1 + $0xe8] sm:$0xf]
  %v250 = vld [vmem:[%s1 + $0xec] sm:$0xf]
  %v251 = vld [vmem:[%s1 + $0xf0] sm:$0xf]
  %v252 = vld [vmem:[%s1 + $0xf4] sm:$0xf]
  %v253 = vld [vmem:[%s1 + $0xf8] sm:$0xf]
  %v254 = vld [vmem:[%s1 + $0xfc] sm:$0xf]
  %v341 = vunpack.c.l.b16 %v105
  %v342 = vunpack.c.h.b16 %v105
  %v343 = vunpack.c.l.b16 %v106
  %v344 = vunpack.c.h.b16 %v106
  %v345 = vunpack.c.l.b16 %v107
  %v346 = vunpack.c.h.b16 %v107
  %v347 = vunpack.c.l.b16 %v108
  %v348 = vunpack.c.h.b16 %v108
  %v349 = vunpack.c.l.b16 %v109
  %v350 = vunpack.c.h.b16 %v109
  %v351 = vunpack.c.l.b16 %v110
  %v352 = vunpack.c.h.b16 %v110
  %v353 = vunpack.c.l.b16 %v111
  %v354 = vunpack.c.h.b16 %v111
  %v355 = vunpack.c.l.b16 %v112
  %v356 = vunpack.c.h.b16 %v112
  %v357 = vunpack.c.l.b16 %v113
  %v358 = vunpack.c.h.b16 %v113
  %v359 = vunpack.c.l.b16 %v114
  %v360 = vunpack.c.h.b16 %v114
  %v361 = vunpack.c.l.b16 %v115
  %v362 = vunpack.c.h.b16 %v115
  %v363 = vunpack.c.l.b16 %v116
  %v364 = vunpack.c.h.b16 %v116
  %v365 = vunpack.c.l.b16 %v117
  %v366 = vunpack.c.h.b16 %v117
  %v367 = vunpack.c.l.b16 %v118
  %v368 = vunpack.c.h.b16 %v118
  %v369 = vunpack.c.l.b16 %v119
  %v370 = vunpack.c.h.b16 %v119
  %v371 = vunpack.c.l.b16 %v120
  %v372 = vunpack.c.h.b16 %v120
  %v373 = vunpack.c.l.b16 %v121
  %v374 = vunpack.c.h.b16 %v121
  %v375 = vunpack.c.l.b16 %v122
  %v376 = vunpack.c.h.b16 %v122
  %v377 = vunpack.c.l.b16 %v123
  %v378 = vunpack.c.h.b16 %v123
  %v379 = vunpack.c.l.b16 %v124
  %v380 = vunpack.c.h.b16 %v124
  %v381 = vunpack.c.l.b16 %v125
  %v382 = vunpack.c.h.b16 %v125
  %v383 = vunpack.c.l.b16 %v126
  %v384 = vunpack.c.h.b16 %v126
  %v385 = vunpack.c.l.b16 %v127
  %v386 = vunpack.c.h.b16 %v127
  %v387 = vunpack.c.l.b16 %v128
  %v388 = vunpack.c.h.b16 %v128
  %v389 = vunpack.c.l.b16 %v129
  %v390 = vunpack.c.h.b16 %v129
  %v391 = vunpack.c.l.b16 %v130
  %v392 = vunpack.c.h.b16 %v130
  %v393 = vunpack.c.l.b16 %v131
  %v394 = vunpack.c.h.b16 %v131
  %v395 = vunpack.c.l.b16 %v132
  %v396 = vunpack.c.h.b16 %v132
  %v397 = vunpack.c.l.b16 %v133
  %v398 = vunpack.c.h.b16 %v133
  %v399 = vunpack.c.l.b16 %v134
  %v400 = vunpack.c.h.b16 %v134
  %v401 = vunpack.c.l.b16 %v135
  %v402 = vunpack.c.h.b16 %v135
  %v403 = vunpack.c.l.b16 %v136
  %v404 = vunpack.c.h.b16 %v136
  %v405 = vunpack.c.l.b16 %v137
  %v406 = vunpack.c.h.b16 %v137
  %v407 = vunpack.c.l.b16 %v138
  %v408 = vunpack.c.h.b16 %v138
  %v409 = vunpack.c.l.b16 %v139
  %v410 = vunpack.c.h.b16 %v139
  %v411 = vunpack.c.l.b16 %v140
  %v412 = vunpack.c.h.b16 %v140
  %v413 = vunpack.c.l.b16 %v141
  %v414 = vunpack.c.h.b16 %v141
  %v415 = vunpack.c.l.b16 %v142
  %v416 = vunpack.c.h.b16 %v142
  %v417 = vunpack.c.l.b16 %v143
  %v418 = vunpack.c.h.b16 %v143
  %v419 = vunpack.c.l.b16 %v144
  %v420 = vunpack.c.h.b16 %v144
  %v421 = vunpack.c.l.b16 %v145
  %v422 = vunpack.c.h.b16 %v145
  %v423 = vunpack.c.l.b16 %v146
  %v424 = vunpack.c.h.b16 %v146
  %v425 = vunpack.c.l.b16 %v147
  %v426 = vunpack.c.h.b16 %v147
  %v427 = vunpack.c.l.b16 %v148
  %v428 = vunpack.c.h.b16 %v148
  %v429 = vunpack.c.l.b16 %v149
  %v430 = vunpack.c.h.b16 %v149
  %v431 = vunpack.c.l.b16 %v150
  %v432 = vunpack.c.h.b16 %v150
  %v433 = vunpack.c.l.b16 %v151
  %v434 = vunpack.c.h.b16 %v151
  %v435 = vunpack.c.l.b16 %v152
  %v436 = vunpack.c.h.b16 %v152
  %v437 = vunpack.c.l.b16 %v153
  %v438 = vunpack.c.h.b16 %v153
  %v439 = vunpack.c.l.b16 %v154
  %v440 = vunpack.c.h.b16 %v154
  %v441 = vunpack.c.l.b16 %v155
  %v442 = vunpack.c.h.b16 %v155
  %v443 = vunpack.c.l.b16 %v156
  %v444 = vunpack.c.h.b16 %v156
  %v445 = vunpack.c.l.b16 %v157
  %v446 = vunpack.c.h.b16 %v157
  %v447 = vunpack.c.l.b16 %v158
  %v448 = vunpack.c.h.b16 %v158
  %v449 = vunpack.c.l.b16 %v159
  %v450 = vunpack.c.h.b16 %v159
  %v451 = vunpack.c.l.b16 %v160
  %v452 = vunpack.c.h.b16 %v160
  %v453 = vunpack.c.l.b16 %v161
  %v454 = vunpack.c.h.b16 %v161
  %v455 = vunpack.c.l.b16 %v162
  %v456 = vunpack.c.h.b16 %v162
  %v457 = vunpack.c.l.b16 %v163
  %v458 = vunpack.c.h.b16 %v163
  %v459 = vunpack.c.l.b16 %v164
  %v460 = vunpack.c.h.b16 %v164
  %v461 = vunpack.c.l.b16 %v165
  %v462 = vunpack.c.h.b16 %v165
  %v463 = vunpack.c.l.b16 %v166
  %v464 = vunpack.c.h.b16 %v166
  %v465 = vunpack.c.l.b16 %v167
  %v466 = vunpack.c.h.b16 %v167
  %v467 = vunpack.c.l.b16 %v168
  %v468 = vunpack.c.h.b16 %v168
  %v469 = vunpack.c.l.b16 %v169
  %v470 = vunpack.c.h.b16 %v169
  %v471 = vunpack.c.l.b16 %v170
  %v472 = vunpack.c.h.b16 %v170
  %v473 = vunpack.c.l.b16 %v171
  %v474 = vunpack.c.h.b16 %v171
  %v475 = vunpack.c.l.b16 %v172
  %v476 = vunpack.c.h.b16 %v172
  %v477 = vunpack.c.l.b16 %v173
  %v478 = vunpack.c.h.b16 %v173
  %v479 = vunpack.c.l.b16 %v174
  %v480 = vunpack.c.h.b16 %v174
  %v481 = vunpack.c.l.b16 %v175
  %v482 = vunpack.c.h.b16 %v175
  %v483 = vunpack.c.l.b16 %v176
  %v484 = vunpack.c.h.b16 %v176
  %v485 = vunpack.c.l.b16 %v177
  %v486 = vunpack.c.h.b16 %v177
  %v487 = vunpack.c.l.b16 %v178
  %v488 = vunpack.c.h.b16 %v178
  %v489 = vunpack.c.l.b16 %v179
  %v490 = vunpack.c.h.b16 %v179
  %v491 = vunpack.c.l.b16 %v180
  %v492 = vunpack.c.h.b16 %v180
  %v493 = vunpack.c.l.b16 %v181
  %v494 = vunpack.c.h.b16 %v181
  %v495 = vunpack.c.l.b16 %v182
  %v496 = vunpack.c.h.b16 %v182
  %v497 = vunpack.c.l.b16 %v183
  %v498 = vunpack.c.h.b16 %v183
  %v499 = vunpack.c.l.b16 %v184
  %v500 = vunpack.c.h.b16 %v184
  %v501 = vunpack.c.l.b16 %v185
  %v502 = vunpack.c.h.b16 %v185
  %v503 = vunpack.c.l.b16 %v186
  %v504 = vunpack.c.h.b16 %v186
  %v505 = vunpack.c.l.b16 %v187
  %v506 = vunpack.c.h.b16 %v187
  %v507 = vunpack.c.l.b16 %v188
  %v508 = vunpack.c.h.b16 %v188
  %v509 = vunpack.c.l.b16 %v189
  %v510 = vunpack.c.h.b16 %v189
  %v511 = vunpack.c.l.b16 %v190
  %v512 = vunpack.c.h.b16 %v190
  %v513 = vpack.c.b16 %v345, %v341
  %v514 = vpack.c.b16 %v346, %v342
  %v515 = vpack.c.b16 %v347, %v343
  %v516 = vpack.c.b16 %v348, %v344
  %v517 = vpack.c.b16 %v353, %v349
  %v518 = vpack.c.b16 %v354, %v350
  %v519 = vpack.c.b16 %v355, %v351
  %v520 = vpack.c.b16 %v356, %v352
  %v521 = vpack.c.b16 %v361, %v357
  %v522 = vpack.c.b16 %v362, %v358
  %v523 = vpack.c.b16 %v363, %v359
  %v524 = vpack.c.b16 %v364, %v360
  %v525 = vpack.c.b16 %v369, %v365
  %v526 = vpack.c.b16 %v370, %v366
  %v527 = vpack.c.b16 %v371, %v367
  %v528 = vpack.c.b16 %v372, %v368
  %v529 = vpack.c.b16 %v377, %v373
  %v530 = vpack.c.b16 %v378, %v374
  %v531 = vpack.c.b16 %v379, %v375
  %v532 = vpack.c.b16 %v380, %v376
  %v533 = vpack.c.b16 %v385, %v381
  %v534 = vpack.c.b16 %v386, %v382
  %v535 = vpack.c.b16 %v387, %v383
  %v536 = vpack.c.b16 %v388, %v384
  %v537 = vpack.c.b16 %v393, %v389
  %v538 = vpack.c.b16 %v394, %v390
  %v539 = vpack.c.b16 %v395, %v391
  %v540 = vpack.c.b16 %v396, %v392
  %v541 = vpack.c.b16 %v401, %v397
  %v542 = vpack.c.b16 %v402, %v398
  %v543 = vpack.c.b16 %v403, %v399
  %v544 = vpack.c.b16 %v404, %v400
  %v545 = vpack.c.b16 %v409, %v405
  %v546 = vpack.c.b16 %v410, %v406
  %v547 = vpack.c.b16 %v411, %v407
  %v548 = vpack.c.b16 %v412, %v408
  %v549 = vpack.c.b16 %v417, %v413
  %v550 = vpack.c.b16 %v418, %v414
  %v551 = vpack.c.b16 %v419, %v415
  %v552 = vpack.c.b16 %v420, %v416
  %v553 = vpack.c.b16 %v425, %v421
  %v554 = vpack.c.b16 %v426, %v422
  %v555 = vpack.c.b16 %v427, %v423
  %v556 = vpack.c.b16 %v428, %v424
  %v557 = vpack.c.b16 %v433, %v429
  %v558 = vpack.c.b16 %v434, %v430
  %v559 = vpack.c.b16 %v435, %v431
  %v560 = vpack.c.b16 %v436, %v432
  %v561 = vpack.c.b16 %v441, %v437
  %v562 = vpack.c.b16 %v442, %v438
  %v563 = vpack.c.b16 %v443, %v439
  %v564 = vpack.c.b16 %v444, %v440
  %v565 = vpack.c.b16 %v449, %v445
  %v566 = vpack.c.b16 %v450, %v446
  %v567 = vpack.c.b16 %v451, %v447
  %v568 = vpack.c.b16 %v452, %v448
  %v569 = vpack.c.b16 %v457, %v453
  %v570 = vpack.c.b16 %v458, %v454
  %v571 = vpack.c.b16 %v459, %v455
  %v572 = vpack.c.b16 %v460, %v456
  %v573 = vpack.c.b16 %v465, %v461
  %v574 = vpack.c.b16 %v466, %v462
  %v575 = vpack.c.b16 %v467, %v463
  %v576 = vpack.c.b16 %v468, %v464
  %v577 = vpack.c.b16 %v473, %v469
  %v578 = vpack.c.b16 %v474, %v470
  %v579 = vpack.c.b16 %v475, %v471
  %v580 = vpack.c.b16 %v476, %v472
  %v581 = vpack.c.b16 %v481, %v477
  %v582 = vpack.c.b16 %v482, %v478
  %v583 = vpack.c.b16 %v483, %v479
  %v584 = vpack.c.b16 %v484, %v480
  %v585 = vpack.c.b16 %v489, %v485
  %v586 = vpack.c.b16 %v490, %v486
  %v587 = vpack.c.b16 %v491, %v487
  %v588 = vpack.c.b16 %v492, %v488
  %v589 = vpack.c.b16 %v497, %v493
  %v590 = vpack.c.b16 %v498, %v494
  %v591 = vpack.c.b16 %v499, %v495
  %v592 = vpack.c.b16 %v500, %v496
  %v593 = vpack.c.b16 %v505, %v501
  %v594 = vpack.c.b16 %v506, %v502
  %v595 = vpack.c.b16 %v507, %v503
  %v596 = vpack.c.b16 %v508, %v504
  %v597 = vpack.c.b16 %v509, %v509
  %v598 = vpack.c.b16 %v510, %v510
  %v599 = vpack.c.b16 %v511, %v511
  %v600 = vpack.c.b16 %v512, %v512
  %v753 = vunpack.c.l.b16 %v191
  %v754 = vunpack.c.l.b16 %v192
  %v755 = vunpack.c.l.b16 %v193
  %v756 = vunpack.c.l.b16 %v194
  %v757 = vunpack.c.l.b16 %v195
  %v758 = vunpack.c.l.b16 %v196
  %v759 = vunpack.c.l.b16 %v197
  %v760 = vunpack.c.l.b16 %v198
  %v761 = vunpack.c.l.b16 %v199
  %v762 = vunpack.c.l.b16 %v200
  %v763 = vunpack.c.l.b16 %v201
  %v764 = vunpack.c.l.b16 %v202
  %v765 = vunpack.c.l.b16 %v203
  %v766 = vunpack.c.l.b16 %v204
  %v767 = vunpack.c.l.b16 %v205
  %v768 = vunpack.c.l.b16 %v206
  %v769 = vunpack.c.l.b16 %v207
  %v770 = vunpack.c.l.b16 %v208
  %v771 = vunpack.c.l.b16 %v209
  %v772 = vunpack.c.l.b16 %v210
  %v773 = vunpack.c.l.b16 %v211
  %v774 = vunpack.c.l.b16 %v212
  %v775 = vunpack.c.l.b16 %v213
  %v776 = vunpack.c.l.b16 %v214
  %v777 = vunpack.c.l.b16 %v215
  %v778 = vunpack.c.l.b16 %v216
  %v779 = vunpack.c.l.b16 %v217
  %v780 = vunpack.c.l.b16 %v218
  %v781 = vunpack.c.l.b16 %v219
  %v782 = vunpack.c.l.b16 %v220
  %v783 = vunpack.c.l.b16 %v221
  %v784 = vunpack.c.l.b16 %v222
  %v785 = vunpack.c.l.b16 %v223
  %v786 = vunpack.c.l.b16 %v224
  %v787 = vunpack.c.l.b16 %v225
  %v788 = vunpack.c.l.b16 %v226
  %v789 = vunpack.c.l.b16 %v227
  %v790 = vunpack.c.l.b16 %v228
  %v791 = vunpack.c.l.b16 %v229
  %v792 = vunpack.c.l.b16 %v230
  %v793 = vunpack.c.l.b16 %v231
  %v794 = vunpack.c.l.b16 %v232
  %v795 = vunpack.c.l.b16 %v233
  %v796 = vunpack.c.l.b16 %v234
  %v797 = vunpack.c.l.b16 %v235
  %v798 = vunpack.c.l.b16 %v236
  %v799 = vunpack.c.l.b16 %v237
  %v800 = vunpack.c.l.b16 %v238
  %v801 = vunpack.c.l.b16 %v239
  %v802 = vunpack.c.l.b16 %v240
  %v803 = vunpack.c.l.b16 %v241
  %v804 = vunpack.c.l.b16 %v242
  %v805 = vunpack.c.l.b16 %v243
  %v806 = vunpack.c.l.b16 %v244
  %v807 = vunpack.c.l.b16 %v245
  %v808 = vunpack.c.l.b16 %v246
  %v809 = vunpack.c.l.b16 %v247
  %v810 = vunpack.c.l.b16 %v248
  %v811 = vunpack.c.l.b16 %v249
  %v812 = vunpack.c.l.b16 %v250
  %v813 = vunpack.c.l.b16 %v251
  %v814 = vunpack.c.l.b16 %v252
  %v815 = vunpack.c.l.b16 %v253
  %v816 = vunpack.c.l.b16 %v254
  %v817 = vpack.c.b16 %v754, %v753
  %v818 = vpack.c.b16 %v756, %v755
  %v819 = vpack.c.b16 %v758, %v757
  %v820 = vpack.c.b16 %v760, %v759
  %v821 = vpack.c.b16 %v762, %v761
  %v822 = vpack.c.b16 %v764, %v763
  %v823 = vpack.c.b16 %v766, %v765
  %v824 = vpack.c.b16 %v768, %v767
  %v825 = vpack.c.b16 %v770, %v769
  %v826 = vpack.c.b16 %v772, %v771
  %v827 = vpack.c.b16 %v774, %v773
  %v828 = vpack.c.b16 %v776, %v775
  %v829 = vpack.c.b16 %v778, %v777
  %v830 = vpack.c.b16 %v780, %v779
  %v831 = vpack.c.b16 %v782, %v781
  %v832 = vpack.c.b16 %v784, %v783
  %v833 = vpack.c.b16 %v786, %v785
  %v834 = vpack.c.b16 %v788, %v787
  %v835 = vpack.c.b16 %v790, %v789
  %v836 = vpack.c.b16 %v792, %v791
  %v837 = vpack.c.b16 %v794, %v793
  %v838 = vpack.c.b16 %v796, %v795
  %v839 = vpack.c.b16 %v798, %v797
  %v840 = vpack.c.b16 %v800, %v799
  %v841 = vpack.c.b16 %v802, %v801
  %v842 = vpack.c.b16 %v804, %v803
  %v843 = vpack.c.b16 %v806, %v805
  %v844 = vpack.c.b16 %v808, %v807
  %v845 = vpack.c.b16 %v810, %v809
  %v846 = vpack.c.b16 %v812, %v811
  %v847 = vpack.c.b16 %v814, %v813
  %v848 = vpack.c.b16 %v816, %v815
  %881 = vmatprep.subr.bf16.mxu0 0
  %882 = vmatpush1.bf16.msra.mxu0 %v817
  %883 = vmatprep.subr.bf16.mxu0 0
  %884 = vmatpush1.bf16.msra.mxu0 %v818
  %885 = vmatprep.subr.bf16.mxu0 0
  %886 = vmatpush1.bf16.msra.mxu0 %v819
  %887 = vmatprep.subr.bf16.mxu0 0
  %888 = vmatpush1.bf16.msra.mxu0 %v820
  %889 = vmatprep.subr.bf16.mxu0 0
  %890 = vmatpush1.bf16.msra.mxu0 %v821
  %891 = vmatprep.subr.bf16.mxu0 0
  %892 = vmatpush1.bf16.msra.mxu0 %v822
  %893 = vmatprep.subr.bf16.mxu0 0
  %894 = vmatpush1.bf16.msra.mxu0 %v823
  %895 = vmatprep.subr.bf16.mxu0 0
  %896 = vmatpush1.bf16.msra.mxu0 %v824
  %897 = vmatprep.subr.bf16.mxu0 0
  %898 = vmatpush1.bf16.msra.mxu0 %v825
  %899 = vmatprep.subr.bf16.mxu0 0
  %900 = vmatpush1.bf16.msra.mxu0 %v826
  %901 = vmatprep.subr.bf16.mxu0 0
  %902 = vmatpush1.bf16.msra.mxu0 %v827
  %903 = vmatprep.subr.bf16.mxu0 0
  %904 = vmatpush1.bf16.msra.mxu0 %v828
  %905 = vmatprep.subr.bf16.mxu0 0
  %906 = vmatpush1.bf16.msra.mxu0 %v829
  %907 = vmatprep.subr.bf16.mxu0 0
  %908 = vmatpush1.bf16.msra.mxu0 %v830
  %909 = vmatprep.subr.bf16.mxu0 0
  %910 = vmatpush1.bf16.msra.mxu0 %v831
  %911 = vmatprep.subr.bf16.mxu0 0
  %912 = vmatpush1.bf16.msra.mxu0 %v832
  %913 = vmatprep.mubr.bf16.mxu0 %v514
  %914 = vmatmul.mubr.bf16.gmra.mrb[0].mxu0 %v513
  %v915 = vpop.f32.mrb[0].mxu0
  %v916 = vadd.f32 0.0, %v915
  %v917 = vpop.f32.mrb[0].mxu0
  %v918 = vpop.f32.mrb[0].mxu0
  %v919 = vadd.f32 0.0, %v918
  %v920 = vpop.f32.mrb[0].mxu0
  %921 = vmatprep.mubr.bf16.mxu0 %v518
  %922 = vmatmul.mubr.bf16.gmra.mrb[0].mxu0 %v517
  %v923 = vpop.f32.mrb[0].mxu0
  %v924 = vadd.f32 0.0, %v923
  %v925 = vpop.f32.mrb[0].mxu0
  %v926 = vpop.f32.mrb[0].mxu0
  %v927 = vadd.f32 0.0, %v926
  %v928 = vpop.f32.mrb[0].mxu0
  %929 = vmatprep.mubr.bf16.mxu0 %v522
  %930 = vmatmul.mubr.bf16.gmra.mrb[0].mxu0 %v521
  %v931 = vpop.f32.mrb[0].mxu0
  %v932 = vadd.f32 0.0, %v931
  %v933 = vpop.f32.mrb[0].mxu0
  %v934 = vpop.f32.mrb[0].mxu0
  %v935 = vadd.f32 0.0, %v934
  %v936 = vpop.f32.mrb[0].mxu0
  %937 = vmatprep.mubr.bf16.mxu0 %v526
  %938 = vmatmul.mubr.bf16.gmra.mrb[0].mxu0 %v525
  %v939 = vpop.f32.mrb[0].mxu0
  %v940 = vadd.f32 0.0, %v939
  %v941 = vpop.f32.mrb[0].mxu0
  %v942 = vpop.f32.mrb[0].mxu0
  %v943 = vadd.f32 0.0, %v942
  %v944 = vpop.f32.mrb[0].mxu0
  %945 = vmatprep.mubr.bf16.mxu0 %v530
  %946 = vmatmul.mubr.bf16.gmra.mrb[0].mxu0 %v529
  %v947 = vpop.f32.mrb[0].mxu0
  %v948 = vadd.f32 0.0, %v947
  %v949 = vpop.f32.mrb[0].mxu0
  %v950 = vpop.f32.mrb[0].mxu0
  %v951 = vadd.f32 0.0, %v950
  %v952 = vpop.f32.mrb[0].mxu0
  %953 = vmatprep.mubr.bf16.mxu0 %v534
  %954 = vmatmul.mubr.bf16.gmra.mrb[0].mxu0 %v533
  %v955 = vpop.f32.mrb[0].mxu0
  %v956 = vadd.f32 0.0, %v955
  %v957 = vpop.f32.mrb[0].mxu0
  %v958 = vpop.f32.mrb[0].mxu0
  %v959 = vadd.f32 0.0, %v958
  %v960 = vpop.f32.mrb[0].mxu0
  %961 = vmatprep.mubr.bf16.mxu0 %v538
  %962 = vmatmul.mubr.bf16.gmra.mrb[0].mxu0 %v537
  %v963 = vpop.f32.mrb[0].mxu0
  %v964 = vadd.f32 0.0, %v963
  %v965 = vpop.f32.mrb[0].mxu0
  %v966 = vpop.f32.mrb[0].mxu0
  %v967 = vadd.f32 0.0, %v966
  %v968 = vpop.f32.mrb[0].mxu0
  %969 = vmatprep.mubr.bf16.mxu0 %v542
  %970 = vmatmul.mubr.bf16.gmra.mrb[0].mxu0 %v541
  %v971 = vpop.f32.mrb[0].mxu0
  %v972 = vadd.f32 0.0, %v971
  %v973 = vpop.f32.mrb[0].mxu0
  %v974 = vpop.f32.mrb[0].mxu0
  %v975 = vadd.f32 0.0, %v974
  %v976 = vpop.f32.mrb[0].mxu0
  %977 = vmatprep.mubr.bf16.mxu0 %v546
  %978 = vmatmul.mubr.bf16.gmra.mrb[0].mxu0 %v545
  %v979 = vpop.f32.mrb[0].mxu0
  %v980 = vadd.f32 0.0, %v979
  %v981 = vpop.f32.mrb[0].mxu0
  %v982 = vpop.f32.mrb[0].mxu0
  %v983 = vadd.f32 0.0, %v982
  %v984 = vpop.f32.mrb[0].mxu0
  %985 = vmatprep.mubr.bf16.mxu0 %v550
  %986 = vmatmul.mubr.bf16.gmra.mrb[0].mxu0 %v549
  %v987 = vpop.f32.mrb[0].mxu0
  %v988 = vadd.f32 0.0, %v987
  %v989 = vpop.f32.mrb[0].mxu0
  %v990 = vpop.f32.mrb[0].mxu0
  %v991 = vadd.f32 0.0, %v990
  %v992 = vpop.f32.mrb[0].mxu0
  %993 = vmatprep.mubr.bf16.mxu0 %v554
  %994 = vmatmul.mubr.bf16.gmra.mrb[0].mxu0 %v553
  %v995 = vpop.f32.mrb[0].mxu0
  %v996 = vadd.f32 0.0, %v995
  %v997 = vpop.f32.mrb[0].mxu0
  %v998 = vpop.f32.mrb[0].mxu0
  %v999 = vadd.f32 0.0, %v998
  %v1000 = vpop.f32.mrb[0].mxu0
  %1001 = vmatprep.mubr.bf16.mxu0 %v558
  %1002 = vmatmul.mubr.bf16.gmra.mrb[0].mxu0 %v557
  %v1003 = vpop.f32.mrb[0].mxu0
  %v1004 = vadd.f32 0.0, %v1003
  %v1005 = vpop.f32.mrb[0].mxu0
  %v1006 = vpop.f32.mrb[0].mxu0
  %v1007 = vadd.f32 0.0, %v1006
  %v1008 = vpop.f32.mrb[0].mxu0
  %1009 = vmatprep.mubr.bf16.mxu0 %v562
  %1010 = vmatmul.mubr.bf16.gmra.mrb[0].mxu0 %v561
  %v1011 = vpop.f32.mrb[0].mxu0
  %v1012 = vadd.f32 0.0, %v1011
  %v1013 = vpop.f32.mrb[0].mxu0
  %v1014 = vpop.f32.mrb[0].mxu0
  %v1015 = vadd.f32 0.0, %v1014
  %v1016 = vpop.f32.mrb[0].mxu0
  %1017 = vmatprep.mubr.bf16.mxu0 %v566
  %1018 = vmatmul.mubr.bf16.gmra.mrb[0].mxu0 %v565
  %v1019 = vpop.f32.mrb[0].mxu0
  %v1020 = vadd.f32 0.0, %v1019
  %v1021 = vpop.f32.mrb[0].mxu0
  %v1022 = vpop.f32.mrb[0].mxu0
  %v1023 = vadd.f32 0.0, %v1022
  %v1024 = vpop.f32.mrb[0].mxu0
  %1025 = vmatprep.mubr.bf16.mxu0 %v570
  %1026 = vmatmul.mubr.bf16.gmra.mrb[0].mxu0 %v569
  %v1027 = vpop.f32.mrb[0].mxu0
  %v1028 = vadd.f32 0.0, %v1027
  %v1029 = vpop.f32.mrb[0].mxu0
  %v1030 = vpop.f32.mrb[0].mxu0
  %v1031 = vadd.f32 0.0, %v1030
  %v1032 = vpop.f32.mrb[0].mxu0
  %1033 = vmatprep.mubr.bf16.mxu0 %v574
  %1034 = vmatmul.mubr.bf16.gmra.mrb[0].mxu0 %v573
  %v1035 = vpop.f32.mrb[0].mxu0
  %v1036 = vadd.f32 0.0, %v1035
  %v1037 = vpop.f32.mrb[0].mxu0
  %v1038 = vpop.f32.mrb[0].mxu0
  %v1039 = vadd.f32 0.0, %v1038
  %v1040 = vpop.f32.mrb[0].mxu0
  %1041 = vmatprep.mubr.bf16.mxu0 %v578
  %1042 = vmatmul.mubr.bf16.gmra.mrb[0].mxu0 %v577
  %v1043 = vpop.f32.mrb[0].mxu0
  %v1044 = vadd.f32 0.0, %v1043
  %v1045 = vpop.f32.mrb[0].mxu0
  %v1046 = vpop.f32.mrb[0].mxu0
  %v1047 = vadd.f32 0.0, %v1046
  %v1048 = vpop.f32.mrb[0].mxu0
  %1049 = vmatprep.mubr.bf16.mxu0 %v582
  %1050 = vmatmul.mubr.bf16.gmra.mrb[0].mxu0 %v581
  %v1051 = vpop.f32.mrb[0].mxu0
  %v1052 = vadd.f32 0.0, %v1051
  %v1053 = vpop.f32.mrb[0].mxu0
  %v1054 = vpop.f32.mrb[0].mxu0
  %v1055 = vadd.f32 0.0, %v1054
  %v1056 = vpop.f32.mrb[0].mxu0
  %1057 = vmatprep.mubr.bf16.mxu0 %v586
  %1058 = vmatmul.mubr.bf16.gmra.mrb[0].mxu0 %v585
  %v1059 = vpop.f32.mrb[0].mxu0
  %v1060 = vadd.f32 0.0, %v1059
  %v1061 = vpop.f32.mrb[0].mxu0
  %v1062 = vpop.f32.mrb[0].mxu0
  %v1063 = vadd.f32 0.0, %v1062
  %v1064 = vpop.f32.mrb[0].mxu0
  %1065 = vmatprep.mubr.bf16.mxu0 %v590
  %1066 = vmatmul.mubr.bf16.gmra.mrb[0].mxu0 %v589
  %v1067 = vpop.f32.mrb[0].mxu0
  %v1068 = vadd.f32 0.0, %v1067
  %v1069 = vpop.f32.mrb[0].mxu0
  %v1070 = vpop.f32.mrb[0].mxu0
  %v1071 = vadd.f32 0.0, %v1070
  %v1072 = vpop.f32.mrb[0].mxu0
  %1073 = vmatprep.mubr.bf16.mxu0 %v594
  %1074 = vmatmul.mubr.bf16.gmra.mrb[0].mxu0 %v593
  %v1075 = vpop.f32.mrb[0].mxu0
  %v1076 = vadd.f32 0.0, %v1075
  %v1077 = vpop.f32.mrb[0].mxu0
  %v1078 = vpop.f32.mrb[0].mxu0
  %v1079 = vadd.f32 0.0, %v1078
  %v1080 = vpop.f32.mrb[0].mxu0
  %1081 = vmatprep.mubr.bf16.mxu0 %v598
  %1082 = vmatmul.mubr.bf16.gmra.mrb[0].mxu0 %v597
  %v1083 = vpop.f32.mrb[0].mxu0
  %v1084 = vadd.f32 0.0, %v1083
  %v1085 = vpop.f32.mrb[0].mxu0
  %v1086 = vpop.f32.mrb[0].mxu0
  %v1087 = vpop.f32.mrb[0].mxu0
  %1088 = vdwg.mxu0
  %1089 = vmatprep.subr.bf16.mxu0 0
  %1090 = vmatpush1.bf16.msra.mxu0 %v833
  %1091 = vmatprep.subr.bf16.mxu0 0
  %1092 = vmatpush1.bf16.msra.mxu0 %v834
  %1093 = vmatprep.subr.bf16.mxu0 0
  %1094 = vmatpush1.bf16.msra.mxu0 %v835
  %1095 = vmatprep.subr.bf16.mxu0 0
  %1096 = vmatpush1.bf16.msra.mxu0 %v836
  %1097 = vmatprep.subr.bf16.mxu0 0
  %1098 = vmatpush1.bf16.msra.mxu0 %v837
  %1099 = vmatprep.subr.bf16.mxu0 0
  %1100 = vmatpush1.bf16.msra.mxu0 %v838
  %1101 = vmatprep.subr.bf16.mxu0 0
  %1102 = vmatpush1.bf16.msra.mxu0 %v839
  %1103 = vmatprep.subr.bf16.mxu0 0
  %1104 = vmatpush1.bf16.msra.mxu0 %v840
  %1105 = vmatprep.subr.bf16.mxu0 0
  %1106 = vmatpush1.bf16.msra.mxu0 %v841
  %1107 = vmatprep.subr.bf16.mxu0 0
  %1108 = vmatpush1.bf16.msra.mxu0 %v842
  %1109 = vmatprep.subr.bf16.mxu0 0
  %1110 = vmatpush1.bf16.msra.mxu0 %v843
  %1111 = vmatprep.subr.bf16.mxu0 0
  %1112 = vmatpush1.bf16.msra.mxu0 %v844
  %1113 = vmatprep.subr.bf16.mxu0 0
  %1114 = vmatpush1.bf16.msra.mxu0 %v845
  %1115 = vmatprep.subr.bf16.mxu0 0
  %1116 = vmatpush1.bf16.msra.mxu0 %v846
  %1117 = vmatprep.subr.bf16.mxu0 0
  %1118 = vmatpush1.bf16.msra.mxu0 %v847
  %1119 = vmatprep.subr.bf16.mxu0 0
  %1120 = vmatpush1.bf16.msra.mxu0 %v848
  %1121 = vmatprep.mubr.bf16.mxu0 %v516
  %1122 = vmatmul.mubr.bf16.gmra.mrb[0].mxu0 %v515
  %v1123 = vpop.f32.mrb[0].mxu0
  %v1124 = vadd.f32 %v916, %v1123
  %v1125 = vpop.f32.mrb[0].mxu0
  %v1126 = vpop.f32.mrb[0].mxu0
  %v1127 = vadd.f32 %v919, %v1126
  %v1128 = vpop.f32.mrb[0].mxu0
  %1129 = vmatprep.mubr.bf16.mxu0 %v520
  %1130 = vmatmul.mubr.bf16.gmra.mrb[0].mxu0 %v519
  %v1131 = vpop.f32.mrb[0].mxu0
  %v1132 = vadd.f32 %v924, %v1131
  %v1133 = vpop.f32.mrb[0].mxu0
  %v1134 = vpop.f32.mrb[0].mxu0
  %v1135 = vadd.f32 %v927, %v1134
  %v1136 = vpop.f32.mrb[0].mxu0
  %1137 = vmatprep.mubr.bf16.mxu0 %v524
  %1138 = vmatmul.mubr.bf16.gmra.mrb[0].mxu0 %v523
  %v1139 = vpop.f32.mrb[0].mxu0
  %v1140 = vadd.f32 %v932, %v1139
  %v1141 = vpop.f32.mrb[0].mxu0
  %v1142 = vpop.f32.mrb[0].mxu0
  %v1143 = vadd.f32 %v935, %v1142
  %v1144 = vpop.f32.mrb[0].mxu0
  %1145 = vmatprep.mubr.bf16.mxu0 %v528
  %1146 = vmatmul.mubr.bf16.gmra.mrb[0].mxu0 %v527
  %v1147 = vpop.f32.mrb[0].mxu0
  %v1148 = vadd.f32 %v940, %v1147
  %v1149 = vpop.f32.mrb[0].mxu0
  %v1150 = vpop.f32.mrb[0].mxu0
  %v1151 = vadd.f32 %v943, %v1150
  %v1152 = vpop.f32.mrb[0].mxu0
  %1153 = vmatprep.mubr.bf16.mxu0 %v532
  %1154 = vmatmul.mubr.bf16.gmra.mrb[0].mxu0 %v531
  %v1155 = vpop.f32.mrb[0].mxu0
  %v1156 = vadd.f32 %v948, %v1155
  %v1157 = vpop.f32.mrb[0].mxu0
  %v1158 = vpop.f32.mrb[0].mxu0
  %v1159 = vadd.f32 %v951, %v1158
  %v1160 = vpop.f32.mrb[0].mxu0
  %1161 = vmatprep.mubr.bf16.mxu0 %v536
  %1162 = vmatmul.mubr.bf16.gmra.mrb[0].mxu0 %v535
  %v1163 = vpop.f32.mrb[0].mxu0
  %v1164 = vadd.f32 %v956, %v1163
  %v1165 = vpop.f32.mrb[0].mxu0
  %v1166 = vpop.f32.mrb[0].mxu0
  %v1167 = vadd.f32 %v959, %v1166
  %v1168 = vpop.f32.mrb[0].mxu0
  %1169 = vmatprep.mubr.bf16.mxu0 %v540
  %1170 = vmatmul.mubr.bf16.gmra.mrb[0].mxu0 %v539
  %v1171 = vpop.f32.mrb[0].mxu0
  %v1172 = vadd.f32 %v964, %v1171
  %v1173 = vpop.f32.mrb[0].mxu0
  %v1174 = vpop.f32.mrb[0].mxu0
  %v1175 = vadd.f32 %v967, %v1174
  %v1176 = vpop.f32.mrb[0].mxu0
  %1177 = vmatprep.mubr.bf16.mxu0 %v544
  %1178 = vmatmul.mubr.bf16.gmra.mrb[0].mxu0 %v543
  %v1179 = vpop.f32.mrb[0].mxu0
  %v1180 = vadd.f32 %v972, %v1179
  %v1181 = vpop.f32.mrb[0].mxu0
  %v1182 = vpop.f32.mrb[0].mxu0
  %v1183 = vadd.f32 %v975, %v1182
  %v1184 = vpop.f32.mrb[0].mxu0
  %1185 = vmatprep.mubr.bf16.mxu0 %v548
  %1186 = vmatmul.mubr.bf16.gmra.mrb[0].mxu0 %v547
  %v1187 = vpop.f32.mrb[0].mxu0
  %v1188 = vadd.f32 %v980, %v1187
  %v1189 = vpop.f32.mrb[0].mxu0
  %v1190 = vpop.f32.mrb[0].mxu0
  %v1191 = vadd.f32 %v983, %v1190
  %v1192 = vpop.f32.mrb[0].mxu0
  %1193 = vmatprep.mubr.bf16.mxu0 %v552
  %1194 = vmatmul.mubr.bf16.gmra.mrb[0].mxu0 %v551
  %v1195 = vpop.f32.mrb[0].mxu0
  %v1196 = vadd.f32 %v988, %v1195
  %v1197 = vpop.f32.mrb[0].mxu0
  %v1198 = vpop.f32.mrb[0].mxu0
  %v1199 = vadd.f32 %v991, %v1198
  %v1200 = vpop.f32.mrb[0].mxu0
  %1201 = vmatprep.mubr.bf16.mxu0 %v556
  %1202 = vmatmul.mubr.bf16.gmra.mrb[0].mxu0 %v555
  %v1203 = vpop.f32.mrb[0].mxu0
  %v1204 = vadd.f32 %v996, %v1203
  %v1205 = vpop.f32.mrb[0].mxu0
  %v1206 = vpop.f32.mrb[0].mxu0
  %v1207 = vadd.f32 %v999, %v1206
  %v1208 = vpop.f32.mrb[0].mxu0
  %1209 = vmatprep.mubr.bf16.mxu0 %v560
  %1210 = vmatmul.mubr.bf16.gmra.mrb[0].mxu0 %v559
  %v1211 = vpop.f32.mrb[0].mxu0
  %v1212 = vadd.f32 %v1004, %v1211
  %v1213 = vpop.f32.mrb[0].mxu0
  %v1214 = vpop.f32.mrb[0].mxu0
  %v1215 = vadd.f32 %v1007, %v1214
  %v1216 = vpop.f32.mrb[0].mxu0
  %1217 = vmatprep.mubr.bf16.mxu0 %v564
  %1218 = vmatmul.mubr.bf16.gmra.mrb[0].mxu0 %v563
  %v1219 = vpop.f32.mrb[0].mxu0
  %v1220 = vadd.f32 %v1012, %v1219
  %v1221 = vpop.f32.mrb[0].mxu0
  %v1222 = vpop.f32.mrb[0].mxu0
  %v1223 = vadd.f32 %v1015, %v1222
  %v1224 = vpop.f32.mrb[0].mxu0
  %1225 = vmatprep.mubr.bf16.mxu0 %v568
  %1226 = vmatmul.mubr.bf16.gmra.mrb[0].mxu0 %v567
  %v1227 = vpop.f32.mrb[0].mxu0
  %v1228 = vadd.f32 %v1020, %v1227
  %v1229 = vpop.f32.mrb[0].mxu0
  %v1230 = vpop.f32.mrb[0].mxu0
  %v1231 = vadd.f32 %v1023, %v1230
  %v1232 = vpop.f32.mrb[0].mxu0
  %1233 = vmatprep.mubr.bf16.mxu0 %v572
  %1234 = vmatmul.mubr.bf16.gmra.mrb[0].mxu0 %v571
  %v1235 = vpop.f32.mrb[0].mxu0
  %v1236 = vadd.f32 %v1028, %v1235
  %v1237 = vpop.f32.mrb[0].mxu0
  %v1238 = vpop.f32.mrb[0].mxu0
  %v1239 = vadd.f32 %v1031, %v1238
  %v1240 = vpop.f32.mrb[0].mxu0
  %1241 = vmatprep.mubr.bf16.mxu0 %v576
  %1242 = vmatmul.mubr.bf16.gmra.mrb[0].mxu0 %v575
  %v1243 = vpop.f32.mrb[0].mxu0
  %v1244 = vadd.f32 %v1036, %v1243
  %v1245 = vpop.f32.mrb[0].mxu0
  %v1246 = vpop.f32.mrb[0].mxu0
  %v1247 = vadd.f32 %v1039, %v1246
  %v1248 = vpop.f32.mrb[0].mxu0
  %1249 = vmatprep.mubr.bf16.mxu0 %v580
  %1250 = vmatmul.mubr.bf16.gmra.mrb[0].mxu0 %v579
  %v1251 = vpop.f32.mrb[0].mxu0
  %v1252 = vadd.f32 %v1044, %v1251
  %v1253 = vpop.f32.mrb[0].mxu0
  %v1254 = vpop.f32.mrb[0].mxu0
  %v1255 = vadd.f32 %v1047, %v1254
  %v1256 = vpop.f32.mrb[0].mxu0
  %1257 = vmatprep.mubr.bf16.mxu0 %v584
  %1258 = vmatmul.mubr.bf16.gmra.mrb[0].mxu0 %v583
  %v1259 = vpop.f32.mrb[0].mxu0
  %v1260 = vadd.f32 %v1052, %v1259
  %v1261 = vpop.f32.mrb[0].mxu0
  %v1262 = vpop.f32.mrb[0].mxu0
  %v1263 = vadd.f32 %v1055, %v1262
  %v1264 = vpop.f32.mrb[0].mxu0
  %1265 = vmatprep.mubr.bf16.mxu0 %v588
  %1266 = vmatmul.mubr.bf16.gmra.mrb[0].mxu0 %v587
  %v1267 = vpop.f32.mrb[0].mxu0
  %v1268 = vadd.f32 %v1060, %v1267
  %v1269 = vpop.f32.mrb[0].mxu0
  %v1270 = vpop.f32.mrb[0].mxu0
  %v1271 = vadd.f32 %v1063, %v1270
  %v1272 = vpop.f32.mrb[0].mxu0
  %1273 = vmatprep.mubr.bf16.mxu0 %v592
  %1274 = vmatmul.mubr.bf16.gmra.mrb[0].mxu0 %v591
  %v1275 = vpop.f32.mrb[0].mxu0
  %v1276 = vadd.f32 %v1068, %v1275
  %v1277 = vpop.f32.mrb[0].mxu0
  %v1278 = vpop.f32.mrb[0].mxu0
  %v1279 = vadd.f32 %v1071, %v1278
  %v1280 = vpop.f32.mrb[0].mxu0
  %1281 = vmatprep.mubr.bf16.mxu0 %v596
  %1282 = vmatmul.mubr.bf16.gmra.mrb[0].mxu0 %v595
  %v1283 = vpop.f32.mrb[0].mxu0
  %v1284 = vadd.f32 %v1076, %v1283
  %v1285 = vpop.f32.mrb[0].mxu0
  %v1286 = vpop.f32.mrb[0].mxu0
  %v1287 = vadd.f32 %v1079, %v1286
  %v1288 = vpop.f32.mrb[0].mxu0
  %1289 = vmatprep.mubr.bf16.mxu0 %v600
  %1290 = vmatmul.mubr.bf16.gmra.mrb[0].mxu0 %v599
  %v1291 = vpop.f32.mrb[0].mxu0
  %v1292 = vadd.f32 %v1084, %v1291
  %v1293 = vpop.f32.mrb[0].mxu0
  %v1294 = vpop.f32.mrb[0].mxu0
  %v1295 = vpop.f32.mrb[0].mxu0
  %1296 = vdwg.mxu0
  %v1297 = vadd.f32 %v62, %v1124
  %v1298 = vadd.f32 %v63, %v1127
  %v1299 = vadd.f32 %v64, %v1132
  %v1300 = vadd.f32 %v65, %v1135
  %v1301 = vadd.f32 %v66, %v1140
  %v1302 = vadd.f32 %v67, %v1143
  %v1303 = vadd.f32 %v68, %v1148
  %v1304 = vadd.f32 %v69, %v1151
  %v1305 = vadd.f32 %v70, %v1156
  %v1306 = vadd.f32 %v71, %v1159
  %v1307 = vadd.f32 %v72, %v1164
  %v1308 = vadd.f32 %v73, %v1167
  %v1309 = vadd.f32 %v74, %v1172
  %v1310 = vadd.f32 %v75, %v1175
  %v1311 = vadd.f32 %v76, %v1180
  %v1312 = vadd.f32 %v77, %v1183
  %v1313 = vadd.f32 %v78, %v1188
  %v1314 = vadd.f32 %v79, %v1191
  %v1315 = vadd.f32 %v80, %v1196
  %v1316 = vadd.f32 %v81, %v1199
  %v1317 = vadd.f32 %v82, %v1204
  %v1318 = vadd.f32 %v83, %v1207
  %v1319 = vadd.f32 %v84, %v1212
  %v1320 = vadd.f32 %v85, %v1215
  %v1321 = vadd.f32 %v86, %v1220
  %v1322 = vadd.f32 %v87, %v1223
  %v1323 = vadd.f32 %v88, %v1228
  %v1324 = vadd.f32 %v89, %v1231
  %v1325 = vadd.f32 %v90, %v1236
  %v1326 = vadd.f32 %v91, %v1239
  %v1327 = vadd.f32 %v92, %v1244
  %v1328 = vadd.f32 %v93, %v1247
  %v1329 = vadd.f32 %v94, %v1252
  %v1330 = vadd.f32 %v95, %v1255
  %v1331 = vadd.f32 %v96, %v1260
  %v1332 = vadd.f32 %v97, %v1263
  %v1333 = vadd.f32 %v98, %v1268
  %v1334 = vadd.f32 %v99, %v1271
  %v1335 = vadd.f32 %v100, %v1276
  %v1336 = vadd.f32 %v101, %v1279
  %v1337 = vadd.f32 %v102, %v1284
  %v1338 = vadd.f32 %v103, %v1287
  %v1339 = vadd.f32 %v104, %v1292
  %1340 = vst [vmem:[%s3] sm:$0xff] %v1297
  %1341 = vst [vmem:[%s3 + $0x8] sm:$0xff] %v1298
  %1342 = vst [vmem:[%s3 + $0x10] sm:$0xff] %v1299
  %1343 = vst [vmem:[%s3 + $0x18] sm:$0xff] %v1300
  %1344 = vst [vmem:[%s3 + $0x20] sm:$0xff] %v1301
  %1345 = vst [vmem:[%s3 + $0x28] sm:$0xff] %v1302
  %1346 = vst [vmem:[%s3 + $0x30] sm:$0xff] %v1303
  %1347 = vst [vmem:[%s3 + $0x38] sm:$0xff] %v1304
  %1348 = vst [vmem:[%s3 + $0x40] sm:$0xff] %v1305
  %1349 = vst [vmem:[%s3 + $0x48] sm:$0xff] %v1306
  %1350 = vst [vmem:[%s3 + $0x50] sm:$0xff] %v1307
  %1351 = vst [vmem:[%s3 + $0x58] sm:$0xff] %v1308
  %1352 = vst [vmem:[%s3 + $0x60] sm:$0xff] %v1309
  %1353 = vst [vmem:[%s3 + $0x68] sm:$0xff] %v1310
  %1354 = vst [vmem:[%s3 + $0x70] sm:$0xff] %v1311
  %1355 = vst [vmem:[%s3 + $0x78] sm:$0xff] %v1312
  %1356 = vst [vmem:[%s3 + $0x80] sm:$0xff] %v1313
  %1357 = vst [vmem:[%s3 + $0x88] sm:$0xff] %v1314
  %1358 = vst [vmem:[%s3 + $0x90] sm:$0xff] %v1315
  %1359 = vst [vmem:[%s3 + $0x98] sm:$0xff] %v1316
  %1360 = vst [vmem:[%s3 + $0xa0] sm:$0xff] %v1317
  %1361 = vst [vmem:[%s3 + $0xa8] sm:$0xff] %v1318
  %1362 = vst [vmem:[%s3 + $0xb0] sm:$0xff] %v1319
  %1363 = vst [vmem:[%s3 + $0xb8] sm:$0xff] %v1320
  %1364 = vst [vmem:[%s3 + $0xc0] sm:$0xff] %v1321
  %1365 = vst [vmem:[%s3 + $0xc8] sm:$0xff] %v1322
  %1366 = vst [vmem:[%s3 + $0xd0] sm:$0xff] %v1323
  %1367 = vst [vmem:[%s3 + $0xd8] sm:$0xff] %v1324
  %1368 = vst [vmem:[%s3 + $0xe0] sm:$0xff] %v1325
  %1369 = vst [vmem:[%s3 + $0xe8] sm:$0xff] %v1326
  %1370 = vst [vmem:[%s3 + $0xf0] sm:$0xff] %v1327
  %1371 = vst [vmem:[%s3 + $0xf8] sm:$0xff] %v1328
  %1372 = vst [vmem:[%s3 + $0x100] sm:$0xff] %v1329
  %1373 = vst [vmem:[%s3 + $0x108] sm:$0xff] %v1330
  %1374 = vst [vmem:[%s3 + $0x110] sm:$0xff] %v1331
  %1375 = vst [vmem:[%s3 + $0x118] sm:$0xff] %v1332
  %1376 = vst [vmem:[%s3 + $0x120] sm:$0xff] %v1333
  %1377 = vst [vmem:[%s3 + $0x128] sm:$0xff] %v1334
  %1378 = vst [vmem:[%s3 + $0x130] sm:$0xff] %v1335
  %1379 = vst [vmem:[%s3 + $0x138] sm:$0xff] %v1336
  %1380 = vst [vmem:[%s3 + $0x140] sm:$0xff] %v1337
  %1381 = vst [vmem:[%s3 + $0x148] sm:$0xff] %v1338
  %1382 = vst [vmem:[%s3 + $0x150] sm:$0xff] %v1339
  // Predicated region
  $region18: #{conv1d_base_net_forward.8} parent=0 // pred_check
    %p1383 = pneg %p15
  $region19: #{conv1d_base_net_forward.8} parent=0 // pred_check_branch
    %1385 = sbr.rel (%p1383) target = $region21
  $region20: #{conv1d_base_net_forward.8} parent=0 // pred_region
    %v1386 = vld [vmem:[%s3] sm:$0xff]
    %v1387 = vld [vmem:[%s3 + $0x8] sm:$0xff]
    %v1388 = vld [vmem:[%s3 + $0x10] sm:$0xff]
    %v1389 = vld [vmem:[%s3 + $0x18] sm:$0xff]
    %v1390 = vld [vmem:[%s3 + $0x20] sm:$0xff]
    %v1391 = vld [vmem:[%s3 + $0x28] sm:$0xff]
    %v1392 = vld [vmem:[%s3 + $0x30] sm:$0xff]
    %v1393 = vld [vmem:[%s3 + $0x38] sm:$0xff]
    %v1394 = vld [vmem:[%s3 + $0x40] sm:$0xff]
    %v1395 = vld [vmem:[%s3 + $0x48] sm:$0xff]
    %v1396 = vld [vmem:[%s3 + $0x50] sm:$0xff]
    %v1397 = vld [vmem:[%s3 + $0x58] sm:$0xff]
    %v1398 = vld [vmem:[%s3 + $0x60] sm:$0xff]
    %v1399 = vld [vmem:[%s3 + $0x68] sm:$0xff]
    %v1400 = vld [vmem:[%s3 + $0x70] sm:$0xff]
    %v1401 = vld [vmem:[%s3 + $0x78] sm:$0xff]
    %v1402 = vld [vmem:[%s3 + $0x80] sm:$0xff]
    %v1403 = vld [vmem:[%s3 + $0x88] sm:$0xff]
    %v1404 = vld [vmem:[%s3 + $0x90] sm:$0xff]
    %v1405 = vld [vmem:[%s3 + $0x98] sm:$0xff]
    %v1406 = vld [vmem:[%s3 + $0xa0] sm:$0xff]
    %v1407 = vld [vmem:[%s3 + $0xa8] sm:$0xff]
    %v1408 = vld [vmem:[%s3 + $0xb0] sm:$0xff]
    %v1409 = vld [vmem:[%s3 + $0xb8] sm:$0xff]
    %v1410 = vld [vmem:[%s3 + $0xc0] sm:$0xff]
    %v1411 = vld [vmem:[%s3 + $0xc8] sm:$0xff]
    %v1412 = vld [vmem:[%s3 + $0xd0] sm:$0xff]
    %v1413 = vld [vmem:[%s3 + $0xd8] sm:$0xff]
    %v1414 = vld [vmem:[%s3 + $0xe0] sm:$0xff]
    %v1415 = vld [vmem:[%s3 + $0xe8] sm:$0xff]
    %v1416 = vld [vmem:[%s3 + $0xf0] sm:$0xff]
    %v1417 = vld [vmem:[%s3 + $0xf8] sm:$0xff]
    %v1418 = vld [vmem:[%s3 + $0x100] sm:$0xff]
    %v1419 = vld [vmem:[%s3 + $0x108] sm:$0xff]
    %v1420 = vld [vmem:[%s3 + $0x110] sm:$0xff]
    %v1421 = vld [vmem:[%s3 + $0x118] sm:$0xff]
    %v1422 = vld [vmem:[%s3 + $0x120] sm:$0xff]
    %v1423 = vld [vmem:[%s3 + $0x128] sm:$0xff]
    %v1424 = vld [vmem:[%s3 + $0x130] sm:$0xff]
    %v1425 = vld [vmem:[%s3 + $0x138] sm:$0xff]
    %v1426 = vld [vmem:[%s3 + $0x140] sm:$0xff]
    %v1427 = vld [vmem:[%s3 + $0x148] sm:$0xff]
    %v1428 = vld [vmem:[%s3 + $0x150] sm:$0xff]
    %v1429 = vld [vmem:[%s2] sm:$0x1]
    %v1430 = vlaneseq
    %v1431 = vshrl.u32 %v1430, 7
    %v1432 = vsub.s32 0, %v1431
    %v1433 = vrot.slane %v1429, %v1432
    %v1434 = vadd.f32 %v1386, %v1433
    %v1435 = vadd.f32 %v1387, %v1433
    %v1436 = vadd.f32 %v1388, %v1433
    %v1437 = vadd.f32 %v1389, %v1433
    %v1438 = vadd.f32 %v1390, %v1433
    %v1439 = vadd.f32 %v1391, %v1433
    %v1440 = vadd.f32 %v1392, %v1433
    %v1441 = vadd.f32 %v1393, %v1433
    %v1442 = vadd.f32 %v1394, %v1433
    %v1443 = vadd.f32 %v1395, %v1433
    %v1444 = vadd.f32 %v1396, %v1433
    %v1445 = vadd.f32 %v1397, %v1433
    %v1446 = vadd.f32 %v1398, %v1433
    %v1447 = vadd.f32 %v1399, %v1433
    %v1448 = vadd.f32 %v1400, %v1433
    %v1449 = vadd.f32 %v1401, %v1433
    %v1450 = vadd.f32 %v1402, %v1433
    %v1451 = vadd.f32 %v1403, %v1433
    %v1452 = vadd.f32 %v1404, %v1433
    %v1453 = vadd.f32 %v1405, %v1433
    %v1454 = vadd.f32 %v1406, %v1433
    %v1455 = vadd.f32 %v1407, %v1433
    %v1456 = vadd.f32 %v1408, %v1433
    %v1457 = vadd.f32 %v1409, %v1433
    %v1458 = vadd.f32 %v1410, %v1433
    %v1459 = vadd.f32 %v1411, %v1433
    %v1460 = vadd.f32 %v1412, %v1433
    %v1461 = vadd.f32 %v1413, %v1433
    %v1462 = vadd.f32 %v1414, %v1433
    %v1463 = vadd.f32 %v1415, %v1433
    %v1464 = vadd.f32 %v1416, %v1433
    %v1465 = vadd.f32 %v1417, %v1433
    %v1466 = vadd.f32 %v1418, %v1433
    %v1467 = vadd.f32 %v1419, %v1433
    %v1468 = vadd.f32 %v1420, %v1433
    %v1469 = vadd.f32 %v1421, %v1433
    %v1470 = vadd.f32 %v1422, %v1433
    %v1471 = vadd.f32 %v1423, %v1433
    %v1472 = vadd.f32 %v1424, %v1433
    %v1473 = vadd.f32 %v1425, %v1433
    %v1474 = vadd.f32 %v1426, %v1433
    %v1475 = vadd.f32 %v1427, %v1433
    %v1476 = vadd.f32 %v1428, %v1433
    %v1477 = vmax.f32 %v1434, 0.0
    %v1478 = vmax.f32 %v1435, 0.0
    %v1479 = vmax.f32 %v1436, 0.0
    %v1480 = vmax.f32 %v1437, 0.0
    %v1481 = vmax.f32 %v1438, 0.0
    %v1482 = vmax.f32 %v1439, 0.0
    %v1483 = vmax.f32 %v1440, 0.0
    %v1484 = vmax.f32 %v1441, 0.0
    %v1485 = vmax.f32 %v1442, 0.0
    %v1486 = vmax.f32 %v1443, 0.0
    %v1487 = vmax.f32 %v1444, 0.0
    %v1488 = vmax.f32 %v1445, 0.0
    %v1489 = vmax.f32 %v1446, 0.0
    %v1490 = vmax.f32 %v1447, 0.0
    %v1491 = vmax.f32 %v1448, 0.0
    %v1492 = vmax.f32 %v1449, 0.0
    %v1493 = vmax.f32 %v1450, 0.0
    %v1494 = vmax.f32 %v1451, 0.0
    %v1495 = vmax.f32 %v1452, 0.0
    %v1496 = vmax.f32 %v1453, 0.0
    %v1497 = vmax.f32 %v1454, 0.0
    %v1498 = vmax.f32 %v1455, 0.0
    %v1499 = vmax.f32 %v1456, 0.0
    %v1500 = vmax.f32 %v1457, 0.0
    %v1501 = vmax.f32 %v1458, 0.0
    %v1502 = vmax.f32 %v1459, 0.0
    %v1503 = vmax.f32 %v1460, 0.0
    %v1504 = vmax.f32 %v1461, 0.0
    %v1505 = vmax.f32 %v1462, 0.0
    %v1506 = vmax.f32 %v1463, 0.0
    %v1507 = vmax.f32 %v1464, 0.0
    %v1508 = vmax.f32 %v1465, 0.0
    %v1509 = vmax.f32 %v1466, 0.0
    %v1510 = vmax.f32 %v1467, 0.0
    %v1511 = vmax.f32 %v1468, 0.0
    %v1512 = vmax.f32 %v1469, 0.0
    %v1513 = vmax.f32 %v1470, 0.0
    %v1514 = vmax.f32 %v1471, 0.0
    %v1515 = vmax.f32 %v1472, 0.0
    %v1516 = vmax.f32 %v1473, 0.0
    %v1517 = vmax.f32 %v1474, 0.0
    %v1518 = vmax.f32 %v1475, 0.0
    %v1519 = vmax.f32 %v1476, 0.0
    %v1520 = vld [vmem:[%s2 + $0x1] sm:$0x1]
    %v1521 = vlaneseq
    %v1522 = vshrl.u32 %v1521, 7
    %v1523 = vsub.s32 0, %v1522
    %v1524 = vrot.slane %v1520, %v1523
    %v1525 = vmul.f32 %v1477, %v1524
    %v1526 = vmul.f32 %v1478, %v1524
    %v1527 = vmul.f32 %v1479, %v1524
    %v1528 = vmul.f32 %v1480, %v1524
    %v1529 = vmul.f32 %v1481, %v1524
    %v1530 = vmul.f32 %v1482, %v1524
    %v1531 = vmul.f32 %v1483, %v1524
    %v1532 = vmul.f32 %v1484, %v1524
    %v1533 = vmul.f32 %v1485, %v1524
    %v1534 = vmul.f32 %v1486, %v1524
    %v1535 = vmul.f32 %v1487, %v1524
    %v1536 = vmul.f32 %v1488, %v1524
    %v1537 = vmul.f32 %v1489, %v1524
    %v1538 = vmul.f32 %v1490, %v1524
    %v1539 = vmul.f32 %v1491, %v1524
    %v1540 = vmul.f32 %v1492, %v1524
    %v1541 = vmul.f32 %v1493, %v1524
    %v1542 = vmul.f32 %v1494, %v1524
    %v1543 = vmul.f32 %v1495, %v1524
    %v1544 = vmul.f32 %v1496, %v1524
    %v1545 = vmul.f32 %v1497, %v1524
    %v1546 = vmul.f32 %v1498, %v1524
    %v1547 = vmul.f32 %v1499, %v1524
    %v1548 = vmul.f32 %v1500, %v1524
    %v1549 = vmul.f32 %v1501, %v1524
    %v1550 = vmul.f32 %v1502, %v1524
    %v1551 = vmul.f32 %v1503, %v1524
    %v1552 = vmul.f32 %v1504, %v1524
    %v1553 = vmul.f32 %v1505, %v1524
    %v1554 = vmul.f32 %v1506, %v1524
    %v1555 = vmul.f32 %v1507, %v1524
    %v1556 = vmul.f32 %v1508, %v1524
    %v1557 = vmul.f32 %v1509, %v1524
    %v1558 = vmul.f32 %v1510, %v1524
    %v1559 = vmul.f32 %v1511, %v1524
    %v1560 = vmul.f32 %v1512, %v1524
    %v1561 = vmul.f32 %v1513, %v1524
    %v1562 = vmul.f32 %v1514, %v1524
    %v1563 = vmul.f32 %v1515, %v1524
    %v1564 = vmul.f32 %v1516, %v1524
    %v1565 = vmul.f32 %v1517, %v1524
    %v1566 = vmul.f32 %v1518, %v1524
    %v1567 = vmul.f32 %v1519, %v1524
    %v1568 = vld [vmem:[%s2 + $0x2] sm:$0x1]
    %v1569 = vlaneseq
    %v1570 = vshrl.u32 %v1569, 7
    %v1571 = vsub.s32 0, %v1570
    %v1572 = vrot.slane %v1568, %v1571
    %v1573 = vadd.f32 %v1525, %v1572
    %v1574 = vadd.f32 %v1526, %v1572
    %v1575 = vadd.f32 %v1527, %v1572
    %v1576 = vadd.f32 %v1528, %v1572
    %v1577 = vadd.f32 %v1529, %v1572
    %v1578 = vadd.f32 %v1530, %v1572
    %v1579 = vadd.f32 %v1531, %v1572
    %v1580 = vadd.f32 %v1532, %v1572
    %v1581 = vadd.f32 %v1533, %v1572
    %v1582 = vadd.f32 %v1534, %v1572
    %v1583 = vadd.f32 %v1535, %v1572
    %v1584 = vadd.f32 %v1536, %v1572
    %v1585 = vadd.f32 %v1537, %v1572
    %v1586 = vadd.f32 %v1538, %v1572
    %v1587 = vadd.f32 %v1539, %v1572
    %v1588 = vadd.f32 %v1540, %v1572
    %v1589 = vadd.f32 %v1541, %v1572
    %v1590 = vadd.f32 %v1542, %v1572
    %v1591 = vadd.f32 %v1543, %v1572
    %v1592 = vadd.f32 %v1544, %v1572
    %v1593 = vadd.f32 %v1545, %v1572
    %v1594 = vadd.f32 %v1546, %v1572
    %v1595 = vadd.f32 %v1547, %v1572
    %v1596 = vadd.f32 %v1548, %v1572
    %v1597 = vadd.f32 %v1549, %v1572
    %v1598 = vadd.f32 %v1550, %v1572
    %v1599 = vadd.f32 %v1551, %v1572
    %v1600 = vadd.f32 %v1552, %v1572
    %v1601 = vadd.f32 %v1553, %v1572
    %v1602 = vadd.f32 %v1554, %v1572
    %v1603 = vadd.f32 %v1555, %v1572
    %v1604 = vadd.f32 %v1556, %v1572
    %v1605 = vadd.f32 %v1557, %v1572
    %v1606 = vadd.f32 %v1558, %v1572
    %v1607 = vadd.f32 %v1559, %v1572
    %v1608 = vadd.f32 %v1560, %v1572
    %v1609 = vadd.f32 %v1561, %v1572
    %v1610 = vadd.f32 %v1562, %v1572
    %v1611 = vadd.f32 %v1563, %v1572
    %v1612 = vadd.f32 %v1564, %v1572
    %v1613 = vadd.f32 %v1565, %v1572
    %v1614 = vadd.f32 %v1566, %v1572
    %v1615 = vadd.f32 %v1567, %v1572
    %1616 = vst [vmem:[%s3] sm:$0xff] %v1573
    %1617 = vst [vmem:[%s3 + $0x8] sm:$0xff] %v1574
    %1618 = vst [vmem:[%s3 + $0x10] sm:$0xff] %v1575
    %1619 = vst [vmem:[%s3 + $0x18] sm:$0xff] %v1576
    %1620 = vst [vmem:[%s3 + $0x20] sm:$0xff] %v1577
    %1621 = vst [vmem:[%s3 + $0x28] sm:$0xff] %v1578
    %1622 = vst [vmem:[%s3 + $0x30] sm:$0xff] %v1579
    %1623 = vst [vmem:[%s3 + $0x38] sm:$0xff] %v1580
    %1624 = vst [vmem:[%s3 + $0x40] sm:$0xff] %v1581
    %1625 = vst [vmem:[%s3 + $0x48] sm:$0xff] %v1582
    %1626 = vst [vmem:[%s3 + $0x50] sm:$0xff] %v1583
    %1627 = vst [vmem:[%s3 + $0x58] sm:$0xff] %v1584
    %1628 = vst [vmem:[%s3 + $0x60] sm:$0xff] %v1585
    %1629 = vst [vmem:[%s3 + $0x68] sm:$0xff] %v1586
    %1630 = vst [vmem:[%s3 + $0x70] sm:$0xff] %v1587
    %1631 = vst [vmem:[%s3 + $0x78] sm:$0xff] %v1588
    %1632 = vst [vmem:[%s3 + $0x80] sm:$0xff] %v1589
    %1633 = vst [vmem:[%s3 + $0x88] sm:$0xff] %v1590
    %1634 = vst [vmem:[%s3 + $0x90] sm:$0xff] %v1591
    %1635 = vst [vmem:[%s3 + $0x98] sm:$0xff] %v1592
    %1636 = vst [vmem:[%s3 + $0xa0] sm:$0xff] %v1593
    %1637 = vst [vmem:[%s3 + $0xa8] sm:$0xff] %v1594
    %1638 = vst [vmem:[%s3 + $0xb0] sm:$0xff] %v1595
    %1639 = vst [vmem:[%s3 + $0xb8] sm:$0xff] %v1596
    %1640 = vst [vmem:[%s3 + $0xc0] sm:$0xff] %v1597
    %1641 = vst [vmem:[%s3 + $0xc8] sm:$0xff] %v1598
    %1642 = vst [vmem:[%s3 + $0xd0] sm:$0xff] %v1599
    %1643 = vst [vmem:[%s3 + $0xd8] sm:$0xff] %v1600
    %1644 = vst [vmem:[%s3 + $0xe0] sm:$0xff] %v1601
    %1645 = vst [vmem:[%s3 + $0xe8] sm:$0xff] %v1602
    %1646 = vst [vmem:[%s3 + $0xf0] sm:$0xff] %v1603
    %1647 = vst [vmem:[%s3 + $0xf8] sm:$0xff] %v1604
    %1648 = vst [vmem:[%s3 + $0x100] sm:$0xff] %v1605
    %1649 = vst [vmem:[%s3 + $0x108] sm:$0xff] %v1606
    %1650 = vst [vmem:[%s3 + $0x110] sm:$0xff] %v1607
    %1651 = vst [vmem:[%s3 + $0x118] sm:$0xff] %v1608
    %1652 = vst [vmem:[%s3 + $0x120] sm:$0xff] %v1609
    %1653 = vst [vmem:[%s3 + $0x128] sm:$0xff] %v1610
    %1654 = vst [vmem:[%s3 + $0x130] sm:$0xff] %v1611
    %1655 = vst [vmem:[%s3 + $0x138] sm:$0xff] %v1612
    %1656 = vst [vmem:[%s3 + $0x140] sm:$0xff] %v1613
    %1657 = vst [vmem:[%s3 + $0x148] sm:$0xff] %v1614
    %1658 = vst [vmem:[%s3 + $0x150] sm:$0xff] %v1615
  $region21: #{conv1d_base_net_forward.8} parent=0 // pred_fallthru
    _
  // Predicated region
  $region22: #{conv1d_base_net_forward.8} parent=0 // pred_check
    _
  $region23: #{conv1d_base_net_forward.8} parent=0 // pred_check_branch
    %1660 = sbr.rel (0) target = $region25
  $region24: #{conv1d_base_net_forward.8} parent=0 // pred_region
    _
  $region25: #{conv1d_base_net_forward.8} parent=0 // pred_fallthru
    _
  // Predicated region
  $region26: #{conv1d_base_net_forward.8} parent=0 // pred_check
    _
  $region27: #{conv1d_base_net_forward.8} parent=0 // pred_check_branch
    %1662 = sbr.rel (0) target = $region29
  $region28: #{conv1d_base_net_forward.8} parent=0 // pred_region
    _
  $region29: #{conv1d_base_net_forward.8} parent=0 // pred_fallthru
    _

// kernel: conv1d_base_net_forward.9
$region0: #{conv1d_base_net_forward.9}
  #allocation0 [shape = 'u32[]', space=smem, size = 0x4, offset = 0x4, fixed_abs, tag = 'smem constant byte address 0x4 - core index']
  #allocation1 [shape = 'u32[144,128]{1,0:T(1,128)}', space=vmem, size = 0x12000, scoped, tag = 'internal scratch']
  %s0 = inlined_call_operand.vmem [shape: bf16[128,2048], index: 0, kind: input, shape index: {}]
  %s1 = inlined_call_operand.vmem [shape: bf16[2048,128], index: 1, kind: input, shape index: {}]
  %s2 = inlined_call_operand.vmem [shape: f32[3,128], index: 2, kind: input, shape index: {}]
  %s3 = inlined_call_operand.vmem [shape: f32[128,128], index: 3, kind: output, shape index: {}]
  %s4 = sld [smem:[#allocation0]]
  $region76: #{conv1d_base_net_forward.9} parent=0
    _
  %s6 = ssub.s32 1, %s4
  %s7 = scalar_select 0, %s6, %s4
  $region1: #{conv1d_base_net_forward.9} parent=0
    #allocation2 [shape = 'u8[524288]{0}', space=vmem, size = 0x80000, scoped, tag = 'input window, operand 0']
    loop: start=0, step=1, limit=4
    $region2: #{conv1d_base_net_forward.9} parent=1 // loop_pre_header
      _
    $region3: #{conv1d_base_net_forward.9} parent=1 // loop_header
      %s9 = sphi 0, %s13
      %p10 = scmp.ge.s32.totalorder %s9, 4
      %s16 = sphi 0, %s35
      %s17 = sphi 0, %s31
      %s18 = sphi 0, %s27
      %s19 = sphi 0, %s16
      %s20 = sphi 0, %s17
      %s21 = sphi 0, %s18
      %s22 = sphi 0, %s19
      %s23 = sphi 0, %s20
      %s24 = sphi 0, %s21
      %s40 = sphi 0, %s42
      %s43 = sphi 0, %s40
      %s44 = sphi 0, %s43
      %s60 = sphi 0, %s44
      %s68 = sphi 0, %s70
      %s71 = sphi 0, %s68
      %s72 = sphi 0, %s71
      %s88 = sphi 0, %s72
      %s94 = sphi 0, %s96
      %s97 = sphi 0, %s94
      %s98 = sphi 0, %s97
      %s114 = sphi 0, %s98
      %s122 = sphi 0, %s124
      %s125 = sphi 0, %s122
      %s126 = sphi 0, %s125
      %s142 = sphi 0, %s126
    $region4: #{conv1d_base_net_forward.9} parent=1 // loop_header_branch
      %12 = sbr.rel (%p10) target = $region8
    $region5: #{conv1d_base_net_forward.9} parent=1 // loop_body
      %s14 = ssub.s32 %s9, 1
      %s15 = ssub.s32 %s9, 2
      %s25 = sadd.s32 1, %s18
      %p26 = scmp.ge.s32.totalorder %s25, 2
      %s27 = scalar_select %p26, 0, %s25
      %s28 = sadd.s32 1, %s17
      %s29 = scalar_select %p26, %s28, %s17
      %p30 = scmp.ge.s32.totalorder %s29, 1
      %s31 = scalar_select %p30, 0, %s29
      %s32 = sadd.s32 1, %s16
      %s33 = scalar_select %p30, %s32, %s16
      %p34 = scmp.ge.s32.totalorder %s33, 1
      %s35 = scalar_select %p34, 0, %s33
      %s36 = ssub.s32 %s16, %s35
      %s37 = ssub.s32 %s18, %s27
      %s38 = sor.u32 %s36, %s37
      %p39 = scmp.eq.s32.totalorder %s38, 0
      %s41 = sadd.s32 %s40, 1
      %s42 = scalar_select %p39, %s40, %s41
      %p45 = pneg %p39
      %p46 = scmp.eq.s32.totalorder %s9, 1
      %p47 = por %p45, %p46
      %p48 = scmp.ne.s32.totalorder %s40, %s43
      %p49 = scmp.eq.s32.totalorder %s9, 0
      %p50 = por %p48, %p49
      %p51 = scmp.ne.s32.totalorder %s40, %s43
      %p52 = scmp.eq.s32.totalorder %s14, 1
      %p53 = por %p51, %p52
      %p54 = scmp.ne.s32.totalorder %s43, %s44
      %p55 = scmp.eq.s32.totalorder %s14, 0
      %p56 = por %p54, %p55
      %p57 = scmp.ne.s32.totalorder %s43, %s44
      %p58 = scmp.eq.s32.totalorder %s15, 1
      %p59 = por %p57, %p58
      %p61 = scmp.ne.s32.totalorder %s44, %s60
      %p62 = scmp.eq.s32.totalorder %s15, 0
      %p63 = por %p61, %p62
      %s64 = ssub.s32 %s18, %s27
      %s65 = ssub.s32 %s17, %s31
      %s66 = sor.u32 %s64, %s65
      %p67 = scmp.eq.s32.totalorder %s66, 0
      %s69 = sadd.s32 %s68, 1
      %s70 = scalar_select %p67, %s68, %s69
      %p73 = pneg %p67
      %p74 = scmp.eq.s32.totalorder %s9, 1
      %p75 = por %p73, %p74
      %p76 = scmp.ne.s32.totalorder %s68, %s71
      %p77 = scmp.eq.s32.totalorder %s9, 0
      %p78 = por %p76, %p77
      %p79 = scmp.ne.s32.totalorder %s68, %s71
      %p80 = scmp.eq.s32.totalorder %s14, 1
      %p81 = por %p79, %p80
      %p82 = scmp.ne.s32.totalorder %s71, %s72
      %p83 = scmp.eq.s32.totalorder %s14, 0
      %p84 = por %p82, %p83
      %p85 = scmp.ne.s32.totalorder %s71, %s72
      %p86 = scmp.eq.s32.totalorder %s15, 1
      %p87 = por %p85, %p86
      %p89 = scmp.ne.s32.totalorder %s72, %s88
      %p90 = scmp.eq.s32.totalorder %s15, 0
      %p91 = por %p89, %p90
      %s92 = ssub.s32 %s17, %s31
      %p93 = scmp.eq.s32.totalorder %s92, 0
      %s95 = sadd.s32 %s94, 1
      %s96 = scalar_select %p93, %s94, %s95
      %p99 = pneg %p93
      %p100 = scmp.eq.s32.totalorder %s9, 1
      %p101 = por %p99, %p100
      %p102 = scmp.ne.s32.totalorder %s94, %s97
      %p103 = scmp.eq.s32.totalorder %s9, 0
      %p104 = por %p102, %p103
      %p105 = scmp.ne.s32.totalorder %s94, %s97
      %p106 = scmp.eq.s32.totalorder %s14, 1
      %p107 = por %p105, %p106
      %p108 = scmp.ne.s32.totalorder %s97, %s98
      %p109 = scmp.eq.s32.totalorder %s14, 0
      %p110 = por %p108, %p109
      %p111 = scmp.ne.s32.totalorder %s97, %s98
      %p112 = scmp.eq.s32.totalorder %s15, 1
      %p113 = por %p111, %p112
      %p115 = scmp.ne.s32.totalorder %s98, %s114
      %p116 = scmp.eq.s32.totalorder %s15, 0
      %p117 = por %p115, %p116
      %s118 = ssub.s32 %s16, %s35
      %s119 = ssub.s32 %s17, %s31
      %s120 = sor.u32 %s118, %s119
      %p121 = scmp.eq.s32.totalorder %s120, 0
      %s123 = sadd.s32 %s122, 1
      %s124 = scalar_select %p121, %s122, %s123
      %p127 = pneg %p121
      %p128 = scmp.eq.s32.totalorder %s9, 1
      %p129 = por %p127, %p128
      %p130 = scmp.ne.s32.totalorder %s122, %s125
      %p131 = scmp.eq.s32.totalorder %s9, 0
      %p132 = por %p130, %p131
      %p133 = scmp.ne.s32.totalorder %s122, %s125
      %p134 = scmp.eq.s32.totalorder %s14, 1
      %p135 = por %p133, %p134
      %p136 = scmp.ne.s32.totalorder %s125, %s126
      %p137 = scmp.eq.s32.totalorder %s14, 0
      %p138 = por %p136, %p137
      %p139 = scmp.ne.s32.totalorder %s125, %s126
      %p140 = scmp.eq.s32.totalorder %s15, 1
      %p141 = por %p139, %p140
      %p143 = scmp.ne.s32.totalorder %s126, %s142
      %p144 = scmp.eq.s32.totalorder %s15, 0
      %p145 = por %p143, %p144
      %p146 = scmp.le.s32.totalorder 1, %s9
      %p147 = scmp.lt.s32.totalorder %s9, 3
      %p148 = pnand %p146, %p147
      %p149 = pneg %p148
      // Predicated region
      $region9: #{conv1d_base_net_forward.9} parent=5 // pred_check
        _
      $region10: #{conv1d_base_net_forward.9} parent=5 // pred_check_branch
        %151 = sbr.rel (%p148) target = $region12
      $region11: #{conv1d_base_net_forward.9} parent=5 // pred_region
        %s152 = ssub.s32 %s9, 1
        // Predicated region
        $region13: #{conv1d_base_net_forward.9} parent=11 // pred_check
          %p153 = pneg %p110
        $region14: #{conv1d_base_net_forward.9} parent=11 // pred_check_branch
          %155 = sbr.rel (%p153) target = $region16
        $region15: #{conv1d_base_net_forward.9} parent=11 // pred_region
          %p156 = scmp.lt.s32.totalorder %s20, 0
          %s157 = scalar_select %p156, %s20, 0
          %s158 = smul.addr %s157, 4
          %s159 = scalar_lea.vmem %s2, %s158
        $region16: #{conv1d_base_net_forward.9} parent=11 // pred_fallthru
          _
      $region12: #{conv1d_base_net_forward.9} parent=5 // pred_fallthru
        _
      %p160 = scmp.lt.s32.totalorder %s9, 2
      // Predicated region
      $region17: #{conv1d_base_net_forward.9} parent=5 // pred_check
        %p161 = pneg %p160
      $region18: #{conv1d_base_net_forward.9} parent=5 // pred_check_branch
        %163 = sbr.rel (%p161) target = $region20
      $region19: #{conv1d_base_net_forward.9} parent=5 // pred_region
        // Predicated region
        $region21: #{conv1d_base_net_forward.9} parent=19 // pred_check
          %p164 = pneg %p50
        $region22: #{conv1d_base_net_forward.9} parent=19 // pred_check_branch
          %166 = sbr.rel (%p164) target = $region24
        $region23: #{conv1d_base_net_forward.9} parent=19 // pred_region
          %s167 = sand.u32 %s40, 1
          %s168 = sand.u32 %s40, 1
          %s169 = smul.addr %s168, 512
          %s170 = scalar_lea.vmem [#allocation2], %s169
          %s171 = smul.u32 16, %s16
          %s172 = smul.u32 8, %s18
          %s173 = smul.addr %s171, 16
          %s174 = sadd.s32 %s172, %s173
          %s175 = smul.addr %s174, 4
          %s176 = scalar_lea.vmem %s0, %s175
          // Predicated region
          $region25: #{conv1d_base_net_forward.9} parent=23 // pred_check
            _
          $region26: #{conv1d_base_net_forward.9} parent=23 // pred_check_branch
            %178 = sbr.rel (0) target = $region28
          $region27: #{conv1d_base_net_forward.9} parent=23 // pred_region
            // Predicated region
            $region29: #{conv1d_base_net_forward.9} parent=27 // pred_check
              _
            $region30: #{conv1d_base_net_forward.9} parent=27 // pred_check_branch
              %180 = sbr.rel (0) target = $region32
            $region31: #{conv1d_base_net_forward.9} parent=27 // pred_region
              loop: start=0, step=1, limit=1
              $region33: #{conv1d_base_net_forward.9} parent=31 // loop_pre_header
                _
              $region34: #{conv1d_base_net_forward.9} parent=31 // loop_header
                %s182 = sphi 0, %s186
                %p183 = scmp.ge.s32.totalorder %s182, 1
                %s187 = sphi %s176, %s176
                %s188 = sphi %s170, %s170
              $region35: #{conv1d_base_net_forward.9} parent=31 // loop_header_branch
                %185 = sbr.rel (%p183) target = $region39
              $region36: #{conv1d_base_net_forward.9} parent=31 // loop_body
                %v189 = vld [vmem:[%s187] sm:$0xff]
                %190 = vst [vmem:[%s188] sm:$0xff] %v189
                %v191 = vld [vmem:[%s187 + $0x8] sm:$0xff]
                %192 = vst [vmem:[%s188 + $0x8] sm:$0xff] %v191
                %v193 = vld [vmem:[%s187 + $0x10] sm:$0xff]
                %194 = vst [vmem:[%s188 + $0x10] sm:$0xff] %v193
                %v195 = vld [vmem:[%s187 + $0x18] sm:$0xff]
                %196 = vst [vmem:[%s188 + $0x18] sm:$0xff] %v195
                %v197 = vld [vmem:[%s187 + $0x40] sm:$0xff]
                %198 = vst [vmem:[%s188 + $0x20] sm:$0xff] %v197
                %v199 = vld [vmem:[%s187 + $0x48] sm:$0xff]
                %200 = vst [vmem:[%s188 + $0x28] sm:$0xff] %v199
                %v201 = vld [vmem:[%s187 + $0x50] sm:$0xff]
                %202 = vst [vmem:[%s188 + $0x30] sm:$0xff] %v201
                %v203 = vld [vmem:[%s187 + $0x58] sm:$0xff]
                %204 = vst [vmem:[%s188 + $0x38] sm:$0xff] %v203
                %v205 = vld [vmem:[%s187 + $0x80] sm:$0xff]
                %206 = vst [vmem:[%s188 + $0x40] sm:$0xff] %v205
                %v207 = vld [vmem:[%s187 + $0x88] sm:$0xff]
                %208 = vst [vmem:[%s188 + $0x48] sm:$0xff] %v207
                %v209 = vld [vmem:[%s187 + $0x90] sm:$0xff]
                %210 = vst [vmem:[%s188 + $0x50] sm:$0xff] %v209
                %v211 = vld [vmem:[%s187 + $0x98] sm:$0xff]
                %212 = vst [vmem:[%s188 + $0x58] sm:$0xff] %v211
                %v213 = vld [vmem:[%s187 + $0xc0] sm:$0xff]
                %214 = vst [vmem:[%s188 + $0x60] sm:$0xff] %v213
                %v215 = vld [vmem:[%s187 + $0xc8] sm:$0xff]
                %216 = vst [vmem:[%s188 + $0x68] sm:$0xff] %v215
                %v217 = vld [vmem:[%s187 + $0xd0] sm:$0xff]
                %218 = vst [vmem:[%s188 + $0x70] sm:$0xff] %v217
                %v219 = vld [vmem:[%s187 + $0xd8] sm:$0xff]
                %220 = vst [vmem:[%s188 + $0x78] sm:$0xff] %v219
                %v221 = vld [vmem:[%s187 + $0x100] sm:$0xff]
                %222 = vst [vmem:[%s188 + $0x80] sm:$0xff] %v221
                %v223 = vld [vmem:[%s187 + $0x108] sm:$0xff]
                %224 = vst [vmem:[%s188 + $0x88] sm:$0xff] %v223
                %v225 = vld [vmem:[%s187 + $0x110] sm:$0xff]
                %226 = vst [vmem:[%s188 + $0x90] sm:$0xff] %v225
                %v227 = vld [vmem:[%s187 + $0x118] sm:$0xff]
                %228 = vst [vmem:[%s188 + $0x98] sm:$0xff] %v227
                %v229 = vld [vmem:[%s187 + $0x140] sm:$0xff]
                %230 = vst [vmem:[%s188 + $0xa0] sm:$0xff] %v229
                %v231 = vld [vmem:[%s187 + $0x148] sm:$0xff]
                %232 = vst [vmem:[%s188 + $0xa8] sm:$0xff] %v231
                %v233 = vld [vmem:[%s187 + $0x150] sm:$0xff]
                %234 = vst [vmem:[%s188 + $0xb0] sm:$0xff] %v233
                %v235 = vld [vmem:[%s187 + $0x158] sm:$0xff]
                %236 = vst [vmem:[%s188 + $0xb8] sm:$0xff] %v235
                %v237 = vld [vmem:[%s187 + $0x180] sm:$0xff]
                %238 = vst [vmem:[%s188 + $0xc0] sm:$0xff] %v237
                %v239 = vld [vmem:[%s187 + $0x188] sm:$0xff]
                %240 = vst [vmem:[%s188 + $0xc8] sm:$0xff] %v239
                %v241 = vld [vmem:[%s187 + $0x190] sm:$0xff]
                %242 = vst [vmem:[%s188 + $0xd0] sm:$0xff] %v241
                %v243 = vld [vmem:[%s187 + $0x198] sm:$0xff]
                %244 = vst [vmem:[%s188 + $0xd8] sm:$0xff] %v243
                %v245 = vld [vmem:[%s187 + $0x1c0] sm:$0xff]
                %246 = vst [vmem:[%s188 + $0xe0] sm:$0xff] %v245
                %v247 = vld [vmem:[%s187 + $0x1c8] sm:$0xff]
                %248 = vst [vmem:[%s188 + $0xe8] sm:$0xff] %v247
                %v249 = vld [vmem:[%s187 + $0x1d0] sm:$0xff]
                %250 = vst [vmem:[%s188 + $0xf0] sm:$0xff] %v249
                %v251 = vld [vmem:[%s187 + $0x1d8] sm:$0xff]
                %252 = vst [vmem:[%s188 + $0xf8] sm:$0xff] %v251
                %v253 = vld [vmem:[%s187 + $0x200] sm:$0xff]
                %254 = vst [vmem:[%s188 + $0x100] sm:$0xff] %v253
                %v255 = vld [vmem:[%s187 + $0x208] sm:$0xff]
                %256 = vst [vmem:[%s188 + $0x108] sm:$0xff] %v255
                %v257 = vld [vmem:[%s187 + $0x210] sm:$0xff]
                %258 = vst [vmem:[%s188 + $0x110] sm:$0xff] %v257
                %v259 = vld [vmem:[%s187 + $0x218] sm:$0xff]
                %260 = vst [vmem:[%s188 + $0x118] sm:$0xff] %v259
                %v261 = vld [vmem:[%s187 + $0x240] sm:$0xff]
                %262 = vst [vmem:[%s188 + $0x120] sm:$0xff] %v261
                %v263 = vld [vmem:[%s187 + $0x248] sm:$0xff]
                %264 = vst [vmem:[%s188 + $0x128] sm:$0xff] %v263
                %v265 = vld [vmem:[%s187 + $0x250] sm:$0xff]
                %266 = vst [vmem:[%s188 + $0x130] sm:$0xff] %v265
                %v267 = vld [vmem:[%s187 + $0x258] sm:$0xff]
                %268 = vst [vmem:[%s188 + $0x138] sm:$0xff] %v267
                %v269 = vld [vmem:[%s187 + $0x280] sm:$0xff]
                %270 = vst [vmem:[%s188 + $0x140] sm:$0xff] %v269
                %v271 = vld [vmem:[%s187 + $0x288] sm:$0xff]
                %272 = vst [vmem:[%s188 + $0x148] sm:$0xff] %v271
                %v273 = vld [vmem:[%s187 + $0x290] sm:$0xff]
                %274 = vst [vmem:[%s188 + $0x150] sm:$0xff] %v273
                %v275 = vld [vmem:[%s187 + $0x298] sm:$0xff]
                %276 = vst [vmem:[%s188 + $0x158] sm:$0xff] %v275
                %v277 = vld [vmem:[%s187 + $0x2c0] sm:$0xff]
                %278 = vst [vmem:[%s188 + $0x160] sm:$0xff] %v277
                %v279 = vld [vmem:[%s187 + $0x2c8] sm:$0xff]
                %280 = vst [vmem:[%s188 + $0x168] sm:$0xff] %v279
                %v281 = vld [vmem:[%s187 + $0x2d0] sm:$0xff]
                %282 = vst [vmem:[%s188 + $0x170] sm:$0xff] %v281
                %v283 = vld [vmem:[%s187 + $0x2d8] sm:$0xff]
                %284 = vst [vmem:[%s188 + $0x178] sm:$0xff] %v283
                %v285 = vld [vmem:[%s187 + $0x300] sm:$0xff]
                %286 = vst [vmem:[%s188 + $0x180] sm:$0xff] %v285
                %v287 = vld [vmem:[%s187 + $0x308] sm:$0xff]
                %288 = vst [vmem:[%s188 + $0x188] sm:$0xff] %v287
                %v289 = vld [vmem:[%s187 + $0x310] sm:$0xff]
                %290 = vst [vmem:[%s188 + $0x190] sm:$0xff] %v289
                %v291 = vld [vmem:[%s187 + $0x318] sm:$0xff]
                %292 = vst [vmem:[%s188 + $0x198] sm:$0xff] %v291
                %v293 = vld [vmem:[%s187 + $0x340] sm:$0xff]
                %294 = vst [vmem:[%s188 + $0x1a0] sm:$0xff] %v293
                %v295 = vld [vmem:[%s187 + $0x348] sm:$0xff]
                %296 = vst [vmem:[%s188 + $0x1a8] sm:$0xff] %v295
                %v297 = vld [vmem:[%s187 + $0x350] sm:$0xff]
                %298 = vst [vmem:[%s188 + $0x1b0] sm:$0xff] %v297
                %v299 = vld [vmem:[%s187 + $0x358] sm:$0xff]
                %300 = vst [vmem:[%s188 + $0x1b8] sm:$0xff] %v299
                %v301 = vld [vmem:[%s187 + $0x380] sm:$0xff]
                %302 = vst [vmem:[%s188 + $0x1c0] sm:$0xff] %v301
                %v303 = vld [vmem:[%s187 + $0x388] sm:$0xff]
                %304 = vst [vmem:[%s188 + $0x1c8] sm:$0xff] %v303
                %v305 = vld [vmem:[%s187 + $0x390] sm:$0xff]
                %306 = vst [vmem:[%s188 + $0x1d0] sm:$0xff] %v305
                %v307 = vld [vmem:[%s187 + $0x398] sm:$0xff]
                %308 = vst [vmem:[%s188 + $0x1d8] sm:$0xff] %v307
                %v309 = vld [vmem:[%s187 + $0x3c0] sm:$0xff]
                %310 = vst [vmem:[%s188 + $0x1e0] sm:$0xff] %v309
                %v311 = vld [vmem:[%s187 + $0x3c8] sm:$0xff]
                %312 = vst [vmem:[%s188 + $0x1e8] sm:$0xff] %v311
                %v313 = vld [vmem:[%s187 + $0x3d0] sm:$0xff]
                %314 = vst [vmem:[%s188 + $0x1f0] sm:$0xff] %v313
                %v315 = vld [vmem:[%s187 + $0x3d8] sm:$0xff]
                %316 = vst [vmem:[%s188 + $0x1f8] sm:$0xff] %v315
              $region37: #{conv1d_base_net_forward.9} parent=31 // loop_footer
                %s186 = sadd.s32 1, %s182
              $region38: #{conv1d_base_net_forward.9} parent=31 // loop_footer_branch
                %181 = sbr.rel target = $region34
              $region39: #{conv1d_base_net_forward.9} parent=31 // loop_exit
                _
            $region32: #{conv1d_base_net_forward.9} parent=27 // pred_fallthru
              _
            // Predicated region
            $region40: #{conv1d_base_net_forward.9} parent=27 // pred_check
              _
            $region41: #{conv1d_base_net_forward.9} parent=27 // pred_check_branch
              %318 = sbr.rel target = $region43
            $region42: #{conv1d_base_net_forward.9} parent=27 // pred_region
              _
            $region43: #{conv1d_base_net_forward.9} parent=27 // pred_fallthru
              _
          $region28: #{conv1d_base_net_forward.9} parent=23 // pred_fallthru
            _
          %319 = vnop
        $region24: #{conv1d_base_net_forward.9} parent=19 // pred_fallthru
          _
        // Predicated region
        $region44: #{conv1d_base_net_forward.9} parent=19 // pred_check
          %p320 = pneg %p78
        $region45: #{conv1d_base_net_forward.9} parent=19 // pred_check_branch
          %322 = sbr.rel (%p320) target = $region47
        $region46: #{conv1d_base_net_forward.9} parent=19 // pred_region
          %s323 = smul.u32 128, %s18
          %p324 = scmp.lt.s32.totalorder %s323, 255
          %s325 = scalar_select %p324, %s323, 255
          %p326 = scmp.lt.s32.totalorder %s17, 0
          %s327 = scalar_select %p326, %s17, 0
          %s328 = sadd.s32 %s327, %s325
          %s329 = smul.addr %s328, 4
          %s330 = scalar_lea.vmem %s1, %s329
          %s331 = smul.u32 128, %s18
        $region47: #{conv1d_base_net_forward.9} parent=19 // pred_fallthru
          _
      $region20: #{conv1d_base_net_forward.9} parent=5 // pred_fallthru
        _
      %p332 = scmp.le.s32.totalorder 1, %s9
      %p333 = scmp.lt.s32.totalorder %s9, 3
      %p334 = pnand %p332, %p333
      %p335 = pneg %p334
      // Predicated region
      $region48: #{conv1d_base_net_forward.9} parent=5 // pred_check
        _
      $region49: #{conv1d_base_net_forward.9} parent=5 // pred_check_branch
        %337 = sbr.rel (%p334) target = $region51
      $region50: #{conv1d_base_net_forward.9} parent=5 // pred_region
        %s338 = ssub.s32 %s9, 1
        %s339 = sand.u32 %s43, 1
        %s340 = sand.u32 %s43, 1
        %s341 = smul.addr %s340, 512
        %s342 = scalar_lea.vmem [#allocation2], %s341
        // Predicated region
        $region52: #{conv1d_base_net_forward.9} parent=50 // pred_check
          %p343 = pneg %p56
        $region53: #{conv1d_base_net_forward.9} parent=50 // pred_check_branch
          %345 = sbr.rel (%p343) target = $region55
        $region54: #{conv1d_base_net_forward.9} parent=50 // pred_region
          _
        $region55: #{conv1d_base_net_forward.9} parent=50 // pred_fallthru
          _
        %s346 = sand.u32 %s43, 1
        %s347 = sand.u32 %s43, 1
        %s348 = smul.addr %s347, 512
        %s349 = scalar_lea.vmem [#allocation2], %s348
        %p350 = pneg %p56
        %p351 = pneg %p53
        %s352 = smul.u32 128, %s21
        %p353 = scmp.lt.s32.totalorder %s352, 255
        %s354 = scalar_select %p353, %s352, 255
        %p355 = scmp.lt.s32.totalorder %s20, 0
        %s356 = scalar_select %p355, %s20, 0
        %s357 = sadd.s32 %s356, %s354
        %s358 = smul.addr %s357, 4
        %s359 = scalar_lea.vmem %s1, %s358
        %p360 = pneg %p84
        %p361 = pneg %p81
        %p362 = scmp.lt.s32.totalorder %s20, 0
        %s363 = scalar_select %p362, %s20, 0
        %s364 = smul.addr %s363, 4
        %s365 = scalar_lea.vmem %s2, %s364
        %p366 = pneg %p110
        %p367 = pneg %p107
        %p368 = pneg %p138
        %p369 = pneg %p135
        %s370 = smul.u32 16, %s19
        %p371 = scmp.lt.s32.totalorder %s370, 15
        %s372 = scalar_select %p371, %s370, 15
        %p373 = scmp.lt.s32.totalorder %s20, 0
        %s374 = scalar_select %p373, %s20, 0
        %s375 = sadd.s32 %s374, %s372
        %s376 = smul.addr %s375, 8
        %s377 = scalar_lea.vmem %s3, %s376
        %s378 = smul.u32 16, %s19
        %s379 = smul.u32 8, %s21
        %s380 = smul.u32 128, %s21
        %p381 = scmp.lt.s32.totalorder %s380, 255
        %s382 = scalar_select %p381, %s380, 255
        %p383 = scmp.lt.s32.totalorder %s20, 0
        %s384 = scalar_select %p383, %s20, 0
        %s385 = sadd.s32 %s384, %s382
        %s386 = smul.addr %s385, 4
        %s387 = scalar_lea.vmem %s1, %s386
        %s388 = smul.u32 128, %s21
        %p389 = scmp.lt.s32.totalorder %s20, 0
        %s390 = scalar_select %p389, %s20, 0
        %s391 = smul.addr %s390, 4
        %s392 = scalar_lea.vmem %s2, %s391
        %s393 = smul.u32 16, %s19
        %p394 = scmp.lt.s32.totalorder %s393, 15
        %s395 = scalar_select %p394, %s393, 15
        %p396 = scmp.lt.s32.totalorder %s20, 0
        %s397 = scalar_select %p396, %s20, 0
        %s398 = sadd.s32 %s397, %s395
        %s399 = smul.addr %s398, 8
        %s400 = scalar_lea.vmem %s3, %s399
        %s401 = smul.u32 16, %s19
        %p403 = scmp.eq.s32.totalorder %s21, 0
        // Predicated region
        $region56: #{conv1d_base_net_forward.9} parent=50 // pred_check
          %p404 = pneg %p403
        $region57: #{conv1d_base_net_forward.9} parent=50 // pred_check_branch
          %406 = sbr.rel (%p404) target = $region59
        $region58: #{conv1d_base_net_forward.9} parent=50 // pred_region
          %407 = vst [vmem:[%s400] sm:$0xff] 0.0
          %408 = vst [vmem:[%s400 + $0x8] sm:$0xff] 0.0
          %409 = vst [vmem:[%s400 + $0x10] sm:$0xff] 0.0
          %410 = vst [vmem:[%s400 + $0x18] sm:$0xff] 0.0
          %411 = vst [vmem:[%s400 + $0x20] sm:$0xff] 0.0
          %412 = vst [vmem:[%s400 + $0x28] sm:$0xff] 0.0
          %413 = vst [vmem:[%s400 + $0x30] sm:$0xff] 0.0
          %414 = vst [vmem:[%s400 + $0x38] sm:$0xff] 0.0
          %415 = vst [vmem:[%s400 + $0x40] sm:$0xff] 0.0
          %416 = vst [vmem:[%s400 + $0x48] sm:$0xff] 0.0
          %417 = vst [vmem:[%s400 + $0x50] sm:$0xff] 0.0
          %418 = vst [vmem:[%s400 + $0x58] sm:$0xff] 0.0
          %419 = vst [vmem:[%s400 + $0x60] sm:$0xff] 0.0
          %420 = vst [vmem:[%s400 + $0x68] sm:$0xff] 0.0
          %421 = vst [vmem:[%s400 + $0x70] sm:$0xff] 0.0
          %422 = vst [vmem:[%s400 + $0x78] sm:$0xff] 0.0
        $region59: #{conv1d_base_net_forward.9} parent=50 // pred_fallthru
          _
        %v423 = vld [vmem:[%s400] sm:$0xff]
        %v424 = vld [vmem:[%s400 + $0x8] sm:$0xff]
        %v425 = vld [vmem:[%s400 + $0x10] sm:$0xff]
        %v426 = vld [vmem:[%s400 + $0x18] sm:$0xff]
        %v427 = vld [vmem:[%s400 + $0x20] sm:$0xff]
        %v428 = vld [vmem:[%s400 + $0x28] sm:$0xff]
        %v429 = vld [vmem:[%s400 + $0x30] sm:$0xff]
        %v430 = vld [vmem:[%s400 + $0x38] sm:$0xff]
        %v431 = vld [vmem:[%s400 + $0x40] sm:$0xff]
        %v432 = vld [vmem:[%s400 + $0x48] sm:$0xff]
        %v433 = vld [vmem:[%s400 + $0x50] sm:$0xff]
        %v434 = vld [vmem:[%s400 + $0x58] sm:$0xff]
        %v435 = vld [vmem:[%s400 + $0x60] sm:$0xff]
        %v436 = vld [vmem:[%s400 + $0x68] sm:$0xff]
        %v437 = vld [vmem:[%s400 + $0x70] sm:$0xff]
        %v438 = vld [vmem:[%s400 + $0x78] sm:$0xff]
        %v439 = vld [vmem:[%s342] sm:$0xff]
        %v440 = vld [vmem:[%s342 + $0x8] sm:$0xff]
        %v441 = vld [vmem:[%s342 + $0x10] sm:$0xff]
        %v442 = vld [vmem:[%s342 + $0x18] sm:$0xff]
        %v443 = vld [vmem:[%s342 + $0x20] sm:$0xff]
        %v444 = vld [vmem:[%s342 + $0x28] sm:$0xff]
        %v445 = vld [vmem:[%s342 + $0x30] sm:$0xff]
        %v446 = vld [vmem:[%s342 + $0x38] sm:$0xff]
        %v447 = vld [vmem:[%s342 + $0x40] sm:$0xff]
        %v448 = vld [vmem:[%s342 + $0x48] sm:$0xff]
        %v449 = vld [vmem:[%s342 + $0x50] sm:$0xff]
        %v450 = vld [vmem:[%s342 + $0x58] sm:$0xff]
        %v451 = vld [vmem:[%s342 + $0x60] sm:$0xff]
        %v452 = vld [vmem:[%s342 + $0x68] sm:$0xff]
        %v453 = vld [vmem:[%s342 + $0x70] sm:$0xff]
        %v454 = vld [vmem:[%s342 + $0x78] sm:$0xff]
        %v455 = vld [vmem:[%s342 + $0x80] sm:$0xff]
        %v456 = vld [vmem:[%s342 + $0x88] sm:$0xff]
        %v457 = vld [vmem:[%s342 + $0x90] sm:$0xff]
        %v458 = vld [vmem:[%s342 + $0x98] sm:$0xff]
        %v459 = vld [vmem:[%s342 + $0xa0] sm:$0xff]
        %v460 = vld [vmem:[%s342 + $0xa8] sm:$0xff]
        %v461 = vld [vmem:[%s342 + $0xb0] sm:$0xff]
        %v462 = vld [vmem:[%s342 + $0xb8] sm:$0xff]
        %v463 = vld [vmem:[%s342 + $0xc0] sm:$0xff]
        %v464 = vld [vmem:[%s342 + $0xc8] sm:$0xff]
        %v465 = vld [vmem:[%s342 + $0xd0] sm:$0xff]
        %v466 = vld [vmem:[%s342 + $0xd8] sm:$0xff]
        %v467 = vld [vmem:[%s342 + $0xe0] sm:$0xff]
        %v468 = vld [vmem:[%s342 + $0xe8] sm:$0xff]
        %v469 = vld [vmem:[%s342 + $0xf0] sm:$0xff]
        %v470 = vld [vmem:[%s342 + $0xf8] sm:$0xff]
        %v471 = vld [vmem:[%s342 + $0x100] sm:$0xff]
        %v472 = vld [vmem:[%s342 + $0x108] sm:$0xff]
        %v473 = vld [vmem:[%s342 + $0x110] sm:$0xff]
        %v474 = vld [vmem:[%s342 + $0x118] sm:$0xff]
        %v475 = vld [vmem:[%s342 + $0x120] sm:$0xff]
        %v476 = vld [vmem:[%s342 + $0x128] sm:$0xff]
        %v477 = vld [vmem:[%s342 + $0x130] sm:$0xff]
        %v478 = vld [vmem:[%s342 + $0x138] sm:$0xff]
        %v479 = vld [vmem:[%s342 + $0x140] sm:$0xff]
        %v480 = vld [vmem:[%s342 + $0x148] sm:$0xff]
        %v481 = vld [vmem:[%s342 + $0x150] sm:$0xff]
        %v482 = vld [vmem:[%s342 + $0x158] sm:$0xff]
        %v483 = vld [vmem:[%s342 + $0x160] sm:$0xff]
        %v484 = vld [vmem:[%s342 + $0x168] sm:$0xff]
        %v485 = vld [vmem:[%s342 + $0x170] sm:$0xff]
        %v486 = vld [vmem:[%s342 + $0x178] sm:$0xff]
        %v487 = vld [vmem:[%s342 + $0x180] sm:$0xff]
        %v488 = vld [vmem:[%s342 + $0x188] sm:$0xff]
        %v489 = vld [vmem:[%s342 + $0x190] sm:$0xff]
        %v490 = vld [vmem:[%s342 + $0x198] sm:$0xff]
        %v491 = vld [vmem:[%s342 + $0x1a0] sm:$0xff]
        %v492 = vld [vmem:[%s342 + $0x1a8] sm:$0xff]
        %v493 = vld [vmem:[%s342 + $0x1b0] sm:$0xff]
        %v494 = vld [vmem:[%s342 + $0x1b8] sm:$0xff]
        %v495 = vld [vmem:[%s342 + $0x1c0] sm:$0xff]
        %v496 = vld [vmem:[%s342 + $0x1c8] sm:$0xff]
        %v497 = vld [vmem:[%s342 + $0x1d0] sm:$0xff]
        %v498 = vld [vmem:[%s342 + $0x1d8] sm:$0xff]
        %v499 = vld [vmem:[%s342 + $0x1e0] sm:$0xff]
        %v500 = vld [vmem:[%s342 + $0x1e8] sm:$0xff]
        %v501 = vld [vmem:[%s342 + $0x1f0] sm:$0xff]
        %v502 = vld [vmem:[%s342 + $0x1f8] sm:$0xff]
        %v503 = vld [vmem:[%s387] sm:$0xf]
        %v504 = vld [vmem:[%s387 + $0x4] sm:$0xf]
        %v505 = vld [vmem:[%s387 + $0x8] sm:$0xf]
        %v506 = vld [vmem:[%s387 + $0xc] sm:$0xf]
        %v507 = vld [vmem:[%s387 + $0x10] sm:$0xf]
        %v508 = vld [vmem:[%s387 + $0x14] sm:$0xf]
        %v509 = vld [vmem:[%s387 + $0x18] sm:$0xf]
        %v510 = vld [vmem:[%s387 + $0x1c] sm:$0xf]
        %v511 = vld [vmem:[%s387 + $0x20] sm:$0xf]
        %v512 = vld [vmem:[%s387 + $0x24] sm:$0xf]
        %v513 = vld [vmem:[%s387 + $0x28] sm:$0xf]
        %v514 = vld [vmem:[%s387 + $0x2c] sm:$0xf]
        %v515 = vld [vmem:[%s387 + $0x30] sm:$0xf]
        %v516 = vld [vmem:[%s387 + $0x34] sm:$0xf]
        %v517 = vld [vmem:[%s387 + $0x38] sm:$0xf]
        %v518 = vld [vmem:[%s387 + $0x3c] sm:$0xf]
        %v519 = vld [vmem:[%s387 + $0x40] sm:$0xf]
        %v520 = vld [vmem:[%s387 + $0x44] sm:$0xf]
        %v521 = vld [vmem:[%s387 + $0x48] sm:$0xf]
        %v522 = vld [vmem:[%s387 + $0x4c] sm:$0xf]
        %v523 = vld [vmem:[%s387 + $0x50] sm:$0xf]
        %v524 = vld [vmem:[%s387 + $0x54] sm:$0xf]
        %v525 = vld [vmem:[%s387 + $0x58] sm:$0xf]
        %v526 = vld [vmem:[%s387 + $0x5c] sm:$0xf]
        %v527 = vld [vmem:[%s387 + $0x60] sm:$0xf]
        %v528 = vld [vmem:[%s387 + $0x64] sm:$0xf]
        %v529 = vld [vmem:[%s387 + $0x68] sm:$0xf]
        %v530 = vld [vmem:[%s387 + $0x6c] sm:$0xf]
        %v531 = vld [vmem:[%s387 + $0x70] sm:$0xf]
        %v532 = vld [vmem:[%s387 + $0x74] sm:$0xf]
        %v533 = vld [vmem:[%s387 + $0x78] sm:$0xf]
        %v534 = vld [vmem:[%s387 + $0x7c] sm:$0xf]
        %v535 = vld [vmem:[%s387 + $0x80] sm:$0xf]
        %v536 = vld [vmem:[%s387 + $0x84] sm:$0xf]
        %v537 = vld [vmem:[%s387 + $0x88] sm:$0xf]
        %v538 = vld [vmem:[%s387 + $0x8c] sm:$0xf]
        %v539 = vld [vmem:[%s387 + $0x90] sm:$0xf]
        %v540 = vld [vmem:[%s387 + $0x94] sm:$0xf]
        %v541 = vld [vmem:[%s387 + $0x98] sm:$0xf]
        %v542 = vld [vmem:[%s387 + $0x9c] sm:$0xf]
        %v543 = vld [vmem:[%s387 + $0xa0] sm:$0xf]
        %v544 = vld [vmem:[%s387 + $0xa4] sm:$0xf]
        %v545 = vld [vmem:[%s387 + $0xa8] sm:$0xf]
        %v546 = vld [vmem:[%s387 + $0xac] sm:$0xf]
        %v547 = vld [vmem:[%s387 + $0xb0] sm:$0xf]
        %v548 = vld [vmem:[%s387 + $0xb4] sm:$0xf]
        %v549 = vld [vmem:[%s387 + $0xb8] sm:$0xf]
        %v550 = vld [vmem:[%s387 + $0xbc] sm:$0xf]
        %v551 = vld [vmem:[%s387 + $0xc0] sm:$0xf]
        %v552 = vld [vmem:[%s387 + $0xc4] sm:$0xf]
        %v553 = vld [vmem:[%s387 + $0xc8] sm:$0xf]
        %v554 = vld [vmem:[%s387 + $0xcc] sm:$0xf]
        %v555 = vld [vmem:[%s387 + $0xd0] sm:$0xf]
        %v556 = vld [vmem:[%s387 + $0xd4] sm:$0xf]
        %v557 = vld [vmem:[%s387 + $0xd8] sm:$0xf]
        %v558 = vld [vmem:[%s387 + $0xdc] sm:$0xf]
        %v559 = vld [vmem:[%s387 + $0xe0] sm:$0xf]
        %v560 = vld [vmem:[%s387 + $0xe4] sm:$0xf]
        %v561 = vld [vmem:[%s387 + $0xe8] sm:$0xf]
        %v562 = vld [vmem:[%s387 + $0xec] sm:$0xf]
        %v563 = vld [vmem:[%s387 + $0xf0] sm:$0xf]
        %v564 = vld [vmem:[%s387 + $0xf4] sm:$0xf]
        %v565 = vld [vmem:[%s387 + $0xf8] sm:$0xf]
        %v566 = vld [vmem:[%s387 + $0xfc] sm:$0xf]
        %v567 = vld [vmem:[%s387 + $0x100] sm:$0xf]
        %v568 = vld [vmem:[%s387 + $0x104] sm:$0xf]
        %v569 = vld [vmem:[%s387 + $0x108] sm:$0xf]
        %v570 = vld [vmem:[%s387 + $0x10c] sm:$0xf]
        %v571 = vld [vmem:[%s387 + $0x110] sm:$0xf]
        %v572 = vld [vmem:[%s387 + $0x114] sm:$0xf]
        %v573 = vld [vmem:[%s387 + $0x118] sm:$0xf]
        %v574 = vld [vmem:[%s387 + $0x11c] sm:$0xf]
        %v575 = vld [vmem:[%s387 + $0x120] sm:$0xf]
        %v576 = vld [vmem:[%s387 + $0x124] sm:$0xf]
        %v577 = vld [vmem:[%s387 + $0x128] sm:$0xf]
        %v578 = vld [vmem:[%s387 + $0x12c] sm:$0xf]
        %v579 = vld [vmem:[%s387 + $0x130] sm:$0xf]
        %v580 = vld [vmem:[%s387 + $0x134] sm:$0xf]
        %v581 = vld [vmem:[%s387 + $0x138] sm:$0xf]
        %v582 = vld [vmem:[%s387 + $0x13c] sm:$0xf]
        %v583 = vld [vmem:[%s387 + $0x140] sm:$0xf]
        %v584 = vld [vmem:[%s387 + $0x144] sm:$0xf]
        %v585 = vld [vmem:[%s387 + $0x148] sm:$0xf]
        %v586 = vld [vmem:[%s387 + $0x14c] sm:$0xf]
        %v587 = vld [vmem:[%s387 + $0x150] sm:$0xf]
        %v588 = vld [vmem:[%s387 + $0x154] sm:$0xf]
        %v589 = vld [vmem:[%s387 + $0x158] sm:$0xf]
        %v590 = vld [vmem:[%s387 + $0x15c] sm:$0xf]
        %v591 = vld [vmem:[%s387 + $0x160] sm:$0xf]
        %v592 = vld [vmem:[%s387 + $0x164] sm:$0xf]
        %v593 = vld [vmem:[%s387 + $0x168] sm:$0xf]
        %v594 = vld [vmem:[%s387 + $0x16c] sm:$0xf]
        %v595 = vld [vmem:[%s387 + $0x170] sm:$0xf]
        %v596 = vld [vmem:[%s387 + $0x174] sm:$0xf]
        %v597 = vld [vmem:[%s387 + $0x178] sm:$0xf]
        %v598 = vld [vmem:[%s387 + $0x17c] sm:$0xf]
        %v599 = vld [vmem:[%s387 + $0x180] sm:$0xf]
        %v600 = vld [vmem:[%s387 + $0x184] sm:$0xf]
        %v601 = vld [vmem:[%s387 + $0x188] sm:$0xf]
        %v602 = vld [vmem:[%s387 + $0x18c] sm:$0xf]
        %v603 = vld [vmem:[%s387 + $0x190] sm:$0xf]
        %v604 = vld [vmem:[%s387 + $0x194] sm:$0xf]
        %v605 = vld [vmem:[%s387 + $0x198] sm:$0xf]
        %v606 = vld [vmem:[%s387 + $0x19c] sm:$0xf]
        %v607 = vld [vmem:[%s387 + $0x1a0] sm:$0xf]
        %v608 = vld [vmem:[%s387 + $0x1a4] sm:$0xf]
        %v609 = vld [vmem:[%s387 + $0x1a8] sm:$0xf]
        %v610 = vld [vmem:[%s387 + $0x1ac] sm:$0xf]
        %v611 = vld [vmem:[%s387 + $0x1b0] sm:$0xf]
        %v612 = vld [vmem:[%s387 + $0x1b4] sm:$0xf]
        %v613 = vld [vmem:[%s387 + $0x1b8] sm:$0xf]
        %v614 = vld [vmem:[%s387 + $0x1bc] sm:$0xf]
        %v615 = vld [vmem:[%s387 + $0x1c0] sm:$0xf]
        %v616 = vld [vmem:[%s387 + $0x1c4] sm:$0xf]
        %v617 = vld [vmem:[%s387 + $0x1c8] sm:$0xf]
        %v618 = vld [vmem:[%s387 + $0x1cc] sm:$0xf]
        %v619 = vld [vmem:[%s387 + $0x1d0] sm:$0xf]
        %v620 = vld [vmem:[%s387 + $0x1d4] sm:$0xf]
        %v621 = vld [vmem:[%s387 + $0x1d8] sm:$0xf]
        %v622 = vld [vmem:[%s387 + $0x1dc] sm:$0xf]
        %v623 = vld [vmem:[%s387 + $0x1e0] sm:$0xf]
        %v624 = vld [vmem:[%s387 + $0x1e4] sm:$0xf]
        %v625 = vld [vmem:[%s387 + $0x1e8] sm:$0xf]
        %v626 = vld [vmem:[%s387 + $0x1ec] sm:$0xf]
        %v627 = vld [vmem:[%s387 + $0x1f0] sm:$0xf]
        %v628 = vld [vmem:[%s387 + $0x1f4] sm:$0xf]
        %v629 = vld [vmem:[%s387 + $0x1f8] sm:$0xf]
        %v630 = vld [vmem:[%s387 + $0x1fc] sm:$0xf]
        %v695 = vunpack.c.l.b16 %v439
        %v696 = vunpack.c.h.b16 %v439
        %v697 = vunpack.c.l.b16 %v440
        %v698 = vunpack.c.h.b16 %v440
        %v699 = vunpack.c.l.b16 %v441
        %v700 = vunpack.c.h.b16 %v441
        %v701 = vunpack.c.l.b16 %v442
        %v702 = vunpack.c.h.b16 %v442
        %v703 = vunpack.c.l.b16 %v443
        %v704 = vunpack.c.h.b16 %v443
        %v705 = vunpack.c.l.b16 %v444
        %v706 = vunpack.c.h.b16 %v444
        %v707 = vunpack.c.l.b16 %v445
        %v708 = vunpack.c.h.b16 %v445
        %v709 = vunpack.c.l.b16 %v446
        %v710 = vunpack.c.h.b16 %v446
        %v711 = vunpack.c.l.b16 %v447
        %v712 = vunpack.c.h.b16 %v447
        %v713 = vunpack.c.l.b16 %v448
        %v714 = vunpack.c.h.b16 %v448
        %v715 = vunpack.c.l.b16 %v449
        %v716 = vunpack.c.h.b16 %v449
        %v717 = vunpack.c.l.b16 %v450
        %v718 = vunpack.c.h.b16 %v450
        %v719 = vunpack.c.l.b16 %v451
        %v720 = vunpack.c.h.b16 %v451
        %v721 = vunpack.c.l.b16 %v452
        %v722 = vunpack.c.h.b16 %v452
        %v723 = vunpack.c.l.b16 %v453
        %v724 = vunpack.c.h.b16 %v453
        %v725 = vunpack.c.l.b16 %v454
        %v726 = vunpack.c.h.b16 %v454
        %v727 = vunpack.c.l.b16 %v455
        %v728 = vunpack.c.h.b16 %v455
        %v729 = vunpack.c.l.b16 %v456
        %v730 = vunpack.c.h.b16 %v456
        %v731 = vunpack.c.l.b16 %v457
        %v732 = vunpack.c.h.b16 %v457
        %v733 = vunpack.c.l.b16 %v458
        %v734 = vunpack.c.h.b16 %v458
        %v735 = vunpack.c.l.b16 %v459
        %v736 = vunpack.c.h.b16 %v459
        %v737 = vunpack.c.l.b16 %v460
        %v738 = vunpack.c.h.b16 %v460
        %v739 = vunpack.c.l.b16 %v461
        %v740 = vunpack.c.h.b16 %v461
        %v741 = vunpack.c.l.b16 %v462
        %v742 = vunpack.c.h.b16 %v462
        %v743 = vunpack.c.l.b16 %v463
        %v744 = vunpack.c.h.b16 %v463
        %v745 = vunpack.c.l.b16 %v464
        %v746 = vunpack.c.h.b16 %v464
        %v747 = vunpack.c.l.b16 %v465
        %v748 = vunpack.c.h.b16 %v465
        %v749 = vunpack.c.l.b16 %v466
        %v750 = vunpack.c.h.b16 %v466
        %v751 = vunpack.c.l.b16 %v467
        %v752 = vunpack.c.h.b16 %v467
        %v753 = vunpack.c.l.b16 %v468
        %v754 = vunpack.c.h.b16 %v468
        %v755 = vunpack.c.l.b16 %v469
        %v756 = vunpack.c.h.b16 %v469
        %v757 = vunpack.c.l.b16 %v470
        %v758 = vunpack.c.h.b16 %v470
        %v759 = vunpack.c.l.b16 %v471
        %v760 = vunpack.c.h.b16 %v471
        %v761 = vunpack.c.l.b16 %v472
        %v762 = vunpack.c.h.b16 %v472
        %v763 = vunpack.c.l.b16 %v473
        %v764 = vunpack.c.h.b16 %v473
        %v765 = vunpack.c.l.b16 %v474
        %v766 = vunpack.c.h.b16 %v474
        %v767 = vunpack.c.l.b16 %v475
        %v768 = vunpack.c.h.b16 %v475
        %v769 = vunpack.c.l.b16 %v476
        %v770 = vunpack.c.h.b16 %v476
        %v771 = vunpack.c.l.b16 %v477
        %v772 = vunpack.c.h.b16 %v477
        %v773 = vunpack.c.l.b16 %v478
        %v774 = vunpack.c.h.b16 %v478
        %v775 = vunpack.c.l.b16 %v479
        %v776 = vunpack.c.h.b16 %v479
        %v777 = vunpack.c.l.b16 %v480
        %v778 = vunpack.c.h.b16 %v480
        %v779 = vunpack.c.l.b16 %v481
        %v780 = vunpack.c.h.b16 %v481
        %v781 = vunpack.c.l.b16 %v482
        %v782 = vunpack.c.h.b16 %v482
        %v783 = vunpack.c.l.b16 %v483
        %v784 = vunpack.c.h.b16 %v483
        %v785 = vunpack.c.l.b16 %v484
        %v786 = vunpack.c.h.b16 %v484
        %v787 = vunpack.c.l.b16 %v485
        %v788 = vunpack.c.h.b16 %v485
        %v789 = vunpack.c.l.b16 %v486
        %v790 = vunpack.c.h.b16 %v486
        %v791 = vunpack.c.l.b16 %v487
        %v792 = vunpack.c.h.b16 %v487
        %v793 = vunpack.c.l.b16 %v488
        %v794 = vunpack.c.h.b16 %v488
        %v795 = vunpack.c.l.b16 %v489
        %v796 = vunpack.c.h.b16 %v489
        %v797 = vunpack.c.l.b16 %v490
        %v798 = vunpack.c.h.b16 %v490
        %v799 = vunpack.c.l.b16 %v491
        %v800 = vunpack.c.h.b16 %v491
        %v801 = vunpack.c.l.b16 %v492
        %v802 = vunpack.c.h.b16 %v492
        %v803 = vunpack.c.l.b16 %v493
        %v804 = vunpack.c.h.b16 %v493
        %v805 = vunpack.c.l.b16 %v494
        %v806 = vunpack.c.h.b16 %v494
        %v807 = vunpack.c.l.b16 %v495
        %v808 = vunpack.c.h.b16 %v495
        %v809 = vunpack.c.l.b16 %v496
        %v810 = vunpack.c.h.b16 %v496
        %v811 = vunpack.c.l.b16 %v497
        %v812 = vunpack.c.h.b16 %v497
        %v813 = vunpack.c.l.b16 %v498
        %v814 = vunpack.c.h.b16 %v498
        %v815 = vunpack.c.l.b16 %v499
        %v816 = vunpack.c.h.b16 %v499
        %v817 = vunpack.c.l.b16 %v500
        %v818 = vunpack.c.h.b16 %v500
        %v819 = vunpack.c.l.b16 %v501
        %v820 = vunpack.c.h.b16 %v501
        %v821 = vunpack.c.l.b16 %v502
        %v822 = vunpack.c.h.b16 %v502
        %v823 = vpack.c.b16 %v703, %v695
        %v824 = vpack.c.b16 %v704, %v696
        %v825 = vpack.c.b16 %v705, %v697
        %v826 = vpack.c.b16 %v706, %v698
        %v827 = vpack.c.b16 %v707, %v699
        %v828 = vpack.c.b16 %v708, %v700
        %v829 = vpack.c.b16 %v709, %v701
        %v830 = vpack.c.b16 %v710, %v702
        %v831 = vpack.c.b16 %v719, %v711
        %v832 = vpack.c.b16 %v720, %v712
        %v833 = vpack.c.b16 %v721, %v713
        %v834 = vpack.c.b16 %v722, %v714
        %v835 = vpack.c.b16 %v723, %v715
        %v836 = vpack.c.b16 %v724, %v716
        %v837 = vpack.c.b16 %v725, %v717
        %v838 = vpack.c.b16 %v726, %v718
        %v839 = vpack.c.b16 %v735, %v727
        %v840 = vpack.c.b16 %v736, %v728
        %v841 = vpack.c.b16 %v737, %v729
        %v842 = vpack.c.b16 %v738, %v730
        %v843 = vpack.c.b16 %v739, %v731
        %v844 = vpack.c.b16 %v740, %v732
        %v845 = vpack.c.b16 %v741, %v733
        %v846 = vpack.c.b16 %v742, %v734
        %v847 = vpack.c.b16 %v751, %v743
        %v848 = vpack.c.b16 %v752, %v744
        %v849 = vpack.c.b16 %v753, %v745
        %v850 = vpack.c.b16 %v754, %v746
        %v851 = vpack.c.b16 %v755, %v747
        %v852 = vpack.c.b16 %v756, %v748
        %v853 = vpack.c.b16 %v757, %v749
        %v854 = vpack.c.b16 %v758, %v750
        %v855 = vpack.c.b16 %v767, %v759
        %v856 = vpack.c.b16 %v768, %v760
        %v857 = vpack.c.b16 %v769, %v761
        %v858 = vpack.c.b16 %v770, %v762
        %v859 = vpack.c.b16 %v771, %v763
        %v860 = vpack.c.b16 %v772, %v764
        %v861 = vpack.c.b16 %v773, %v765
        %v862 = vpack.c.b16 %v774, %v766
        %v863 = vpack.c.b16 %v783, %v775
        %v864 = vpack.c.b16 %v784, %v776
        %v865 = vpack.c.b16 %v785, %v777
        %v866 = vpack.c.b16 %v786, %v778
        %v867 = vpack.c.b16 %v787, %v779
        %v868 = vpack.c.b16 %v788, %v780
        %v869 = vpack.c.b16 %v789, %v781
        %v870 = vpack.c.b16 %v790, %v782
        %v871 = vpack.c.b16 %v799, %v791
        %v872 = vpack.c.b16 %v800, %v792
        %v873 = vpack.c.b16 %v801, %v793
        %v874 = vpack.c.b16 %v802, %v794
        %v875 = vpack.c.b16 %v803, %v795
        %v876 = vpack.c.b16 %v804, %v796
        %v877 = vpack.c.b16 %v805, %v797
        %v878 = vpack.c.b16 %v806, %v798
        %v879 = vpack.c.b16 %v815, %v807
        %v880 = vpack.c.b16 %v816, %v808
        %v881 = vpack.c.b16 %v817, %v809
        %v882 = vpack.c.b16 %v818, %v810
        %v883 = vpack.c.b16 %v819, %v811
        %v884 = vpack.c.b16 %v820, %v812
        %v885 = vpack.c.b16 %v821, %v813
        %v886 = vpack.c.b16 %v822, %v814
        %v1079 = vunpack.c.l.b16 %v503
        %v1080 = vunpack.c.l.b16 %v504
        %v1081 = vunpack.c.l.b16 %v505
        %v1082 = vunpack.c.l.b16 %v506
        %v1083 = vunpack.c.l.b16 %v507
        %v1084 = vunpack.c.l.b16 %v508
        %v1085 = vunpack.c.l.b16 %v509
        %v1086 = vunpack.c.l.b16 %v510
        %v1087 = vunpack.c.l.b16 %v511
        %v1088 = vunpack.c.l.b16 %v512
        %v1089 = vunpack.c.l.b16 %v513
        %v1090 = vunpack.c.l.b16 %v514
        %v1091 = vunpack.c.l.b16 %v515
        %v1092 = vunpack.c.l.b16 %v516
        %v1093 = vunpack.c.l.b16 %v517
        %v1094 = vunpack.c.l.b16 %v518
        %v1095 = vunpack.c.l.b16 %v519
        %v1096 = vunpack.c.l.b16 %v520
        %v1097 = vunpack.c.l.b16 %v521
        %v1098 = vunpack.c.l.b16 %v522
        %v1099 = vunpack.c.l.b16 %v523
        %v1100 = vunpack.c.l.b16 %v524
        %v1101 = vunpack.c.l.b16 %v525
        %v1102 = vunpack.c.l.b16 %v526
        %v1103 = vunpack.c.l.b16 %v527
        %v1104 = vunpack.c.l.b16 %v528
        %v1105 = vunpack.c.l.b16 %v529
        %v1106 = vunpack.c.l.b16 %v530
        %v1107 = vunpack.c.l.b16 %v531
        %v1108 = vunpack.c.l.b16 %v532
        %v1109 = vunpack.c.l.b16 %v533
        %v1110 = vunpack.c.l.b16 %v534
        %v1111 = vunpack.c.l.b16 %v535
        %v1112 = vunpack.c.l.b16 %v536
        %v1113 = vunpack.c.l.b16 %v537
        %v1114 = vunpack.c.l.b16 %v538
        %v1115 = vunpack.c.l.b16 %v539
        %v1116 = vunpack.c.l.b16 %v540
        %v1117 = vunpack.c.l.b16 %v541
        %v1118 = vunpack.c.l.b16 %v542
        %v1119 = vunpack.c.l.b16 %v543
        %v1120 = vunpack.c.l.b16 %v544
        %v1121 = vunpack.c.l.b16 %v545
        %v1122 = vunpack.c.l.b16 %v546
        %v1123 = vunpack.c.l.b16 %v547
        %v1124 = vunpack.c.l.b16 %v548
        %v1125 = vunpack.c.l.b16 %v549
        %v1126 = vunpack.c.l.b16 %v550
        %v1127 = vunpack.c.l.b16 %v551
        %v1128 = vunpack.c.l.b16 %v552
        %v1129 = vunpack.c.l.b16 %v553
        %v1130 = vunpack.c.l.b16 %v554
        %v1131 = vunpack.c.l.b16 %v555
        %v1132 = vunpack.c.l.b16 %v556
        %v1133 = vunpack.c.l.b16 %v557
        %v1134 = vunpack.c.l.b16 %v558
        %v1135 = vunpack.c.l.b16 %v559
        %v1136 = vunpack.c.l.b16 %v560
        %v1137 = vunpack.c.l.b16 %v561
        %v1138 = vunpack.c.l.b16 %v562
        %v1139 = vunpack.c.l.b16 %v563
        %v1140 = vunpack.c.l.b16 %v564
        %v1141 = vunpack.c.l.b16 %v565
        %v1142 = vunpack.c.l.b16 %v566
        %v1143 = vunpack.c.l.b16 %v567
        %v1144 = vunpack.c.l.b16 %v568
        %v1145 = vunpack.c.l.b16 %v569
        %v1146 = vunpack.c.l.b16 %v570
        %v1147 = vunpack.c.l.b16 %v571
        %v1148 = vunpack.c.l.b16 %v572
        %v1149 = vunpack.c.l.b16 %v573
        %v1150 = vunpack.c.l.b16 %v574
        %v1151 = vunpack.c.l.b16 %v575
        %v1152 = vunpack.c.l.b16 %v576
        %v1153 = vunpack.c.l.b16 %v577
        %v1154 = vunpack.c.l.b16 %v578
        %v1155 = vunpack.c.l.b16 %v579
        %v1156 = vunpack.c.l.b16 %v580
        %v1157 = vunpack.c.l.b16 %v581
        %v1158 = vunpack.c.l.b16 %v582
        %v1159 = vunpack.c.l.b16 %v583
        %v1160 = vunpack.c.l.b16 %v584
        %v1161 = vunpack.c.l.b16 %v585
        %v1162 = vunpack.c.l.b16 %v586
        %v1163 = vunpack.c.l.b16 %v587
        %v1164 = vunpack.c.l.b16 %v588
        %v1165 = vunpack.c.l.b16 %v589
        %v1166 = vunpack.c.l.b16 %v590
        %v1167 = vunpack.c.l.b16 %v591
        %v1168 = vunpack.c.l.b16 %v592
        %v1169 = vunpack.c.l.b16 %v593
        %v1170 = vunpack.c.l.b16 %v594
        %v1171 = vunpack.c.l.b16 %v595
        %v1172 = vunpack.c.l.b16 %v596
        %v1173 = vunpack.c.l.b16 %v597
        %v1174 = vunpack.c.l.b16 %v598
        %v1175 = vunpack.c.l.b16 %v599
        %v1176 = vunpack.c.l.b16 %v600
        %v1177 = vunpack.c.l.b16 %v601
        %v1178 = vunpack.c.l.b16 %v602
        %v1179 = vunpack.c.l.b16 %v603
        %v1180 = vunpack.c.l.b16 %v604
        %v1181 = vunpack.c.l.b16 %v605
        %v1182 = vunpack.c.l.b16 %v606
        %v1183 = vunpack.c.l.b16 %v607
        %v1184 = vunpack.c.l.b16 %v608
        %v1185 = vunpack.c.l.b16 %v609
        %v1186 = vunpack.c.l.b16 %v610
        %v1187 = vunpack.c.l.b16 %v611
        %v1188 = vunpack.c.l.b16 %v612
        %v1189 = vunpack.c.l.b16 %v613
        %v1190 = vunpack.c.l.b16 %v614
        %v1191 = vunpack.c.l.b16 %v615
        %v1192 = vunpack.c.l.b16 %v616
        %v1193 = vunpack.c.l.b16 %v617
        %v1194 = vunpack.c.l.b16 %v618
        %v1195 = vunpack.c.l.b16 %v619
        %v1196 = vunpack.c.l.b16 %v620
        %v1197 = vunpack.c.l.b16 %v621
        %v1198 = vunpack.c.l.b16 %v622
        %v1199 = vunpack.c.l.b16 %v623
        %v1200 = vunpack.c.l.b16 %v624
        %v1201 = vunpack.c.l.b16 %v625
        %v1202 = vunpack.c.l.b16 %v626
        %v1203 = vunpack.c.l.b16 %v627
        %v1204 = vunpack.c.l.b16 %v628
        %v1205 = vunpack.c.l.b16 %v629
        %v1206 = vunpack.c.l.b16 %v630
        %v1207 = vpack.c.b16 %v1080, %v1079
        %v1208 = vpack.c.b16 %v1082, %v1081
        %v1209 = vpack.c.b16 %v1084, %v1083
        %v1210 = vpack.c.b16 %v1086, %v1085
        %v1211 = vpack.c.b16 %v1088, %v1087
        %v1212 = vpack.c.b16 %v1090, %v1089
        %v1213 = vpack.c.b16 %v1092, %v1091
        %v1214 = vpack.c.b16 %v1094, %v1093
        %v1215 = vpack.c.b16 %v1096, %v1095
        %v1216 = vpack.c.b16 %v1098, %v1097
        %v1217 = vpack.c.b16 %v1100, %v1099
        %v1218 = vpack.c.b16 %v1102, %v1101
        %v1219 = vpack.c.b16 %v1104, %v1103
        %v1220 = vpack.c.b16 %v1106, %v1105
        %v1221 = vpack.c.b16 %v1108, %v1107
        %v1222 = vpack.c.b16 %v1110, %v1109
        %v1223 = vpack.c.b16 %v1112, %v1111
        %v1224 = vpack.c.b16 %v1114, %v1113
        %v1225 = vpack.c.b16 %v1116, %v1115
        %v1226 = vpack.c.b16 %v1118, %v1117
        %v1227 = vpack.c.b16 %v1120, %v1119
        %v1228 = vpack.c.b16 %v1122, %v1121
        %v1229 = vpack.c.b16 %v1124, %v1123
        %v1230 = vpack.c.b16 %v1126, %v1125
        %v1231 = vpack.c.b16 %v1128, %v1127
        %v1232 = vpack.c.b16 %v1130, %v1129
        %v1233 = vpack.c.b16 %v1132, %v1131
        %v1234 = vpack.c.b16 %v1134, %v1133
        %v1235 = vpack.c.b16 %v1136, %v1135
        %v1236 = vpack.c.b16 %v1138, %v1137
        %v1237 = vpack.c.b16 %v1140, %v1139
        %v1238 = vpack.c.b16 %v1142, %v1141
        %v1239 = vpack.c.b16 %v1144, %v1143
        %v1240 = vpack.c.b16 %v1146, %v1145
        %v1241 = vpack.c.b16 %v1148, %v1147
        %v1242 = vpack.c.b16 %v1150, %v1149
        %v1243 = vpack.c.b16 %v1152, %v1151
        %v1244 = vpack.c.b16 %v1154, %v1153
        %v1245 = vpack.c.b16 %v1156, %v1155
        %v1246 = vpack.c.b16 %v1158, %v1157
        %v1247 = vpack.c.b16 %v1160, %v1159
        %v1248 = vpack.c.b16 %v1162, %v1161
        %v1249 = vpack.c.b16 %v1164, %v1163
        %v1250 = vpack.c.b16 %v1166, %v1165
        %v1251 = vpack.c.b16 %v1168, %v1167
        %v1252 = vpack.c.b16 %v1170, %v1169
        %v1253 = vpack.c.b16 %v1172, %v1171
        %v1254 = vpack.c.b16 %v1174, %v1173
        %v1255 = vpack.c.b16 %v1176, %v1175
        %v1256 = vpack.c.b16 %v1178, %v1177
        %v1257 = vpack.c.b16 %v1180, %v1179
        %v1258 = vpack.c.b16 %v1182, %v1181
        %v1259 = vpack.c.b16 %v1184, %v1183
        %v1260 = vpack.c.b16 %v1186, %v1185
        %v1261 = vpack.c.b16 %v1188, %v1187
        %v1262 = vpack.c.b16 %v1190, %v1189
        %v1263 = vpack.c.b16 %v1192, %v1191
        %v1264 = vpack.c.b16 %v1194, %v1193
        %v1265 = vpack.c.b16 %v1196, %v1195
        %v1266 = vpack.c.b16 %v1198, %v1197
        %v1267 = vpack.c.b16 %v1200, %v1199
        %v1268 = vpack.c.b16 %v1202, %v1201
        %v1269 = vpack.c.b16 %v1204, %v1203
        %v1270 = vpack.c.b16 %v1206, %v1205
        %1335 = vmatprep.subr.bf16.mxu0 0
        %1336 = vmatpush1.bf16.msra.mxu0 %v1207
        %1337 = vmatprep.subr.bf16.mxu0 0
        %1338 = vmatpush1.bf16.msra.mxu0 %v1208
        %1339 = vmatprep.subr.bf16.mxu0 0
        %1340 = vmatpush1.bf16.msra.mxu0 %v1209
        %1341 = vmatprep.subr.bf16.mxu0 0
        %1342 = vmatpush1.bf16.msra.mxu0 %v1210
        %1343 = vmatprep.subr.bf16.mxu0 0
        %1344 = vmatpush1.bf16.msra.mxu0 %v1211
        %1345 = vmatprep.subr.bf16.mxu0 0
        %1346 = vmatpush1.bf16.msra.mxu0 %v1212
        %1347 = vmatprep.subr.bf16.mxu0 0
        %1348 = vmatpush1.bf16.msra.mxu0 %v1213
        %1349 = vmatprep.subr.bf16.mxu0 0
        %1350 = vmatpush1.bf16.msra.mxu0 %v1214
        %1351 = vmatprep.subr.bf16.mxu0 0
        %1352 = vmatpush1.bf16.msra.mxu0 %v1215
        %1353 = vmatprep.subr.bf16.mxu0 0
        %1354 = vmatpush1.bf16.msra.mxu0 %v1216
        %1355 = vmatprep.subr.bf16.mxu0 0
        %1356 = vmatpush1.bf16.msra.mxu0 %v1217
        %1357 = vmatprep.subr.bf16.mxu0 0
        %1358 = vmatpush1.bf16.msra.mxu0 %v1218
        %1359 = vmatprep.subr.bf16.mxu0 0
        %1360 = vmatpush1.bf16.msra.mxu0 %v1219
        %1361 = vmatprep.subr.bf16.mxu0 0
        %1362 = vmatpush1.bf16.msra.mxu0 %v1220
        %1363 = vmatprep.subr.bf16.mxu0 0
        %1364 = vmatpush1.bf16.msra.mxu0 %v1221
        %1365 = vmatprep.subr.bf16.mxu0 0
        %1366 = vmatpush1.bf16.msra.mxu0 %v1222
        %1367 = vmatprep.mubr.bf16.mxu0 %v824
        %1368 = vmatmul.mubr.bf16.gmra.mrb[0].mxu0 %v823
        %v1369 = vpop.f32.mrb[0].mxu0
        %v1370 = vadd.f32 0.0, %v1369
        %v1371 = vpop.f32.mrb[0].mxu0
        %v1372 = vpop.f32.mrb[0].mxu0
        %v1373 = vadd.f32 0.0, %v1372
        %v1374 = vpop.f32.mrb[0].mxu0
        %1375 = vmatprep.mubr.bf16.mxu0 %v832
        %1376 = vmatmul.mubr.bf16.gmra.mrb[0].mxu0 %v831
        %v1377 = vpop.f32.mrb[0].mxu0
        %v1378 = vadd.f32 0.0, %v1377
        %v1379 = vpop.f32.mrb[0].mxu0
        %v1380 = vpop.f32.mrb[0].mxu0
        %v1381 = vadd.f32 0.0, %v1380
        %v1382 = vpop.f32.mrb[0].mxu0
        %1383 = vmatprep.mubr.bf16.mxu0 %v840
        %1384 = vmatmul.mubr.bf16.gmra.mrb[0].mxu0 %v839
        %v1385 = vpop.f32.mrb[0].mxu0
        %v1386 = vadd.f32 0.0, %v1385
        %v1387 = vpop.f32.mrb[0].mxu0
        %v1388 = vpop.f32.mrb[0].mxu0
        %v1389 = vadd.f32 0.0, %v1388
        %v1390 = vpop.f32.mrb[0].mxu0
        %1391 = vmatprep.mubr.bf16.mxu0 %v848
        %1392 = vmatmul.mubr.bf16.gmra.mrb[0].mxu0 %v847
        %v1393 = vpop.f32.mrb[0].mxu0
        %v1394 = vadd.f32 0.0, %v1393
        %v1395 = vpop.f32.mrb[0].mxu0
        %v1396 = vpop.f32.mrb[0].mxu0
        %v1397 = vadd.f32 0.0, %v1396
        %v1398 = vpop.f32.mrb[0].mxu0
        %1399 = vmatprep.mubr.bf16.mxu0 %v856
        %1400 = vmatmul.mubr.bf16.gmra.mrb[0].mxu0 %v855
        %v1401 = vpop.f32.mrb[0].mxu0
        %v1402 = vadd.f32 0.0, %v1401
        %v1403 = vpop.f32.mrb[0].mxu0
        %v1404 = vpop.f32.mrb[0].mxu0
        %v1405 = vadd.f32 0.0, %v1404
        %v1406 = vpop.f32.mrb[0].mxu0
        %1407 = vmatprep.mubr.bf16.mxu0 %v864
        %1408 = vmatmul.mubr.bf16.gmra.mrb[0].mxu0 %v863
        %v1409 = vpop.f32.mrb[0].mxu0
        %v1410 = vadd.f32 0.0, %v1409
        %v1411 = vpop.f32.mrb[0].mxu0
        %v1412 = vpop.f32.mrb[0].mxu0
        %v1413 = vadd.f32 0.0, %v1412
        %v1414 = vpop.f32.mrb[0].mxu0
        %1415 = vmatprep.mubr.bf16.mxu0 %v872
        %1416 = vmatmul.mubr.bf16.gmra.mrb[0].mxu0 %v871
        %v1417 = vpop.f32.mrb[0].mxu0
        %v1418 = vadd.f32 0.0, %v1417
        %v1419 = vpop.f32.mrb[0].mxu0
        %v1420 = vpop.f32.mrb[0].mxu0
        %v1421 = vadd.f32 0.0, %v1420
        %v1422 = vpop.f32.mrb[0].mxu0
        %1423 = vmatprep.mubr.bf16.mxu0 %v880
        %1424 = vmatmul.mubr.bf16.gmra.mrb[0].mxu0 %v879
        %v1425 = vpop.f32.mrb[0].mxu0
        %v1426 = vadd.f32 0.0, %v1425
        %v1427 = vpop.f32.mrb[0].mxu0
        %v1428 = vpop.f32.mrb[0].mxu0
        %v1429 = vadd.f32 0.0, %v1428
        %v1430 = vpop.f32.mrb[0].mxu0
        %1431 = vdwg.mxu0
        %1432 = vmatprep.subr.bf16.mxu0 0
        %1433 = vmatpush1.bf16.msra.mxu0 %v1223
        %1434 = vmatprep.subr.bf16.mxu0 0
        %1435 = vmatpush1.bf16.msra.mxu0 %v1224
        %1436 = vmatprep.subr.bf16.mxu0 0
        %1437 = vmatpush1.bf16.msra.mxu0 %v1225
        %1438 = vmatprep.subr.bf16.mxu0 0
        %1439 = vmatpush1.bf16.msra.mxu0 %v1226
        %1440 = vmatprep.subr.bf16.mxu0 0
        %1441 = vmatpush1.bf16.msra.mxu0 %v1227
        %1442 = vmatprep.subr.bf16.mxu0 0
        %1443 = vmatpush1.bf16.msra.mxu0 %v1228
        %1444 = vmatprep.subr.bf16.mxu0 0
        %1445 = vmatpush1.bf16.msra.mxu0 %v1229
        %1446 = vmatprep.subr.bf16.mxu0 0
        %1447 = vmatpush1.bf16.msra.mxu0 %v1230
        %1448 = vmatprep.subr.bf16.mxu0 0
        %1449 = vmatpush1.bf16.msra.mxu0 %v1231
        %1450 = vmatprep.subr.bf16.mxu0 0
        %1451 = vmatpush1.bf16.msra.mxu0 %v1232
        %1452 = vmatprep.subr.bf16.mxu0 0
        %1453 = vmatpush1.bf16.msra.mxu0 %v1233
        %1454 = vmatprep.subr.bf16.mxu0 0
        %1455 = vmatpush1.bf16.msra.mxu0 %v1234
        %1456 = vmatprep.subr.bf16.mxu0 0
        %1457 = vmatpush1.bf16.msra.mxu0 %v1235
        %1458 = vmatprep.subr.bf16.mxu0 0
        %1459 = vmatpush1.bf16.msra.mxu0 %v1236
        %1460 = vmatprep.subr.bf16.mxu0 0
        %1461 = vmatpush1.bf16.msra.mxu0 %v1237
        %1462 = vmatprep.subr.bf16.mxu0 0
        %1463 = vmatpush1.bf16.msra.mxu0 %v1238
        %1464 = vmatprep.mubr.bf16.mxu0 %v826
        %1465 = vmatmul.mubr.bf16.gmra.mrb[0].mxu0 %v825
        %v1466 = vpop.f32.mrb[0].mxu0
        %v1467 = vadd.f32 %v1370, %v1466
        %v1468 = vpop.f32.mrb[0].mxu0
        %v1469 = vpop.f32.mrb[0].mxu0
        %v1470 = vadd.f32 %v1373, %v1469
        %v1471 = vpop.f32.mrb[0].mxu0
        %1472 = vmatprep.mubr.bf16.mxu0 %v834
        %1473 = vmatmul.mubr.bf16.gmra.mrb[0].mxu0 %v833
        %v1474 = vpop.f32.mrb[0].mxu0
        %v1475 = vadd.f32 %v1378, %v1474
        %v1476 = vpop.f32.mrb[0].mxu0
        %v1477 = vpop.f32.mrb[0].mxu0
        %v1478 = vadd.f32 %v1381, %v1477
        %v1479 = vpop.f32.mrb[0].mxu0
        %1480 = vmatprep.mubr.bf16.mxu0 %v842
        %1481 = vmatmul.mubr.bf16.gmra.mrb[0].mxu0 %v841
        %v1482 = vpop.f32.mrb[0].mxu0
        %v1483 = vadd.f32 %v1386, %v1482
        %v1484 = vpop.f32.mrb[0].mxu0
        %v1485 = vpop.f32.mrb[0].mxu0
        %v1486 = vadd.f32 %v1389, %v1485
        %v1487 = vpop.f32.mrb[0].mxu0
        %1488 = vmatprep.mubr.bf16.mxu0 %v850
        %1489 = vmatmul.mubr.bf16.gmra.mrb[0].mxu0 %v849
        %v1490 = vpop.f32.mrb[0].mxu0
        %v1491 = vadd.f32 %v1394, %v1490
        %v1492 = vpop.f32.mrb[0].mxu0
        %v1493 = vpop.f32.mrb[0].mxu0
        %v1494 = vadd.f32 %v1397, %v1493
        %v1495 = vpop.f32.mrb[0].mxu0
        %1496 = vmatprep.mubr.bf16.mxu0 %v858
        %1497 = vmatmul.mubr.bf16.gmra.mrb[0].mxu0 %v857
        %v1498 = vpop.f32.mrb[0].mxu0
        %v1499 = vadd.f32 %v1402, %v1498
        %v1500 = vpop.f32.mrb[0].mxu0
        %v1501 = vpop.f32.mrb[0].mxu0
        %v1502 = vadd.f32 %v1405, %v1501
        %v1503 = vpop.f32.mrb[0].mxu0
        %1504 = vmatprep.mubr.bf16.mxu0 %v866
        %1505 = vmatmul.mubr.bf16.gmra.mrb[0].mxu0 %v865
        %v1506 = vpop.f32.mrb[0].mxu0
        %v1507 = vadd.f32 %v1410, %v1506
        %v1508 = vpop.f32.mrb[0].mxu0
        %v1509 = vpop.f32.mrb[0].mxu0
        %v1510 = vadd.f32 %v1413, %v1509
        %v1511 = vpop.f32.mrb[0].mxu0
        %1512 = vmatprep.mubr.bf16.mxu0 %v874
        %1513 = vmatmul.mubr.bf16.gmra.mrb[0].mxu0 %v873
        %v1514 = vpop.f32.mrb[0].mxu0
        %v1515 = vadd.f32 %v1418, %v1514
        %v1516 = vpop.f32.mrb[0].mxu0
        %v1517 = vpop.f32.mrb[0].mxu0
        %v1518 = vadd.f32 %v1421, %v1517
        %v1519 = vpop.f32.mrb[0].mxu0
        %1520 = vmatprep.mubr.bf16.mxu0 %v882
        %1521 = vmatmul.mubr.bf16.gmra.mrb[0].mxu0 %v881
        %v1522 = vpop.f32.mrb[0].mxu0
        %v1523 = vadd.f32 %v1426, %v1522
        %v1524 = vpop.f32.mrb[0].mxu0
        %v1525 = vpop.f32.mrb[0].mxu0
        %v1526 = vadd.f32 %v1429, %v1525
        %v1527 = vpop.f32.mrb[0].mxu0
        %1528 = vdwg.mxu0
        %1529 = vmatprep.subr.bf16.mxu0 0
        %1530 = vmatpush1.bf16.msra.mxu0 %v1239
        %1531 = vmatprep.subr.bf16.mxu0 0
        %1532 = vmatpush1.bf16.msra.mxu0 %v1240
        %1533 = vmatprep.subr.bf16.mxu0 0
        %1534 = vmatpush1.bf16.msra.mxu0 %v1241
        %1535 = vmatprep.subr.bf16.mxu0 0
        %1536 = vmatpush1.bf16.msra.mxu0 %v1242
        %1537 = vmatprep.subr.bf16.mxu0 0
        %1538 = vmatpush1.bf16.msra.mxu0 %v1243
        %1539 = vmatprep.subr.bf16.mxu0 0
        %1540 = vmatpush1.bf16.msra.mxu0 %v1244
        %1541 = vmatprep.subr.bf16.mxu0 0
        %1542 = vmatpush1.bf16.msra.mxu0 %v1245
        %1543 = vmatprep.subr.bf16.mxu0 0
        %1544 = vmatpush1.bf16.msra.mxu0 %v1246
        %1545 = vmatprep.subr.bf16.mxu0 0
        %1546 = vmatpush1.bf16.msra.mxu0 %v1247
        %1547 = vmatprep.subr.bf16.mxu0 0
        %1548 = vmatpush1.bf16.msra.mxu0 %v1248
        %1549 = vmatprep.subr.bf16.mxu0 0
        %1550 = vmatpush1.bf16.msra.mxu0 %v1249
        %1551 = vmatprep.subr.bf16.mxu0 0
        %1552 = vmatpush1.bf16.msra.mxu0 %v1250
        %1553 = vmatprep.subr.bf16.mxu0 0
        %1554 = vmatpush1.bf16.msra.mxu0 %v1251
        %1555 = vmatprep.subr.bf16.mxu0 0
        %1556 = vmatpush1.bf16.msra.mxu0 %v1252
        %1557 = vmatprep.subr.bf16.mxu0 0
        %1558 = vmatpush1.bf16.msra.mxu0 %v1253
        %1559 = vmatprep.subr.bf16.mxu0 0
        %1560 = vmatpush1.bf16.msra.mxu0 %v1254
        %1561 = vmatprep.mubr.bf16.mxu0 %v828
        %1562 = vmatmul.mubr.bf16.gmra.mrb[0].mxu0 %v827
        %v1563 = vpop.f32.mrb[0].mxu0
        %v1564 = vadd.f32 %v1467, %v1563
        %v1565 = vpop.f32.mrb[0].mxu0
        %v1566 = vpop.f32.mrb[0].mxu0
        %v1567 = vadd.f32 %v1470, %v1566
        %v1568 = vpop.f32.mrb[0].mxu0
        %1569 = vmatprep.mubr.bf16.mxu0 %v836
        %1570 = vmatmul.mubr.bf16.gmra.mrb[0].mxu0 %v835
        %v1571 = vpop.f32.mrb[0].mxu0
        %v1572 = vadd.f32 %v1475, %v1571
        %v1573 = vpop.f32.mrb[0].mxu0
        %v1574 = vpop.f32.mrb[0].mxu0
        %v1575 = vadd.f32 %v1478, %v1574
        %v1576 = vpop.f32.mrb[0].mxu0
        %1577 = vmatprep.mubr.bf16.mxu0 %v844
        %1578 = vmatmul.mubr.bf16.gmra.mrb[0].mxu0 %v843
        %v1579 = vpop.f32.mrb[0].mxu0
        %v1580 = vadd.f32 %v1483, %v1579
        %v1581 = vpop.f32.mrb[0].mxu0
        %v1582 = vpop.f32.mrb[0].mxu0
        %v1583 = vadd.f32 %v1486, %v1582
        %v1584 = vpop.f32.mrb[0].mxu0
        %1585 = vmatprep.mubr.bf16.mxu0 %v852
        %1586 = vmatmul.mubr.bf16.gmra.mrb[0].mxu0 %v851
        %v1587 = vpop.f32.mrb[0].mxu0
        %v1588 = vadd.f32 %v1491, %v1587
        %v1589 = vpop.f32.mrb[0].mxu0
        %v1590 = vpop.f32.mrb[0].mxu0
        %v1591 = vadd.f32 %v1494, %v1590
        %v1592 = vpop.f32.mrb[0].mxu0
        %1593 = vmatprep.mubr.bf16.mxu0 %v860
        %1594 = vmatmul.mubr.bf16.gmra.mrb[0].mxu0 %v859
        %v1595 = vpop.f32.mrb[0].mxu0
        %v1596 = vadd.f32 %v1499, %v1595
        %v1597 = vpop.f32.mrb[0].mxu0
        %v1598 = vpop.f32.mrb[0].mxu0
        %v1599 = vadd.f32 %v1502, %v1598
        %v1600 = vpop.f32.mrb[0].mxu0
        %1601 = vmatprep.mubr.bf16.mxu0 %v868
        %1602 = vmatmul.mubr.bf16.gmra.mrb[0].mxu0 %v867
        %v1603 = vpop.f32.mrb[0].mxu0
        %v1604 = vadd.f32 %v1507, %v1603
        %v1605 = vpop.f32.mrb[0].mxu0
        %v1606 = vpop.f32.mrb[0].mxu0
        %v1607 = vadd.f32 %v1510, %v1606
        %v1608 = vpop.f32.mrb[0].mxu0
        %1609 = vmatprep.mubr.bf16.mxu0 %v876
        %1610 = vmatmul.mubr.bf16.gmra.mrb[0].mxu0 %v875
        %v1611 = vpop.f32.mrb[0].mxu0
        %v1612 = vadd.f32 %v1515, %v1611
        %v1613 = vpop.f32.mrb[0].mxu0
        %v1614 = vpop.f32.mrb[0].mxu0
        %v1615 = vadd.f32 %v1518, %v1614
        %v1616 = vpop.f32.mrb[0].mxu0
        %1617 = vmatprep.mubr.bf16.mxu0 %v884
        %1618 = vmatmul.mubr.bf16.gmra.mrb[0].mxu0 %v883
        %v1619 = vpop.f32.mrb[0].mxu0
        %v1620 = vadd.f32 %v1523, %v1619
        %v1621 = vpop.f32.mrb[0].mxu0
        %v1622 = vpop.f32.mrb[0].mxu0
        %v1623 = vadd.f32 %v1526, %v1622
        %v1624 = vpop.f32.mrb[0].mxu0
        %1625 = vdwg.mxu0
        %1626 = vmatprep.subr.bf16.mxu0 0
        %1627 = vmatpush1.bf16.msra.mxu0 %v1255
        %1628 = vmatprep.subr.bf16.mxu0 0
        %1629 = vmatpush1.bf16.msra.mxu0 %v1256
        %1630 = vmatprep.subr.bf16.mxu0 0
        %1631 = vmatpush1.bf16.msra.mxu0 %v1257
        %1632 = vmatprep.subr.bf16.mxu0 0
        %1633 = vmatpush1.bf16.msra.mxu0 %v1258
        %1634 = vmatprep.subr.bf16.mxu0 0
        %1635 = vmatpush1.bf16.msra.mxu0 %v1259
        %1636 = vmatprep.subr.bf16.mxu0 0
        %1637 = vmatpush1.bf16.msra.mxu0 %v1260
        %1638 = vmatprep.subr.bf16.mxu0 0
        %1639 = vmatpush1.bf16.msra.mxu0 %v1261
        %1640 = vmatprep.subr.bf16.mxu0 0
        %1641 = vmatpush1.bf16.msra.mxu0 %v1262
        %1642 = vmatprep.subr.bf16.mxu0 0
        %1643 = vmatpush1.bf16.msra.mxu0 %v1263
        %1644 = vmatprep.subr.bf16.mxu0 0
        %1645 = vmatpush1.bf16.msra.mxu0 %v1264
        %1646 = vmatprep.subr.bf16.mxu0 0
        %1647 = vmatpush1.bf16.msra.mxu0 %v1265
        %1648 = vmatprep.subr.bf16.mxu0 0
        %1649 = vmatpush1.bf16.msra.mxu0 %v1266
        %1650 = vmatprep.subr.bf16.mxu0 0
        %1651 = vmatpush1.bf16.msra.mxu0 %v1267
        %1652 = vmatprep.subr.bf16.mxu0 0
        %1653 = vmatpush1.bf16.msra.mxu0 %v1268
        %1654 = vmatprep.subr.bf16.mxu0 0
        %1655 = vmatpush1.bf16.msra.mxu0 %v1269
        %1656 = vmatprep.subr.bf16.mxu0 0
        %1657 = vmatpush1.bf16.msra.mxu0 %v1270
        %1658 = vmatprep.mubr.bf16.mxu0 %v830
        %1659 = vmatmul.mubr.bf16.gmra.mrb[0].mxu0 %v829
        %v1660 = vpop.f32.mrb[0].mxu0
        %v1661 = vadd.f32 %v1564, %v1660
        %v1662 = vpop.f32.mrb[0].mxu0
        %v1663 = vpop.f32.mrb[0].mxu0
        %v1664 = vadd.f32 %v1567, %v1663
        %v1665 = vpop.f32.mrb[0].mxu0
        %1666 = vmatprep.mubr.bf16.mxu0 %v838
        %1667 = vmatmul.mubr.bf16.gmra.mrb[0].mxu0 %v837
        %v1668 = vpop.f32.mrb[0].mxu0
        %v1669 = vadd.f32 %v1572, %v1668
        %v1670 = vpop.f32.mrb[0].mxu0
        %v1671 = vpop.f32.mrb[0].mxu0
        %v1672 = vadd.f32 %v1575, %v1671
        %v1673 = vpop.f32.mrb[0].mxu0
        %1674 = vmatprep.mubr.bf16.mxu0 %v846
        %1675 = vmatmul.mubr.bf16.gmra.mrb[0].mxu0 %v845
        %v1676 = vpop.f32.mrb[0].mxu0
        %v1677 = vadd.f32 %v1580, %v1676
        %v1678 = vpop.f32.mrb[0].mxu0
        %v1679 = vpop.f32.mrb[0].mxu0
        %v1680 = vadd.f32 %v1583, %v1679
        %v1681 = vpop.f32.mrb[0].mxu0
        %1682 = vmatprep.mubr.bf16.mxu0 %v854
        %1683 = vmatmul.mubr.bf16.gmra.mrb[0].mxu0 %v853
        %v1684 = vpop.f32.mrb[0].mxu0
        %v1685 = vadd.f32 %v1588, %v1684
        %v1686 = vpop.f32.mrb[0].mxu0
        %v1687 = vpop.f32.mrb[0].mxu0
        %v1688 = vadd.f32 %v1591, %v1687
        %v1689 = vpop.f32.mrb[0].mxu0
        %1690 = vmatprep.mubr.bf16.mxu0 %v862
        %1691 = vmatmul.mubr.bf16.gmra.mrb[0].mxu0 %v861
        %v1692 = vpop.f32.mrb[0].mxu0
        %v1693 = vadd.f32 %v1596, %v1692
        %v1694 = vpop.f32.mrb[0].mxu0
        %v1695 = vpop.f32.mrb[0].mxu0
        %v1696 = vadd.f32 %v1599, %v1695
        %v1697 = vpop.f32.mrb[0].mxu0
        %1698 = vmatprep.mubr.bf16.mxu0 %v870
        %1699 = vmatmul.mubr.bf16.gmra.mrb[0].mxu0 %v869
        %v1700 = vpop.f32.mrb[0].mxu0
        %v1701 = vadd.f32 %v1604, %v1700
        %v1702 = vpop.f32.mrb[0].mxu0
        %v1703 = vpop.f32.mrb[0].mxu0
        %v1704 = vadd.f32 %v1607, %v1703
        %v1705 = vpop.f32.mrb[0].mxu0
        %1706 = vmatprep.mubr.bf16.mxu0 %v878
        %1707 = vmatmul.mubr.bf16.gmra.mrb[0].mxu0 %v877
        %v1708 = vpop.f32.mrb[0].mxu0
        %v1709 = vadd.f32 %v1612, %v1708
        %v1710 = vpop.f32.mrb[0].mxu0
        %v1711 = vpop.f32.mrb[0].mxu0
        %v1712 = vadd.f32 %v1615, %v1711
        %v1713 = vpop.f32.mrb[0].mxu0
        %1714 = vmatprep.mubr.bf16.mxu0 %v886
        %1715 = vmatmul.mubr.bf16.gmra.mrb[0].mxu0 %v885
        %v1716 = vpop.f32.mrb[0].mxu0
        %v1717 = vadd.f32 %v1620, %v1716
        %v1718 = vpop.f32.mrb[0].mxu0
        %v1719 = vpop.f32.mrb[0].mxu0
        %v1720 = vadd.f32 %v1623, %v1719
        %v1721 = vpop.f32.mrb[0].mxu0
        %1722 = vdwg.mxu0
        %v1723 = vadd.f32 %v423, %v1661
        %v1724 = vadd.f32 %v424, %v1664
        %v1725 = vadd.f32 %v425, %v1669
        %v1726 = vadd.f32 %v426, %v1672
        %v1727 = vadd.f32 %v427, %v1677
        %v1728 = vadd.f32 %v428, %v1680
        %v1729 = vadd.f32 %v429, %v1685
        %v1730 = vadd.f32 %v430, %v1688
        %v1731 = vadd.f32 %v431, %v1693
        %v1732 = vadd.f32 %v432, %v1696
        %v1733 = vadd.f32 %v433, %v1701
        %v1734 = vadd.f32 %v434, %v1704
        %v1735 = vadd.f32 %v435, %v1709
        %v1736 = vadd.f32 %v436, %v1712
        %v1737 = vadd.f32 %v437, %v1717
        %v1738 = vadd.f32 %v438, %v1720
        %1739 = vst [vmem:[%s400] sm:$0xff] %v1723
        %1740 = vst [vmem:[%s400 + $0x8] sm:$0xff] %v1724
        %1741 = vst [vmem:[%s400 + $0x10] sm:$0xff] %v1725
        %1742 = vst [vmem:[%s400 + $0x18] sm:$0xff] %v1726
        %1743 = vst [vmem:[%s400 + $0x20] sm:$0xff] %v1727
        %1744 = vst [vmem:[%s400 + $0x28] sm:$0xff] %v1728
        %1745 = vst [vmem:[%s400 + $0x30] sm:$0xff] %v1729
        %1746 = vst [vmem:[%s400 + $0x38] sm:$0xff] %v1730
        %1747 = vst [vmem:[%s400 + $0x40] sm:$0xff] %v1731
        %1748 = vst [vmem:[%s400 + $0x48] sm:$0xff] %v1732
        %1749 = vst [vmem:[%s400 + $0x50] sm:$0xff] %v1733
        %1750 = vst [vmem:[%s400 + $0x58] sm:$0xff] %v1734
        %1751 = vst [vmem:[%s400 + $0x60] sm:$0xff] %v1735
        %1752 = vst [vmem:[%s400 + $0x68] sm:$0xff] %v1736
        %1753 = vst [vmem:[%s400 + $0x70] sm:$0xff] %v1737
        %1754 = vst [vmem:[%s400 + $0x78] sm:$0xff] %v1738
        %p1755 = scmp.eq.s32.totalorder %s21, 1
        // Predicated region
        $region60: #{conv1d_base_net_forward.9} parent=50 // pred_check
          %p1756 = pneg %p1755
        $region61: #{conv1d_base_net_forward.9} parent=50 // pred_check_branch
          %1758 = sbr.rel (%p1756) target = $region63
        $region62: #{conv1d_base_net_forward.9} parent=50 // pred_region
          %v1759 = vld [vmem:[%s400] sm:$0xff]
          %v1760 = vld [vmem:[%s400 + $0x8] sm:$0xff]
          %v1761 = vld [vmem:[%s400 + $0x10] sm:$0xff]
          %v1762 = vld [vmem:[%s400 + $0x18] sm:$0xff]
          %v1763 = vld [vmem:[%s400 + $0x20] sm:$0xff]
          %v1764 = vld [vmem:[%s400 + $0x28] sm:$0xff]
          %v1765 = vld [vmem:[%s400 + $0x30] sm:$0xff]
          %v1766 = vld [vmem:[%s400 + $0x38] sm:$0xff]
          %v1767 = vld [vmem:[%s400 + $0x40] sm:$0xff]
          %v1768 = vld [vmem:[%s400 + $0x48] sm:$0xff]
          %v1769 = vld [vmem:[%s400 + $0x50] sm:$0xff]
          %v1770 = vld [vmem:[%s400 + $0x58] sm:$0xff]
          %v1771 = vld [vmem:[%s400 + $0x60] sm:$0xff]
          %v1772 = vld [vmem:[%s400 + $0x68] sm:$0xff]
          %v1773 = vld [vmem:[%s400 + $0x70] sm:$0xff]
          %v1774 = vld [vmem:[%s400 + $0x78] sm:$0xff]
          %v1775 = vld [vmem:[%s392] sm:$0x1]
          %v1776 = vlaneseq
          %v1777 = vshrl.u32 %v1776, 7
          %v1778 = vsub.s32 0, %v1777
          %v1779 = vrot.slane %v1775, %v1778
          %v1780 = vadd.f32 %v1759, %v1779
          %v1781 = vadd.f32 %v1760, %v1779
          %v1782 = vadd.f32 %v1761, %v1779
          %v1783 = vadd.f32 %v1762, %v1779
          %v1784 = vadd.f32 %v1763, %v1779
          %v1785 = vadd.f32 %v1764, %v1779
          %v1786 = vadd.f32 %v1765, %v1779
          %v1787 = vadd.f32 %v1766, %v1779
          %v1788 = vadd.f32 %v1767, %v1779
          %v1789 = vadd.f32 %v1768, %v1779
          %v1790 = vadd.f32 %v1769, %v1779
          %v1791 = vadd.f32 %v1770, %v1779
          %v1792 = vadd.f32 %v1771, %v1779
          %v1793 = vadd.f32 %v1772, %v1779
          %v1794 = vadd.f32 %v1773, %v1779
          %v1795 = vadd.f32 %v1774, %v1779
          %v1796 = vmax.f32 %v1780, 0.0
          %v1797 = vmax.f32 %v1781, 0.0
          %v1798 = vmax.f32 %v1782, 0.0
          %v1799 = vmax.f32 %v1783, 0.0
          %v1800 = vmax.f32 %v1784, 0.0
          %v1801 = vmax.f32 %v1785, 0.0
          %v1802 = vmax.f32 %v1786, 0.0
          %v1803 = vmax.f32 %v1787, 0.0
          %v1804 = vmax.f32 %v1788, 0.0
          %v1805 = vmax.f32 %v1789, 0.0
          %v1806 = vmax.f32 %v1790, 0.0
          %v1807 = vmax.f32 %v1791, 0.0
          %v1808 = vmax.f32 %v1792, 0.0
          %v1809 = vmax.f32 %v1793, 0.0
          %v1810 = vmax.f32 %v1794, 0.0
          %v1811 = vmax.f32 %v1795, 0.0
          %v1812 = vld [vmem:[%s392 + $0x1] sm:$0x1]
          %v1813 = vlaneseq
          %v1814 = vshrl.u32 %v1813, 7
          %v1815 = vsub.s32 0, %v1814
          %v1816 = vrot.slane %v1812, %v1815
          %v1817 = vmul.f32 %v1796, %v1816
          %v1818 = vmul.f32 %v1797, %v1816
          %v1819 = vmul.f32 %v1798, %v1816
          %v1820 = vmul.f32 %v1799, %v1816
          %v1821 = vmul.f32 %v1800, %v1816
          %v1822 = vmul.f32 %v1801, %v1816
          %v1823 = vmul.f32 %v1802, %v1816
          %v1824 = vmul.f32 %v1803, %v1816
          %v1825 = vmul.f32 %v1804, %v1816
          %v1826 = vmul.f32 %v1805, %v1816
          %v1827 = vmul.f32 %v1806, %v1816
          %v1828 = vmul.f32 %v1807, %v1816
          %v1829 = vmul.f32 %v1808, %v1816
          %v1830 = vmul.f32 %v1809, %v1816
          %v1831 = vmul.f32 %v1810, %v1816
          %v1832 = vmul.f32 %v1811, %v1816
          %v1833 = vld [vmem:[%s392 + $0x2] sm:$0x1]
          %v1834 = vlaneseq
          %v1835 = vshrl.u32 %v1834, 7
          %v1836 = vsub.s32 0, %v1835
          %v1837 = vrot.slane %v1833, %v1836
          %v1838 = vadd.f32 %v1817, %v1837
          %v1839 = vadd.f32 %v1818, %v1837
          %v1840 = vadd.f32 %v1819, %v1837
          %v1841 = vadd.f32 %v1820, %v1837
          %v1842 = vadd.f32 %v1821, %v1837
          %v1843 = vadd.f32 %v1822, %v1837
          %v1844 = vadd.f32 %v1823, %v1837
          %v1845 = vadd.f32 %v1824, %v1837
          %v1846 = vadd.f32 %v1825, %v1837
          %v1847 = vadd.f32 %v1826, %v1837
          %v1848 = vadd.f32 %v1827, %v1837
          %v1849 = vadd.f32 %v1828, %v1837
          %v1850 = vadd.f32 %v1829, %v1837
          %v1851 = vadd.f32 %v1830, %v1837
          %v1852 = vadd.f32 %v1831, %v1837
          %v1853 = vadd.f32 %v1832, %v1837
          %1854 = vst [vmem:[%s400] sm:$0xff] %v1838
          %1855 = vst [vmem:[%s400 + $0x8] sm:$0xff] %v1839
          %1856 = vst [vmem:[%s400 + $0x10] sm:$0xff] %v1840
          %1857 = vst [vmem:[%s400 + $0x18] sm:$0xff] %v1841
          %1858 = vst [vmem:[%s400 + $0x20] sm:$0xff] %v1842
          %1859 = vst [vmem:[%s400 + $0x28] sm:$0xff] %v1843
          %1860 = vst [vmem:[%s400 + $0x30] sm:$0xff] %v1844
          %1861 = vst [vmem:[%s400 + $0x38] sm:$0xff] %v1845
          %1862 = vst [vmem:[%s400 + $0x40] sm:$0xff] %v1846
          %1863 = vst [vmem:[%s400 + $0x48] sm:$0xff] %v1847
          %1864 = vst [vmem:[%s400 + $0x50] sm:$0xff] %v1848
          %1865 = vst [vmem:[%s400 + $0x58] sm:$0xff] %v1849
          %1866 = vst [vmem:[%s400 + $0x60] sm:$0xff] %v1850
          %1867 = vst [vmem:[%s400 + $0x68] sm:$0xff] %v1851
          %1868 = vst [vmem:[%s400 + $0x70] sm:$0xff] %v1852
          %1869 = vst [vmem:[%s400 + $0x78] sm:$0xff] %v1853
        $region63: #{conv1d_base_net_forward.9} parent=50 // pred_fallthru
          _
        %s1870 = smul.u32 16, %s19
        %p1871 = scmp.lt.s32.totalorder %s1870, 15
        %s1872 = scalar_select %p1871, %s1870, 15
        %p1873 = scmp.lt.s32.totalorder %s20, 0
        %s1874 = scalar_select %p1873, %s20, 0
        %s1875 = sadd.s32 %s1874, %s1872
        %s1876 = smul.addr %s1875, 8
        %s1877 = scalar_lea.vmem %s3, %s1876
        // Predicated region
        $region64: #{conv1d_base_net_forward.9} parent=50 // pred_check
          %p1878 = pneg %p135
        $region65: #{conv1d_base_net_forward.9} parent=50 // pred_check_branch
          %1880 = sbr.rel (%p1878) target = $region67
        $region66: #{conv1d_base_net_forward.9} parent=50 // pred_region
          %s1881 = smul.u32 16, %s19
        $region67: #{conv1d_base_net_forward.9} parent=50 // pred_fallthru
          _
        // Predicated region
        $region68: #{conv1d_base_net_forward.9} parent=50 // pred_check
          %p1882 = pneg %p135
        $region69: #{conv1d_base_net_forward.9} parent=50 // pred_check_branch
          %1884 = sbr.rel (%p1882) target = $region71
        $region70: #{conv1d_base_net_forward.9} parent=50 // pred_region
          %s1885 = smul.u32 16, %s19
          %p1886 = scmp.lt.s32.totalorder %s1885, 15
          %s1887 = scalar_select %p1886, %s1885, 15
          %p1888 = scmp.lt.s32.totalorder %s20, 0
          %s1889 = scalar_select %p1888, %s20, 0
          %s1890 = sadd.s32 %s1889, %s1887
          %s1891 = smul.addr %s1890, 8
          %s1892 = scalar_lea.vmem %s3, %s1891
        $region71: #{conv1d_base_net_forward.9} parent=50 // pred_fallthru
          _
      $region51: #{conv1d_base_net_forward.9} parent=5 // pred_fallthru
        _
      %p1893 = scmp.le.s32.totalorder 2, %s9
      // Predicated region
      $region72: #{conv1d_base_net_forward.9} parent=5 // pred_check
        %p1894 = pneg %p1893
      $region73: #{conv1d_base_net_forward.9} parent=5 // pred_check_branch
        %1896 = sbr.rel (%p1894) target = $region75
      $region74: #{conv1d_base_net_forward.9} parent=5 // pred_region
        %s1897 = ssub.s32 %s9, 2
      $region75: #{conv1d_base_net_forward.9} parent=5 // pred_fallthru
        _
    $region6: #{conv1d_base_net_forward.9} parent=1 // loop_footer
      %s13 = sadd.s32 1, %s9
    $region7: #{conv1d_base_net_forward.9} parent=1 // loop_footer_branch
      %8 = sbr.rel target = $region3
    $region8: #{conv1d_base_net_forward.9} parent=1 // loop_exit
      _

// kernel: conv1d_base_net_forward.10
$region0: #{conv1d_base_net_forward.10}
  #allocation0 [shape = 'u32[]', space=smem, size = 0x4, offset = 0x4, fixed_abs, tag = 'smem constant byte address 0x4 - core index']
  #allocation1 [shape = 'u32[144,128]{1,0:T(1,128)}', space=vmem, size = 0x12000, scoped, tag = 'internal scratch']
  %s0 = inlined_call_operand.vmem [shape: bf16[64,1024], index: 0, kind: input, shape index: {}]
  %s1 = inlined_call_operand.vmem [shape: bf16[1024,128], index: 1, kind: input, shape index: {}]
  %s2 = inlined_call_operand.vmem [shape: f32[3,128], index: 2, kind: input, shape index: {}]
  %s3 = inlined_call_operand.vmem [shape: f32[64,128], index: 3, kind: output, shape index: {}]
  %s4 = sld [smem:[#allocation0]]
  $region30: #{conv1d_base_net_forward.10} parent=0
    _
  %s6 = ssub.s32 1, %s4
  %s7 = scalar_select 0, %s6, %s4
  // Predicated region
  $region2: #{conv1d_base_net_forward.10} parent=0 // pred_check
    _
  $region3: #{conv1d_base_net_forward.10} parent=0 // pred_check_branch
    %9 = sbr.rel (0) target = $region5
  $region4: #{conv1d_base_net_forward.10} parent=0 // pred_region
    _
  $region5: #{conv1d_base_net_forward.10} parent=0 // pred_fallthru
    _
  // Predicated region
  $region6: #{conv1d_base_net_forward.10} parent=0 // pred_check
    _
  $region7: #{conv1d_base_net_forward.10} parent=0 // pred_check_branch
    %11 = sbr.rel (0) target = $region9
  $region8: #{conv1d_base_net_forward.10} parent=0 // pred_region
    _
  $region9: #{conv1d_base_net_forward.10} parent=0 // pred_fallthru
    _
  // Predicated region
  $region10: #{conv1d_base_net_forward.10} parent=0 // pred_check
    _
  $region11: #{conv1d_base_net_forward.10} parent=0 // pred_check_branch
    %13 = sbr.rel (0) target = $region13
  $region12: #{conv1d_base_net_forward.10} parent=0 // pred_region
    _
  $region13: #{conv1d_base_net_forward.10} parent=0 // pred_fallthru
    _
  %p15 = scmp.eq.s32.totalorder 0, 0
  // Predicated region
  $region14: #{conv1d_base_net_forward.10} parent=0 // pred_check
    %p16 = pneg %p15
  $region15: #{conv1d_base_net_forward.10} parent=0 // pred_check_branch
    %18 = sbr.rel (%p16) target = $region17
  $region16: #{conv1d_base_net_forward.10} parent=0 // pred_region
    %19 = vst [vmem:[%s3] sm:$0xff] 0.0
    %20 = vst [vmem:[%s3 + $0x8] sm:$0xff] 0.0
    %21 = vst [vmem:[%s3 + $0x10] sm:$0xff] 0.0
    %22 = vst [vmem:[%s3 + $0x18] sm:$0xff] 0.0
    %23 = vst [vmem:[%s3 + $0x20] sm:$0xff] 0.0
    %24 = vst [vmem:[%s3 + $0x28] sm:$0xff] 0.0
    %25 = vst [vmem:[%s3 + $0x30] sm:$0xff] 0.0
    %26 = vst [vmem:[%s3 + $0x38] sm:$0xff] 0.0
  $region17: #{conv1d_base_net_forward.10} parent=0 // pred_fallthru
    _
  %v27 = vld [vmem:[%s3] sm:$0xff]
  %v28 = vld [vmem:[%s3 + $0x8] sm:$0xff]
  %v29 = vld [vmem:[%s3 + $0x10] sm:$0xff]
  %v30 = vld [vmem:[%s3 + $0x18] sm:$0xff]
  %v31 = vld [vmem:[%s3 + $0x20] sm:$0xff]
  %v32 = vld [vmem:[%s3 + $0x28] sm:$0xff]
  %v33 = vld [vmem:[%s3 + $0x30] sm:$0xff]
  %v34 = vld [vmem:[%s3 + $0x38] sm:$0xff]
  %v35 = vld [vmem:[%s0] sm:$0xff]
  %v36 = vld [vmem:[%s0 + $0x8] sm:$0xff]
  %v37 = vld [vmem:[%s0 + $0x10] sm:$0xff]
  %v38 = vld [vmem:[%s0 + $0x18] sm:$0xff]
  %v39 = vld [vmem:[%s0 + $0x20] sm:$0xff]
  %v40 = vld [vmem:[%s0 + $0x28] sm:$0xff]
  %v41 = vld [vmem:[%s0 + $0x30] sm:$0xff]
  %v42 = vld [vmem:[%s0 + $0x38] sm:$0xff]
  %v43 = vld [vmem:[%s0 + $0x40] sm:$0xff]
  %v44 = vld [vmem:[%s0 + $0x48] sm:$0xff]
  %v45 = vld [vmem:[%s0 + $0x50] sm:$0xff]
  %v46 = vld [vmem:[%s0 + $0x58] sm:$0xff]
  %v47 = vld [vmem:[%s0 + $0x60] sm:$0xff]
  %v48 = vld [vmem:[%s0 + $0x68] sm:$0xff]
  %v49 = vld [vmem:[%s0 + $0x70] sm:$0xff]
  %v50 = vld [vmem:[%s0 + $0x78] sm:$0xff]
  %v51 = vld [vmem:[%s0 + $0x80] sm:$0xff]
  %v52 = vld [vmem:[%s0 + $0x88] sm:$0xff]
  %v53 = vld [vmem:[%s0 + $0x90] sm:$0xff]
  %v54 = vld [vmem:[%s0 + $0x98] sm:$0xff]
  %v55 = vld [vmem:[%s0 + $0xa0] sm:$0xff]
  %v56 = vld [vmem:[%s0 + $0xa8] sm:$0xff]
  %v57 = vld [vmem:[%s0 + $0xb0] sm:$0xff]
  %v58 = vld [vmem:[%s0 + $0xb8] sm:$0xff]
  %v59 = vld [vmem:[%s0 + $0xc0] sm:$0xff]
  %v60 = vld [vmem:[%s0 + $0xc8] sm:$0xff]
  %v61 = vld [vmem:[%s0 + $0xd0] sm:$0xff]
  %v62 = vld [vmem:[%s0 + $0xd8] sm:$0xff]
  %v63 = vld [vmem:[%s0 + $0xe0] sm:$0xff]
  %v64 = vld [vmem:[%s0 + $0xe8] sm:$0xff]
  %v65 = vld [vmem:[%s0 + $0xf0] sm:$0xff]
  %v66 = vld [vmem:[%s0 + $0xf8] sm:$0xff]
  %v67 = vld [vmem:[%s1] sm:$0xf]
  %v68 = vld [vmem:[%s1 + $0x4] sm:$0xf]
  %v69 = vld [vmem:[%s1 + $0x8] sm:$0xf]
  %v70 = vld [vmem:[%s1 + $0xc] sm:$0xf]
  %v71 = vld [vmem:[%s1 + $0x10] sm:$0xf]
  %v72 = vld [vmem:[%s1 + $0x14] sm:$0xf]
  %v73 = vld [vmem:[%s1 + $0x18] sm:$0xf]
  %v74 = vld [vmem:[%s1 + $0x1c] sm:$0xf]
  %v75 = vld [vmem:[%s1 + $0x20] sm:$0xf]
  %v76 = vld [vmem:[%s1 + $0x24] sm:$0xf]
  %v77 = vld [vmem:[%s1 + $0x28] sm:$0xf]
  %v78 = vld [vmem:[%s1 + $0x2c] sm:$0xf]
  %v79 = vld [vmem:[%s1 + $0x30] sm:$0xf]
  %v80 = vld [vmem:[%s1 + $0x34] sm:$0xf]
  %v81 = vld [vmem:[%s1 + $0x38] sm:$0xf]
  %v82 = vld [vmem:[%s1 + $0x3c] sm:$0xf]
  %v83 = vld [vmem:[%s1 + $0x40] sm:$0xf]
  %v84 = vld [vmem:[%s1 + $0x44] sm:$0xf]
  %v85 = vld [vmem:[%s1 + $0x48] sm:$0xf]
  %v86 = vld [vmem:[%s1 + $0x4c] sm:$0xf]
  %v87 = vld [vmem:[%s1 + $0x50] sm:$0xf]
  %v88 = vld [vmem:[%s1 + $0x54] sm:$0xf]
  %v89 = vld [vmem:[%s1 + $0x58] sm:$0xf]
  %v90 = vld [vmem:[%s1 + $0x5c] sm:$0xf]
  %v91 = vld [vmem:[%s1 + $0x60] sm:$0xf]
  %v92 = vld [vmem:[%s1 + $0x64] sm:$0xf]
  %v93 = vld [vmem:[%s1 + $0x68] sm:$0xf]
  %v94 = vld [vmem:[%s1 + $0x6c] sm:$0xf]
  %v95 = vld [vmem:[%s1 + $0x70] sm:$0xf]
  %v96 = vld [vmem:[%s1 + $0x74] sm:$0xf]
  %v97 = vld [vmem:[%s1 + $0x78] sm:$0xf]
  %v98 = vld [vmem:[%s1 + $0x7c] sm:$0xf]
  %v99 = vld [vmem:[%s1 + $0x80] sm:$0xf]
  %v100 = vld [vmem:[%s1 + $0x84] sm:$0xf]
  %v101 = vld [vmem:[%s1 + $0x88] sm:$0xf]
  %v102 = vld [vmem:[%s1 + $0x8c] sm:$0xf]
  %v103 = vld [vmem:[%s1 + $0x90] sm:$0xf]
  %v104 = vld [vmem:[%s1 + $0x94] sm:$0xf]
  %v105 = vld [vmem:[%s1 + $0x98] sm:$0xf]
  %v106 = vld [vmem:[%s1 + $0x9c] sm:$0xf]
  %v107 = vld [vmem:[%s1 + $0xa0] sm:$0xf]
  %v108 = vld [vmem:[%s1 + $0xa4] sm:$0xf]
  %v109 = vld [vmem:[%s1 + $0xa8] sm:$0xf]
  %v110 = vld [vmem:[%s1 + $0xac] sm:$0xf]
  %v111 = vld [vmem:[%s1 + $0xb0] sm:$0xf]
  %v112 = vld [vmem:[%s1 + $0xb4] sm:$0xf]
  %v113 = vld [vmem:[%s1 + $0xb8] sm:$0xf]
  %v114 = vld [vmem:[%s1 + $0xbc] sm:$0xf]
  %v115 = vld [vmem:[%s1 + $0xc0] sm:$0xf]
  %v116 = vld [vmem:[%s1 + $0xc4] sm:$0xf]
  %v117 = vld [vmem:[%s1 + $0xc8] sm:$0xf]
  %v118 = vld [vmem:[%s1 + $0xcc] sm:$0xf]
  %v119 = vld [vmem:[%s1 + $0xd0] sm:$0xf]
  %v120 = vld [vmem:[%s1 + $0xd4] sm:$0xf]
  %v121 = vld [vmem:[%s1 + $0xd8] sm:$0xf]
  %v122 = vld [vmem:[%s1 + $0xdc] sm:$0xf]
  %v123 = vld [vmem:[%s1 + $0xe0] sm:$0xf]
  %v124 = vld [vmem:[%s1 + $0xe4] sm:$0xf]
  %v125 = vld [vmem:[%s1 + $0xe8] sm:$0xf]
  %v126 = vld [vmem:[%s1 + $0xec] sm:$0xf]
  %v127 = vld [vmem:[%s1 + $0xf0] sm:$0xf]
  %v128 = vld [vmem:[%s1 + $0xf4] sm:$0xf]
  %v129 = vld [vmem:[%s1 + $0xf8] sm:$0xf]
  %v130 = vld [vmem:[%s1 + $0xfc] sm:$0xf]
  %v131 = vld [vmem:[%s1 + $0x100] sm:$0xf]
  %v132 = vld [vmem:[%s1 + $0x104] sm:$0xf]
  %v133 = vld [vmem:[%s1 + $0x108] sm:$0xf]
  %v134 = vld [vmem:[%s1 + $0x10c] sm:$0xf]
  %v135 = vld [vmem:[%s1 + $0x110] sm:$0xf]
  %v136 = vld [vmem:[%s1 + $0x114] sm:$0xf]
  %v137 = vld [vmem:[%s1 + $0x118] sm:$0xf]
  %v138 = vld [vmem:[%s1 + $0x11c] sm:$0xf]
  %v139 = vld [vmem:[%s1 + $0x120] sm:$0xf]
  %v140 = vld [vmem:[%s1 + $0x124] sm:$0xf]
  %v141 = vld [vmem:[%s1 + $0x128] sm:$0xf]
  %v142 = vld [vmem:[%s1 + $0x12c] sm:$0xf]
  %v143 = vld [vmem:[%s1 + $0x130] sm:$0xf]
  %v144 = vld [vmem:[%s1 + $0x134] sm:$0xf]
  %v145 = vld [vmem:[%s1 + $0x138] sm:$0xf]
  %v146 = vld [vmem:[%s1 + $0x13c] sm:$0xf]
  %v147 = vld [vmem:[%s1 + $0x140] sm:$0xf]
  %v148 = vld [vmem:[%s1 + $0x144] sm:$0xf]
  %v149 = vld [vmem:[%s1 + $0x148] sm:$0xf]
  %v150 = vld [vmem:[%s1 + $0x14c] sm:$0xf]
  %v151 = vld [vmem:[%s1 + $0x150] sm:$0xf]
  %v152 = vld [vmem:[%s1 + $0x154] sm:$0xf]
  %v153 = vld [vmem:[%s1 + $0x158] sm:$0xf]
  %v154 = vld [vmem:[%s1 + $0x15c] sm:$0xf]
  %v155 = vld [vmem:[%s1 + $0x160] sm:$0xf]
  %v156 = vld [vmem:[%s1 + $0x164] sm:$0xf]
  %v157 = vld [vmem:[%s1 + $0x168] sm:$0xf]
  %v158 = vld [vmem:[%s1 + $0x16c] sm:$0xf]
  %v159 = vld [vmem:[%s1 + $0x170] sm:$0xf]
  %v160 = vld [vmem:[%s1 + $0x174] sm:$0xf]
  %v161 = vld [vmem:[%s1 + $0x178] sm:$0xf]
  %v162 = vld [vmem:[%s1 + $0x17c] sm:$0xf]
  %v163 = vld [vmem:[%s1 + $0x180] sm:$0xf]
  %v164 = vld [vmem:[%s1 + $0x184] sm:$0xf]
  %v165 = vld [vmem:[%s1 + $0x188] sm:$0xf]
  %v166 = vld [vmem:[%s1 + $0x18c] sm:$0xf]
  %v167 = vld [vmem:[%s1 + $0x190] sm:$0xf]
  %v168 = vld [vmem:[%s1 + $0x194] sm:$0xf]
  %v169 = vld [vmem:[%s1 + $0x198] sm:$0xf]
  %v170 = vld [vmem:[%s1 + $0x19c] sm:$0xf]
  %v171 = vld [vmem:[%s1 + $0x1a0] sm:$0xf]
  %v172 = vld [vmem:[%s1 + $0x1a4] sm:$0xf]
  %v173 = vld [vmem:[%s1 + $0x1a8] sm:$0xf]
  %v174 = vld [vmem:[%s1 + $0x1ac] sm:$0xf]
  %v175 = vld [vmem:[%s1 + $0x1b0] sm:$0xf]
  %v176 = vld [vmem:[%s1 + $0x1b4] sm:$0xf]
  %v177 = vld [vmem:[%s1 + $0x1b8] sm:$0xf]
  %v178 = vld [vmem:[%s1 + $0x1bc] sm:$0xf]
  %v179 = vld [vmem:[%s1 + $0x1c0] sm:$0xf]
  %v180 = vld [vmem:[%s1 + $0x1c4] sm:$0xf]
  %v181 = vld [vmem:[%s1 + $0x1c8] sm:$0xf]
  %v182 = vld [vmem:[%s1 + $0x1cc] sm:$0xf]
  %v183 = vld [vmem:[%s1 + $0x1d0] sm:$0xf]
  %v184 = vld [vmem:[%s1 + $0x1d4] sm:$0xf]
  %v185 = vld [vmem:[%s1 + $0x1d8] sm:$0xf]
  %v186 = vld [vmem:[%s1 + $0x1dc] sm:$0xf]
  %v187 = vld [vmem:[%s1 + $0x1e0] sm:$0xf]
  %v188 = vld [vmem:[%s1 + $0x1e4] sm:$0xf]
  %v189 = vld [vmem:[%s1 + $0x1e8] sm:$0xf]
  %v190 = vld [vmem:[%s1 + $0x1ec] sm:$0xf]
  %v191 = vld [vmem:[%s1 + $0x1f0] sm:$0xf]
  %v192 = vld [vmem:[%s1 + $0x1f4] sm:$0xf]
  %v193 = vld [vmem:[%s1 + $0x1f8] sm:$0xf]
  %v194 = vld [vmem:[%s1 + $0x1fc] sm:$0xf]
  %v227 = vunpack.c.l.b16 %v35
  %v228 = vunpack.c.h.b16 %v35
  %v229 = vunpack.c.l.b16 %v36
  %v230 = vunpack.c.h.b16 %v36
  %v231 = vunpack.c.l.b16 %v37
  %v232 = vunpack.c.h.b16 %v37
  %v233 = vunpack.c.l.b16 %v38
  %v234 = vunpack.c.h.b16 %v38
  %v235 = vunpack.c.l.b16 %v39
  %v236 = vunpack.c.h.b16 %v39
  %v237 = vunpack.c.l.b16 %v40
  %v238 = vunpack.c.h.b16 %v40
  %v239 = vunpack.c.l.b16 %v41
  %v240 = vunpack.c.h.b16 %v41
  %v241 = vunpack.c.l.b16 %v42
  %v242 = vunpack.c.h.b16 %v42
  %v243 = vunpack.c.l.b16 %v43
  %v244 = vunpack.c.h.b16 %v43
  %v245 = vunpack.c.l.b16 %v44
  %v246 = vunpack.c.h.b16 %v44
  %v247 = vunpack.c.l.b16 %v45
  %v248 = vunpack.c.h.b16 %v45
  %v249 = vunpack.c.l.b16 %v46
  %v250 = vunpack.c.h.b16 %v46
  %v251 = vunpack.c.l.b16 %v47
  %v252 = vunpack.c.h.b16 %v47
  %v253 = vunpack.c.l.b16 %v48
  %v254 = vunpack.c.h.b16 %v48
  %v255 = vunpack.c.l.b16 %v49
  %v256 = vunpack.c.h.b16 %v49
  %v257 = vunpack.c.l.b16 %v50
  %v258 = vunpack.c.h.b16 %v50
  %v259 = vunpack.c.l.b16 %v51
  %v260 = vunpack.c.h.b16 %v51
  %v261 = vunpack.c.l.b16 %v52
  %v262 = vunpack.c.h.b16 %v52
  %v263 = vunpack.c.l.b16 %v53
  %v264 = vunpack.c.h.b16 %v53
  %v265 = vunpack.c.l.b16 %v54
  %v266 = vunpack.c.h.b16 %v54
  %v267 = vunpack.c.l.b16 %v55
  %v268 = vunpack.c.h.b16 %v55
  %v269 = vunpack.c.l.b16 %v56
  %v270 = vunpack.c.h.b16 %v56
  %v271 = vunpack.c.l.b16 %v57
  %v272 = vunpack.c.h.b16 %v57
  %v273 = vunpack.c.l.b16 %v58
  %v274 = vunpack.c.h.b16 %v58
  %v275 = vunpack.c.l.b16 %v59
  %v276 = vunpack.c.h.b16 %v59
  %v277 = vunpack.c.l.b16 %v60
  %v278 = vunpack.c.h.b16 %v60
  %v279 = vunpack.c.l.b16 %v61
  %v280 = vunpack.c.h.b16 %v61
  %v281 = vunpack.c.l.b16 %v62
  %v282 = vunpack.c.h.b16 %v62
  %v283 = vunpack.c.l.b16 %v63
  %v284 = vunpack.c.h.b16 %v63
  %v285 = vunpack.c.l.b16 %v64
  %v286 = vunpack.c.h.b16 %v64
  %v287 = vunpack.c.l.b16 %v65
  %v288 = vunpack.c.h.b16 %v65
  %v289 = vunpack.c.l.b16 %v66
  %v290 = vunpack.c.h.b16 %v66
  %v291 = vpack.c.b16 %v235, %v227
  %v292 = vpack.c.b16 %v236, %v228
  %v293 = vpack.c.b16 %v237, %v229
  %v294 = vpack.c.b16 %v238, %v230
  %v295 = vpack.c.b16 %v239, %v231
  %v296 = vpack.c.b16 %v240, %v232
  %v297 = vpack.c.b16 %v241, %v233
  %v298 = vpack.c.b16 %v242, %v234
  %v299 = vpack.c.b16 %v251, %v243
  %v300 = vpack.c.b16 %v252, %v244
  %v301 = vpack.c.b16 %v253, %v245
  %v302 = vpack.c.b16 %v254, %v246
  %v303 = vpack.c.b16 %v255, %v247
  %v304 = vpack.c.b16 %v256, %v248
  %v305 = vpack.c.b16 %v257, %v249
  %v306 = vpack.c.b16 %v258, %v250
  %v307 = vpack.c.b16 %v267, %v259
  %v308 = vpack.c.b16 %v268, %v260
  %v309 = vpack.c.b16 %v269, %v261
  %v310 = vpack.c.b16 %v270, %v262
  %v311 = vpack.c.b16 %v271, %v263
  %v312 = vpack.c.b16 %v272, %v264
  %v313 = vpack.c.b16 %v273, %v265
  %v314 = vpack.c.b16 %v274, %v266
  %v315 = vpack.c.b16 %v283, %v275
  %v316 = vpack.c.b16 %v284, %v276
  %v317 = vpack.c.b16 %v285, %v277
  %v318 = vpack.c.b16 %v286, %v278
  %v319 = vpack.c.b16 %v287, %v279
  %v320 = vpack.c.b16 %v288, %v280
  %v321 = vpack.c.b16 %v289, %v281
  %v322 = vpack.c.b16 %v290, %v282
  %v483 = vunpack.c.l.b16 %v67
  %v484 = vunpack.c.l.b16 %v68
  %v485 = vunpack.c.l.b16 %v69
  %v486 = vunpack.c.l.b16 %v70
  %v487 = vunpack.c.l.b16 %v71
  %v488 = vunpack.c.l.b16 %v72
  %v489 = vunpack.c.l.b16 %v73
  %v490 = vunpack.c.l.b16 %v74
  %v491 = vunpack.c.l.b16 %v75
  %v492 = vunpack.c.l.b16 %v76
  %v493 = vunpack.c.l.b16 %v77
  %v494 = vunpack.c.l.b16 %v78
  %v495 = vunpack.c.l.b16 %v79
  %v496 = vunpack.c.l.b16 %v80
  %v497 = vunpack.c.l.b16 %v81
  %v498 = vunpack.c.l.b16 %v82
  %v499 = vunpack.c.l.b16 %v83
  %v500 = vunpack.c.l.b16 %v84
  %v501 = vunpack.c.l.b16 %v85
  %v502 = vunpack.c.l.b16 %v86
  %v503 = vunpack.c.l.b16 %v87
  %v504 = vunpack.c.l.b16 %v88
  %v505 = vunpack.c.l.b16 %v89
  %v506 = vunpack.c.l.b16 %v90
  %v507 = vunpack.c.l.b16 %v91
  %v508 = vunpack.c.l.b16 %v92
  %v509 = vunpack.c.l.b16 %v93
  %v510 = vunpack.c.l.b16 %v94
  %v511 = vunpack.c.l.b16 %v95
  %v512 = vunpack.c.l.b16 %v96
  %v513 = vunpack.c.l.b16 %v97
  %v514 = vunpack.c.l.b16 %v98
  %v515 = vunpack.c.l.b16 %v99
  %v516 = vunpack.c.l.b16 %v100
  %v517 = vunpack.c.l.b16 %v101
  %v518 = vunpack.c.l.b16 %v102
  %v519 = vunpack.c.l.b16 %v103
  %v520 = vunpack.c.l.b16 %v104
  %v521 = vunpack.c.l.b16 %v105
  %v522 = vunpack.c.l.b16 %v106
  %v523 = vunpack.c.l.b16 %v107
  %v524 = vunpack.c.l.b16 %v108
  %v525 = vunpack.c.l.b16 %v109
  %v526 = vunpack.c.l.b16 %v110
  %v527 = vunpack.c.l.b16 %v111
  %v528 = vunpack.c.l.b16 %v112
  %v529 = vunpack.c.l.b16 %v113
  %v530 = vunpack.c.l.b16 %v114
  %v531 = vunpack.c.l.b16 %v115
  %v532 = vunpack.c.l.b16 %v116
  %v533 = vunpack.c.l.b16 %v117
  %v534 = vunpack.c.l.b16 %v118
  %v535 = vunpack.c.l.b16 %v119
  %v536 = vunpack.c.l.b16 %v120
  %v537 = vunpack.c.l.b16 %v121
  %v538 = vunpack.c.l.b16 %v122
  %v539 = vunpack.c.l.b16 %v123
  %v540 = vunpack.c.l.b16 %v124
  %v541 = vunpack.c.l.b16 %v125
  %v542 = vunpack.c.l.b16 %v126
  %v543 = vunpack.c.l.b16 %v127
  %v544 = vunpack.c.l.b16 %v128
  %v545 = vunpack.c.l.b16 %v129
  %v546 = vunpack.c.l.b16 %v130
  %v547 = vunpack.c.l.b16 %v131
  %v548 = vunpack.c.l.b16 %v132
  %v549 = vunpack.c.l.b16 %v133
  %v550 = vunpack.c.l.b16 %v134
  %v551 = vunpack.c.l.b16 %v135
  %v552 = vunpack.c.l.b16 %v136
  %v553 = vunpack.c.l.b16 %v137
  %v554 = vunpack.c.l.b16 %v138
  %v555 = vunpack.c.l.b16 %v139
  %v556 = vunpack.c.l.b16 %v140
  %v557 = vunpack.c.l.b16 %v141
  %v558 = vunpack.c.l.b16 %v142
  %v559 = vunpack.c.l.b16 %v143
  %v560 = vunpack.c.l.b16 %v144
  %v561 = vunpack.c.l.b16 %v145
  %v562 = vunpack.c.l.b16 %v146
  %v563 = vunpack.c.l.b16 %v147
  %v564 = vunpack.c.l.b16 %v148
  %v565 = vunpack.c.l.b16 %v149
  %v566 = vunpack.c.l.b16 %v150
  %v567 = vunpack.c.l.b16 %v151
  %v568 = vunpack.c.l.b16 %v152
  %v569 = vunpack.c.l.b16 %v153
  %v570 = vunpack.c.l.b16 %v154
  %v571 = vunpack.c.l.b16 %v155
  %v572 = vunpack.c.l.b16 %v156
  %v573 = vunpack.c.l.b16 %v157
  %v574 = vunpack.c.l.b16 %v158
  %v575 = vunpack.c.l.b16 %v159
  %v576 = vunpack.c.l.b16 %v160
  %v577 = vunpack.c.l.b16 %v161
  %v578 = vunpack.c.l.b16 %v162
  %v579 = vunpack.c.l.b16 %v163
  %v580 = vunpack.c.l.b16 %v164
  %v581 = vunpack.c.l.b16 %v165
  %v582 = vunpack.c.l.b16 %v166
  %v583 = vunpack.c.l.b16 %v167
  %v584 = vunpack.c.l.b16 %v168
  %v585 = vunpack.c.l.b16 %v169
  %v586 = vunpack.c.l.b16 %v170
  %v587 = vunpack.c.l.b16 %v171
  %v588 = vunpack.c.l.b16 %v172
  %v589 = vunpack.c.l.b16 %v173
  %v590 = vunpack.c.l.b16 %v174
  %v591 = vunpack.c.l.b16 %v175
  %v592 = vunpack.c.l.b16 %v176
  %v593 = vunpack.c.l.b16 %v177
  %v594 = vunpack.c.l.b16 %v178
  %v595 = vunpack.c.l.b16 %v179
  %v596 = vunpack.c.l.b16 %v180
  %v597 = vunpack.c.l.b16 %v181
  %v598 = vunpack.c.l.b16 %v182
  %v599 = vunpack.c.l.b16 %v183
  %v600 = vunpack.c.l.b16 %v184
  %v601 = vunpack.c.l.b16 %v185
  %v602 = vunpack.c.l.b16 %v186
  %v603 = vunpack.c.l.b16 %v187
  %v604 = vunpack.c.l.b16 %v188
  %v605 = vunpack.c.l.b16 %v189
  %v606 = vunpack.c.l.b16 %v190
  %v607 = vunpack.c.l.b16 %v191
  %v608 = vunpack.c.l.b16 %v192
  %v609 = vunpack.c.l.b16 %v193
  %v610 = vunpack.c.l.b16 %v194
  %v611 = vpack.c.b16 %v484, %v483
  %v612 = vpack.c.b16 %v486, %v485
  %v613 = vpack.c.b16 %v488, %v487
  %v614 = vpack.c.b16 %v490, %v489
  %v615 = vpack.c.b16 %v492, %v491
  %v616 = vpack.c.b16 %v494, %v493
  %v617 = vpack.c.b16 %v496, %v495
  %v618 = vpack.c.b16 %v498, %v497
  %v619 = vpack.c.b16 %v500, %v499
  %v620 = vpack.c.b16 %v502, %v501
  %v621 = vpack.c.b16 %v504, %v503
  %v622 = vpack.c.b16 %v506, %v505
  %v623 = vpack.c.b16 %v508, %v507
  %v624 = vpack.c.b16 %v510, %v509
  %v625 = vpack.c.b16 %v512, %v511
  %v626 = vpack.c.b16 %v514, %v513
  %v627 = vpack.c.b16 %v516, %v515
  %v628 = vpack.c.b16 %v518, %v517
  %v629 = vpack.c.b16 %v520, %v519
  %v630 = vpack.c.b16 %v522, %v521
  %v631 = vpack.c.b16 %v524, %v523
  %v632 = vpack.c.b16 %v526, %v525
  %v633 = vpack.c.b16 %v528, %v527
  %v634 = vpack.c.b16 %v530, %v529
  %v635 = vpack.c.b16 %v532, %v531
  %v636 = vpack.c.b16 %v534, %v533
  %v637 = vpack.c.b16 %v536, %v535
  %v638 = vpack.c.b16 %v538, %v537
  %v639 = vpack.c.b16 %v540, %v539
  %v640 = vpack.c.b16 %v542, %v541
  %v641 = vpack.c.b16 %v544, %v543
  %v642 = vpack.c.b16 %v546, %v545
  %v643 = vpack.c.b16 %v548, %v547
  %v644 = vpack.c.b16 %v550, %v549
  %v645 = vpack.c.b16 %v552, %v551
  %v646 = vpack.c.b16 %v554, %v553
  %v647 = vpack.c.b16 %v556, %v555
  %v648 = vpack.c.b16 %v558, %v557
  %v649 = vpack.c.b16 %v560, %v559
  %v650 = vpack.c.b16 %v562, %v561
  %v651 = vpack.c.b16 %v564, %v563
  %v652 = vpack.c.b16 %v566, %v565
  %v653 = vpack.c.b16 %v568, %v567
  %v654 = vpack.c.b16 %v570, %v569
  %v655 = vpack.c.b16 %v572, %v571
  %v656 = vpack.c.b16 %v574, %v573
  %v657 = vpack.c.b16 %v576, %v575
  %v658 = vpack.c.b16 %v578, %v577
  %v659 = vpack.c.b16 %v580, %v579
  %v660 = vpack.c.b16 %v582, %v581
  %v661 = vpack.c.b16 %v584, %v583
  %v662 = vpack.c.b16 %v586, %v585
  %v663 = vpack.c.b16 %v588, %v587
  %v664 = vpack.c.b16 %v590, %v589
  %v665 = vpack.c.b16 %v592, %v591
  %v666 = vpack.c.b16 %v594, %v593
  %v667 = vpack.c.b16 %v596, %v595
  %v668 = vpack.c.b16 %v598, %v597
  %v669 = vpack.c.b16 %v600, %v599
  %v670 = vpack.c.b16 %v602, %v601
  %v671 = vpack.c.b16 %v604, %v603
  %v672 = vpack.c.b16 %v606, %v605
  %v673 = vpack.c.b16 %v608, %v607
  %v674 = vpack.c.b16 %v610, %v609
  %739 = vmatprep.subr.bf16.mxu0 0
  %740 = vmatpush1.bf16.msra.mxu0 %v611
  %741 = vmatprep.subr.bf16.mxu0 0
  %742 = vmatpush1.bf16.msra.mxu0 %v612
  %743 = vmatprep.subr.bf16.mxu0 0
  %744 = vmatpush1.bf16.msra.mxu0 %v613
  %745 = vmatprep.subr.bf16.mxu0 0
  %746 = vmatpush1.bf16.msra.mxu0 %v614
  %747 = vmatprep.subr.bf16.mxu0 0
  %748 = vmatpush1.bf16.msra.mxu0 %v615
  %749 = vmatprep.subr.bf16.mxu0 0
  %750 = vmatpush1.bf16.msra.mxu0 %v616
  %751 = vmatprep.subr.bf16.mxu0 0
  %752 = vmatpush1.bf16.msra.mxu0 %v617
  %753 = vmatprep.subr.bf16.mxu0 0
  %754 = vmatpush1.bf16.msra.mxu0 %v618
  %755 = vmatprep.subr.bf16.mxu0 0
  %756 = vmatpush1.bf16.msra.mxu0 %v619
  %757 = vmatprep.subr.bf16.mxu0 0
  %758 = vmatpush1.bf16.msra.mxu0 %v620
  %759 = vmatprep.subr.bf16.mxu0 0
  %760 = vmatpush1.bf16.msra.mxu0 %v621
  %761 = vmatprep.subr.bf16.mxu0 0
  %762 = vmatpush1.bf16.msra.mxu0 %v622
  %763 = vmatprep.subr.bf16.mxu0 0
  %764 = vmatpush1.bf16.msra.mxu0 %v623
  %765 = vmatprep.subr.bf16.mxu0 0
  %766 = vmatpush1.bf16.msra.mxu0 %v624
  %767 = vmatprep.subr.bf16.mxu0 0
  %768 = vmatpush1.bf16.msra.mxu0 %v625
  %769 = vmatprep.subr.bf16.mxu0 0
  %770 = vmatpush1.bf16.msra.mxu0 %v626
  %771 = vmatprep.mubr.bf16.mxu0 %v292
  %772 = vmatmul.mubr.bf16.gmra.mrb[0].mxu0 %v291
  %v773 = vpop.f32.mrb[0].mxu0
  %v774 = vadd.f32 0.0, %v773
  %v775 = vpop.f32.mrb[0].mxu0
  %v776 = vpop.f32.mrb[0].mxu0
  %v777 = vadd.f32 0.0, %v776
  %v778 = vpop.f32.mrb[0].mxu0
  %779 = vmatprep.mubr.bf16.mxu0 %v300
  %780 = vmatmul.mubr.bf16.gmra.mrb[0].mxu0 %v299
  %v781 = vpop.f32.mrb[0].mxu0
  %v782 = vadd.f32 0.0, %v781
  %v783 = vpop.f32.mrb[0].mxu0
  %v784 = vpop.f32.mrb[0].mxu0
  %v785 = vadd.f32 0.0, %v784
  %v786 = vpop.f32.mrb[0].mxu0
  %787 = vmatprep.mubr.bf16.mxu0 %v308
  %788 = vmatmul.mubr.bf16.gmra.mrb[0].mxu0 %v307
  %v789 = vpop.f32.mrb[0].mxu0
  %v790 = vadd.f32 0.0, %v789
  %v791 = vpop.f32.mrb[0].mxu0
  %v792 = vpop.f32.mrb[0].mxu0
  %v793 = vadd.f32 0.0, %v792
  %v794 = vpop.f32.mrb[0].mxu0
  %795 = vmatprep.mubr.bf16.mxu0 %v316
  %796 = vmatmul.mubr.bf16.gmra.mrb[0].mxu0 %v315
  %v797 = vpop.f32.mrb[0].mxu0
  %v798 = vadd.f32 0.0, %v797
  %v799 = vpop.f32.mrb[0].mxu0
  %v800 = vpop.f32.mrb[0].mxu0
  %v801 = vadd.f32 0.0, %v800
  %v802 = vpop.f32.mrb[0].mxu0
  %803 = vdwg.mxu0
  %804 = vmatprep.subr.bf16.mxu0 0
  %805 = vmatpush1.bf16.msra.mxu0 %v627
  %806 = vmatprep.subr.bf16.mxu0 0
  %807 = vmatpush1.bf16.msra.mxu0 %v628
  %808 = vmatprep.subr.bf16.mxu0 0
  %809 = vmatpush1.bf16.msra.mxu0 %v629
  %810 = vmatprep.subr.bf16.mxu0 0
  %811 = vmatpush1.bf16.msra.mxu0 %v630
  %812 = vmatprep.subr.bf16.mxu0 0
  %813 = vmatpush1.bf16.msra.mxu0 %v631
  %814 = vmatprep.subr.bf16.mxu0 0
  %815 = vmatpush1.bf16.msra.mxu0 %v632
  %816 = vmatprep.subr.bf16.mxu0 0
  %817 = vmatpush1.bf16.msra.mxu0 %v633
  %818 = vmatprep.subr.bf16.mxu0 0
  %819 = vmatpush1.bf16.msra.mxu0 %v634
  %820 = vmatprep.subr.bf16.mxu0 0
  %821 = vmatpush1.bf16.msra.mxu0 %v635
  %822 = vmatprep.subr.bf16.mxu0 0
  %823 = vmatpush1.bf16.msra.mxu0 %v636
  %824 = vmatprep.subr.bf16.mxu0 0
  %825 = vmatpush1.bf16.msra.mxu0 %v637
  %826 = vmatprep.subr.bf16.mxu0 0
  %827 = vmatpush1.bf16.msra.mxu0 %v638
  %828 = vmatprep.subr.bf16.mxu0 0
  %829 = vmatpush1.bf16.msra.mxu0 %v639
  %830 = vmatprep.subr.bf16.mxu0 0
  %831 = vmatpush1.bf16.msra.mxu0 %v640
  %832 = vmatprep.subr.bf16.mxu0 0
  %833 = vmatpush1.bf16.msra.mxu0 %v641
  %834 = vmatprep.subr.bf16.mxu0 0
  %835 = vmatpush1.bf16.msra.mxu0 %v642
  %836 = vmatprep.mubr.bf16.mxu0 %v294
  %837 = vmatmul.mubr.bf16.gmra.mrb[0].mxu0 %v293
  %v838 = vpop.f32.mrb[0].mxu0
  %v839 = vadd.f32 %v774, %v838
  %v840 = vpop.f32.mrb[0].mxu0
  %v841 = vpop.f32.mrb[0].mxu0
  %v842 = vadd.f32 %v777, %v841
  %v843 = vpop.f32.mrb[0].mxu0
  %844 = vmatprep.mubr.bf16.mxu0 %v302
  %845 = vmatmul.mubr.bf16.gmra.mrb[0].mxu0 %v301
  %v846 = vpop.f32.mrb[0].mxu0
  %v847 = vadd.f32 %v782, %v846
  %v848 = vpop.f32.mrb[0].mxu0
  %v849 = vpop.f32.mrb[0].mxu0
  %v850 = vadd.f32 %v785, %v849
  %v851 = vpop.f32.mrb[0].mxu0
  %852 = vmatprep.mubr.bf16.mxu0 %v310
  %853 = vmatmul.mubr.bf16.gmra.mrb[0].mxu0 %v309
  %v854 = vpop.f32.mrb[0].mxu0
  %v855 = vadd.f32 %v790, %v854
  %v856 = vpop.f32.mrb[0].mxu0
  %v857 = vpop.f32.mrb[0].mxu0
  %v858 = vadd.f32 %v793, %v857
  %v859 = vpop.f32.mrb[0].mxu0
  %860 = vmatprep.mubr.bf16.mxu0 %v318
  %861 = vmatmul.mubr.bf16.gmra.mrb[0].mxu0 %v317
  %v862 = vpop.f32.mrb[0].mxu0
  %v863 = vadd.f32 %v798, %v862
  %v864 = vpop.f32.mrb[0].mxu0
  %v865 = vpop.f32.mrb[0].mxu0
  %v866 = vadd.f32 %v801, %v865
  %v867 = vpop.f32.mrb[0].mxu0
  %868 = vdwg.mxu0
  %869 = vmatprep.subr.bf16.mxu0 0
  %870 = vmatpush1.bf16.msra.mxu0 %v643
  %871 = vmatprep.subr.bf16.mxu0 0
  %872 = vmatpush1.bf16.msra.mxu0 %v644
  %873 = vmatprep.subr.bf16.mxu0 0
  %874 = vmatpush1.bf16.msra.mxu0 %v645
  %875 = vmatprep.subr.bf16.mxu0 0
  %876 = vmatpush1.bf16.msra.mxu0 %v646
  %877 = vmatprep.subr.bf16.mxu0 0
  %878 = vmatpush1.bf16.msra.mxu0 %v647
  %879 = vmatprep.subr.bf16.mxu0 0
  %880 = vmatpush1.bf16.msra.mxu0 %v648
  %881 = vmatprep.subr.bf16.mxu0 0
  %882 = vmatpush1.bf16.msra.mxu0 %v649
  %883 = vmatprep.subr.bf16.mxu0 0
  %884 = vmatpush1.bf16.msra.mxu0 %v650
  %885 = vmatprep.subr.bf16.mxu0 0
  %886 = vmatpush1.bf16.msra.mxu0 %v651
  %887 = vmatprep.subr.bf16.mxu0 0
  %888 = vmatpush1.bf16.msra.mxu0 %v652
  %889 = vmatprep.subr.bf16.mxu0 0
  %890 = vmatpush1.bf16.msra.mxu0 %v653
  %891 = vmatprep.subr.bf16.mxu0 0
  %892 = vmatpush1.bf16.msra.mxu0 %v654
  %893 = vmatprep.subr.bf16.mxu0 0
  %894 = vmatpush1.bf16.msra.mxu0 %v655
  %895 = vmatprep.subr.bf16.mxu0 0
  %896 = vmatpush1.bf16.msra.mxu0 %v656
  %897 = vmatprep.subr.bf16.mxu0 0
  %898 = vmatpush1.bf16.msra.mxu0 %v657
  %899 = vmatprep.subr.bf16.mxu0 0
  %900 = vmatpush1.bf16.msra.mxu0 %v658
  %901 = vmatprep.mubr.bf16.mxu0 %v296
  %902 = vmatmul.mubr.bf16.gmra.mrb[0].mxu0 %v295
  %v903 = vpop.f32.mrb[0].mxu0
  %v904 = vadd.f32 %v839, %v903
  %v905 = vpop.f32.mrb[0].mxu0
  %v906 = vpop.f32.mrb[0].mxu0
  %v907 = vadd.f32 %v842, %v906
  %v908 = vpop.f32.mrb[0].mxu0
  %909 = vmatprep.mubr.bf16.mxu0 %v304
  %910 = vmatmul.mubr.bf16.gmra.mrb[0].mxu0 %v303
  %v911 = vpop.f32.mrb[0].mxu0
  %v912 = vadd.f32 %v847, %v911
  %v913 = vpop.f32.mrb[0].mxu0
  %v914 = vpop.f32.mrb[0].mxu0
  %v915 = vadd.f32 %v850, %v914
  %v916 = vpop.f32.mrb[0].mxu0
  %917 = vmatprep.mubr.bf16.mxu0 %v312
  %918 = vmatmul.mubr.bf16.gmra.mrb[0].mxu0 %v311
  %v919 = vpop.f32.mrb[0].mxu0
  %v920 = vadd.f32 %v855, %v919
  %v921 = vpop.f32.mrb[0].mxu0
  %v922 = vpop.f32.mrb[0].mxu0
  %v923 = vadd.f32 %v858, %v922
  %v924 = vpop.f32.mrb[0].mxu0
  %925 = vmatprep.mubr.bf16.mxu0 %v320
  %926 = vmatmul.mubr.bf16.gmra.mrb[0].mxu0 %v319
  %v927 = vpop.f32.mrb[0].mxu0
  %v928 = vadd.f32 %v863, %v927
  %v929 = vpop.f32.mrb[0].mxu0
  %v930 = vpop.f32.mrb[0].mxu0
  %v931 = vadd.f32 %v866, %v930
  %v932 = vpop.f32.mrb[0].mxu0
  %933 = vdwg.mxu0
  %934 = vmatprep.subr.bf16.mxu0 0
  %935 = vmatpush1.bf16.msra.mxu0 %v659
  %936 = vmatprep.subr.bf16.mxu0 0
  %937 = vmatpush1.bf16.msra.mxu0 %v660
  %938 = vmatprep.subr.bf16.mxu0 0
  %939 = vmatpush1.bf16.msra.mxu0 %v661
  %940 = vmatprep.subr.bf16.mxu0 0
  %941 = vmatpush1.bf16.msra.mxu0 %v662
  %942 = vmatprep.subr.bf16.mxu0 0
  %943 = vmatpush1.bf16.msra.mxu0 %v663
  %944 = vmatprep.subr.bf16.mxu0 0
  %945 = vmatpush1.bf16.msra.mxu0 %v664
  %946 = vmatprep.subr.bf16.mxu0 0
  %947 = vmatpush1.bf16.msra.mxu0 %v665
  %948 = vmatprep.subr.bf16.mxu0 0
  %949 = vmatpush1.bf16.msra.mxu0 %v666
  %950 = vmatprep.subr.bf16.mxu0 0
  %951 = vmatpush1.bf16.msra.mxu0 %v667
  %952 = vmatprep.subr.bf16.mxu0 0
  %953 = vmatpush1.bf16.msra.mxu0 %v668
  %954 = vmatprep.subr.bf16.mxu0 0
  %955 = vmatpush1.bf16.msra.mxu0 %v669
  %956 = vmatprep.subr.bf16.mxu0 0
  %957 = vmatpush1.bf16.msra.mxu0 %v670
  %958 = vmatprep.subr.bf16.mxu0 0
  %959 = vmatpush1.bf16.msra.mxu0 %v671
  %960 = vmatprep.subr.bf16.mxu0 0
  %961 = vmatpush1.bf16.msra.mxu0 %v672
  %962 = vmatprep.subr.bf16.mxu0 0
  %963 = vmatpush1.bf16.msra.mxu0 %v673
  %964 = vmatprep.subr.bf16.mxu0 0
  %965 = vmatpush1.bf16.msra.mxu0 %v674
  %966 = vmatprep.mubr.bf16.mxu0 %v298
  %967 = vmatmul.mubr.bf16.gmra.mrb[0].mxu0 %v297
  %v968 = vpop.f32.mrb[0].mxu0
  %v969 = vadd.f32 %v904, %v968
  %v970 = vpop.f32.mrb[0].mxu0
  %v971 = vpop.f32.mrb[0].mxu0
  %v972 = vadd.f32 %v907, %v971
  %v973 = vpop.f32.mrb[0].mxu0
  %974 = vmatprep.mubr.bf16.mxu0 %v306
  %975 = vmatmul.mubr.bf16.gmra.mrb[0].mxu0 %v305
  %v976 = vpop.f32.mrb[0].mxu0
  %v977 = vadd.f32 %v912, %v976
  %v978 = vpop.f32.mrb[0].mxu0
  %v979 = vpop.f32.mrb[0].mxu0
  %v980 = vadd.f32 %v915, %v979
  %v981 = vpop.f32.mrb[0].mxu0
  %982 = vmatprep.mubr.bf16.mxu0 %v314
  %983 = vmatmul.mubr.bf16.gmra.mrb[0].mxu0 %v313
  %v984 = vpop.f32.mrb[0].mxu0
  %v985 = vadd.f32 %v920, %v984
  %v986 = vpop.f32.mrb[0].mxu0
  %v987 = vpop.f32.mrb[0].mxu0
  %v988 = vadd.f32 %v923, %v987
  %v989 = vpop.f32.mrb[0].mxu0
  %990 = vmatprep.mubr.bf16.mxu0 %v322
  %991 = vmatmul.mubr.bf16.gmra.mrb[0].mxu0 %v321
  %v992 = vpop.f32.mrb[0].mxu0
  %v993 = vadd.f32 %v928, %v992
  %v994 = vpop.f32.mrb[0].mxu0
  %v995 = vpop.f32.mrb[0].mxu0
  %v996 = vadd.f32 %v931, %v995
  %v997 = vpop.f32.mrb[0].mxu0
  %998 = vdwg.mxu0
  %v999 = vadd.f32 %v27, %v969
  %v1000 = vadd.f32 %v28, %v972
  %v1001 = vadd.f32 %v29, %v977
  %v1002 = vadd.f32 %v30, %v980
  %v1003 = vadd.f32 %v31, %v985
  %v1004 = vadd.f32 %v32, %v988
  %v1005 = vadd.f32 %v33, %v993
  %v1006 = vadd.f32 %v34, %v996
  %1007 = vst [vmem:[%s3] sm:$0xff] %v999
  %1008 = vst [vmem:[%s3 + $0x8] sm:$0xff] %v1000
  %1009 = vst [vmem:[%s3 + $0x10] sm:$0xff] %v1001
  %1010 = vst [vmem:[%s3 + $0x18] sm:$0xff] %v1002
  %1011 = vst [vmem:[%s3 + $0x20] sm:$0xff] %v1003
  %1012 = vst [vmem:[%s3 + $0x28] sm:$0xff] %v1004
  %1013 = vst [vmem:[%s3 + $0x30] sm:$0xff] %v1005
  %1014 = vst [vmem:[%s3 + $0x38] sm:$0xff] %v1006
  // Predicated region
  $region18: #{conv1d_base_net_forward.10} parent=0 // pred_check
    %p1015 = pneg %p15
  $region19: #{conv1d_base_net_forward.10} parent=0 // pred_check_branch
    %1017 = sbr.rel (%p1015) target = $region21
  $region20: #{conv1d_base_net_forward.10} parent=0 // pred_region
    %v1018 = vld [vmem:[%s3] sm:$0xff]
    %v1019 = vld [vmem:[%s3 + $0x8] sm:$0xff]
    %v1020 = vld [vmem:[%s3 + $0x10] sm:$0xff]
    %v1021 = vld [vmem:[%s3 + $0x18] sm:$0xff]
    %v1022 = vld [vmem:[%s3 + $0x20] sm:$0xff]
    %v1023 = vld [vmem:[%s3 + $0x28] sm:$0xff]
    %v1024 = vld [vmem:[%s3 + $0x30] sm:$0xff]
    %v1025 = vld [vmem:[%s3 + $0x38] sm:$0xff]
    %v1026 = vld [vmem:[%s2] sm:$0x1]
    %v1027 = vlaneseq
    %v1028 = vshrl.u32 %v1027, 7
    %v1029 = vsub.s32 0, %v1028
    %v1030 = vrot.slane %v1026, %v1029
    %v1031 = vadd.f32 %v1018, %v1030
    %v1032 = vadd.f32 %v1019, %v1030
    %v1033 = vadd.f32 %v1020, %v1030
    %v1034 = vadd.f32 %v1021, %v1030
    %v1035 = vadd.f32 %v1022, %v1030
    %v1036 = vadd.f32 %v1023, %v1030
    %v1037 = vadd.f32 %v1024, %v1030
    %v1038 = vadd.f32 %v1025, %v1030
    %v1039 = vmax.f32 %v1031, 0.0
    %v1040 = vmax.f32 %v1032, 0.0
    %v1041 = vmax.f32 %v1033, 0.0
    %v1042 = vmax.f32 %v1034, 0.0
    %v1043 = vmax.f32 %v1035, 0.0
    %v1044 = vmax.f32 %v1036, 0.0
    %v1045 = vmax.f32 %v1037, 0.0
    %v1046 = vmax.f32 %v1038, 0.0
    %v1047 = vld [vmem:[%s2 + $0x1] sm:$0x1]
    %v1048 = vlaneseq
    %v1049 = vshrl.u32 %v1048, 7
    %v1050 = vsub.s32 0, %v1049
    %v1051 = vrot.slane %v1047, %v1050
    %v1052 = vmul.f32 %v1039, %v1051
    %v1053 = vmul.f32 %v1040, %v1051
    %v1054 = vmul.f32 %v1041, %v1051
    %v1055 = vmul.f32 %v1042, %v1051
    %v1056 = vmul.f32 %v1043, %v1051
    %v1057 = vmul.f32 %v1044, %v1051
    %v1058 = vmul.f32 %v1045, %v1051
    %v1059 = vmul.f32 %v1046, %v1051
    %v1060 = vld [vmem:[%s2 + $0x2] sm:$0x1]
    %v1061 = vlaneseq
    %v1062 = vshrl.u32 %v1061, 7
    %v1063 = vsub.s32 0, %v1062
    %v1064 = vrot.slane %v1060, %v1063
    %v1065 = vadd.f32 %v1052, %v1064
    %v1066 = vadd.f32 %v1053, %v1064
    %v1067 = vadd.f32 %v1054, %v1064
    %v1068 = vadd.f32 %v1055, %v1064
    %v1069 = vadd.f32 %v1056, %v1064
    %v1070 = vadd.f32 %v1057, %v1064
    %v1071 = vadd.f32 %v1058, %v1064
    %v1072 = vadd.f32 %v1059, %v1064
    %1073 = vst [vmem:[%s3] sm:$0xff] %v1065
    %1074 = vst [vmem:[%s3 + $0x8] sm:$0xff] %v1066
    %1075 = vst [vmem:[%s3 + $0x10] sm:$0xff] %v1067
    %1076 = vst [vmem:[%s3 + $0x18] sm:$0xff] %v1068
    %1077 = vst [vmem:[%s3 + $0x20] sm:$0xff] %v1069
    %1078 = vst [vmem:[%s3 + $0x28] sm:$0xff] %v1070
    %1079 = vst [vmem:[%s3 + $0x30] sm:$0xff] %v1071
    %1080 = vst [vmem:[%s3 + $0x38] sm:$0xff] %v1072
  $region21: #{conv1d_base_net_forward.10} parent=0 // pred_fallthru
    _
  // Predicated region
  $region22: #{conv1d_base_net_forward.10} parent=0 // pred_check
    _
  $region23: #{conv1d_base_net_forward.10} parent=0 // pred_check_branch
    %1082 = sbr.rel (0) target = $region25
  $region24: #{conv1d_base_net_forward.10} parent=0 // pred_region
    _
  $region25: #{conv1d_base_net_forward.10} parent=0 // pred_fallthru
    _
  // Predicated region
  $region26: #{conv1d_base_net_forward.10} parent=0 // pred_check
    _
  $region27: #{conv1d_base_net_forward.10} parent=0 // pred_check_branch
    %1084 = sbr.rel (0) target = $region29
  $region28: #{conv1d_base_net_forward.10} parent=0 // pred_region
    _
  $region29: #{conv1d_base_net_forward.10} parent=0 // pred_fallthru
    _

// kernel: conv1d_base_net_forward.11
$region0: #{conv1d_base_net_forward.11}
  #allocation0 [shape = 'u32[]', space=smem, size = 0x4, offset = 0x4, fixed_abs, tag = 'smem constant byte address 0x4 - core index']
  #allocation1 [shape = 'u32[144,128]{1,0:T(1,128)}', space=vmem, size = 0x12000, scoped, tag = 'internal scratch']
  %s0 = inlined_call_operand.vmem [shape: bf16[32,1024], index: 0, kind: input, shape index: {}]
  %s1 = inlined_call_operand.vmem [shape: bf16[1024,128], index: 1, kind: input, shape index: {}]
  %s2 = inlined_call_operand.vmem [shape: f32[3,128], index: 2, kind: input, shape index: {}]
  %s3 = inlined_call_operand.vmem [shape: f32[32,128], index: 3, kind: output, shape index: {}]
  %s4 = sld [smem:[#allocation0]]
  $region30: #{conv1d_base_net_forward.11} parent=0
    _
  %s6 = ssub.s32 1, %s4
  %s7 = scalar_select 0, %s6, %s4
  // Predicated region
  $region2: #{conv1d_base_net_forward.11} parent=0 // pred_check
    _
  $region3: #{conv1d_base_net_forward.11} parent=0 // pred_check_branch
    %9 = sbr.rel (0) target = $region5
  $region4: #{conv1d_base_net_forward.11} parent=0 // pred_region
    _
  $region5: #{conv1d_base_net_forward.11} parent=0 // pred_fallthru
    _
  // Predicated region
  $region6: #{conv1d_base_net_forward.11} parent=0 // pred_check
    _
  $region7: #{conv1d_base_net_forward.11} parent=0 // pred_check_branch
    %11 = sbr.rel (0) target = $region9
  $region8: #{conv1d_base_net_forward.11} parent=0 // pred_region
    _
  $region9: #{conv1d_base_net_forward.11} parent=0 // pred_fallthru
    _
  // Predicated region
  $region10: #{conv1d_base_net_forward.11} parent=0 // pred_check
    _
  $region11: #{conv1d_base_net_forward.11} parent=0 // pred_check_branch
    %13 = sbr.rel (0) target = $region13
  $region12: #{conv1d_base_net_forward.11} parent=0 // pred_region
    _
  $region13: #{conv1d_base_net_forward.11} parent=0 // pred_fallthru
    _
  %p15 = scmp.eq.s32.totalorder 0, 0
  // Predicated region
  $region14: #{conv1d_base_net_forward.11} parent=0 // pred_check
    %p16 = pneg %p15
  $region15: #{conv1d_base_net_forward.11} parent=0 // pred_check_branch
    %18 = sbr.rel (%p16) target = $region17
  $region16: #{conv1d_base_net_forward.11} parent=0 // pred_region
    %19 = vst [vmem:[%s3] sm:$0xff] 0.0
    %20 = vst [vmem:[%s3 + $0x8] sm:$0xff] 0.0
    %21 = vst [vmem:[%s3 + $0x10] sm:$0xff] 0.0
    %22 = vst [vmem:[%s3 + $0x18] sm:$0xff] 0.0
  $region17: #{conv1d_base_net_forward.11} parent=0 // pred_fallthru
    _
  %v23 = vld [vmem:[%s3] sm:$0xff]
  %v24 = vld [vmem:[%s3 + $0x8] sm:$0xff]
  %v25 = vld [vmem:[%s3 + $0x10] sm:$0xff]
  %v26 = vld [vmem:[%s3 + $0x18] sm:$0xff]
  %v27 = vld [vmem:[%s0] sm:$0xff]
  %v28 = vld [vmem:[%s0 + $0x8] sm:$0xff]
  %v29 = vld [vmem:[%s0 + $0x10] sm:$0xff]
  %v30 = vld [vmem:[%s0 + $0x18] sm:$0xff]
  %v31 = vld [vmem:[%s0 + $0x20] sm:$0xff]
  %v32 = vld [vmem:[%s0 + $0x28] sm:$0xff]
  %v33 = vld [vmem:[%s0 + $0x30] sm:$0xff]
  %v34 = vld [vmem:[%s0 + $0x38] sm:$0xff]
  %v35 = vld [vmem:[%s0 + $0x40] sm:$0xff]
  %v36 = vld [vmem:[%s0 + $0x48] sm:$0xff]
  %v37 = vld [vmem:[%s0 + $0x50] sm:$0xff]
  %v38 = vld [vmem:[%s0 + $0x58] sm:$0xff]
  %v39 = vld [vmem:[%s0 + $0x60] sm:$0xff]
  %v40 = vld [vmem:[%s0 + $0x68] sm:$0xff]
  %v41 = vld [vmem:[%s0 + $0x70] sm:$0xff]
  %v42 = vld [vmem:[%s0 + $0x78] sm:$0xff]
  %v43 = vld [vmem:[%s1] sm:$0xf]
  %v44 = vld [vmem:[%s1 + $0x4] sm:$0xf]
  %v45 = vld [vmem:[%s1 + $0x8] sm:$0xf]
  %v46 = vld [vmem:[%s1 + $0xc] sm:$0xf]
  %v47 = vld [vmem:[%s1 + $0x10] sm:$0xf]
  %v48 = vld [vmem:[%s1 + $0x14] sm:$0xf]
  %v49 = vld [vmem:[%s1 + $0x18] sm:$0xf]
  %v50 = vld [vmem:[%s1 + $0x1c] sm:$0xf]
  %v51 = vld [vmem:[%s1 + $0x20] sm:$0xf]
  %v52 = vld [vmem:[%s1 + $0x24] sm:$0xf]
  %v53 = vld [vmem:[%s1 + $0x28] sm:$0xf]
  %v54 = vld [vmem:[%s1 + $0x2c] sm:$0xf]
  %v55 = vld [vmem:[%s1 + $0x30] sm:$0xf]
  %v56 = vld [vmem:[%s1 + $0x34] sm:$0xf]
  %v57 = vld [vmem:[%s1 + $0x38] sm:$0xf]
  %v58 = vld [vmem:[%s1 + $0x3c] sm:$0xf]
  %v59 = vld [vmem:[%s1 + $0x40] sm:$0xf]
  %v60 = vld [vmem:[%s1 + $0x44] sm:$0xf]
  %v61 = vld [vmem:[%s1 + $0x48] sm:$0xf]
  %v62 = vld [vmem:[%s1 + $0x4c] sm:$0xf]
  %v63 = vld [vmem:[%s1 + $0x50] sm:$0xf]
  %v64 = vld [vmem:[%s1 + $0x54] sm:$0xf]
  %v65 = vld [vmem:[%s1 + $0x58] sm:$0xf]
  %v66 = vld [vmem:[%s1 + $0x5c] sm:$0xf]
  %v67 = vld [vmem:[%s1 + $0x60] sm:$0xf]
  %v68 = vld [vmem:[%s1 + $0x64] sm:$0xf]
  %v69 = vld [vmem:[%s1 + $0x68] sm:$0xf]
  %v70 = vld [vmem:[%s1 + $0x6c] sm:$0xf]
  %v71 = vld [vmem:[%s1 + $0x70] sm:$0xf]
  %v72 = vld [vmem:[%s1 + $0x74] sm:$0xf]
  %v73 = vld [vmem:[%s1 + $0x78] sm:$0xf]
  %v74 = vld [vmem:[%s1 + $0x7c] sm:$0xf]
  %v75 = vld [vmem:[%s1 + $0x80] sm:$0xf]
  %v76 = vld [vmem:[%s1 + $0x84] sm:$0xf]
  %v77 = vld [vmem:[%s1 + $0x88] sm:$0xf]
  %v78 = vld [vmem:[%s1 + $0x8c] sm:$0xf]
  %v79 = vld [vmem:[%s1 + $0x90] sm:$0xf]
  %v80 = vld [vmem:[%s1 + $0x94] sm:$0xf]
  %v81 = vld [vmem:[%s1 + $0x98] sm:$0xf]
  %v82 = vld [vmem:[%s1 + $0x9c] sm:$0xf]
  %v83 = vld [vmem:[%s1 + $0xa0] sm:$0xf]
  %v84 = vld [vmem:[%s1 + $0xa4] sm:$0xf]
  %v85 = vld [vmem:[%s1 + $0xa8] sm:$0xf]
  %v86 = vld [vmem:[%s1 + $0xac] sm:$0xf]
  %v87 = vld [vmem:[%s1 + $0xb0] sm:$0xf]
  %v88 = vld [vmem:[%s1 + $0xb4] sm:$0xf]
  %v89 = vld [vmem:[%s1 + $0xb8] sm:$0xf]
  %v90 = vld [vmem:[%s1 + $0xbc] sm:$0xf]
  %v91 = vld [vmem:[%s1 + $0xc0] sm:$0xf]
  %v92 = vld [vmem:[%s1 + $0xc4] sm:$0xf]
  %v93 = vld [vmem:[%s1 + $0xc8] sm:$0xf]
  %v94 = vld [vmem:[%s1 + $0xcc] sm:$0xf]
  %v95 = vld [vmem:[%s1 + $0xd0] sm:$0xf]
  %v96 = vld [vmem:[%s1 + $0xd4] sm:$0xf]
  %v97 = vld [vmem:[%s1 + $0xd8] sm:$0xf]
  %v98 = vld [vmem:[%s1 + $0xdc] sm:$0xf]
  %v99 = vld [vmem:[%s1 + $0xe0] sm:$0xf]
  %v100 = vld [vmem:[%s1 + $0xe4] sm:$0xf]
  %v101 = vld [vmem:[%s1 + $0xe8] sm:$0xf]
  %v102 = vld [vmem:[%s1 + $0xec] sm:$0xf]
  %v103 = vld [vmem:[%s1 + $0xf0] sm:$0xf]
  %v104 = vld [vmem:[%s1 + $0xf4] sm:$0xf]
  %v105 = vld [vmem:[%s1 + $0xf8] sm:$0xf]
  %v106 = vld [vmem:[%s1 + $0xfc] sm:$0xf]
  %v107 = vld [vmem:[%s1 + $0x100] sm:$0xf]
  %v108 = vld [vmem:[%s1 + $0x104] sm:$0xf]
  %v109 = vld [vmem:[%s1 + $0x108] sm:$0xf]
  %v110 = vld [vmem:[%s1 + $0x10c] sm:$0xf]
  %v111 = vld [vmem:[%s1 + $0x110] sm:$0xf]
  %v112 = vld [vmem:[%s1 + $0x114] sm:$0xf]
  %v113 = vld [vmem:[%s1 + $0x118] sm:$0xf]
  %v114 = vld [vmem:[%s1 + $0x11c] sm:$0xf]
  %v115 = vld [vmem:[%s1 + $0x120] sm:$0xf]
  %v116 = vld [vmem:[%s1 + $0x124] sm:$0xf]
  %v117 = vld [vmem:[%s1 + $0x128] sm:$0xf]
  %v118 = vld [vmem:[%s1 + $0x12c] sm:$0xf]
  %v119 = vld [vmem:[%s1 + $0x130] sm:$0xf]
  %v120 = vld [vmem:[%s1 + $0x134] sm:$0xf]
  %v121 = vld [vmem:[%s1 + $0x138] sm:$0xf]
  %v122 = vld [vmem:[%s1 + $0x13c] sm:$0xf]
  %v123 = vld [vmem:[%s1 + $0x140] sm:$0xf]
  %v124 = vld [vmem:[%s1 + $0x144] sm:$0xf]
  %v125 = vld [vmem:[%s1 + $0x148] sm:$0xf]
  %v126 = vld [vmem:[%s1 + $0x14c] sm:$0xf]
  %v127 = vld [vmem:[%s1 + $0x150] sm:$0xf]
  %v128 = vld [vmem:[%s1 + $0x154] sm:$0xf]
  %v129 = vld [vmem:[%s1 + $0x158] sm:$0xf]
  %v130 = vld [vmem:[%s1 + $0x15c] sm:$0xf]
  %v131 = vld [vmem:[%s1 + $0x160] sm:$0xf]
  %v132 = vld [vmem:[%s1 + $0x164] sm:$0xf]
  %v133 = vld [vmem:[%s1 + $0x168] sm:$0xf]
  %v134 = vld [vmem:[%s1 + $0x16c] sm:$0xf]
  %v135 = vld [vmem:[%s1 + $0x170] sm:$0xf]
  %v136 = vld [vmem:[%s1 + $0x174] sm:$0xf]
  %v137 = vld [vmem:[%s1 + $0x178] sm:$0xf]
  %v138 = vld [vmem:[%s1 + $0x17c] sm:$0xf]
  %v139 = vld [vmem:[%s1 + $0x180] sm:$0xf]
  %v140 = vld [vmem:[%s1 + $0x184] sm:$0xf]
  %v141 = vld [vmem:[%s1 + $0x188] sm:$0xf]
  %v142 = vld [vmem:[%s1 + $0x18c] sm:$0xf]
  %v143 = vld [vmem:[%s1 + $0x190] sm:$0xf]
  %v144 = vld [vmem:[%s1 + $0x194] sm:$0xf]
  %v145 = vld [vmem:[%s1 + $0x198] sm:$0xf]
  %v146 = vld [vmem:[%s1 + $0x19c] sm:$0xf]
  %v147 = vld [vmem:[%s1 + $0x1a0] sm:$0xf]
  %v148 = vld [vmem:[%s1 + $0x1a4] sm:$0xf]
  %v149 = vld [vmem:[%s1 + $0x1a8] sm:$0xf]
  %v150 = vld [vmem:[%s1 + $0x1ac] sm:$0xf]
  %v151 = vld [vmem:[%s1 + $0x1b0] sm:$0xf]
  %v152 = vld [vmem:[%s1 + $0x1b4] sm:$0xf]
  %v153 = vld [vmem:[%s1 + $0x1b8] sm:$0xf]
  %v154 = vld [vmem:[%s1 + $0x1bc] sm:$0xf]
  %v155 = vld [vmem:[%s1 + $0x1c0] sm:$0xf]
  %v156 = vld [vmem:[%s1 + $0x1c4] sm:$0xf]
  %v157 = vld [vmem:[%s1 + $0x1c8] sm:$0xf]
  %v158 = vld [vmem:[%s1 + $0x1cc] sm:$0xf]
  %v159 = vld [vmem:[%s1 + $0x1d0] sm:$0xf]
  %v160 = vld [vmem:[%s1 + $0x1d4] sm:$0xf]
  %v161 = vld [vmem:[%s1 + $0x1d8] sm:$0xf]
  %v162 = vld [vmem:[%s1 + $0x1dc] sm:$0xf]
  %v163 = vld [vmem:[%s1 + $0x1e0] sm:$0xf]
  %v164 = vld [vmem:[%s1 + $0x1e4] sm:$0xf]
  %v165 = vld [vmem:[%s1 + $0x1e8] sm:$0xf]
  %v166 = vld [vmem:[%s1 + $0x1ec] sm:$0xf]
  %v167 = vld [vmem:[%s1 + $0x1f0] sm:$0xf]
  %v168 = vld [vmem:[%s1 + $0x1f4] sm:$0xf]
  %v169 = vld [vmem:[%s1 + $0x1f8] sm:$0xf]
  %v170 = vld [vmem:[%s1 + $0x1fc] sm:$0xf]
  %v187 = vunpack.c.l.b16 %v27
  %v188 = vunpack.c.h.b16 %v27
  %v189 = vunpack.c.l.b16 %v28
  %v190 = vunpack.c.h.b16 %v28
  %v191 = vunpack.c.l.b16 %v29
  %v192 = vunpack.c.h.b16 %v29
  %v193 = vunpack.c.l.b16 %v30
  %v194 = vunpack.c.h.b16 %v30
  %v195 = vunpack.c.l.b16 %v31
  %v196 = vunpack.c.h.b16 %v31
  %v197 = vunpack.c.l.b16 %v32
  %v198 = vunpack.c.h.b16 %v32
  %v199 = vunpack.c.l.b16 %v33
  %v200 = vunpack.c.h.b16 %v33
  %v201 = vunpack.c.l.b16 %v34
  %v202 = vunpack.c.h.b16 %v34
  %v203 = vunpack.c.l.b16 %v35
  %v204 = vunpack.c.h.b16 %v35
  %v205 = vunpack.c.l.b16 %v36
  %v206 = vunpack.c.h.b16 %v36
  %v207 = vunpack.c.l.b16 %v37
  %v208 = vunpack.c.h.b16 %v37
  %v209 = vunpack.c.l.b16 %v38
  %v210 = vunpack.c.h.b16 %v38
  %v211 = vunpack.c.l.b16 %v39
  %v212 = vunpack.c.h.b16 %v39
  %v213 = vunpack.c.l.b16 %v40
  %v214 = vunpack.c.h.b16 %v40
  %v215 = vunpack.c.l.b16 %v41
  %v216 = vunpack.c.h.b16 %v41
  %v217 = vunpack.c.l.b16 %v42
  %v218 = vunpack.c.h.b16 %v42
  %v219 = vpack.c.b16 %v195, %v187
  %v220 = vpack.c.b16 %v196, %v188
  %v221 = vpack.c.b16 %v197, %v189
  %v222 = vpack.c.b16 %v198, %v190
  %v223 = vpack.c.b16 %v199, %v191
  %v224 = vpack.c.b16 %v200, %v192
  %v225 = vpack.c.b16 %v201, %v193
  %v226 = vpack.c.b16 %v202, %v194
  %v227 = vpack.c.b16 %v211, %v203
  %v228 = vpack.c.b16 %v212, %v204
  %v229 = vpack.c.b16 %v213, %v205
  %v230 = vpack.c.b16 %v214, %v206
  %v231 = vpack.c.b16 %v215, %v207
  %v232 = vpack.c.b16 %v216, %v208
  %v233 = vpack.c.b16 %v217, %v209
  %v234 = vpack.c.b16 %v218, %v210
  %v379 = vunpack.c.l.b16 %v43
  %v380 = vunpack.c.l.b16 %v44
  %v381 = vunpack.c.l.b16 %v45
  %v382 = vunpack.c.l.b16 %v46
  %v383 = vunpack.c.l.b16 %v47
  %v384 = vunpack.c.l.b16 %v48
  %v385 = vunpack.c.l.b16 %v49
  %v386 = vunpack.c.l.b16 %v50
  %v387 = vunpack.c.l.b16 %v51
  %v388 = vunpack.c.l.b16 %v52
  %v389 = vunpack.c.l.b16 %v53
  %v390 = vunpack.c.l.b16 %v54
  %v391 = vunpack.c.l.b16 %v55
  %v392 = vunpack.c.l.b16 %v56
  %v393 = vunpack.c.l.b16 %v57
  %v394 = vunpack.c.l.b16 %v58
  %v395 = vunpack.c.l.b16 %v59
  %v396 = vunpack.c.l.b16 %v60
  %v397 = vunpack.c.l.b16 %v61
  %v398 = vunpack.c.l.b16 %v62
  %v399 = vunpack.c.l.b16 %v63
  %v400 = vunpack.c.l.b16 %v64
  %v401 = vunpack.c.l.b16 %v65
  %v402 = vunpack.c.l.b16 %v66
  %v403 = vunpack.c.l.b16 %v67
  %v404 = vunpack.c.l.b16 %v68
  %v405 = vunpack.c.l.b16 %v69
  %v406 = vunpack.c.l.b16 %v70
  %v407 = vunpack.c.l.b16 %v71
  %v408 = vunpack.c.l.b16 %v72
  %v409 = vunpack.c.l.b16 %v73
  %v410 = vunpack.c.l.b16 %v74
  %v411 = vunpack.c.l.b16 %v75
  %v412 = vunpack.c.l.b16 %v76
  %v413 = vunpack.c.l.b16 %v77
  %v414 = vunpack.c.l.b16 %v78
  %v415 = vunpack.c.l.b16 %v79
  %v416 = vunpack.c.l.b16 %v80
  %v417 = vunpack.c.l.b16 %v81
  %v418 = vunpack.c.l.b16 %v82
  %v419 = vunpack.c.l.b16 %v83
  %v420 = vunpack.c.l.b16 %v84
  %v421 = vunpack.c.l.b16 %v85
  %v422 = vunpack.c.l.b16 %v86
  %v423 = vunpack.c.l.b16 %v87
  %v424 = vunpack.c.l.b16 %v88
  %v425 = vunpack.c.l.b16 %v89
  %v426 = vunpack.c.l.b16 %v90
  %v427 = vunpack.c.l.b16 %v91
  %v428 = vunpack.c.l.b16 %v92
  %v429 = vunpack.c.l.b16 %v93
  %v430 = vunpack.c.l.b16 %v94
  %v431 = vunpack.c.l.b16 %v95
  %v432 = vunpack.c.l.b16 %v96
  %v433 = vunpack.c.l.b16 %v97
  %v434 = vunpack.c.l.b16 %v98
  %v435 = vunpack.c.l.b16 %v99
  %v436 = vunpack.c.l.b16 %v100
  %v437 = vunpack.c.l.b16 %v101
  %v438 = vunpack.c.l.b16 %v102
  %v439 = vunpack.c.l.b16 %v103
  %v440 = vunpack.c.l.b16 %v104
  %v441 = vunpack.c.l.b16 %v105
  %v442 = vunpack.c.l.b16 %v106
  %v443 = vunpack.c.l.b16 %v107
  %v444 = vunpack.c.l.b16 %v108
  %v445 = vunpack.c.l.b16 %v109
  %v446 = vunpack.c.l.b16 %v110
  %v447 = vunpack.c.l.b16 %v111
  %v448 = vunpack.c.l.b16 %v112
  %v449 = vunpack.c.l.b16 %v113
  %v450 = vunpack.c.l.b16 %v114
  %v451 = vunpack.c.l.b16 %v115
  %v452 = vunpack.c.l.b16 %v116
  %v453 = vunpack.c.l.b16 %v117
  %v454 = vunpack.c.l.b16 %v118
  %v455 = vunpack.c.l.b16 %v119
  %v456 = vunpack.c.l.b16 %v120
  %v457 = vunpack.c.l.b16 %v121
  %v458 = vunpack.c.l.b16 %v122
  %v459 = vunpack.c.l.b16 %v123
  %v460 = vunpack.c.l.b16 %v124
  %v461 = vunpack.c.l.b16 %v125
  %v462 = vunpack.c.l.b16 %v126
  %v463 = vunpack.c.l.b16 %v127
  %v464 = vunpack.c.l.b16 %v128
  %v465 = vunpack.c.l.b16 %v129
  %v466 = vunpack.c.l.b16 %v130
  %v467 = vunpack.c.l.b16 %v131
  %v468 = vunpack.c.l.b16 %v132
  %v469 = vunpack.c.l.b16 %v133
  %v470 = vunpack.c.l.b16 %v134
  %v471 = vunpack.c.l.b16 %v135
  %v472 = vunpack.c.l.b16 %v136
  %v473 = vunpack.c.l.b16 %v137
  %v474 = vunpack.c.l.b16 %v138
  %v475 = vunpack.c.l.b16 %v139
  %v476 = vunpack.c.l.b16 %v140
  %v477 = vunpack.c.l.b16 %v141
  %v478 = vunpack.c.l.b16 %v142
  %v479 = vunpack.c.l.b16 %v143
  %v480 = vunpack.c.l.b16 %v144
  %v481 = vunpack.c.l.b16 %v145
  %v482 = vunpack.c.l.b16 %v146
  %v483 = vunpack.c.l.b16 %v147
  %v484 = vunpack.c.l.b16 %v148
  %v485 = vunpack.c.l.b16 %v149
  %v486 = vunpack.c.l.b16 %v150
  %v487 = vunpack.c.l.b16 %v151
  %v488 = vunpack.c.l.b16 %v152
  %v489 = vunpack.c.l.b16 %v153
  %v490 = vunpack.c.l.b16 %v154
  %v491 = vunpack.c.l.b16 %v155
  %v492 = vunpack.c.l.b16 %v156
  %v493 = vunpack.c.l.b16 %v157
  %v494 = vunpack.c.l.b16 %v158
  %v495 = vunpack.c.l.b16 %v159
  %v496 = vunpack.c.l.b16 %v160
  %v497 = vunpack.c.l.b16 %v161
  %v498 = vunpack.c.l.b16 %v162
  %v499 = vunpack.c.l.b16 %v163
  %v500 = vunpack.c.l.b16 %v164
  %v501 = vunpack.c.l.b16 %v165
  %v502 = vunpack.c.l.b16 %v166
  %v503 = vunpack.c.l.b16 %v167
  %v504 = vunpack.c.l.b16 %v168
  %v505 = vunpack.c.l.b16 %v169
  %v506 = vunpack.c.l.b16 %v170
  %v507 = vpack.c.b16 %v380, %v379
  %v508 = vpack.c.b16 %v382, %v381
  %v509 = vpack.c.b16 %v384, %v383
  %v510 = vpack.c.b16 %v386, %v385
  %v511 = vpack.c.b16 %v388, %v387
  %v512 = vpack.c.b16 %v390, %v389
  %v513 = vpack.c.b16 %v392, %v391
  %v514 = vpack.c.b16 %v394, %v393
  %v515 = vpack.c.b16 %v396, %v395
  %v516 = vpack.c.b16 %v398, %v397
  %v517 = vpack.c.b16 %v400, %v399
  %v518 = vpack.c.b16 %v402, %v401
  %v519 = vpack.c.b16 %v404, %v403
  %v520 = vpack.c.b16 %v406, %v405
  %v521 = vpack.c.b16 %v408, %v407
  %v522 = vpack.c.b16 %v410, %v409
  %v523 = vpack.c.b16 %v412, %v411
  %v524 = vpack.c.b16 %v414, %v413
  %v525 = vpack.c.b16 %v416, %v415
  %v526 = vpack.c.b16 %v418, %v417
  %v527 = vpack.c.b16 %v420, %v419
  %v528 = vpack.c.b16 %v422, %v421
  %v529 = vpack.c.b16 %v424, %v423
  %v530 = vpack.c.b16 %v426, %v425
  %v531 = vpack.c.b16 %v428, %v427
  %v532 = vpack.c.b16 %v430, %v429
  %v533 = vpack.c.b16 %v432, %v431
  %v534 = vpack.c.b16 %v434, %v433
  %v535 = vpack.c.b16 %v436, %v435
  %v536 = vpack.c.b16 %v438, %v437
  %v537 = vpack.c.b16 %v440, %v439
  %v538 = vpack.c.b16 %v442, %v441
  %v539 = vpack.c.b16 %v444, %v443
  %v540 = vpack.c.b16 %v446, %v445
  %v541 = vpack.c.b16 %v448, %v447
  %v542 = vpack.c.b16 %v450, %v449
  %v543 = vpack.c.b16 %v452, %v451
  %v544 = vpack.c.b16 %v454, %v453
  %v545 = vpack.c.b16 %v456, %v455
  %v546 = vpack.c.b16 %v458, %v457
  %v547 = vpack.c.b16 %v460, %v459
  %v548 = vpack.c.b16 %v462, %v461
  %v549 = vpack.c.b16 %v464, %v463
  %v550 = vpack.c.b16 %v466, %v465
  %v551 = vpack.c.b16 %v468, %v467
  %v552 = vpack.c.b16 %v470, %v469
  %v553 = vpack.c.b16 %v472, %v471
  %v554 = vpack.c.b16 %v474, %v473
  %v555 = vpack.c.b16 %v476, %v475
  %v556 = vpack.c.b16 %v478, %v477
  %v557 = vpack.c.b16 %v480, %v479
  %v558 = vpack.c.b16 %v482, %v481
  %v559 = vpack.c.b16 %v484, %v483
  %v560 = vpack.c.b16 %v486, %v485
  %v561 = vpack.c.b16 %v488, %v487
  %v562 = vpack.c.b16 %v490, %v489
  %v563 = vpack.c.b16 %v492, %v491
  %v564 = vpack.c.b16 %v494, %v493
  %v565 = vpack.c.b16 %v496, %v495
  %v566 = vpack.c.b16 %v498, %v497
  %v567 = vpack.c.b16 %v500, %v499
  %v568 = vpack.c.b16 %v502, %v501
  %v569 = vpack.c.b16 %v504, %v503
  %v570 = vpack.c.b16 %v506, %v505
  %635 = vmatprep.subr.bf16.mxu0 0
  %636 = vmatpush1.bf16.msra.mxu0 %v507
  %637 = vmatprep.subr.bf16.mxu0 0
  %638 = vmatpush1.bf16.msra.mxu0 %v508
  %639 = vmatprep.subr.bf16.mxu0 0
  %640 = vmatpush1.bf16.msra.mxu0 %v509
  %641 = vmatprep.subr.bf16.mxu0 0
  %642 = vmatpush1.bf16.msra.mxu0 %v510
  %643 = vmatprep.subr.bf16.mxu0 0
  %644 = vmatpush1.bf16.msra.mxu0 %v511
  %645 = vmatprep.subr.bf16.mxu0 0
  %646 = vmatpush1.bf16.msra.mxu0 %v512
  %647 = vmatprep.subr.bf16.mxu0 0
  %648 = vmatpush1.bf16.msra.mxu0 %v513
  %649 = vmatprep.subr.bf16.mxu0 0
  %650 = vmatpush1.bf16.msra.mxu0 %v514
  %651 = vmatprep.subr.bf16.mxu0 0
  %652 = vmatpush1.bf16.msra.mxu0 %v515
  %653 = vmatprep.subr.bf16.mxu0 0
  %654 = vmatpush1.bf16.msra.mxu0 %v516
  %655 = vmatprep.subr.bf16.mxu0 0
  %656 = vmatpush1.bf16.msra.mxu0 %v517
  %657 = vmatprep.subr.bf16.mxu0 0
  %658 = vmatpush1.bf16.msra.mxu0 %v518
  %659 = vmatprep.subr.bf16.mxu0 0
  %660 = vmatpush1.bf16.msra.mxu0 %v519
  %661 = vmatprep.subr.bf16.mxu0 0
  %662 = vmatpush1.bf16.msra.mxu0 %v520
  %663 = vmatprep.subr.bf16.mxu0 0
  %664 = vmatpush1.bf16.msra.mxu0 %v521
  %665 = vmatprep.subr.bf16.mxu0 0
  %666 = vmatpush1.bf16.msra.mxu0 %v522
  %667 = vmatprep.mubr.bf16.mxu0 %v220
  %668 = vmatmul.mubr.bf16.gmra.mrb[0].mxu0 %v219
  %v669 = vpop.f32.mrb[0].mxu0
  %v670 = vadd.f32 0.0, %v669
  %v671 = vpop.f32.mrb[0].mxu0
  %v672 = vpop.f32.mrb[0].mxu0
  %v673 = vadd.f32 0.0, %v672
  %v674 = vpop.f32.mrb[0].mxu0
  %675 = vmatprep.mubr.bf16.mxu0 %v228
  %676 = vmatmul.mubr.bf16.gmra.mrb[0].mxu0 %v227
  %v677 = vpop.f32.mrb[0].mxu0
  %v678 = vadd.f32 0.0, %v677
  %v679 = vpop.f32.mrb[0].mxu0
  %v680 = vpop.f32.mrb[0].mxu0
  %v681 = vadd.f32 0.0, %v680
  %v682 = vpop.f32.mrb[0].mxu0
  %683 = vdwg.mxu0
  %684 = vmatprep.subr.bf16.mxu0 0
  %685 = vmatpush1.bf16.msra.mxu0 %v523
  %686 = vmatprep.subr.bf16.mxu0 0
  %687 = vmatpush1.bf16.msra.mxu0 %v524
  %688 = vmatprep.subr.bf16.mxu0 0
  %689 = vmatpush1.bf16.msra.mxu0 %v525
  %690 = vmatprep.subr.bf16.mxu0 0
  %691 = vmatpush1.bf16.msra.mxu0 %v526
  %692 = vmatprep.subr.bf16.mxu0 0
  %693 = vmatpush1.bf16.msra.mxu0 %v527
  %694 = vmatprep.subr.bf16.mxu0 0
  %695 = vmatpush1.bf16.msra.mxu0 %v528
  %696 = vmatprep.subr.bf16.mxu0 0
  %697 = vmatpush1.bf16.msra.mxu0 %v529
  %698 = vmatprep.subr.bf16.mxu0 0
  %699 = vmatpush1.bf16.msra.mxu0 %v530
  %700 = vmatprep.subr.bf16.mxu0 0
  %701 = vmatpush1.bf16.msra.mxu0 %v531
  %702 = vmatprep.subr.bf16.mxu0 0
  %703 = vmatpush1.bf16.msra.mxu0 %v532
  %704 = vmatprep.subr.bf16.mxu0 0
  %705 = vmatpush1.bf16.msra.mxu0 %v533
  %706 = vmatprep.subr.bf16.mxu0 0
  %707 = vmatpush1.bf16.msra.mxu0 %v534
  %708 = vmatprep.subr.bf16.mxu0 0
  %709 = vmatpush1.bf16.msra.mxu0 %v535
  %710 = vmatprep.subr.bf16.mxu0 0
  %711 = vmatpush1.bf16.msra.mxu0 %v536
  %712 = vmatprep.subr.bf16.mxu0 0
  %713 = vmatpush1.bf16.msra.mxu0 %v537
  %714 = vmatprep.subr.bf16.mxu0 0
  %715 = vmatpush1.bf16.msra.mxu0 %v538
  %716 = vmatprep.mubr.bf16.mxu0 %v222
  %717 = vmatmul.mubr.bf16.gmra.mrb[0].mxu0 %v221
  %v718 = vpop.f32.mrb[0].mxu0
  %v719 = vadd.f32 %v670, %v718
  %v720 = vpop.f32.mrb[0].mxu0
  %v721 = vpop.f32.mrb[0].mxu0
  %v722 = vadd.f32 %v673, %v721
  %v723 = vpop.f32.mrb[0].mxu0
  %724 = vmatprep.mubr.bf16.mxu0 %v230
  %725 = vmatmul.mubr.bf16.gmra.mrb[0].mxu0 %v229
  %v726 = vpop.f32.mrb[0].mxu0
  %v727 = vadd.f32 %v678, %v726
  %v728 = vpop.f32.mrb[0].mxu0
  %v729 = vpop.f32.mrb[0].mxu0
  %v730 = vadd.f32 %v681, %v729
  %v731 = vpop.f32.mrb[0].mxu0
  %732 = vdwg.mxu0
  %733 = vmatprep.subr.bf16.mxu0 0
  %734 = vmatpush1.bf16.msra.mxu0 %v539
  %735 = vmatprep.subr.bf16.mxu0 0
  %736 = vmatpush1.bf16.msra.mxu0 %v540
  %737 = vmatprep.subr.bf16.mxu0 0
  %738 = vmatpush1.bf16.msra.mxu0 %v541
  %739 = vmatprep.subr.bf16.mxu0 0
  %740 = vmatpush1.bf16.msra.mxu0 %v542
  %741 = vmatprep.subr.bf16.mxu0 0
  %742 = vmatpush1.bf16.msra.mxu0 %v543
  %743 = vmatprep.subr.bf16.mxu0 0
  %744 = vmatpush1.bf16.msra.mxu0 %v544
  %745 = vmatprep.subr.bf16.mxu0 0
  %746 = vmatpush1.bf16.msra.mxu0 %v545
  %747 = vmatprep.subr.bf16.mxu0 0
  %748 = vmatpush1.bf16.msra.mxu0 %v546
  %749 = vmatprep.subr.bf16.mxu0 0
  %750 = vmatpush1.bf16.msra.mxu0 %v547
  %751 = vmatprep.subr.bf16.mxu0 0
  %752 = vmatpush1.bf16.msra.mxu0 %v548
  %753 = vmatprep.subr.bf16.mxu0 0
  %754 = vmatpush1.bf16.msra.mxu0 %v549
  %755 = vmatprep.subr.bf16.mxu0 0
  %756 = vmatpush1.bf16.msra.mxu0 %v550
  %757 = vmatprep.subr.bf16.mxu0 0
  %758 = vmatpush1.bf16.msra.mxu0 %v551
  %759 = vmatprep.subr.bf16.mxu0 0
  %760 = vmatpush1.bf16.msra.mxu0 %v552
  %761 = vmatprep.subr.bf16.mxu0 0
  %762 = vmatpush1.bf16.msra.mxu0 %v553
  %763 = vmatprep.subr.bf16.mxu0 0
  %764 = vmatpush1.bf16.msra.mxu0 %v554
  %765 = vmatprep.mubr.bf16.mxu0 %v224
  %766 = vmatmul.mubr.bf16.gmra.mrb[0].mxu0 %v223
  %v767 = vpop.f32.mrb[0].mxu0
  %v768 = vadd.f32 %v719, %v767
  %v769 = vpop.f32.mrb[0].mxu0
  %v770 = vpop.f32.mrb[0].mxu0
  %v771 = vadd.f32 %v722, %v770
  %v772 = vpop.f32.mrb[0].mxu0
  %773 = vmatprep.mubr.bf16.mxu0 %v232
  %774 = vmatmul.mubr.bf16.gmra.mrb[0].mxu0 %v231
  %v775 = vpop.f32.mrb[0].mxu0
  %v776 = vadd.f32 %v727, %v775
  %v777 = vpop.f32.mrb[0].mxu0
  %v778 = vpop.f32.mrb[0].mxu0
  %v779 = vadd.f32 %v730, %v778
  %v780 = vpop.f32.mrb[0].mxu0
  %781 = vdwg.mxu0
  %782 = vmatprep.subr.bf16.mxu0 0
  %783 = vmatpush1.bf16.msra.mxu0 %v555
  %784 = vmatprep.subr.bf16.mxu0 0
  %785 = vmatpush1.bf16.msra.mxu0 %v556
  %786 = vmatprep.subr.bf16.mxu0 0
  %787 = vmatpush1.bf16.msra.mxu0 %v557
  %788 = vmatprep.subr.bf16.mxu0 0
  %789 = vmatpush1.bf16.msra.mxu0 %v558
  %790 = vmatprep.subr.bf16.mxu0 0
  %791 = vmatpush1.bf16.msra.mxu0 %v559
  %792 = vmatprep.subr.bf16.mxu0 0
  %793 = vmatpush1.bf16.msra.mxu0 %v560
  %794 = vmatprep.subr.bf16.mxu0 0
  %795 = vmatpush1.bf16.msra.mxu0 %v561
  %796 = vmatprep.subr.bf16.mxu0 0
  %797 = vmatpush1.bf16.msra.mxu0 %v562
  %798 = vmatprep.subr.bf16.mxu0 0
  %799 = vmatpush1.bf16.msra.mxu0 %v563
  %800 = vmatprep.subr.bf16.mxu0 0
  %801 = vmatpush1.bf16.msra.mxu0 %v564
  %802 = vmatprep.subr.bf16.mxu0 0
  %803 = vmatpush1.bf16.msra.mxu0 %v565
  %804 = vmatprep.subr.bf16.mxu0 0
  %805 = vmatpush1.bf16.msra.mxu0 %v566
  %806 = vmatprep.subr.bf16.mxu0 0
  %807 = vmatpush1.bf16.msra.mxu0 %v567
  %808 = vmatprep.subr.bf16.mxu0 0
  %809 = vmatpush1.bf16.msra.mxu0 %v568
  %810 = vmatprep.subr.bf16.mxu0 0
  %811 = vmatpush1.bf16.msra.mxu0 %v569
  %812 = vmatprep.subr.bf16.mxu0 0
  %813 = vmatpush1.bf16.msra.mxu0 %v570
  %814 = vmatprep.mubr.bf16.mxu0 %v226
  %815 = vmatmul.mubr.bf16.gmra.mrb[0].mxu0 %v225
  %v816 = vpop.f32.mrb[0].mxu0
  %v817 = vadd.f32 %v768, %v816
  %v818 = vpop.f32.mrb[0].mxu0
  %v819 = vpop.f32.mrb[0].mxu0
  %v820 = vadd.f32 %v771, %v819
  %v821 = vpop.f32.mrb[0].mxu0
  %822 = vmatprep.mubr.bf16.mxu0 %v234
  %823 = vmatmul.mubr.bf16.gmra.mrb[0].mxu0 %v233
  %v824 = vpop.f32.mrb[0].mxu0
  %v825 = vadd.f32 %v776, %v824
  %v826 = vpop.f32.mrb[0].mxu0
  %v827 = vpop.f32.mrb[0].mxu0
  %v828 = vadd.f32 %v779, %v827
  %v829 = vpop.f32.mrb[0].mxu0
  %830 = vdwg.mxu0
  %v831 = vadd.f32 %v23, %v817
  %v832 = vadd.f32 %v24, %v820
  %v833 = vadd.f32 %v25, %v825
  %v834 = vadd.f32 %v26, %v828
  %835 = vst [vmem:[%s3] sm:$0xff] %v831
  %836 = vst [vmem:[%s3 + $0x8] sm:$0xff] %v832
  %837 = vst [vmem:[%s3 + $0x10] sm:$0xff] %v833
  %838 = vst [vmem:[%s3 + $0x18] sm:$0xff] %v834
  // Predicated region
  $region18: #{conv1d_base_net_forward.11} parent=0 // pred_check
    %p839 = pneg %p15
  $region19: #{conv1d_base_net_forward.11} parent=0 // pred_check_branch
    %841 = sbr.rel (%p839) target = $region21
  $region20: #{conv1d_base_net_forward.11} parent=0 // pred_region
    %v842 = vld [vmem:[%s3] sm:$0xff]
    %v843 = vld [vmem:[%s3 + $0x8] sm:$0xff]
    %v844 = vld [vmem:[%s3 + $0x10] sm:$0xff]
    %v845 = vld [vmem:[%s3 + $0x18] sm:$0xff]
    %v846 = vld [vmem:[%s2] sm:$0x1]
    %v847 = vlaneseq
    %v848 = vshrl.u32 %v847, 7
    %v849 = vsub.s32 0, %v848
    %v850 = vrot.slane %v846, %v849
    %v851 = vadd.f32 %v842, %v850
    %v852 = vadd.f32 %v843, %v850
    %v853 = vadd.f32 %v844, %v850
    %v854 = vadd.f32 %v845, %v850
    %v855 = vmax.f32 %v851, 0.0
    %v856 = vmax.f32 %v852, 0.0
    %v857 = vmax.f32 %v853, 0.0
    %v858 = vmax.f32 %v854, 0.0
    %v859 = vld [vmem:[%s2 + $0x1] sm:$0x1]
    %v860 = vlaneseq
    %v861 = vshrl.u32 %v860, 7
    %v862 = vsub.s32 0, %v861
    %v863 = vrot.slane %v859, %v862
    %v864 = vmul.f32 %v855, %v863
    %v865 = vmul.f32 %v856, %v863
    %v866 = vmul.f32 %v857, %v863
    %v867 = vmul.f32 %v858, %v863
    %v868 = vld [vmem:[%s2 + $0x2] sm:$0x1]
    %v869 = vlaneseq
    %v870 = vshrl.u32 %v869, 7
    %v871 = vsub.s32 0, %v870
    %v872 = vrot.slane %v868, %v871
    %v873 = vadd.f32 %v864, %v872
    %v874 = vadd.f32 %v865, %v872
    %v875 = vadd.f32 %v866, %v872
    %v876 = vadd.f32 %v867, %v872
    %877 = vst [vmem:[%s3] sm:$0xff] %v873
    %878 = vst [vmem:[%s3 + $0x8] sm:$0xff] %v874
    %879 = vst [vmem:[%s3 + $0x10] sm:$0xff] %v875
    %880 = vst [vmem:[%s3 + $0x18] sm:$0xff] %v876
  $region21: #{conv1d_base_net_forward.11} parent=0 // pred_fallthru
    _
  // Predicated region
  $region22: #{conv1d_base_net_forward.11} parent=0 // pred_check
    _
  $region23: #{conv1d_base_net_forward.11} parent=0 // pred_check_branch
    %882 = sbr.rel (0) target = $region25
  $region24: #{conv1d_base_net_forward.11} parent=0 // pred_region
    _
  $region25: #{conv1d_base_net_forward.11} parent=0 // pred_fallthru
    _
  // Predicated region
  $region26: #{conv1d_base_net_forward.11} parent=0 // pred_check
    _
  $region27: #{conv1d_base_net_forward.11} parent=0 // pred_check_branch
    %884 = sbr.rel (0) target = $region29
  $region28: #{conv1d_base_net_forward.11} parent=0 // pred_region
    _
  $region29: #{conv1d_base_net_forward.11} parent=0 // pred_fallthru
    _

// kernel: conv1d_base_net_forward.12
$region0: #{conv1d_base_net_forward.12}
  #allocation0 [shape = 'u32[]', space=smem, size = 0x4, offset = 0x4, fixed_abs, tag = 'smem constant byte address 0x4 - core index']
  #allocation1 [shape = 'u32[144,128]{1,0:T(1,128)}', space=vmem, size = 0x12000, scoped, tag = 'internal scratch']
  %s0 = inlined_call_operand.vmem [shape: bf16[16,512], index: 0, kind: input, shape index: {}]
  %s1 = inlined_call_operand.vmem [shape: bf16[512,128], index: 1, kind: input, shape index: {}]
  %s2 = inlined_call_operand.vmem [shape: f32[3,128], index: 2, kind: input, shape index: {}]
  %s3 = inlined_call_operand.vmem [shape: f32[16,128], index: 3, kind: output, shape index: {}]
  %s4 = sld [smem:[#allocation0]]
  $region30: #{conv1d_base_net_forward.12} parent=0
    _
  %s6 = ssub.s32 1, %s4
  %s7 = scalar_select 0, %s6, %s4
  // Predicated region
  $region2: #{conv1d_base_net_forward.12} parent=0 // pred_check
    _
  $region3: #{conv1d_base_net_forward.12} parent=0 // pred_check_branch
    %9 = sbr.rel (0) target = $region5
  $region4: #{conv1d_base_net_forward.12} parent=0 // pred_region
    _
  $region5: #{conv1d_base_net_forward.12} parent=0 // pred_fallthru
    _
  // Predicated region
  $region6: #{conv1d_base_net_forward.12} parent=0 // pred_check
    _
  $region7: #{conv1d_base_net_forward.12} parent=0 // pred_check_branch
    %11 = sbr.rel (0) target = $region9
  $region8: #{conv1d_base_net_forward.12} parent=0 // pred_region
    _
  $region9: #{conv1d_base_net_forward.12} parent=0 // pred_fallthru
    _
  // Predicated region
  $region10: #{conv1d_base_net_forward.12} parent=0 // pred_check
    _
  $region11: #{conv1d_base_net_forward.12} parent=0 // pred_check_branch
    %13 = sbr.rel (0) target = $region13
  $region12: #{conv1d_base_net_forward.12} parent=0 // pred_region
    _
  $region13: #{conv1d_base_net_forward.12} parent=0 // pred_fallthru
    _
  %p15 = scmp.eq.s32.totalorder 0, 0
  // Predicated region
  $region14: #{conv1d_base_net_forward.12} parent=0 // pred_check
    %p16 = pneg %p15
  $region15: #{conv1d_base_net_forward.12} parent=0 // pred_check_branch
    %18 = sbr.rel (%p16) target = $region17
  $region16: #{conv1d_base_net_forward.12} parent=0 // pred_region
    %19 = vst [vmem:[%s3] sm:$0xff] 0.0
    %20 = vst [vmem:[%s3 + $0x8] sm:$0xff] 0.0
  $region17: #{conv1d_base_net_forward.12} parent=0 // pred_fallthru
    _
  %v21 = vld [vmem:[%s3] sm:$0xff]
  %v22 = vld [vmem:[%s3 + $0x8] sm:$0xff]
  %v23 = vld [vmem:[%s0] sm:$0xff]
  %v24 = vld [vmem:[%s0 + $0x8] sm:$0xff]
  %v25 = vld [vmem:[%s0 + $0x10] sm:$0xff]
  %v26 = vld [vmem:[%s0 + $0x18] sm:$0xff]
  %v27 = vld [vmem:[%s1] sm:$0xf]
  %v28 = vld [vmem:[%s1 + $0x4] sm:$0xf]
  %v29 = vld [vmem:[%s1 + $0x8] sm:$0xf]
  %v30 = vld [vmem:[%s1 + $0xc] sm:$0xf]
  %v31 = vld [vmem:[%s1 + $0x10] sm:$0xf]
  %v32 = vld [vmem:[%s1 + $0x14] sm:$0xf]
  %v33 = vld [vmem:[%s1 + $0x18] sm:$0xf]
  %v34 = vld [vmem:[%s1 + $0x1c] sm:$0xf]
  %v35 = vld [vmem:[%s1 + $0x20] sm:$0xf]
  %v36 = vld [vmem:[%s1 + $0x24] sm:$0xf]
  %v37 = vld [vmem:[%s1 + $0x28] sm:$0xf]
  %v38 = vld [vmem:[%s1 + $0x2c] sm:$0xf]
  %v39 = vld [vmem:[%s1 + $0x30] sm:$0xf]
  %v40 = vld [vmem:[%s1 + $0x34] sm:$0xf]
  %v41 = vld [vmem:[%s1 + $0x38] sm:$0xf]
  %v42 = vld [vmem:[%s1 + $0x3c] sm:$0xf]
  %v43 = vld [vmem:[%s1 + $0x40] sm:$0xf]
  %v44 = vld [vmem:[%s1 + $0x44] sm:$0xf]
  %v45 = vld [vmem:[%s1 + $0x48] sm:$0xf]
  %v46 = vld [vmem:[%s1 + $0x4c] sm:$0xf]
  %v47 = vld [vmem:[%s1 + $0x50] sm:$0xf]
  %v48 = vld [vmem:[%s1 + $0x54] sm:$0xf]
  %v49 = vld [vmem:[%s1 + $0x58] sm:$0xf]
  %v50 = vld [vmem:[%s1 + $0x5c] sm:$0xf]
  %v51 = vld [vmem:[%s1 + $0x60] sm:$0xf]
  %v52 = vld [vmem:[%s1 + $0x64] sm:$0xf]
  %v53 = vld [vmem:[%s1 + $0x68] sm:$0xf]
  %v54 = vld [vmem:[%s1 + $0x6c] sm:$0xf]
  %v55 = vld [vmem:[%s1 + $0x70] sm:$0xf]
  %v56 = vld [vmem:[%s1 + $0x74] sm:$0xf]
  %v57 = vld [vmem:[%s1 + $0x78] sm:$0xf]
  %v58 = vld [vmem:[%s1 + $0x7c] sm:$0xf]
  %v59 = vld [vmem:[%s1 + $0x80] sm:$0xf]
  %v60 = vld [vmem:[%s1 + $0x84] sm:$0xf]
  %v61 = vld [vmem:[%s1 + $0x88] sm:$0xf]
  %v62 = vld [vmem:[%s1 + $0x8c] sm:$0xf]
  %v63 = vld [vmem:[%s1 + $0x90] sm:$0xf]
  %v64 = vld [vmem:[%s1 + $0x94] sm:$0xf]
  %v65 = vld [vmem:[%s1 + $0x98] sm:$0xf]
  %v66 = vld [vmem:[%s1 + $0x9c] sm:$0xf]
  %v67 = vld [vmem:[%s1 + $0xa0] sm:$0xf]
  %v68 = vld [vmem:[%s1 + $0xa4] sm:$0xf]
  %v69 = vld [vmem:[%s1 + $0xa8] sm:$0xf]
  %v70 = vld [vmem:[%s1 + $0xac] sm:$0xf]
  %v71 = vld [vmem:[%s1 + $0xb0] sm:$0xf]
  %v72 = vld [vmem:[%s1 + $0xb4] sm:$0xf]
  %v73 = vld [vmem:[%s1 + $0xb8] sm:$0xf]
  %v74 = vld [vmem:[%s1 + $0xbc] sm:$0xf]
  %v75 = vld [vmem:[%s1 + $0xc0] sm:$0xf]
  %v76 = vld [vmem:[%s1 + $0xc4] sm:$0xf]
  %v77 = vld [vmem:[%s1 + $0xc8] sm:$0xf]
  %v78 = vld [vmem:[%s1 + $0xcc] sm:$0xf]
  %v79 = vld [vmem:[%s1 + $0xd0] sm:$0xf]
  %v80 = vld [vmem:[%s1 + $0xd4] sm:$0xf]
  %v81 = vld [vmem:[%s1 + $0xd8] sm:$0xf]
  %v82 = vld [vmem:[%s1 + $0xdc] sm:$0xf]
  %v83 = vld [vmem:[%s1 + $0xe0] sm:$0xf]
  %v84 = vld [vmem:[%s1 + $0xe4] sm:$0xf]
  %v85 = vld [vmem:[%s1 + $0xe8] sm:$0xf]
  %v86 = vld [vmem:[%s1 + $0xec] sm:$0xf]
  %v87 = vld [vmem:[%s1 + $0xf0] sm:$0xf]
  %v88 = vld [vmem:[%s1 + $0xf4] sm:$0xf]
  %v89 = vld [vmem:[%s1 + $0xf8] sm:$0xf]
  %v90 = vld [vmem:[%s1 + $0xfc] sm:$0xf]
  %v95 = vunpack.c.l.b16 %v23
  %v96 = vunpack.c.h.b16 %v23
  %v97 = vunpack.c.l.b16 %v24
  %v98 = vunpack.c.h.b16 %v24
  %v99 = vunpack.c.l.b16 %v25
  %v100 = vunpack.c.h.b16 %v25
  %v101 = vunpack.c.l.b16 %v26
  %v102 = vunpack.c.h.b16 %v26
  %v103 = vpack.c.b16 %v99, %v95
  %v104 = vpack.c.b16 %v100, %v96
  %v105 = vpack.c.b16 %v101, %v97
  %v106 = vpack.c.b16 %v102, %v98
  %v175 = vunpack.c.l.b16 %v27
  %v176 = vunpack.c.l.b16 %v28
  %v177 = vunpack.c.l.b16 %v29
  %v178 = vunpack.c.l.b16 %v30
  %v179 = vunpack.c.l.b16 %v31
  %v180 = vunpack.c.l.b16 %v32
  %v181 = vunpack.c.l.b16 %v33
  %v182 = vunpack.c.l.b16 %v34
  %v183 = vunpack.c.l.b16 %v35
  %v184 = vunpack.c.l.b16 %v36
  %v185 = vunpack.c.l.b16 %v37
  %v186 = vunpack.c.l.b16 %v38
  %v187 = vunpack.c.l.b16 %v39
  %v188 = vunpack.c.l.b16 %v40
  %v189 = vunpack.c.l.b16 %v41
  %v190 = vunpack.c.l.b16 %v42
  %v191 = vunpack.c.l.b16 %v43
  %v192 = vunpack.c.l.b16 %v44
  %v193 = vunpack.c.l.b16 %v45
  %v194 = vunpack.c.l.b16 %v46
  %v195 = vunpack.c.l.b16 %v47
  %v196 = vunpack.c.l.b16 %v48
  %v197 = vunpack.c.l.b16 %v49
  %v198 = vunpack.c.l.b16 %v50
  %v199 = vunpack.c.l.b16 %v51
  %v200 = vunpack.c.l.b16 %v52
  %v201 = vunpack.c.l.b16 %v53
  %v202 = vunpack.c.l.b16 %v54
  %v203 = vunpack.c.l.b16 %v55
  %v204 = vunpack.c.l.b16 %v56
  %v205 = vunpack.c.l.b16 %v57
  %v206 = vunpack.c.l.b16 %v58
  %v207 = vunpack.c.l.b16 %v59
  %v208 = vunpack.c.l.b16 %v60
  %v209 = vunpack.c.l.b16 %v61
  %v210 = vunpack.c.l.b16 %v62
  %v211 = vunpack.c.l.b16 %v63
  %v212 = vunpack.c.l.b16 %v64
  %v213 = vunpack.c.l.b16 %v65
  %v214 = vunpack.c.l.b16 %v66
  %v215 = vunpack.c.l.b16 %v67
  %v216 = vunpack.c.l.b16 %v68
  %v217 = vunpack.c.l.b16 %v69
  %v218 = vunpack.c.l.b16 %v70
  %v219 = vunpack.c.l.b16 %v71
  %v220 = vunpack.c.l.b16 %v72
  %v221 = vunpack.c.l.b16 %v73
  %v222 = vunpack.c.l.b16 %v74
  %v223 = vunpack.c.l.b16 %v75
  %v224 = vunpack.c.l.b16 %v76
  %v225 = vunpack.c.l.b16 %v77
  %v226 = vunpack.c.l.b16 %v78
  %v227 = vunpack.c.l.b16 %v79
  %v228 = vunpack.c.l.b16 %v80
  %v229 = vunpack.c.l.b16 %v81
  %v230 = vunpack.c.l.b16 %v82
  %v231 = vunpack.c.l.b16 %v83
  %v232 = vunpack.c.l.b16 %v84
  %v233 = vunpack.c.l.b16 %v85
  %v234 = vunpack.c.l.b16 %v86
  %v235 = vunpack.c.l.b16 %v87
  %v236 = vunpack.c.l.b16 %v88
  %v237 = vunpack.c.l.b16 %v89
  %v238 = vunpack.c.l.b16 %v90
  %v239 = vpack.c.b16 %v176, %v175
  %v240 = vpack.c.b16 %v178, %v177
  %v241 = vpack.c.b16 %v180, %v179
  %v242 = vpack.c.b16 %v182, %v181
  %v243 = vpack.c.b16 %v184, %v183
  %v244 = vpack.c.b16 %v186, %v185
  %v245 = vpack.c.b16 %v188, %v187
  %v246 = vpack.c.b16 %v190, %v189
  %v247 = vpack.c.b16 %v192, %v191
  %v248 = vpack.c.b16 %v194, %v193
  %v249 = vpack.c.b16 %v196, %v195
  %v250 = vpack.c.b16 %v198, %v197
  %v251 = vpack.c.b16 %v200, %v199
  %v252 = vpack.c.b16 %v202, %v201
  %v253 = vpack.c.b16 %v204, %v203
  %v254 = vpack.c.b16 %v206, %v205
  %v255 = vpack.c.b16 %v208, %v207
  %v256 = vpack.c.b16 %v210, %v209
  %v257 = vpack.c.b16 %v212, %v211
  %v258 = vpack.c.b16 %v214, %v213
  %v259 = vpack.c.b16 %v216, %v215
  %v260 = vpack.c.b16 %v218, %v217
  %v261 = vpack.c.b16 %v220, %v219
  %v262 = vpack.c.b16 %v222, %v221
  %v263 = vpack.c.b16 %v224, %v223
  %v264 = vpack.c.b16 %v226, %v225
  %v265 = vpack.c.b16 %v228, %v227
  %v266 = vpack.c.b16 %v230, %v229
  %v267 = vpack.c.b16 %v232, %v231
  %v268 = vpack.c.b16 %v234, %v233
  %v269 = vpack.c.b16 %v236, %v235
  %v270 = vpack.c.b16 %v238, %v237
  %303 = vmatprep.subr.bf16.mxu0 0
  %304 = vmatpush1.bf16.msra.mxu0 %v239
  %305 = vmatprep.subr.bf16.mxu0 0
  %306 = vmatpush1.bf16.msra.mxu0 %v240
  %307 = vmatprep.subr.bf16.mxu0 0
  %308 = vmatpush1.bf16.msra.mxu0 %v241
  %309 = vmatprep.subr.bf16.mxu0 0
  %310 = vmatpush1.bf16.msra.mxu0 %v242
  %311 = vmatprep.subr.bf16.mxu0 0
  %312 = vmatpush1.bf16.msra.mxu0 %v243
  %313 = vmatprep.subr.bf16.mxu0 0
  %314 = vmatpush1.bf16.msra.mxu0 %v244
  %315 = vmatprep.subr.bf16.mxu0 0
  %316 = vmatpush1.bf16.msra.mxu0 %v245
  %317 = vmatprep.subr.bf16.mxu0 0
  %318 = vmatpush1.bf16.msra.mxu0 %v246
  %319 = vmatprep.subr.bf16.mxu0 0
  %320 = vmatpush1.bf16.msra.mxu0 %v247
  %321 = vmatprep.subr.bf16.mxu0 0
  %322 = vmatpush1.bf16.msra.mxu0 %v248
  %323 = vmatprep.subr.bf16.mxu0 0
  %324 = vmatpush1.bf16.msra.mxu0 %v249
  %325 = vmatprep.subr.bf16.mxu0 0
  %326 = vmatpush1.bf16.msra.mxu0 %v250
  %327 = vmatprep.subr.bf16.mxu0 0
  %328 = vmatpush1.bf16.msra.mxu0 %v251
  %329 = vmatprep.subr.bf16.mxu0 0
  %330 = vmatpush1.bf16.msra.mxu0 %v252
  %331 = vmatprep.subr.bf16.mxu0 0
  %332 = vmatpush1.bf16.msra.mxu0 %v253
  %333 = vmatprep.subr.bf16.mxu0 0
  %334 = vmatpush1.bf16.msra.mxu0 %v254
  %335 = vmatprep.mubr.bf16.mxu0 %v104
  %336 = vmatmul.mubr.bf16.gmra.mrb[0].mxu0 %v103
  %v337 = vpop.f32.mrb[0].mxu0
  %v338 = vadd.f32 0.0, %v337
  %v339 = vpop.f32.mrb[0].mxu0
  %v340 = vpop.f32.mrb[0].mxu0
  %v341 = vadd.f32 0.0, %v340
  %v342 = vpop.f32.mrb[0].mxu0
  %343 = vdwg.mxu0
  %344 = vmatprep.subr.bf16.mxu0 0
  %345 = vmatpush1.bf16.msra.mxu0 %v255
  %346 = vmatprep.subr.bf16.mxu0 0
  %347 = vmatpush1.bf16.msra.mxu0 %v256
  %348 = vmatprep.subr.bf16.mxu0 0
  %349 = vmatpush1.bf16.msra.mxu0 %v257
  %350 = vmatprep.subr.bf16.mxu0 0
  %351 = vmatpush1.bf16.msra.mxu0 %v258
  %352 = vmatprep.subr.bf16.mxu0 0
  %353 = vmatpush1.bf16.msra.mxu0 %v259
  %354 = vmatprep.subr.bf16.mxu0 0
  %355 = vmatpush1.bf16.msra.mxu0 %v260
  %356 = vmatprep.subr.bf16.mxu0 0
  %357 = vmatpush1.bf16.msra.mxu0 %v261
  %358 = vmatprep.subr.bf16.mxu0 0
  %359 = vmatpush1.bf16.msra.mxu0 %v262
  %360 = vmatprep.subr.bf16.mxu0 0
  %361 = vmatpush1.bf16.msra.mxu0 %v263
  %362 = vmatprep.subr.bf16.mxu0 0
  %363 = vmatpush1.bf16.msra.mxu0 %v264
  %364 = vmatprep.subr.bf16.mxu0 0
  %365 = vmatpush1.bf16.msra.mxu0 %v265
  %366 = vmatprep.subr.bf16.mxu0 0
  %367 = vmatpush1.bf16.msra.mxu0 %v266
  %368 = vmatprep.subr.bf16.mxu0 0
  %369 = vmatpush1.bf16.msra.mxu0 %v267
  %370 = vmatprep.subr.bf16.mxu0 0
  %371 = vmatpush1.bf16.msra.mxu0 %v268
  %372 = vmatprep.subr.bf16.mxu0 0
  %373 = vmatpush1.bf16.msra.mxu0 %v269
  %374 = vmatprep.subr.bf16.mxu0 0
  %375 = vmatpush1.bf16.msra.mxu0 %v270
  %376 = vmatprep.mubr.bf16.mxu0 %v106
  %377 = vmatmul.mubr.bf16.gmra.mrb[0].mxu0 %v105
  %v378 = vpop.f32.mrb[0].mxu0
  %v379 = vadd.f32 %v338, %v378
  %v380 = vpop.f32.mrb[0].mxu0
  %v381 = vpop.f32.mrb[0].mxu0
  %v382 = vadd.f32 %v341, %v381
  %v383 = vpop.f32.mrb[0].mxu0
  %384 = vdwg.mxu0
  %v385 = vadd.f32 %v21, %v379
  %v386 = vadd.f32 %v22, %v382
  %387 = vst [vmem:[%s3] sm:$0xff] %v385
  %388 = vst [vmem:[%s3 + $0x8] sm:$0xff] %v386
  // Predicated region
  $region18: #{conv1d_base_net_forward.12} parent=0 // pred_check
    %p389 = pneg %p15
  $region19: #{conv1d_base_net_forward.12} parent=0 // pred_check_branch
    %391 = sbr.rel (%p389) target = $region21
  $region20: #{conv1d_base_net_forward.12} parent=0 // pred_region
    %v392 = vld [vmem:[%s3] sm:$0xff]
    %v393 = vld [vmem:[%s3 + $0x8] sm:$0xff]
    %v394 = vld [vmem:[%s2] sm:$0x1]
    %v395 = vlaneseq
    %v396 = vshrl.u32 %v395, 7
    %v397 = vsub.s32 0, %v396
    %v398 = vrot.slane %v394, %v397
    %v399 = vadd.f32 %v392, %v398
    %v400 = vadd.f32 %v393, %v398
    %v401 = vmax.f32 %v399, 0.0
    %v402 = vmax.f32 %v400, 0.0
    %v403 = vld [vmem:[%s2 + $0x1] sm:$0x1]
    %v404 = vlaneseq
    %v405 = vshrl.u32 %v404, 7
    %v406 = vsub.s32 0, %v405
    %v407 = vrot.slane %v403, %v406
    %v408 = vmul.f32 %v401, %v407
    %v409 = vmul.f32 %v402, %v407
    %v410 = vld [vmem:[%s2 + $0x2] sm:$0x1]
    %v411 = vlaneseq
    %v412 = vshrl.u32 %v411, 7
    %v413 = vsub.s32 0, %v412
    %v414 = vrot.slane %v410, %v413
    %v415 = vadd.f32 %v408, %v414
    %v416 = vadd.f32 %v409, %v414
    %417 = vst [vmem:[%s3] sm:$0xff] %v415
    %418 = vst [vmem:[%s3 + $0x8] sm:$0xff] %v416
  $region21: #{conv1d_base_net_forward.12} parent=0 // pred_fallthru
    _
  // Predicated region
  $region22: #{conv1d_base_net_forward.12} parent=0 // pred_check
    _
  $region23: #{conv1d_base_net_forward.12} parent=0 // pred_check_branch
    %420 = sbr.rel (0) target = $region25
  $region24: #{conv1d_base_net_forward.12} parent=0 // pred_region
    _
  $region25: #{conv1d_base_net_forward.12} parent=0 // pred_fallthru
    _
  // Predicated region
  $region26: #{conv1d_base_net_forward.12} parent=0 // pred_check
    _
  $region27: #{conv1d_base_net_forward.12} parent=0 // pred_check_branch
    %422 = sbr.rel (0) target = $region29
  $region28: #{conv1d_base_net_forward.12} parent=0 // pred_region
    _
  $region29: #{conv1d_base_net_forward.12} parent=0 // pred_fallthru
    _

// kernel: conv1d_base_net_forward.13
$region0: #{conv1d_base_net_forward.13}
  #allocation0 [shape = 'u32[]', space=smem, size = 0x4, offset = 0x4, fixed_abs, tag = 'smem constant byte address 0x4 - core index']
  #allocation1 [shape = 'u32[144,128]{1,0:T(1,128)}', space=vmem, size = 0x12000, scoped, tag = 'internal scratch']
  %s0 = inlined_call_operand.vmem [shape: bf16[256,128], index: 0, kind: input, shape index: {}]
  %s1 = inlined_call_operand.vmem [shape: bf16[128,128], index: 1, kind: input, shape index: {}]
  %s2 = inlined_call_operand.vmem [shape: f32[3,128], index: 2, kind: input, shape index: {}]
  %s3 = inlined_call_operand.vmem [shape: f32[256,128], index: 3, kind: output, shape index: {}]
  %s4 = sld [smem:[#allocation0]]
  $region30: #{conv1d_base_net_forward.13} parent=0
    _
  %s6 = ssub.s32 1, %s4
  %s7 = scalar_select 0, %s6, %s4
  // Predicated region
  $region2: #{conv1d_base_net_forward.13} parent=0 // pred_check
    _
  $region3: #{conv1d_base_net_forward.13} parent=0 // pred_check_branch
    %9 = sbr.rel (0) target = $region5
  $region4: #{conv1d_base_net_forward.13} parent=0 // pred_region
    _
  $region5: #{conv1d_base_net_forward.13} parent=0 // pred_fallthru
    _
  // Predicated region
  $region6: #{conv1d_base_net_forward.13} parent=0 // pred_check
    _
  $region7: #{conv1d_base_net_forward.13} parent=0 // pred_check_branch
    %11 = sbr.rel (0) target = $region9
  $region8: #{conv1d_base_net_forward.13} parent=0 // pred_region
    _
  $region9: #{conv1d_base_net_forward.13} parent=0 // pred_fallthru
    _
  // Predicated region
  $region10: #{conv1d_base_net_forward.13} parent=0 // pred_check
    _
  $region11: #{conv1d_base_net_forward.13} parent=0 // pred_check_branch
    %13 = sbr.rel (0) target = $region13
  $region12: #{conv1d_base_net_forward.13} parent=0 // pred_region
    _
  $region13: #{conv1d_base_net_forward.13} parent=0 // pred_fallthru
    _
  %p15 = scmp.eq.s32.totalorder 0, 0
  // Predicated region
  $region14: #{conv1d_base_net_forward.13} parent=0 // pred_check
    %p16 = pneg %p15
  $region15: #{conv1d_base_net_forward.13} parent=0 // pred_check_branch
    %18 = sbr.rel (%p16) target = $region17
  $region16: #{conv1d_base_net_forward.13} parent=0 // pred_region
    %19 = vst [vmem:[%s3] sm:$0xff] 0.0
    %20 = vst [vmem:[%s3 + $0x8] sm:$0xff] 0.0
    %21 = vst [vmem:[%s3 + $0x10] sm:$0xff] 0.0
    %22 = vst [vmem:[%s3 + $0x18] sm:$0xff] 0.0
    %23 = vst [vmem:[%s3 + $0x20] sm:$0xff] 0.0
    %24 = vst [vmem:[%s3 + $0x28] sm:$0xff] 0.0
    %25 = vst [vmem:[%s3 + $0x30] sm:$0xff] 0.0
    %26 = vst [vmem:[%s3 + $0x38] sm:$0xff] 0.0
    %27 = vst [vmem:[%s3 + $0x40] sm:$0xff] 0.0
    %28 = vst [vmem:[%s3 + $0x48] sm:$0xff] 0.0
    %29 = vst [vmem:[%s3 + $0x50] sm:$0xff] 0.0
    %30 = vst [vmem:[%s3 + $0x58] sm:$0xff] 0.0
    %31 = vst [vmem:[%s3 + $0x60] sm:$0xff] 0.0
    %32 = vst [vmem:[%s3 + $0x68] sm:$0xff] 0.0
    %33 = vst [vmem:[%s3 + $0x70] sm:$0xff] 0.0
    %34 = vst [vmem:[%s3 + $0x78] sm:$0xff] 0.0
    %35 = vst [vmem:[%s3 + $0x80] sm:$0xff] 0.0
    %36 = vst [vmem:[%s3 + $0x88] sm:$0xff] 0.0
    %37 = vst [vmem:[%s3 + $0x90] sm:$0xff] 0.0
    %38 = vst [vmem:[%s3 + $0x98] sm:$0xff] 0.0
    %39 = vst [vmem:[%s3 + $0xa0] sm:$0xff] 0.0
    %40 = vst [vmem:[%s3 + $0xa8] sm:$0xff] 0.0
    %41 = vst [vmem:[%s3 + $0xb0] sm:$0xff] 0.0
    %42 = vst [vmem:[%s3 + $0xb8] sm:$0xff] 0.0
    %43 = vst [vmem:[%s3 + $0xc0] sm:$0xff] 0.0
    %44 = vst [vmem:[%s3 + $0xc8] sm:$0xff] 0.0
    %45 = vst [vmem:[%s3 + $0xd0] sm:$0xff] 0.0
    %46 = vst [vmem:[%s3 + $0xd8] sm:$0xff] 0.0
    %47 = vst [vmem:[%s3 + $0xe0] sm:$0xff] 0.0
    %48 = vst [vmem:[%s3 + $0xe8] sm:$0xff] 0.0
    %49 = vst [vmem:[%s3 + $0xf0] sm:$0xff] 0.0
    %50 = vst [vmem:[%s3 + $0xf8] sm:$0xff] 0.0
  $region17: #{conv1d_base_net_forward.13} parent=0 // pred_fallthru
    _
  %v51 = vld [vmem:[%s3] sm:$0xff]
  %v52 = vld [vmem:[%s3 + $0x8] sm:$0xff]
  %v53 = vld [vmem:[%s3 + $0x10] sm:$0xff]
  %v54 = vld [vmem:[%s3 + $0x18] sm:$0xff]
  %v55 = vld [vmem:[%s3 + $0x20] sm:$0xff]
  %v56 = vld [vmem:[%s3 + $0x28] sm:$0xff]
  %v57 = vld [vmem:[%s3 + $0x30] sm:$0xff]
  %v58 = vld [vmem:[%s3 + $0x38] sm:$0xff]
  %v59 = vld [vmem:[%s3 + $0x40] sm:$0xff]
  %v60 = vld [vmem:[%s3 + $0x48] sm:$0xff]
  %v61 = vld [vmem:[%s3 + $0x50] sm:$0xff]
  %v62 = vld [vmem:[%s3 + $0x58] sm:$0xff]
  %v63 = vld [vmem:[%s3 + $0x60] sm:$0xff]
  %v64 = vld [vmem:[%s3 + $0x68] sm:$0xff]
  %v65 = vld [vmem:[%s3 + $0x70] sm:$0xff]
  %v66 = vld [vmem:[%s3 + $0x78] sm:$0xff]
  %v67 = vld [vmem:[%s3 + $0x80] sm:$0xff]
  %v68 = vld [vmem:[%s3 + $0x88] sm:$0xff]
  %v69 = vld [vmem:[%s3 + $0x90] sm:$0xff]
  %v70 = vld [vmem:[%s3 + $0x98] sm:$0xff]
  %v71 = vld [vmem:[%s3 + $0xa0] sm:$0xff]
  %v72 = vld [vmem:[%s3 + $0xa8] sm:$0xff]
  %v73 = vld [vmem:[%s3 + $0xb0] sm:$0xff]
  %v74 = vld [vmem:[%s3 + $0xb8] sm:$0xff]
  %v75 = vld [vmem:[%s3 + $0xc0] sm:$0xff]
  %v76 = vld [vmem:[%s3 + $0xc8] sm:$0xff]
  %v77 = vld [vmem:[%s3 + $0xd0] sm:$0xff]
  %v78 = vld [vmem:[%s3 + $0xd8] sm:$0xff]
  %v79 = vld [vmem:[%s3 + $0xe0] sm:$0xff]
  %v80 = vld [vmem:[%s3 + $0xe8] sm:$0xff]
  %v81 = vld [vmem:[%s3 + $0xf0] sm:$0xff]
  %v82 = vld [vmem:[%s3 + $0xf8] sm:$0xff]
  %v83 = vld [vmem:[%s0] sm:$0xf]
  %v84 = vld [vmem:[%s0 + $0x4] sm:$0xf]
  %v85 = vld [vmem:[%s0 + $0x8] sm:$0xf]
  %v86 = vld [vmem:[%s0 + $0xc] sm:$0xf]
  %v87 = vld [vmem:[%s0 + $0x10] sm:$0xf]
  %v88 = vld [vmem:[%s0 + $0x14] sm:$0xf]
  %v89 = vld [vmem:[%s0 + $0x18] sm:$0xf]
  %v90 = vld [vmem:[%s0 + $0x1c] sm:$0xf]
  %v91 = vld [vmem:[%s0 + $0x20] sm:$0xf]
  %v92 = vld [vmem:[%s0 + $0x24] sm:$0xf]
  %v93 = vld [vmem:[%s0 + $0x28] sm:$0xf]
  %v94 = vld [vmem:[%s0 + $0x2c] sm:$0xf]
  %v95 = vld [vmem:[%s0 + $0x30] sm:$0xf]
  %v96 = vld [vmem:[%s0 + $0x34] sm:$0xf]
  %v97 = vld [vmem:[%s0 + $0x38] sm:$0xf]
  %v98 = vld [vmem:[%s0 + $0x3c] sm:$0xf]
  %v99 = vld [vmem:[%s0 + $0x40] sm:$0xf]
  %v100 = vld [vmem:[%s0 + $0x44] sm:$0xf]
  %v101 = vld [vmem:[%s0 + $0x48] sm:$0xf]
  %v102 = vld [vmem:[%s0 + $0x4c] sm:$0xf]
  %v103 = vld [vmem:[%s0 + $0x50] sm:$0xf]
  %v104 = vld [vmem:[%s0 + $0x54] sm:$0xf]
  %v105 = vld [vmem:[%s0 + $0x58] sm:$0xf]
  %v106 = vld [vmem:[%s0 + $0x5c] sm:$0xf]
  %v107 = vld [vmem:[%s0 + $0x60] sm:$0xf]
  %v108 = vld [vmem:[%s0 + $0x64] sm:$0xf]
  %v109 = vld [vmem:[%s0 + $0x68] sm:$0xf]
  %v110 = vld [vmem:[%s0 + $0x6c] sm:$0xf]
  %v111 = vld [vmem:[%s0 + $0x70] sm:$0xf]
  %v112 = vld [vmem:[%s0 + $0x74] sm:$0xf]
  %v113 = vld [vmem:[%s0 + $0x78] sm:$0xf]
  %v114 = vld [vmem:[%s0 + $0x7c] sm:$0xf]
  %v115 = vld [vmem:[%s1] sm:$0xf]
  %v116 = vld [vmem:[%s1 + $0x4] sm:$0xf]
  %v117 = vld [vmem:[%s1 + $0x8] sm:$0xf]
  %v118 = vld [vmem:[%s1 + $0xc] sm:$0xf]
  %v119 = vld [vmem:[%s1 + $0x10] sm:$0xf]
  %v120 = vld [vmem:[%s1 + $0x14] sm:$0xf]
  %v121 = vld [vmem:[%s1 + $0x18] sm:$0xf]
  %v122 = vld [vmem:[%s1 + $0x1c] sm:$0xf]
  %v123 = vld [vmem:[%s1 + $0x20] sm:$0xf]
  %v124 = vld [vmem:[%s1 + $0x24] sm:$0xf]
  %v125 = vld [vmem:[%s1 + $0x28] sm:$0xf]
  %v126 = vld [vmem:[%s1 + $0x2c] sm:$0xf]
  %v127 = vld [vmem:[%s1 + $0x30] sm:$0xf]
  %v128 = vld [vmem:[%s1 + $0x34] sm:$0xf]
  %v129 = vld [vmem:[%s1 + $0x38] sm:$0xf]
  %v130 = vld [vmem:[%s1 + $0x3c] sm:$0xf]
  %v163 = vunpack.c.l.b16 %v83
  %v164 = vunpack.c.l.b16 %v84
  %v165 = vunpack.c.l.b16 %v85
  %v166 = vunpack.c.l.b16 %v86
  %v167 = vunpack.c.l.b16 %v87
  %v168 = vunpack.c.l.b16 %v88
  %v169 = vunpack.c.l.b16 %v89
  %v170 = vunpack.c.l.b16 %v90
  %v171 = vunpack.c.l.b16 %v91
  %v172 = vunpack.c.l.b16 %v92
  %v173 = vunpack.c.l.b16 %v93
  %v174 = vunpack.c.l.b16 %v94
  %v175 = vunpack.c.l.b16 %v95
  %v176 = vunpack.c.l.b16 %v96
  %v177 = vunpack.c.l.b16 %v97
  %v178 = vunpack.c.l.b16 %v98
  %v179 = vunpack.c.l.b16 %v99
  %v180 = vunpack.c.l.b16 %v100
  %v181 = vunpack.c.l.b16 %v101
  %v182 = vunpack.c.l.b16 %v102
  %v183 = vunpack.c.l.b16 %v103
  %v184 = vunpack.c.l.b16 %v104
  %v185 = vunpack.c.l.b16 %v105
  %v186 = vunpack.c.l.b16 %v106
  %v187 = vunpack.c.l.b16 %v107
  %v188 = vunpack.c.l.b16 %v108
  %v189 = vunpack.c.l.b16 %v109
  %v190 = vunpack.c.l.b16 %v110
  %v191 = vunpack.c.l.b16 %v111
  %v192 = vunpack.c.l.b16 %v112
  %v193 = vunpack.c.l.b16 %v113
  %v194 = vunpack.c.l.b16 %v114
  %v195 = vpack.c.b16 %v164, %v163
  %v196 = vpack.c.b16 %v166, %v165
  %v197 = vpack.c.b16 %v168, %v167
  %v198 = vpack.c.b16 %v170, %v169
  %v199 = vpack.c.b16 %v172, %v171
  %v200 = vpack.c.b16 %v174, %v173
  %v201 = vpack.c.b16 %v176, %v175
  %v202 = vpack.c.b16 %v178, %v177
  %v203 = vpack.c.b16 %v180, %v179
  %v204 = vpack.c.b16 %v182, %v181
  %v205 = vpack.c.b16 %v184, %v183
  %v206 = vpack.c.b16 %v186, %v185
  %v207 = vpack.c.b16 %v188, %v187
  %v208 = vpack.c.b16 %v190, %v189
  %v209 = vpack.c.b16 %v192, %v191
  %v210 = vpack.c.b16 %v194, %v193
  %v243 = vunpack.c.l.b16 %v115
  %v244 = vunpack.c.l.b16 %v116
  %v245 = vunpack.c.l.b16 %v117
  %v246 = vunpack.c.l.b16 %v118
  %v247 = vunpack.c.l.b16 %v119
  %v248 = vunpack.c.l.b16 %v120
  %v249 = vunpack.c.l.b16 %v121
  %v250 = vunpack.c.l.b16 %v122
  %v251 = vunpack.c.l.b16 %v123
  %v252 = vunpack.c.l.b16 %v124
  %v253 = vunpack.c.l.b16 %v125
  %v254 = vunpack.c.l.b16 %v126
  %v255 = vunpack.c.l.b16 %v127
  %v256 = vunpack.c.l.b16 %v128
  %v257 = vunpack.c.l.b16 %v129
  %v258 = vunpack.c.l.b16 %v130
  %v259 = vpack.c.b16 %v244, %v243
  %v260 = vpack.c.b16 %v246, %v245
  %v261 = vpack.c.b16 %v248, %v247
  %v262 = vpack.c.b16 %v250, %v249
  %v263 = vpack.c.b16 %v252, %v251
  %v264 = vpack.c.b16 %v254, %v253
  %v265 = vpack.c.b16 %v256, %v255
  %v266 = vpack.c.b16 %v258, %v257
  %275 = vmatprep.subr.bf16.mxu0 0
  %276 = vmatpush1.bf16.msra.mxu0 %v259
  %277 = vmatprep.subr.bf16.mxu0 0
  %278 = vmatpush1.bf16.msra.mxu0 %v260
  %279 = vmatprep.subr.bf16.mxu0 0
  %280 = vmatpush1.bf16.msra.mxu0 %v261
  %281 = vmatprep.subr.bf16.mxu0 0
  %282 = vmatpush1.bf16.msra.mxu0 %v262
  %283 = vmatprep.subr.bf16.mxu0 0
  %284 = vmatpush1.bf16.msra.mxu0 %v263
  %285 = vmatprep.subr.bf16.mxu0 0
  %286 = vmatpush1.bf16.msra.mxu0 %v264
  %287 = vmatprep.subr.bf16.mxu0 0
  %288 = vmatpush1.bf16.msra.mxu0 %v265
  %289 = vmatprep.subr.bf16.mxu0 0
  %290 = vmatpush1.bf16.msra.mxu0 %v266
  %291 = vmatprep.subr.bf16.mxu0 0
  %292 = vmatpush1.bf16.msra.mxu0 0
  %293 = vmatprep.subr.bf16.mxu0 0
  %294 = vmatpush1.bf16.msra.mxu0 0
  %295 = vmatprep.subr.bf16.mxu0 0
  %296 = vmatpush1.bf16.msra.mxu0 0
  %297 = vmatprep.subr.bf16.mxu0 0
  %298 = vmatpush1.bf16.msra.mxu0 0
  %299 = vmatprep.subr.bf16.mxu0 0
  %300 = vmatpush1.bf16.msra.mxu0 0
  %301 = vmatprep.subr.bf16.mxu0 0
  %302 = vmatpush1.bf16.msra.mxu0 0
  %303 = vmatprep.subr.bf16.mxu0 0
  %304 = vmatpush1.bf16.msra.mxu0 0
  %305 = vmatprep.subr.bf16.mxu0 0
  %306 = vmatpush1.bf16.msra.mxu0 0
  %307 = vmatprep.mubr.bf16.mxu0 0
  %308 = vmatmul.mubr.bf16.gmra.mrb[0].mxu0 %v195
  %v309 = vpop.f32.mrb[0].mxu0
  %v310 = vadd.f32 0.0, %v309
  %v311 = vpop.f32.mrb[0].mxu0
  %v312 = vpop.f32.mrb[0].mxu0
  %v313 = vadd.f32 0.0, %v312
  %v314 = vpop.f32.mrb[0].mxu0
  %315 = vmatprep.mubr.bf16.mxu0 0
  %316 = vmatmul.mubr.bf16.gmra.mrb[0].mxu0 %v196
  %v317 = vpop.f32.mrb[0].mxu0
  %v318 = vadd.f32 0.0, %v317
  %v319 = vpop.f32.mrb[0].mxu0
  %v320 = vpop.f32.mrb[0].mxu0
  %v321 = vadd.f32 0.0, %v320
  %v322 = vpop.f32.mrb[0].mxu0
  %323 = vmatprep.mubr.bf16.mxu0 0
  %324 = vmatmul.mubr.bf16.gmra.mrb[0].mxu0 %v197
  %v325 = vpop.f32.mrb[0].mxu0
  %v326 = vadd.f32 0.0, %v325
  %v327 = vpop.f32.mrb[0].mxu0
  %v328 = vpop.f32.mrb[0].mxu0
  %v329 = vadd.f32 0.0, %v328
  %v330 = vpop.f32.mrb[0].mxu0
  %331 = vmatprep.mubr.bf16.mxu0 0
  %332 = vmatmul.mubr.bf16.gmra.mrb[0].mxu0 %v198
  %v333 = vpop.f32.mrb[0].mxu0
  %v334 = vadd.f32 0.0, %v333
  %v335 = vpop.f32.mrb[0].mxu0
  %v336 = vpop.f32.mrb[0].mxu0
  %v337 = vadd.f32 0.0, %v336
  %v338 = vpop.f32.mrb[0].mxu0
  %339 = vmatprep.mubr.bf16.mxu0 0
  %340 = vmatmul.mubr.bf16.gmra.mrb[0].mxu0 %v199
  %v341 = vpop.f32.mrb[0].mxu0
  %v342 = vadd.f32 0.0, %v341
  %v343 = vpop.f32.mrb[0].mxu0
  %v344 = vpop.f32.mrb[0].mxu0
  %v345 = vadd.f32 0.0, %v344
  %v346 = vpop.f32.mrb[0].mxu0
  %347 = vmatprep.mubr.bf16.mxu0 0
  %348 = vmatmul.mubr.bf16.gmra.mrb[0].mxu0 %v200
  %v349 = vpop.f32.mrb[0].mxu0
  %v350 = vadd.f32 0.0, %v349
  %v351 = vpop.f32.mrb[0].mxu0
  %v352 = vpop.f32.mrb[0].mxu0
  %v353 = vadd.f32 0.0, %v352
  %v354 = vpop.f32.mrb[0].mxu0
  %355 = vmatprep.mubr.bf16.mxu0 0
  %356 = vmatmul.mubr.bf16.gmra.mrb[0].mxu0 %v201
  %v357 = vpop.f32.mrb[0].mxu0
  %v358 = vadd.f32 0.0, %v357
  %v359 = vpop.f32.mrb[0].mxu0
  %v360 = vpop.f32.mrb[0].mxu0
  %v361 = vadd.f32 0.0, %v360
  %v362 = vpop.f32.mrb[0].mxu0
  %363 = vmatprep.mubr.bf16.mxu0 0
  %364 = vmatmul.mubr.bf16.gmra.mrb[0].mxu0 %v202
  %v365 = vpop.f32.mrb[0].mxu0
  %v366 = vadd.f32 0.0, %v365
  %v367 = vpop.f32.mrb[0].mxu0
  %v368 = vpop.f32.mrb[0].mxu0
  %v369 = vadd.f32 0.0, %v368
  %v370 = vpop.f32.mrb[0].mxu0
  %371 = vmatprep.mubr.bf16.mxu0 0
  %372 = vmatmul.mubr.bf16.gmra.mrb[0].mxu0 %v203
  %v373 = vpop.f32.mrb[0].mxu0
  %v374 = vadd.f32 0.0, %v373
  %v375 = vpop.f32.mrb[0].mxu0
  %v376 = vpop.f32.mrb[0].mxu0
  %v377 = vadd.f32 0.0, %v376
  %v378 = vpop.f32.mrb[0].mxu0
  %379 = vmatprep.mubr.bf16.mxu0 0
  %380 = vmatmul.mubr.bf16.gmra.mrb[0].mxu0 %v204
  %v381 = vpop.f32.mrb[0].mxu0
  %v382 = vadd.f32 0.0, %v381
  %v383 = vpop.f32.mrb[0].mxu0
  %v384 = vpop.f32.mrb[0].mxu0
  %v385 = vadd.f32 0.0, %v384
  %v386 = vpop.f32.mrb[0].mxu0
  %387 = vmatprep.mubr.bf16.mxu0 0
  %388 = vmatmul.mubr.bf16.gmra.mrb[0].mxu0 %v205
  %v389 = vpop.f32.mrb[0].mxu0
  %v390 = vadd.f32 0.0, %v389
  %v391 = vpop.f32.mrb[0].mxu0
  %v392 = vpop.f32.mrb[0].mxu0
  %v393 = vadd.f32 0.0, %v392
  %v394 = vpop.f32.mrb[0].mxu0
  %395 = vmatprep.mubr.bf16.mxu0 0
  %396 = vmatmul.mubr.bf16.gmra.mrb[0].mxu0 %v206
  %v397 = vpop.f32.mrb[0].mxu0
  %v398 = vadd.f32 0.0, %v397
  %v399 = vpop.f32.mrb[0].mxu0
  %v400 = vpop.f32.mrb[0].mxu0
  %v401 = vadd.f32 0.0, %v400
  %v402 = vpop.f32.mrb[0].mxu0
  %403 = vmatprep.mubr.bf16.mxu0 0
  %404 = vmatmul.mubr.bf16.gmra.mrb[0].mxu0 %v207
  %v405 = vpop.f32.mrb[0].mxu0
  %v406 = vadd.f32 0.0, %v405
  %v407 = vpop.f32.mrb[0].mxu0
  %v408 = vpop.f32.mrb[0].mxu0
  %v409 = vadd.f32 0.0, %v408
  %v410 = vpop.f32.mrb[0].mxu0
  %411 = vmatprep.mubr.bf16.mxu0 0
  %412 = vmatmul.mubr.bf16.gmra.mrb[0].mxu0 %v208
  %v413 = vpop.f32.mrb[0].mxu0
  %v414 = vadd.f32 0.0, %v413
  %v415 = vpop.f32.mrb[0].mxu0
  %v416 = vpop.f32.mrb[0].mxu0
  %v417 = vadd.f32 0.0, %v416
  %v418 = vpop.f32.mrb[0].mxu0
  %419 = vmatprep.mubr.bf16.mxu0 0
  %420 = vmatmul.mubr.bf16.gmra.mrb[0].mxu0 %v209
  %v421 = vpop.f32.mrb[0].mxu0
  %v422 = vadd.f32 0.0, %v421
  %v423 = vpop.f32.mrb[0].mxu0
  %v424 = vpop.f32.mrb[0].mxu0
  %v425 = vadd.f32 0.0, %v424
  %v426 = vpop.f32.mrb[0].mxu0
  %427 = vmatprep.mubr.bf16.mxu0 0
  %428 = vmatmul.mubr.bf16.gmra.mrb[0].mxu0 %v210
  %v429 = vpop.f32.mrb[0].mxu0
  %v430 = vadd.f32 0.0, %v429
  %v431 = vpop.f32.mrb[0].mxu0
  %v432 = vpop.f32.mrb[0].mxu0
  %v433 = vadd.f32 0.0, %v432
  %v434 = vpop.f32.mrb[0].mxu0
  %435 = vdwg.mxu0
  %v436 = vadd.f32 %v51, %v310
  %v437 = vadd.f32 %v52, %v313
  %v438 = vadd.f32 %v53, %v318
  %v439 = vadd.f32 %v54, %v321
  %v440 = vadd.f32 %v55, %v326
  %v441 = vadd.f32 %v56, %v329
  %v442 = vadd.f32 %v57, %v334
  %v443 = vadd.f32 %v58, %v337
  %v444 = vadd.f32 %v59, %v342
  %v445 = vadd.f32 %v60, %v345
  %v446 = vadd.f32 %v61, %v350
  %v447 = vadd.f32 %v62, %v353
  %v448 = vadd.f32 %v63, %v358
  %v449 = vadd.f32 %v64, %v361
  %v450 = vadd.f32 %v65, %v366
  %v451 = vadd.f32 %v66, %v369
  %v452 = vadd.f32 %v67, %v374
  %v453 = vadd.f32 %v68, %v377
  %v454 = vadd.f32 %v69, %v382
  %v455 = vadd.f32 %v70, %v385
  %v456 = vadd.f32 %v71, %v390
  %v457 = vadd.f32 %v72, %v393
  %v458 = vadd.f32 %v73, %v398
  %v459 = vadd.f32 %v74, %v401
  %v460 = vadd.f32 %v75, %v406
  %v461 = vadd.f32 %v76, %v409
  %v462 = vadd.f32 %v77, %v414
  %v463 = vadd.f32 %v78, %v417
  %v464 = vadd.f32 %v79, %v422
  %v465 = vadd.f32 %v80, %v425
  %v466 = vadd.f32 %v81, %v430
  %v467 = vadd.f32 %v82, %v433
  %468 = vst [vmem:[%s3] sm:$0xff] %v436
  %469 = vst [vmem:[%s3 + $0x8] sm:$0xff] %v437
  %470 = vst [vmem:[%s3 + $0x10] sm:$0xff] %v438
  %471 = vst [vmem:[%s3 + $0x18] sm:$0xff] %v439
  %472 = vst [vmem:[%s3 + $0x20] sm:$0xff] %v440
  %473 = vst [vmem:[%s3 + $0x28] sm:$0xff] %v441
  %474 = vst [vmem:[%s3 + $0x30] sm:$0xff] %v442
  %475 = vst [vmem:[%s3 + $0x38] sm:$0xff] %v443
  %476 = vst [vmem:[%s3 + $0x40] sm:$0xff] %v444
  %477 = vst [vmem:[%s3 + $0x48] sm:$0xff] %v445
  %478 = vst [vmem:[%s3 + $0x50] sm:$0xff] %v446
  %479 = vst [vmem:[%s3 + $0x58] sm:$0xff] %v447
  %480 = vst [vmem:[%s3 + $0x60] sm:$0xff] %v448
  %481 = vst [vmem:[%s3 + $0x68] sm:$0xff] %v449
  %482 = vst [vmem:[%s3 + $0x70] sm:$0xff] %v450
  %483 = vst [vmem:[%s3 + $0x78] sm:$0xff] %v451
  %484 = vst [vmem:[%s3 + $0x80] sm:$0xff] %v452
  %485 = vst [vmem:[%s3 + $0x88] sm:$0xff] %v453
  %486 = vst [vmem:[%s3 + $0x90] sm:$0xff] %v454
  %487 = vst [vmem:[%s3 + $0x98] sm:$0xff] %v455
  %488 = vst [vmem:[%s3 + $0xa0] sm:$0xff] %v456
  %489 = vst [vmem:[%s3 + $0xa8] sm:$0xff] %v457
  %490 = vst [vmem:[%s3 + $0xb0] sm:$0xff] %v458
  %491 = vst [vmem:[%s3 + $0xb8] sm:$0xff] %v459
  %492 = vst [vmem:[%s3 + $0xc0] sm:$0xff] %v460
  %493 = vst [vmem:[%s3 + $0xc8] sm:$0xff] %v461
  %494 = vst [vmem:[%s3 + $0xd0] sm:$0xff] %v462
  %495 = vst [vmem:[%s3 + $0xd8] sm:$0xff] %v463
  %496 = vst [vmem:[%s3 + $0xe0] sm:$0xff] %v464
  %497 = vst [vmem:[%s3 + $0xe8] sm:$0xff] %v465
  %498 = vst [vmem:[%s3 + $0xf0] sm:$0xff] %v466
  %499 = vst [vmem:[%s3 + $0xf8] sm:$0xff] %v467
  // Predicated region
  $region18: #{conv1d_base_net_forward.13} parent=0 // pred_check
    %p500 = pneg %p15
  $region19: #{conv1d_base_net_forward.13} parent=0 // pred_check_branch
    %502 = sbr.rel (%p500) target = $region21
  $region20: #{conv1d_base_net_forward.13} parent=0 // pred_region
    %v503 = vld [vmem:[%s3] sm:$0xff]
    %v504 = vld [vmem:[%s3 + $0x8] sm:$0xff]
    %v505 = vld [vmem:[%s3 + $0x10] sm:$0xff]
    %v506 = vld [vmem:[%s3 + $0x18] sm:$0xff]
    %v507 = vld [vmem:[%s3 + $0x20] sm:$0xff]
    %v508 = vld [vmem:[%s3 + $0x28] sm:$0xff]
    %v509 = vld [vmem:[%s3 + $0x30] sm:$0xff]
    %v510 = vld [vmem:[%s3 + $0x38] sm:$0xff]
    %v511 = vld [vmem:[%s3 + $0x40] sm:$0xff]
    %v512 = vld [vmem:[%s3 + $0x48] sm:$0xff]
    %v513 = vld [vmem:[%s3 + $0x50] sm:$0xff]
    %v514 = vld [vmem:[%s3 + $0x58] sm:$0xff]
    %v515 = vld [vmem:[%s3 + $0x60] sm:$0xff]
    %v516 = vld [vmem:[%s3 + $0x68] sm:$0xff]
    %v517 = vld [vmem:[%s3 + $0x70] sm:$0xff]
    %v518 = vld [vmem:[%s3 + $0x78] sm:$0xff]
    %v519 = vld [vmem:[%s3 + $0x80] sm:$0xff]
    %v520 = vld [vmem:[%s3 + $0x88] sm:$0xff]
    %v521 = vld [vmem:[%s3 + $0x90] sm:$0xff]
    %v522 = vld [vmem:[%s3 + $0x98] sm:$0xff]
    %v523 = vld [vmem:[%s3 + $0xa0] sm:$0xff]
    %v524 = vld [vmem:[%s3 + $0xa8] sm:$0xff]
    %v525 = vld [vmem:[%s3 + $0xb0] sm:$0xff]
    %v526 = vld [vmem:[%s3 + $0xb8] sm:$0xff]
    %v527 = vld [vmem:[%s3 + $0xc0] sm:$0xff]
    %v528 = vld [vmem:[%s3 + $0xc8] sm:$0xff]
    %v529 = vld [vmem:[%s3 + $0xd0] sm:$0xff]
    %v530 = vld [vmem:[%s3 + $0xd8] sm:$0xff]
    %v531 = vld [vmem:[%s3 + $0xe0] sm:$0xff]
    %v532 = vld [vmem:[%s3 + $0xe8] sm:$0xff]
    %v533 = vld [vmem:[%s3 + $0xf0] sm:$0xff]
    %v534 = vld [vmem:[%s3 + $0xf8] sm:$0xff]
    %v535 = vld [vmem:[%s2] sm:$0x1]
    %v536 = vlaneseq
    %v537 = vshrl.u32 %v536, 7
    %v538 = vsub.s32 0, %v537
    %v539 = vrot.slane %v535, %v538
    %v540 = vadd.f32 %v503, %v539
    %v541 = vadd.f32 %v504, %v539
    %v542 = vadd.f32 %v505, %v539
    %v543 = vadd.f32 %v506, %v539
    %v544 = vadd.f32 %v507, %v539
    %v545 = vadd.f32 %v508, %v539
    %v546 = vadd.f32 %v509, %v539
    %v547 = vadd.f32 %v510, %v539
    %v548 = vadd.f32 %v511, %v539
    %v549 = vadd.f32 %v512, %v539
    %v550 = vadd.f32 %v513, %v539
    %v551 = vadd.f32 %v514, %v539
    %v552 = vadd.f32 %v515, %v539
    %v553 = vadd.f32 %v516, %v539
    %v554 = vadd.f32 %v517, %v539
    %v555 = vadd.f32 %v518, %v539
    %v556 = vadd.f32 %v519, %v539
    %v557 = vadd.f32 %v520, %v539
    %v558 = vadd.f32 %v521, %v539
    %v559 = vadd.f32 %v522, %v539
    %v560 = vadd.f32 %v523, %v539
    %v561 = vadd.f32 %v524, %v539
    %v562 = vadd.f32 %v525, %v539
    %v563 = vadd.f32 %v526, %v539
    %v564 = vadd.f32 %v527, %v539
    %v565 = vadd.f32 %v528, %v539
    %v566 = vadd.f32 %v529, %v539
    %v567 = vadd.f32 %v530, %v539
    %v568 = vadd.f32 %v531, %v539
    %v569 = vadd.f32 %v532, %v539
    %v570 = vadd.f32 %v533, %v539
    %v571 = vadd.f32 %v534, %v539
    %v572 = vld [vmem:[%s2 + $0x1] sm:$0x1]
    %v573 = vlaneseq
    %v574 = vshrl.u32 %v573, 7
    %v575 = vsub.s32 0, %v574
    %v576 = vrot.slane %v572, %v575
    %v577 = vmul.f32 %v540, %v576
    %v578 = vmul.f32 %v541, %v576
    %v579 = vmul.f32 %v542, %v576
    %v580 = vmul.f32 %v543, %v576
    %v581 = vmul.f32 %v544, %v576
    %v582 = vmul.f32 %v545, %v576
    %v583 = vmul.f32 %v546, %v576
    %v584 = vmul.f32 %v547, %v576
    %v585 = vmul.f32 %v548, %v576
    %v586 = vmul.f32 %v549, %v576
    %v587 = vmul.f32 %v550, %v576
    %v588 = vmul.f32 %v551, %v576
    %v589 = vmul.f32 %v552, %v576
    %v590 = vmul.f32 %v553, %v576
    %v591 = vmul.f32 %v554, %v576
    %v592 = vmul.f32 %v555, %v576
    %v593 = vmul.f32 %v556, %v576
    %v594 = vmul.f32 %v557, %v576
    %v595 = vmul.f32 %v558, %v576
    %v596 = vmul.f32 %v559, %v576
    %v597 = vmul.f32 %v560, %v576
    %v598 = vmul.f32 %v561, %v576
    %v599 = vmul.f32 %v562, %v576
    %v600 = vmul.f32 %v563, %v576
    %v601 = vmul.f32 %v564, %v576
    %v602 = vmul.f32 %v565, %v576
    %v603 = vmul.f32 %v566, %v576
    %v604 = vmul.f32 %v567, %v576
    %v605 = vmul.f32 %v568, %v576
    %v606 = vmul.f32 %v569, %v576
    %v607 = vmul.f32 %v570, %v576
    %v608 = vmul.f32 %v571, %v576
    %v609 = vld [vmem:[%s2 + $0x2] sm:$0x1]
    %v610 = vlaneseq
    %v611 = vshrl.u32 %v610, 7
    %v612 = vsub.s32 0, %v611
    %v613 = vrot.slane %v609, %v612
    %v614 = vadd.f32 %v577, %v613
    %v615 = vadd.f32 %v578, %v613
    %v616 = vadd.f32 %v579, %v613
    %v617 = vadd.f32 %v580, %v613
    %v618 = vadd.f32 %v581, %v613
    %v619 = vadd.f32 %v582, %v613
    %v620 = vadd.f32 %v583, %v613
    %v621 = vadd.f32 %v584, %v613
    %v622 = vadd.f32 %v585, %v613
    %v623 = vadd.f32 %v586, %v613
    %v624 = vadd.f32 %v587, %v613
    %v625 = vadd.f32 %v588, %v613
    %v626 = vadd.f32 %v589, %v613
    %v627 = vadd.f32 %v590, %v613
    %v628 = vadd.f32 %v591, %v613
    %v629 = vadd.f32 %v592, %v613
    %v630 = vadd.f32 %v593, %v613
    %v631 = vadd.f32 %v594, %v613
    %v632 = vadd.f32 %v595, %v613
    %v633 = vadd.f32 %v596, %v613
    %v634 = vadd.f32 %v597, %v613
    %v635 = vadd.f32 %v598, %v613
    %v636 = vadd.f32 %v599, %v613
    %v637 = vadd.f32 %v600, %v613
    %v638 = vadd.f32 %v601, %v613
    %v639 = vadd.f32 %v602, %v613
    %v640 = vadd.f32 %v603, %v613
    %v641 = vadd.f32 %v604, %v613
    %v642 = vadd.f32 %v605, %v613
    %v643 = vadd.f32 %v606, %v613
    %v644 = vadd.f32 %v607, %v613
    %v645 = vadd.f32 %v608, %v613
    %646 = vst [vmem:[%s3] sm:$0xff] %v614
    %647 = vst [vmem:[%s3 + $0x8] sm:$0xff] %v615
    %648 = vst [vmem:[%s3 + $0x10] sm:$0xff] %v616
    %649 = vst [vmem:[%s3 + $0x18] sm:$0xff] %v617
    %650 = vst [vmem:[%s3 + $0x20] sm:$0xff] %v618
    %651 = vst [vmem:[%s3 + $0x28] sm:$0xff] %v619
    %652 = vst [vmem:[%s3 + $0x30] sm:$0xff] %v620
    %653 = vst [vmem:[%s3 + $0x38] sm:$0xff] %v621
    %654 = vst [vmem:[%s3 + $0x40] sm:$0xff] %v622
    %655 = vst [vmem:[%s3 + $0x48] sm:$0xff] %v623
    %656 = vst [vmem:[%s3 + $0x50] sm:$0xff] %v624
    %657 = vst [vmem:[%s3 + $0x58] sm:$0xff] %v625
    %658 = vst [vmem:[%s3 + $0x60] sm:$0xff] %v626
    %659 = vst [vmem:[%s3 + $0x68] sm:$0xff] %v627
    %660 = vst [vmem:[%s3 + $0x70] sm:$0xff] %v628
    %661 = vst [vmem:[%s3 + $0x78] sm:$0xff] %v629
    %662 = vst [vmem:[%s3 + $0x80] sm:$0xff] %v630
    %663 = vst [vmem:[%s3 + $0x88] sm:$0xff] %v631
    %664 = vst [vmem:[%s3 + $0x90] sm:$0xff] %v632
    %665 = vst [vmem:[%s3 + $0x98] sm:$0xff] %v633
    %666 = vst [vmem:[%s3 + $0xa0] sm:$0xff] %v634
    %667 = vst [vmem:[%s3 + $0xa8] sm:$0xff] %v635
    %668 = vst [vmem:[%s3 + $0xb0] sm:$0xff] %v636
    %669 = vst [vmem:[%s3 + $0xb8] sm:$0xff] %v637
    %670 = vst [vmem:[%s3 + $0xc0] sm:$0xff] %v638
    %671 = vst [vmem:[%s3 + $0xc8] sm:$0xff] %v639
    %672 = vst [vmem:[%s3 + $0xd0] sm:$0xff] %v640
    %673 = vst [vmem:[%s3 + $0xd8] sm:$0xff] %v641
    %674 = vst [vmem:[%s3 + $0xe0] sm:$0xff] %v642
    %675 = vst [vmem:[%s3 + $0xe8] sm:$0xff] %v643
    %676 = vst [vmem:[%s3 + $0xf0] sm:$0xff] %v644
    %677 = vst [vmem:[%s3 + $0xf8] sm:$0xff] %v645
  $region21: #{conv1d_base_net_forward.13} parent=0 // pred_fallthru
    _
  // Predicated region
  $region22: #{conv1d_base_net_forward.13} parent=0 // pred_check
    _
  $region23: #{conv1d_base_net_forward.13} parent=0 // pred_check_branch
    %679 = sbr.rel (0) target = $region25
  $region24: #{conv1d_base_net_forward.13} parent=0 // pred_region
    _
  $region25: #{conv1d_base_net_forward.13} parent=0 // pred_fallthru
    _
  // Predicated region
  $region26: #{conv1d_base_net_forward.13} parent=0 // pred_check
    _
  $region27: #{conv1d_base_net_forward.13} parent=0 // pred_check_branch
    %681 = sbr.rel (0) target = $region29
  $region28: #{conv1d_base_net_forward.13} parent=0 // pred_region
    _
  $region29: #{conv1d_base_net_forward.13} parent=0 // pred_fallthru
    _

// kernel: conv1d_base_net_forward.14
$region0: #{conv1d_base_net_forward.14}
  #allocation0 [shape = 'u32[]', space=smem, size = 0x4, offset = 0x4, fixed_abs, tag = 'smem constant byte address 0x4 - core index']
  #allocation1 [shape = 'u32[144,128]{1,0:T(1,128)}', space=vmem, size = 0x12000, scoped, tag = 'internal scratch']
  %s0 = inlined_call_operand.vmem [shape: bf16[8,13312], index: 0, kind: input, shape index: {}]
  %s1 = inlined_call_operand.hbm [shape: bf16[13312,2048], index: 1, kind: input, shape index: {}]
  %s2 = inlined_call_operand.vmem [shape: f32[3,2048], index: 2, kind: input, shape index: {}]
  %s3 = inlined_call_operand.vmem [shape: f32[8,2048], index: 3, kind: output, shape index: {}]
  %s4 = sld [smem:[#allocation0]]
  $region57: #{conv1d_base_net_forward.14} parent=0
    _
  %s6 = ssub.s32 1, %s4
  %s7 = scalar_select 0, %s6, %s4
  $region1: #{conv1d_base_net_forward.14} parent=0
    #allocation2 [shape = 'u8[1048576]{0}', space=vmem, size = 0x100000, scoped, tag = 'input window, operand 1']
    #allocation3 [shape = 's32[2]{0}', space=sflag, size = 0x8, scoped, tag = 'scoped memory for conv1d_base_net_forward.14']
    %8 = vsyncpa [#allocation3], 0
    %s9 = scalar_lea.sflag [#allocation3], 1
    %10 = vsyncpa %s9, 0
    loop: start=0, step=1, limit=106
    $region2: #{conv1d_base_net_forward.14} parent=1 // loop_pre_header
      _
    $region3: #{conv1d_base_net_forward.14} parent=1 // loop_header
      %s12 = sphi 0, %s16
      %p13 = scmp.ge.s32.totalorder %s12, 106
      %s19 = sphi 0, %s38
      %s20 = sphi 0, %s34
      %s21 = sphi 0, %s30
      %s22 = sphi 0, %s19
      %s23 = sphi 0, %s20
      %s24 = sphi 0, %s21
      %s25 = sphi 0, %s22
      %s26 = sphi 0, %s23
      %s27 = sphi 0, %s24
      %s43 = sphi 0, %s45
      %s46 = sphi 0, %s43
      %s47 = sphi 0, %s46
      %s63 = sphi 0, %s47
      %s71 = sphi 0, %s73
      %s74 = sphi 0, %s71
      %s75 = sphi 0, %s74
      %s91 = sphi 0, %s75
      %s97 = sphi 0, %s99
      %s100 = sphi 0, %s97
      %s101 = sphi 0, %s100
      %s117 = sphi 0, %s101
      %s125 = sphi 0, %s127
      %s128 = sphi 0, %s125
      %s129 = sphi 0, %s128
      %s145 = sphi 0, %s129
    $region4: #{conv1d_base_net_forward.14} parent=1 // loop_header_branch
      %15 = sbr.rel (%p13) target = $region8
    $region5: #{conv1d_base_net_forward.14} parent=1 // loop_body
      %s17 = ssub.s32 %s12, 1
      %s18 = ssub.s32 %s12, 2
      %s28 = sadd.s32 1, %s21
      %p29 = scmp.ge.s32.totalorder %s28, 13
      %s30 = scalar_select %p29, 0, %s28
      %s31 = sadd.s32 1, %s20
      %s32 = scalar_select %p29, %s31, %s20
      %p33 = scmp.ge.s32.totalorder %s32, 8
      %s34 = scalar_select %p33, 0, %s32
      %s35 = sadd.s32 1, %s19
      %s36 = scalar_select %p33, %s35, %s19
      %p37 = scmp.ge.s32.totalorder %s36, 1
      %s38 = scalar_select %p37, 0, %s36
      %s39 = ssub.s32 %s19, %s38
      %s40 = ssub.s32 %s21, %s30
      %s41 = sor.u32 %s39, %s40
      %p42 = scmp.eq.s32.totalorder %s41, 0
      %s44 = sadd.s32 %s43, 1
      %s45 = scalar_select %p42, %s43, %s44
      %p48 = pneg %p42
      %p49 = scmp.eq.s32.totalorder %s12, 103
      %p50 = por %p48, %p49
      %p51 = scmp.ne.s32.totalorder %s43, %s46
      %p52 = scmp.eq.s32.totalorder %s12, 0
      %p53 = por %p51, %p52
      %p54 = scmp.ne.s32.totalorder %s43, %s46
      %p55 = scmp.eq.s32.totalorder %s17, 103
      %p56 = por %p54, %p55
      %p57 = scmp.ne.s32.totalorder %s46, %s47
      %p58 = scmp.eq.s32.totalorder %s17, 0
      %p59 = por %p57, %p58
      %p60 = scmp.ne.s32.totalorder %s46, %s47
      %p61 = scmp.eq.s32.totalorder %s18, 103
      %p62 = por %p60, %p61
      %p64 = scmp.ne.s32.totalorder %s47, %s63
      %p65 = scmp.eq.s32.totalorder %s18, 0
      %p66 = por %p64, %p65
      %s67 = ssub.s32 %s21, %s30
      %s68 = ssub.s32 %s20, %s34
      %s69 = sor.u32 %s67, %s68
      %p70 = scmp.eq.s32.totalorder %s69, 0
      %s72 = sadd.s32 %s71, 1
      %s73 = scalar_select %p70, %s71, %s72
      %p76 = pneg %p70
      %p77 = scmp.eq.s32.totalorder %s12, 103
      %p78 = por %p76, %p77
      %p79 = scmp.ne.s32.totalorder %s71, %s74
      %p80 = scmp.eq.s32.totalorder %s12, 0
      %p81 = por %p79, %p80
      %p82 = scmp.ne.s32.totalorder %s71, %s74
      %p83 = scmp.eq.s32.totalorder %s17, 103
      %p84 = por %p82, %p83
      %p85 = scmp.ne.s32.totalorder %s74, %s75
      %p86 = scmp.eq.s32.totalorder %s17, 0
      %p87 = por %p85, %p86
      %p88 = scmp.ne.s32.totalorder %s74, %s75
      %p89 = scmp.eq.s32.totalorder %s18, 103
      %p90 = por %p88, %p89
      %p92 = scmp.ne.s32.totalorder %s75, %s91
      %p93 = scmp.eq.s32.totalorder %s18, 0
      %p94 = por %p92, %p93
      %s95 = ssub.s32 %s20, %s34
      %p96 = scmp.eq.s32.totalorder %s95, 0
      %s98 = sadd.s32 %s97, 1
      %s99 = scalar_select %p96, %s97, %s98
      %p102 = pneg %p96
      %p103 = scmp.eq.s32.totalorder %s12, 103
      %p104 = por %p102, %p103
      %p105 = scmp.ne.s32.totalorder %s97, %s100
      %p106 = scmp.eq.s32.totalorder %s12, 0
      %p107 = por %p105, %p106
      %p108 = scmp.ne.s32.totalorder %s97, %s100
      %p109 = scmp.eq.s32.totalorder %s17, 103
      %p110 = por %p108, %p109
      %p111 = scmp.ne.s32.totalorder %s100, %s101
      %p112 = scmp.eq.s32.totalorder %s17, 0
      %p113 = por %p111, %p112
      %p114 = scmp.ne.s32.totalorder %s100, %s101
      %p115 = scmp.eq.s32.totalorder %s18, 103
      %p116 = por %p114, %p115
      %p118 = scmp.ne.s32.totalorder %s101, %s117
      %p119 = scmp.eq.s32.totalorder %s18, 0
      %p120 = por %p118, %p119
      %s121 = ssub.s32 %s19, %s38
      %s122 = ssub.s32 %s20, %s34
      %s123 = sor.u32 %s121, %s122
      %p124 = scmp.eq.s32.totalorder %s123, 0
      %s126 = sadd.s32 %s125, 1
      %s127 = scalar_select %p124, %s125, %s126
      %p130 = pneg %p124
      %p131 = scmp.eq.s32.totalorder %s12, 103
      %p132 = por %p130, %p131
      %p133 = scmp.ne.s32.totalorder %s125, %s128
      %p134 = scmp.eq.s32.totalorder %s12, 0
      %p135 = por %p133, %p134
      %p136 = scmp.ne.s32.totalorder %s125, %s128
      %p137 = scmp.eq.s32.totalorder %s17, 103
      %p138 = por %p136, %p137
      %p139 = scmp.ne.s32.totalorder %s128, %s129
      %p140 = scmp.eq.s32.totalorder %s17, 0
      %p141 = por %p139, %p140
      %p142 = scmp.ne.s32.totalorder %s128, %s129
      %p143 = scmp.eq.s32.totalorder %s18, 103
      %p144 = por %p142, %p143
      %p146 = scmp.ne.s32.totalorder %s129, %s145
      %p147 = scmp.eq.s32.totalorder %s18, 0
      %p148 = por %p146, %p147
      %p149 = scmp.le.s32.totalorder 1, %s12
      %p150 = scmp.lt.s32.totalorder %s12, 105
      %p151 = pnand %p149, %p150
      %p152 = pneg %p151
      // Predicated region
      $region9: #{conv1d_base_net_forward.14} parent=5 // pred_check
        _
      $region10: #{conv1d_base_net_forward.14} parent=5 // pred_check_branch
        %154 = sbr.rel (%p151) target = $region12
      $region11: #{conv1d_base_net_forward.14} parent=5 // pred_region
        %s155 = ssub.s32 %s12, 1
      $region12: #{conv1d_base_net_forward.14} parent=5 // pred_fallthru
        _
      %p156 = scmp.lt.s32.totalorder %s12, 104
      // Predicated region
      $region13: #{conv1d_base_net_forward.14} parent=5 // pred_check
        %p157 = pneg %p156
      $region14: #{conv1d_base_net_forward.14} parent=5 // pred_check_branch
        %159 = sbr.rel (%p157) target = $region16
      $region15: #{conv1d_base_net_forward.14} parent=5 // pred_region
        // Predicated region
        $region17: #{conv1d_base_net_forward.14} parent=15 // pred_check
          %p160 = pneg %p53
        $region18: #{conv1d_base_net_forward.14} parent=15 // pred_check_branch
          %162 = sbr.rel (%p160) target = $region20
        $region19: #{conv1d_base_net_forward.14} parent=15 // pred_region
          %s163 = smul.u32 8, %s21
          %p164 = scmp.lt.s32.totalorder %s19, 0
          %s165 = scalar_select %p164, %s19, 0
          %p166 = scmp.lt.s32.totalorder %s163, 103
          %s167 = scalar_select %p166, %s163, 103
          %s168 = smul.addr %s165, 104
          %s169 = sadd.s32 %s167, %s168
          %s170 = smul.addr %s169, 4
          %s171 = scalar_lea.vmem %s0, %s170
          %s172 = smul.u32 8, %s21
        $region20: #{conv1d_base_net_forward.14} parent=15 // pred_fallthru
          _
        // Predicated region
        $region21: #{conv1d_base_net_forward.14} parent=15 // pred_check
          %p173 = pneg %p81
        $region22: #{conv1d_base_net_forward.14} parent=15 // pred_check_branch
          %175 = sbr.rel (%p173) target = $region24
        $region23: #{conv1d_base_net_forward.14} parent=15 // pred_region
          %s176 = sand.u32 %s71, 1
          %s177 = scalar_lea.sflag [#allocation3], %s176
          %s178 = sand.u32 %s71, 1
          %s179 = smul.addr %s178, 1024
          %s180 = scalar_lea.vmem [#allocation2], %s179
          %s181 = smul.u32 128, %s21
          %s182 = smul.u32 2, %s20
          %s184 = ssub.s32 16384, 16384
          %185 = vsyncadd %s177, %s184
          %s186 = smul.addr %s181, 16
          %s187 = sadd.s32 %s182, %s186
          %s188 = smul.addr %s187, 64
          %s189 = scalar_lea.hbm %s1, %s188
          %s190 = sshll.u32 %s180, 4
          %s191 = int_to_ptr.vmem [resolvable:$true] %s190
          %196 = dma.hbm_to_vmem [thread:$0]  %s189, 16384, %s191, %s177, 1024, 128, 8
        $region24: #{conv1d_base_net_forward.14} parent=15 // pred_fallthru
          _
        // Predicated region
        $region25: #{conv1d_base_net_forward.14} parent=15 // pred_check
          %p197 = pneg %p107
        $region26: #{conv1d_base_net_forward.14} parent=15 // pred_check_branch
          %199 = sbr.rel (%p197) target = $region28
        $region27: #{conv1d_base_net_forward.14} parent=15 // pred_region
          %s200 = smul.u32 2, %s20
          %p201 = scmp.lt.s32.totalorder %s200, 15
          %s202 = scalar_select %p201, %s200, 15
          %s203 = smul.addr %s202, 4
          %s204 = scalar_lea.vmem %s2, %s203
          %s205 = smul.u32 2, %s20
        $region28: #{conv1d_base_net_forward.14} parent=15 // pred_fallthru
          _
      $region16: #{conv1d_base_net_forward.14} parent=5 // pred_fallthru
        _
      %p206 = scmp.le.s32.totalorder 1, %s12
      %p207 = scmp.lt.s32.totalorder %s12, 105
      %p208 = pnand %p206, %p207
      %p209 = pneg %p208
      // Predicated region
      $region29: #{conv1d_base_net_forward.14} parent=5 // pred_check
        _
      $region30: #{conv1d_base_net_forward.14} parent=5 // pred_check_branch
        %211 = sbr.rel (%p208) target = $region32
      $region31: #{conv1d_base_net_forward.14} parent=5 // pred_region
        %s212 = ssub.s32 %s12, 1
        %s213 = sand.u32 %s74, 1
        %s214 = scalar_lea.sflag [#allocation3], %s213
        %s215 = sand.u32 %s74, 1
        %s216 = smul.addr %s215, 1024
        %s217 = scalar_lea.vmem [#allocation2], %s216
        // Predicated region
        $region33: #{conv1d_base_net_forward.14} parent=31 // pred_check
          %p218 = pneg %p87
        $region34: #{conv1d_base_net_forward.14} parent=31 // pred_check_branch
          %220 = sbr.rel (%p218) target = $region36
        $region35: #{conv1d_base_net_forward.14} parent=31 // pred_region
          %221 = dma.done %s214, 16384
        $region36: #{conv1d_base_net_forward.14} parent=31 // pred_fallthru
          _
        %s222 = smul.u32 8, %s24
        %p223 = scmp.lt.s32.totalorder %s22, 0
        %s224 = scalar_select %p223, %s22, 0
        %p225 = scmp.lt.s32.totalorder %s222, 103
        %s226 = scalar_select %p225, %s222, 103
        %s227 = smul.addr %s224, 104
        %s228 = sadd.s32 %s226, %s227
        %s229 = smul.addr %s228, 4
        %s230 = scalar_lea.vmem %s0, %s229
        %p231 = pneg %p59
        %p232 = pneg %p56
        %s233 = sand.u32 %s74, 1
        %s234 = scalar_lea.sflag [#allocation3], %s233
        %s235 = sand.u32 %s74, 1
        %s236 = smul.addr %s235, 1024
        %s237 = scalar_lea.vmem [#allocation2], %s236
        %p238 = pneg %p87
        %p239 = pneg %p84
        %s240 = smul.u32 2, %s23
        %p241 = scmp.lt.s32.totalorder %s240, 15
        %s242 = scalar_select %p241, %s240, 15
        %s243 = smul.addr %s242, 4
        %s244 = scalar_lea.vmem %s2, %s243
        %p245 = pneg %p113
        %p246 = pneg %p110
        %p247 = pneg %p141
        %p248 = pneg %p138
        %s249 = smul.u32 2, %s23
        %p250 = scmp.lt.s32.totalorder %s22, 0
        %s251 = scalar_select %p250, %s22, 0
        %p252 = scmp.lt.s32.totalorder %s249, 15
        %s253 = scalar_select %p252, %s249, 15
        %s254 = smul.addr %s251, 16
        %s255 = sadd.s32 %s253, %s254
        %s256 = smul.addr %s255, 8
        %s257 = scalar_lea.vmem %s3, %s256
        %s258 = smul.u32 8, %s24
        %p259 = scmp.lt.s32.totalorder %s22, 0
        %s260 = scalar_select %p259, %s22, 0
        %p261 = scmp.lt.s32.totalorder %s258, 103
        %s262 = scalar_select %p261, %s258, 103
        %s263 = smul.addr %s260, 104
        %s264 = sadd.s32 %s262, %s263
        %s265 = smul.addr %s264, 4
        %s266 = scalar_lea.vmem %s0, %s265
        %s267 = smul.u32 8, %s24
        %s268 = smul.u32 128, %s24
        %s269 = smul.u32 2, %s23
        %s270 = smul.u32 2, %s23
        %p271 = scmp.lt.s32.totalorder %s270, 15
        %s272 = scalar_select %p271, %s270, 15
        %s273 = smul.addr %s272, 4
        %s274 = scalar_lea.vmem %s2, %s273
        %s275 = smul.u32 2, %s23
        %s276 = smul.u32 2, %s23
        %p277 = scmp.lt.s32.totalorder %s22, 0
        %s278 = scalar_select %p277, %s22, 0
        %p279 = scmp.lt.s32.totalorder %s276, 15
        %s280 = scalar_select %p279, %s276, 15
        %s281 = smul.addr %s278, 16
        %s282 = sadd.s32 %s280, %s281
        %s283 = smul.addr %s282, 8
        %s284 = scalar_lea.vmem %s3, %s283
        %s285 = smul.u32 2, %s23
        %p286 = scmp.eq.s32.totalorder %s24, 0
        // Predicated region
        $region37: #{conv1d_base_net_forward.14} parent=31 // pred_check
          %p287 = pneg %p286
        $region38: #{conv1d_base_net_forward.14} parent=31 // pred_check_branch
          %289 = sbr.rel (%p287) target = $region40
        $region39: #{conv1d_base_net_forward.14} parent=31 // pred_region
          %290 = vst [vmem:[%s284] sm:$0xff] 0.0
          %291 = vst [vmem:[%s284 + $0x8] sm:$0xff] 0.0
        $region40: #{conv1d_base_net_forward.14} parent=31 // pred_fallthru
          _
        %v292 = vld [vmem:[%s284] sm:$0xff]
        %v293 = vld [vmem:[%s284 + $0x8] sm:$0xff]
        %v294 = vld [vmem:[%s266] sm:$0xff]
        %v295 = vld [vmem:[%s266 + $0x8] sm:$0xff]
        %v296 = vld [vmem:[%s266 + $0x10] sm:$0xff]
        %v297 = vld [vmem:[%s266 + $0x18] sm:$0xff]
        %v298 = vld [vmem:[%s217] sm:$0xff]
        %v299 = vld [vmem:[%s217 + $0x8] sm:$0xff]
        %v300 = vld [vmem:[%s217 + $0x10] sm:$0xff]
        %v301 = vld [vmem:[%s217 + $0x18] sm:$0xff]
        %v302 = vld [vmem:[%s217 + $0x20] sm:$0xff]
        %v303 = vld [vmem:[%s217 + $0x28] sm:$0xff]
        %v304 = vld [vmem:[%s217 + $0x30] sm:$0xff]
        %v305 = vld [vmem:[%s217 + $0x38] sm:$0xff]
        %v306 = vld [vmem:[%s217 + $0x40] sm:$0xff]
        %v307 = vld [vmem:[%s217 + $0x48] sm:$0xff]
        %v308 = vld [vmem:[%s217 + $0x50] sm:$0xff]
        %v309 = vld [vmem:[%s217 + $0x58] sm:$0xff]
        %v310 = vld [vmem:[%s217 + $0x60] sm:$0xff]
        %v311 = vld [vmem:[%s217 + $0x68] sm:$0xff]
        %v312 = vld [vmem:[%s217 + $0x70] sm:$0xff]
        %v313 = vld [vmem:[%s217 + $0x78] sm:$0xff]
        %v314 = vld [vmem:[%s217 + $0x80] sm:$0xff]
        %v315 = vld [vmem:[%s217 + $0x88] sm:$0xff]
        %v316 = vld [vmem:[%s217 + $0x90] sm:$0xff]
        %v317 = vld [vmem:[%s217 + $0x98] sm:$0xff]
        %v318 = vld [vmem:[%s217 + $0xa0] sm:$0xff]
        %v319 = vld [vmem:[%s217 + $0xa8] sm:$0xff]
        %v320 = vld [vmem:[%s217 + $0xb0] sm:$0xff]
        %v321 = vld [vmem:[%s217 + $0xb8] sm:$0xff]
        %v322 = vld [vmem:[%s217 + $0xc0] sm:$0xff]
        %v323 = vld [vmem:[%s217 + $0xc8] sm:$0xff]
        %v324 = vld [vmem:[%s217 + $0xd0] sm:$0xff]
        %v325 = vld [vmem:[%s217 + $0xd8] sm:$0xff]
        %v326 = vld [vmem:[%s217 + $0xe0] sm:$0xff]
        %v327 = vld [vmem:[%s217 + $0xe8] sm:$0xff]
        %v328 = vld [vmem:[%s217 + $0xf0] sm:$0xff]
        %v329 = vld [vmem:[%s217 + $0xf8] sm:$0xff]
        %v330 = vld [vmem:[%s217 + $0x100] sm:$0xff]
        %v331 = vld [vmem:[%s217 + $0x108] sm:$0xff]
        %v332 = vld [vmem:[%s217 + $0x110] sm:$0xff]
        %v333 = vld [vmem:[%s217 + $0x118] sm:$0xff]
        %v334 = vld [vmem:[%s217 + $0x120] sm:$0xff]
        %v335 = vld [vmem:[%s217 + $0x128] sm:$0xff]
        %v336 = vld [vmem:[%s217 + $0x130] sm:$0xff]
        %v337 = vld [vmem:[%s217 + $0x138] sm:$0xff]
        %v338 = vld [vmem:[%s217 + $0x140] sm:$0xff]
        %v339 = vld [vmem:[%s217 + $0x148] sm:$0xff]
        %v340 = vld [vmem:[%s217 + $0x150] sm:$0xff]
        %v341 = vld [vmem:[%s217 + $0x158] sm:$0xff]
        %v342 = vld [vmem:[%s217 + $0x160] sm:$0xff]
        %v343 = vld [vmem:[%s217 + $0x168] sm:$0xff]
        %v344 = vld [vmem:[%s217 + $0x170] sm:$0xff]
        %v345 = vld [vmem:[%s217 + $0x178] sm:$0xff]
        %v346 = vld [vmem:[%s217 + $0x180] sm:$0xff]
        %v347 = vld [vmem:[%s217 + $0x188] sm:$0xff]
        %v348 = vld [vmem:[%s217 + $0x190] sm:$0xff]
        %v349 = vld [vmem:[%s217 + $0x198] sm:$0xff]
        %v350 = vld [vmem:[%s217 + $0x1a0] sm:$0xff]
        %v351 = vld [vmem:[%s217 + $0x1a8] sm:$0xff]
        %v352 = vld [vmem:[%s217 + $0x1b0] sm:$0xff]
        %v353 = vld [vmem:[%s217 + $0x1b8] sm:$0xff]
        %v354 = vld [vmem:[%s217 + $0x1c0] sm:$0xff]
        %v355 = vld [vmem:[%s217 + $0x1c8] sm:$0xff]
        %v356 = vld [vmem:[%s217 + $0x1d0] sm:$0xff]
        %v357 = vld [vmem:[%s217 + $0x1d8] sm:$0xff]
        %v358 = vld [vmem:[%s217 + $0x1e0] sm:$0xff]
        %v359 = vld [vmem:[%s217 + $0x1e8] sm:$0xff]
        %v360 = vld [vmem:[%s217 + $0x1f0] sm:$0xff]
        %v361 = vld [vmem:[%s217 + $0x1f8] sm:$0xff]
        %v362 = vld [vmem:[%s217 + $0x200] sm:$0xff]
        %v363 = vld [vmem:[%s217 + $0x208] sm:$0xff]
        %v364 = vld [vmem:[%s217 + $0x210] sm:$0xff]
        %v365 = vld [vmem:[%s217 + $0x218] sm:$0xff]
        %v366 = vld [vmem:[%s217 + $0x220] sm:$0xff]
        %v367 = vld [vmem:[%s217 + $0x228] sm:$0xff]
        %v368 = vld [vmem:[%s217 + $0x230] sm:$0xff]
        %v369 = vld [vmem:[%s217 + $0x238] sm:$0xff]
        %v370 = vld [vmem:[%s217 + $0x240] sm:$0xff]
        %v371 = vld [vmem:[%s217 + $0x248] sm:$0xff]
        %v372 = vld [vmem:[%s217 + $0x250] sm:$0xff]
        %v373 = vld [vmem:[%s217 + $0x258] sm:$0xff]
        %v374 = vld [vmem:[%s217 + $0x260] sm:$0xff]
        %v375 = vld [vmem:[%s217 + $0x268] sm:$0xff]
        %v376 = vld [vmem:[%s217 + $0x270] sm:$0xff]
        %v377 = vld [vmem:[%s217 + $0x278] sm:$0xff]
        %v378 = vld [vmem:[%s217 + $0x280] sm:$0xff]
        %v379 = vld [vmem:[%s217 + $0x288] sm:$0xff]
        %v380 = vld [vmem:[%s217 + $0x290] sm:$0xff]
        %v381 = vld [vmem:[%s217 + $0x298] sm:$0xff]
        %v382 = vld [vmem:[%s217 + $0x2a0] sm:$0xff]
        %v383 = vld [vmem:[%s217 + $0x2a8] sm:$0xff]
        %v384 = vld [vmem:[%s217 + $0x2b0] sm:$0xff]
        %v385 = vld [vmem:[%s217 + $0x2b8] sm:$0xff]
        %v386 = vld [vmem:[%s217 + $0x2c0] sm:$0xff]
        %v387 = vld [vmem:[%s217 + $0x2c8] sm:$0xff]
        %v388 = vld [vmem:[%s217 + $0x2d0] sm:$0xff]
        %v389 = vld [vmem:[%s217 + $0x2d8] sm:$0xff]
        %v390 = vld [vmem:[%s217 + $0x2e0] sm:$0xff]
        %v391 = vld [vmem:[%s217 + $0x2e8] sm:$0xff]
        %v392 = vld [vmem:[%s217 + $0x2f0] sm:$0xff]
        %v393 = vld [vmem:[%s217 + $0x2f8] sm:$0xff]
        %v394 = vld [vmem:[%s217 + $0x300] sm:$0xff]
        %v395 = vld [vmem:[%s217 + $0x308] sm:$0xff]
        %v396 = vld [vmem:[%s217 + $0x310] sm:$0xff]
        %v397 = vld [vmem:[%s217 + $0x318] sm:$0xff]
        %v398 = vld [vmem:[%s217 + $0x320] sm:$0xff]
        %v399 = vld [vmem:[%s217 + $0x328] sm:$0xff]
        %v400 = vld [vmem:[%s217 + $0x330] sm:$0xff]
        %v401 = vld [vmem:[%s217 + $0x338] sm:$0xff]
        %v402 = vld [vmem:[%s217 + $0x340] sm:$0xff]
        %v403 = vld [vmem:[%s217 + $0x348] sm:$0xff]
        %v404 = vld [vmem:[%s217 + $0x350] sm:$0xff]
        %v405 = vld [vmem:[%s217 + $0x358] sm:$0xff]
        %v406 = vld [vmem:[%s217 + $0x360] sm:$0xff]
        %v407 = vld [vmem:[%s217 + $0x368] sm:$0xff]
        %v408 = vld [vmem:[%s217 + $0x370] sm:$0xff]
        %v409 = vld [vmem:[%s217 + $0x378] sm:$0xff]
        %v410 = vld [vmem:[%s217 + $0x380] sm:$0xff]
        %v411 = vld [vmem:[%s217 + $0x388] sm:$0xff]
        %v412 = vld [vmem:[%s217 + $0x390] sm:$0xff]
        %v413 = vld [vmem:[%s217 + $0x398] sm:$0xff]
        %v414 = vld [vmem:[%s217 + $0x3a0] sm:$0xff]
        %v415 = vld [vmem:[%s217 + $0x3a8] sm:$0xff]
        %v416 = vld [vmem:[%s217 + $0x3b0] sm:$0xff]
        %v417 = vld [vmem:[%s217 + $0x3b8] sm:$0xff]
        %v418 = vld [vmem:[%s217 + $0x3c0] sm:$0xff]
        %v419 = vld [vmem:[%s217 + $0x3c8] sm:$0xff]
        %v420 = vld [vmem:[%s217 + $0x3d0] sm:$0xff]
        %v421 = vld [vmem:[%s217 + $0x3d8] sm:$0xff]
        %v422 = vld [vmem:[%s217 + $0x3e0] sm:$0xff]
        %v423 = vld [vmem:[%s217 + $0x3e8] sm:$0xff]
        %v424 = vld [vmem:[%s217 + $0x3f0] sm:$0xff]
        %v425 = vld [vmem:[%s217 + $0x3f8] sm:$0xff]
        %v430 = vunpack.c.l.b16 %v294
        %v431 = vunpack.c.h.b16 %v294
        %v432 = vunpack.c.l.b16 %v295
        %v433 = vunpack.c.h.b16 %v295
        %v434 = vunpack.c.l.b16 %v296
        %v435 = vunpack.c.h.b16 %v296
        %v436 = vunpack.c.l.b16 %v297
        %v437 = vunpack.c.h.b16 %v297
        %v438 = vpack.c.b16 %v430, %v430
        %v439 = vpack.c.b16 %v431, %v431
        %v440 = vpack.c.b16 %v432, %v432
        %v441 = vpack.c.b16 %v433, %v433
        %v442 = vpack.c.b16 %v434, %v434
        %v443 = vpack.c.b16 %v435, %v435
        %v444 = vpack.c.b16 %v436, %v436
        %v445 = vpack.c.b16 %v437, %v437
        %v582 = vunpack.c.l.b16 %v298
        %v583 = vunpack.c.h.b16 %v298
        %v584 = vunpack.c.l.b16 %v299
        %v585 = vunpack.c.h.b16 %v299
        %v586 = vunpack.c.l.b16 %v300
        %v587 = vunpack.c.h.b16 %v300
        %v588 = vunpack.c.l.b16 %v301
        %v589 = vunpack.c.h.b16 %v301
        %v590 = vunpack.c.l.b16 %v302
        %v591 = vunpack.c.h.b16 %v302
        %v592 = vunpack.c.l.b16 %v303
        %v593 = vunpack.c.h.b16 %v303
        %v594 = vunpack.c.l.b16 %v304
        %v595 = vunpack.c.h.b16 %v304
        %v596 = vunpack.c.l.b16 %v305
        %v597 = vunpack.c.h.b16 %v305
        %v598 = vunpack.c.l.b16 %v306
        %v599 = vunpack.c.h.b16 %v306
        %v600 = vunpack.c.l.b16 %v307
        %v601 = vunpack.c.h.b16 %v307
        %v602 = vunpack.c.l.b16 %v308
        %v603 = vunpack.c.h.b16 %v308
        %v604 = vunpack.c.l.b16 %v309
        %v605 = vunpack.c.h.b16 %v309
        %v606 = vunpack.c.l.b16 %v310
        %v607 = vunpack.c.h.b16 %v310
        %v608 = vunpack.c.l.b16 %v311
        %v609 = vunpack.c.h.b16 %v311
        %v610 = vunpack.c.l.b16 %v312
        %v611 = vunpack.c.h.b16 %v312
        %v612 = vunpack.c.l.b16 %v313
        %v613 = vunpack.c.h.b16 %v313
        %v614 = vunpack.c.l.b16 %v314
        %v615 = vunpack.c.h.b16 %v314
        %v616 = vunpack.c.l.b16 %v315
        %v617 = vunpack.c.h.b16 %v315
        %v618 = vunpack.c.l.b16 %v316
        %v619 = vunpack.c.h.b16 %v316
        %v620 = vunpack.c.l.b16 %v317
        %v621 = vunpack.c.h.b16 %v317
        %v622 = vunpack.c.l.b16 %v318
        %v623 = vunpack.c.h.b16 %v318
        %v624 = vunpack.c.l.b16 %v319
        %v625 = vunpack.c.h.b16 %v319
        %v626 = vunpack.c.l.b16 %v320
        %v627 = vunpack.c.h.b16 %v320
        %v628 = vunpack.c.l.b16 %v321
        %v629 = vunpack.c.h.b16 %v321
        %v630 = vunpack.c.l.b16 %v322
        %v631 = vunpack.c.h.b16 %v322
        %v632 = vunpack.c.l.b16 %v323
        %v633 = vunpack.c.h.b16 %v323
        %v634 = vunpack.c.l.b16 %v324
        %v635 = vunpack.c.h.b16 %v324
        %v636 = vunpack.c.l.b16 %v325
        %v637 = vunpack.c.h.b16 %v325
        %v638 = vunpack.c.l.b16 %v326
        %v639 = vunpack.c.h.b16 %v326
        %v640 = vunpack.c.l.b16 %v327
        %v641 = vunpack.c.h.b16 %v327
        %v642 = vunpack.c.l.b16 %v328
        %v643 = vunpack.c.h.b16 %v328
        %v644 = vunpack.c.l.b16 %v329
        %v645 = vunpack.c.h.b16 %v329
        %v646 = vunpack.c.l.b16 %v330
        %v647 = vunpack.c.h.b16 %v330
        %v648 = vunpack.c.l.b16 %v331
        %v649 = vunpack.c.h.b16 %v331
        %v650 = vunpack.c.l.b16 %v332
        %v651 = vunpack.c.h.b16 %v332
        %v652 = vunpack.c.l.b16 %v333
        %v653 = vunpack.c.h.b16 %v333
        %v654 = vunpack.c.l.b16 %v334
        %v655 = vunpack.c.h.b16 %v334
        %v656 = vunpack.c.l.b16 %v335
        %v657 = vunpack.c.h.b16 %v335
        %v658 = vunpack.c.l.b16 %v336
        %v659 = vunpack.c.h.b16 %v336
        %v660 = vunpack.c.l.b16 %v337
        %v661 = vunpack.c.h.b16 %v337
        %v662 = vunpack.c.l.b16 %v338
        %v663 = vunpack.c.h.b16 %v338
        %v664 = vunpack.c.l.b16 %v339
        %v665 = vunpack.c.h.b16 %v339
        %v666 = vunpack.c.l.b16 %v340
        %v667 = vunpack.c.h.b16 %v340
        %v668 = vunpack.c.l.b16 %v341
        %v669 = vunpack.c.h.b16 %v341
        %v670 = vunpack.c.l.b16 %v342
        %v671 = vunpack.c.h.b16 %v342
        %v672 = vunpack.c.l.b16 %v343
        %v673 = vunpack.c.h.b16 %v343
        %v674 = vunpack.c.l.b16 %v344
        %v675 = vunpack.c.h.b16 %v344
        %v676 = vunpack.c.l.b16 %v345
        %v677 = vunpack.c.h.b16 %v345
        %v678 = vunpack.c.l.b16 %v346
        %v679 = vunpack.c.h.b16 %v346
        %v680 = vunpack.c.l.b16 %v347
        %v681 = vunpack.c.h.b16 %v347
        %v682 = vunpack.c.l.b16 %v348
        %v683 = vunpack.c.h.b16 %v348
        %v684 = vunpack.c.l.b16 %v349
        %v685 = vunpack.c.h.b16 %v349
        %v686 = vunpack.c.l.b16 %v350
        %v687 = vunpack.c.h.b16 %v350
        %v688 = vunpack.c.l.b16 %v351
        %v689 = vunpack.c.h.b16 %v351
        %v690 = vunpack.c.l.b16 %v352
        %v691 = vunpack.c.h.b16 %v352
        %v692 = vunpack.c.l.b16 %v353
        %v693 = vunpack.c.h.b16 %v353
        %v694 = vunpack.c.l.b16 %v354
        %v695 = vunpack.c.h.b16 %v354
        %v696 = vunpack.c.l.b16 %v355
        %v697 = vunpack.c.h.b16 %v355
        %v698 = vunpack.c.l.b16 %v356
        %v699 = vunpack.c.h.b16 %v356
        %v700 = vunpack.c.l.b16 %v357
        %v701 = vunpack.c.h.b16 %v357
        %v702 = vunpack.c.l.b16 %v358
        %v703 = vunpack.c.h.b16 %v358
        %v704 = vunpack.c.l.b16 %v359
        %v705 = vunpack.c.h.b16 %v359
        %v706 = vunpack.c.l.b16 %v360
        %v707 = vunpack.c.h.b16 %v360
        %v708 = vunpack.c.l.b16 %v361
        %v709 = vunpack.c.h.b16 %v361
        %v710 = vunpack.c.l.b16 %v362
        %v711 = vunpack.c.h.b16 %v362
        %v712 = vunpack.c.l.b16 %v363
        %v713 = vunpack.c.h.b16 %v363
        %v714 = vunpack.c.l.b16 %v364
        %v715 = vunpack.c.h.b16 %v364
        %v716 = vunpack.c.l.b16 %v365
        %v717 = vunpack.c.h.b16 %v365
        %v718 = vunpack.c.l.b16 %v366
        %v719 = vunpack.c.h.b16 %v366
        %v720 = vunpack.c.l.b16 %v367
        %v721 = vunpack.c.h.b16 %v367
        %v722 = vunpack.c.l.b16 %v368
        %v723 = vunpack.c.h.b16 %v368
        %v724 = vunpack.c.l.b16 %v369
        %v725 = vunpack.c.h.b16 %v369
        %v726 = vunpack.c.l.b16 %v370
        %v727 = vunpack.c.h.b16 %v370
        %v728 = vunpack.c.l.b16 %v371
        %v729 = vunpack.c.h.b16 %v371
        %v730 = vunpack.c.l.b16 %v372
        %v731 = vunpack.c.h.b16 %v372
        %v732 = vunpack.c.l.b16 %v373
        %v733 = vunpack.c.h.b16 %v373
        %v734 = vunpack.c.l.b16 %v374
        %v735 = vunpack.c.h.b16 %v374
        %v736 = vunpack.c.l.b16 %v375
        %v737 = vunpack.c.h.b16 %v375
        %v738 = vunpack.c.l.b16 %v376
        %v739 = vunpack.c.h.b16 %v376
        %v740 = vunpack.c.l.b16 %v377
        %v741 = vunpack.c.h.b16 %v377
        %v742 = vunpack.c.l.b16 %v378
        %v743 = vunpack.c.h.b16 %v378
        %v744 = vunpack.c.l.b16 %v379
        %v745 = vunpack.c.h.b16 %v379
        %v746 = vunpack.c.l.b16 %v380
        %v747 = vunpack.c.h.b16 %v380
        %v748 = vunpack.c.l.b16 %v381
        %v749 = vunpack.c.h.b16 %v381
        %v750 = vunpack.c.l.b16 %v382
        %v751 = vunpack.c.h.b16 %v382
        %v752 = vunpack.c.l.b16 %v383
        %v753 = vunpack.c.h.b16 %v383
        %v754 = vunpack.c.l.b16 %v384
        %v755 = vunpack.c.h.b16 %v384
        %v756 = vunpack.c.l.b16 %v385
        %v757 = vunpack.c.h.b16 %v385
        %v758 = vunpack.c.l.b16 %v386
        %v759 = vunpack.c.h.b16 %v386
        %v760 = vunpack.c.l.b16 %v387
        %v761 = vunpack.c.h.b16 %v387
        %v762 = vunpack.c.l.b16 %v388
        %v763 = vunpack.c.h.b16 %v388
        %v764 = vunpack.c.l.b16 %v389
        %v765 = vunpack.c.h.b16 %v389
        %v766 = vunpack.c.l.b16 %v390
        %v767 = vunpack.c.h.b16 %v390
        %v768 = vunpack.c.l.b16 %v391
        %v769 = vunpack.c.h.b16 %v391
        %v770 = vunpack.c.l.b16 %v392
        %v771 = vunpack.c.h.b16 %v392
        %v772 = vunpack.c.l.b16 %v393
        %v773 = vunpack.c.h.b16 %v393
        %v774 = vunpack.c.l.b16 %v394
        %v775 = vunpack.c.h.b16 %v394
        %v776 = vunpack.c.l.b16 %v395
        %v777 = vunpack.c.h.b16 %v395
        %v778 = vunpack.c.l.b16 %v396
        %v779 = vunpack.c.h.b16 %v396
        %v780 = vunpack.c.l.b16 %v397
        %v781 = vunpack.c.h.b16 %v397
        %v782 = vunpack.c.l.b16 %v398
        %v783 = vunpack.c.h.b16 %v398
        %v784 = vunpack.c.l.b16 %v399
        %v785 = vunpack.c.h.b16 %v399
        %v786 = vunpack.c.l.b16 %v400
        %v787 = vunpack.c.h.b16 %v400
        %v788 = vunpack.c.l.b16 %v401
        %v789 = vunpack.c.h.b16 %v401
        %v790 = vunpack.c.l.b16 %v402
        %v791 = vunpack.c.h.b16 %v402
        %v792 = vunpack.c.l.b16 %v403
        %v793 = vunpack.c.h.b16 %v403
        %v794 = vunpack.c.l.b16 %v404
        %v795 = vunpack.c.h.b16 %v404
        %v796 = vunpack.c.l.b16 %v405
        %v797 = vunpack.c.h.b16 %v405
        %v798 = vunpack.c.l.b16 %v406
        %v799 = vunpack.c.h.b16 %v406
        %v800 = vunpack.c.l.b16 %v407
        %v801 = vunpack.c.h.b16 %v407
        %v802 = vunpack.c.l.b16 %v408
        %v803 = vunpack.c.h.b16 %v408
        %v804 = vunpack.c.l.b16 %v409
        %v805 = vunpack.c.h.b16 %v409
        %v806 = vunpack.c.l.b16 %v410
        %v807 = vunpack.c.h.b16 %v410
        %v808 = vunpack.c.l.b16 %v411
        %v809 = vunpack.c.h.b16 %v411
        %v810 = vunpack.c.l.b16 %v412
        %v811 = vunpack.c.h.b16 %v412
        %v812 = vunpack.c.l.b16 %v413
        %v813 = vunpack.c.h.b16 %v413
        %v814 = vunpack.c.l.b16 %v414
        %v815 = vunpack.c.h.b16 %v414
        %v816 = vunpack.c.l.b16 %v415
        %v817 = vunpack.c.h.b16 %v415
        %v818 = vunpack.c.l.b16 %v416
        %v819 = vunpack.c.h.b16 %v416
        %v820 = vunpack.c.l.b16 %v417
        %v821 = vunpack.c.h.b16 %v417
        %v822 = vunpack.c.l.b16 %v418
        %v823 = vunpack.c.h.b16 %v418
        %v824 = vunpack.c.l.b16 %v419
        %v825 = vunpack.c.h.b16 %v419
        %v826 = vunpack.c.l.b16 %v420
        %v827 = vunpack.c.h.b16 %v420
        %v828 = vunpack.c.l.b16 %v421
        %v829 = vunpack.c.h.b16 %v421
        %v830 = vunpack.c.l.b16 %v422
        %v831 = vunpack.c.h.b16 %v422
        %v832 = vunpack.c.l.b16 %v423
        %v833 = vunpack.c.h.b16 %v423
        %v834 = vunpack.c.l.b16 %v424
        %v835 = vunpack.c.h.b16 %v424
        %v836 = vunpack.c.l.b16 %v425
        %v837 = vunpack.c.h.b16 %v425
        %v838 = vpack.c.b16 %v584, %v582
        %v839 = vpack.c.b16 %v585, %v583
        %v840 = vpack.c.b16 %v588, %v586
        %v841 = vpack.c.b16 %v589, %v587
        %v842 = vpack.c.b16 %v592, %v590
        %v843 = vpack.c.b16 %v593, %v591
        %v844 = vpack.c.b16 %v596, %v594
        %v845 = vpack.c.b16 %v597, %v595
        %v846 = vpack.c.b16 %v600, %v598
        %v847 = vpack.c.b16 %v601, %v599
        %v848 = vpack.c.b16 %v604, %v602
        %v849 = vpack.c.b16 %v605, %v603
        %v850 = vpack.c.b16 %v608, %v606
        %v851 = vpack.c.b16 %v609, %v607
        %v852 = vpack.c.b16 %v612, %v610
        %v853 = vpack.c.b16 %v613, %v611
        %v854 = vpack.c.b16 %v616, %v614
        %v855 = vpack.c.b16 %v617, %v615
        %v856 = vpack.c.b16 %v620, %v618
        %v857 = vpack.c.b16 %v621, %v619
        %v858 = vpack.c.b16 %v624, %v622
        %v859 = vpack.c.b16 %v625, %v623
        %v860 = vpack.c.b16 %v628, %v626
        %v861 = vpack.c.b16 %v629, %v627
        %v862 = vpack.c.b16 %v632, %v630
        %v863 = vpack.c.b16 %v633, %v631
        %v864 = vpack.c.b16 %v636, %v634
        %v865 = vpack.c.b16 %v637, %v635
        %v866 = vpack.c.b16 %v640, %v638
        %v867 = vpack.c.b16 %v641, %v639
        %v868 = vpack.c.b16 %v644, %v642
        %v869 = vpack.c.b16 %v645, %v643
        %v870 = vpack.c.b16 %v648, %v646
        %v871 = vpack.c.b16 %v649, %v647
        %v872 = vpack.c.b16 %v652, %v650
        %v873 = vpack.c.b16 %v653, %v651
        %v874 = vpack.c.b16 %v656, %v654
        %v875 = vpack.c.b16 %v657, %v655
        %v876 = vpack.c.b16 %v660, %v658
        %v877 = vpack.c.b16 %v661, %v659
        %v878 = vpack.c.b16 %v664, %v662
        %v879 = vpack.c.b16 %v665, %v663
        %v880 = vpack.c.b16 %v668, %v666
        %v881 = vpack.c.b16 %v669, %v667
        %v882 = vpack.c.b16 %v672, %v670
        %v883 = vpack.c.b16 %v673, %v671
        %v884 = vpack.c.b16 %v676, %v674
        %v885 = vpack.c.b16 %v677, %v675
        %v886 = vpack.c.b16 %v680, %v678
        %v887 = vpack.c.b16 %v681, %v679
        %v888 = vpack.c.b16 %v684, %v682
        %v889 = vpack.c.b16 %v685, %v683
        %v890 = vpack.c.b16 %v688, %v686
        %v891 = vpack.c.b16 %v689, %v687
        %v892 = vpack.c.b16 %v692, %v690
        %v893 = vpack.c.b16 %v693, %v691
        %v894 = vpack.c.b16 %v696, %v694
        %v895 = vpack.c.b16 %v697, %v695
        %v896 = vpack.c.b16 %v700, %v698
        %v897 = vpack.c.b16 %v701, %v699
        %v898 = vpack.c.b16 %v704, %v702
        %v899 = vpack.c.b16 %v705, %v703
        %v900 = vpack.c.b16 %v708, %v706
        %v901 = vpack.c.b16 %v709, %v707
        %v902 = vpack.c.b16 %v712, %v710
        %v903 = vpack.c.b16 %v713, %v711
        %v904 = vpack.c.b16 %v716, %v714
        %v905 = vpack.c.b16 %v717, %v715
        %v906 = vpack.c.b16 %v720, %v718
        %v907 = vpack.c.b16 %v721, %v719
        %v908 = vpack.c.b16 %v724, %v722
        %v909 = vpack.c.b16 %v725, %v723
        %v910 = vpack.c.b16 %v728, %v726
        %v911 = vpack.c.b16 %v729, %v727
        %v912 = vpack.c.b16 %v732, %v730
        %v913 = vpack.c.b16 %v733, %v731
        %v914 = vpack.c.b16 %v736, %v734
        %v915 = vpack.c.b16 %v737, %v735
        %v916 = vpack.c.b16 %v740, %v738
        %v917 = vpack.c.b16 %v741, %v739
        %v918 = vpack.c.b16 %v744, %v742
        %v919 = vpack.c.b16 %v745, %v743
        %v920 = vpack.c.b16 %v748, %v746
        %v921 = vpack.c.b16 %v749, %v747
        %v922 = vpack.c.b16 %v752, %v750
        %v923 = vpack.c.b16 %v753, %v751
        %v924 = vpack.c.b16 %v756, %v754
        %v925 = vpack.c.b16 %v757, %v755
        %v926 = vpack.c.b16 %v760, %v758
        %v927 = vpack.c.b16 %v761, %v759
        %v928 = vpack.c.b16 %v764, %v762
        %v929 = vpack.c.b16 %v765, %v763
        %v930 = vpack.c.b16 %v768, %v766
        %v931 = vpack.c.b16 %v769, %v767
        %v932 = vpack.c.b16 %v772, %v770
        %v933 = vpack.c.b16 %v773, %v771
        %v934 = vpack.c.b16 %v776, %v774
        %v935 = vpack.c.b16 %v777, %v775
        %v936 = vpack.c.b16 %v780, %v778
        %v937 = vpack.c.b16 %v781, %v779
        %v938 = vpack.c.b16 %v784, %v782
        %v939 = vpack.c.b16 %v785, %v783
        %v940 = vpack.c.b16 %v788, %v786
        %v941 = vpack.c.b16 %v789, %v787
        %v942 = vpack.c.b16 %v792, %v790
        %v943 = vpack.c.b16 %v793, %v791
        %v944 = vpack.c.b16 %v796, %v794
        %v945 = vpack.c.b16 %v797, %v795
        %v946 = vpack.c.b16 %v800, %v798
        %v947 = vpack.c.b16 %v801, %v799
        %v948 = vpack.c.b16 %v804, %v802
        %v949 = vpack.c.b16 %v805, %v803
        %v950 = vpack.c.b16 %v808, %v806
        %v951 = vpack.c.b16 %v809, %v807
        %v952 = vpack.c.b16 %v812, %v810
        %v953 = vpack.c.b16 %v813, %v811
        %v954 = vpack.c.b16 %v816, %v814
        %v955 = vpack.c.b16 %v817, %v815
        %v956 = vpack.c.b16 %v820, %v818
        %v957 = vpack.c.b16 %v821, %v819
        %v958 = vpack.c.b16 %v824, %v822
        %v959 = vpack.c.b16 %v825, %v823
        %v960 = vpack.c.b16 %v828, %v826
        %v961 = vpack.c.b16 %v829, %v827
        %v962 = vpack.c.b16 %v832, %v830
        %v963 = vpack.c.b16 %v833, %v831
        %v964 = vpack.c.b16 %v836, %v834
        %v965 = vpack.c.b16 %v837, %v835
        %1094 = vmatprep.subr.bf16.mxu0 %v839
        %1095 = vmatpush1.bf16.msra.mxu0 %v838
        %1096 = vmatprep.subr.bf16.mxu0 %v841
        %1097 = vmatpush1.bf16.msra.mxu0 %v840
        %1098 = vmatprep.subr.bf16.mxu0 %v843
        %1099 = vmatpush1.bf16.msra.mxu0 %v842
        %1100 = vmatprep.subr.bf16.mxu0 %v845
        %1101 = vmatpush1.bf16.msra.mxu0 %v844
        %1102 = vmatprep.subr.bf16.mxu0 %v847
        %1103 = vmatpush1.bf16.msra.mxu0 %v846
        %1104 = vmatprep.subr.bf16.mxu0 %v849
        %1105 = vmatpush1.bf16.msra.mxu0 %v848
        %1106 = vmatprep.subr.bf16.mxu0 %v851
        %1107 = vmatpush1.bf16.msra.mxu0 %v850
        %1108 = vmatprep.subr.bf16.mxu0 %v853
        %1109 = vmatpush1.bf16.msra.mxu0 %v852
        %1110 = vmatprep.subr.bf16.mxu0 %v855
        %1111 = vmatpush1.bf16.msra.mxu0 %v854
        %1112 = vmatprep.subr.bf16.mxu0 %v857
        %1113 = vmatpush1.bf16.msra.mxu0 %v856
        %1114 = vmatprep.subr.bf16.mxu0 %v859
        %1115 = vmatpush1.bf16.msra.mxu0 %v858
        %1116 = vmatprep.subr.bf16.mxu0 %v861
        %1117 = vmatpush1.bf16.msra.mxu0 %v860
        %1118 = vmatprep.subr.bf16.mxu0 %v863
        %1119 = vmatpush1.bf16.msra.mxu0 %v862
        %1120 = vmatprep.subr.bf16.mxu0 %v865
        %1121 = vmatpush1.bf16.msra.mxu0 %v864
        %1122 = vmatprep.subr.bf16.mxu0 %v867
        %1123 = vmatpush1.bf16.msra.mxu0 %v866
        %1124 = vmatprep.subr.bf16.mxu0 %v869
        %1125 = vmatpush1.bf16.msra.mxu0 %v868
        %1126 = vmatprep.mubr.bf16.mxu0 %v439
        %1127 = vmatmul.mubr.bf16.gmra.mrb[0].mxu0 %v438
        %v1128 = vpop.f32.mrb[0].mxu0
        %v1129 = vadd.f32 0.0, %v1128
        %v1130 = vpop.f32.mrb[0].mxu0
        %v1131 = vadd.f32 0.0, %v1130
        %v1132 = vpop.f32.mrb[0].mxu0
        %v1133 = vpop.f32.mrb[0].mxu0
        %1134 = vdwg.mxu0
        %1135 = vmatprep.subr.bf16.mxu0 %v871
        %1136 = vmatpush1.bf16.msra.mxu0 %v870
        %1137 = vmatprep.subr.bf16.mxu0 %v873
        %1138 = vmatpush1.bf16.msra.mxu0 %v872
        %1139 = vmatprep.subr.bf16.mxu0 %v875
        %1140 = vmatpush1.bf16.msra.mxu0 %v874
        %1141 = vmatprep.subr.bf16.mxu0 %v877
        %1142 = vmatpush1.bf16.msra.mxu0 %v876
        %1143 = vmatprep.subr.bf16.mxu0 %v879
        %1144 = vmatpush1.bf16.msra.mxu0 %v878
        %1145 = vmatprep.subr.bf16.mxu0 %v881
        %1146 = vmatpush1.bf16.msra.mxu0 %v880
        %1147 = vmatprep.subr.bf16.mxu0 %v883
        %1148 = vmatpush1.bf16.msra.mxu0 %v882
        %1149 = vmatprep.subr.bf16.mxu0 %v885
        %1150 = vmatpush1.bf16.msra.mxu0 %v884
        %1151 = vmatprep.subr.bf16.mxu0 %v887
        %1152 = vmatpush1.bf16.msra.mxu0 %v886
        %1153 = vmatprep.subr.bf16.mxu0 %v889
        %1154 = vmatpush1.bf16.msra.mxu0 %v888
        %1155 = vmatprep.subr.bf16.mxu0 %v891
        %1156 = vmatpush1.bf16.msra.mxu0 %v890
        %1157 = vmatprep.subr.bf16.mxu0 %v893
        %1158 = vmatpush1.bf16.msra.mxu0 %v892
        %1159 = vmatprep.subr.bf16.mxu0 %v895
        %1160 = vmatpush1.bf16.msra.mxu0 %v894
        %1161 = vmatprep.subr.bf16.mxu0 %v897
        %1162 = vmatpush1.bf16.msra.mxu0 %v896
        %1163 = vmatprep.subr.bf16.mxu0 %v899
        %1164 = vmatpush1.bf16.msra.mxu0 %v898
        %1165 = vmatprep.subr.bf16.mxu0 %v901
        %1166 = vmatpush1.bf16.msra.mxu0 %v900
        %1167 = vmatprep.mubr.bf16.mxu0 %v441
        %1168 = vmatmul.mubr.bf16.gmra.mrb[0].mxu0 %v440
        %v1169 = vpop.f32.mrb[0].mxu0
        %v1170 = vadd.f32 %v1129, %v1169
        %v1171 = vpop.f32.mrb[0].mxu0
        %v1172 = vadd.f32 %v1131, %v1171
        %v1173 = vpop.f32.mrb[0].mxu0
        %v1174 = vpop.f32.mrb[0].mxu0
        %1175 = vdwg.mxu0
        %1176 = vmatprep.subr.bf16.mxu0 %v903
        %1177 = vmatpush1.bf16.msra.mxu0 %v902
        %1178 = vmatprep.subr.bf16.mxu0 %v905
        %1179 = vmatpush1.bf16.msra.mxu0 %v904
        %1180 = vmatprep.subr.bf16.mxu0 %v907
        %1181 = vmatpush1.bf16.msra.mxu0 %v906
        %1182 = vmatprep.subr.bf16.mxu0 %v909
        %1183 = vmatpush1.bf16.msra.mxu0 %v908
        %1184 = vmatprep.subr.bf16.mxu0 %v911
        %1185 = vmatpush1.bf16.msra.mxu0 %v910
        %1186 = vmatprep.subr.bf16.mxu0 %v913
        %1187 = vmatpush1.bf16.msra.mxu0 %v912
        %1188 = vmatprep.subr.bf16.mxu0 %v915
        %1189 = vmatpush1.bf16.msra.mxu0 %v914
        %1190 = vmatprep.subr.bf16.mxu0 %v917
        %1191 = vmatpush1.bf16.msra.mxu0 %v916
        %1192 = vmatprep.subr.bf16.mxu0 %v919
        %1193 = vmatpush1.bf16.msra.mxu0 %v918
        %1194 = vmatprep.subr.bf16.mxu0 %v921
        %1195 = vmatpush1.bf16.msra.mxu0 %v920
        %1196 = vmatprep.subr.bf16.mxu0 %v923
        %1197 = vmatpush1.bf16.msra.mxu0 %v922
        %1198 = vmatprep.subr.bf16.mxu0 %v925
        %1199 = vmatpush1.bf16.msra.mxu0 %v924
        %1200 = vmatprep.subr.bf16.mxu0 %v927
        %1201 = vmatpush1.bf16.msra.mxu0 %v926
        %1202 = vmatprep.subr.bf16.mxu0 %v929
        %1203 = vmatpush1.bf16.msra.mxu0 %v928
        %1204 = vmatprep.subr.bf16.mxu0 %v931
        %1205 = vmatpush1.bf16.msra.mxu0 %v930
        %1206 = vmatprep.subr.bf16.mxu0 %v933
        %1207 = vmatpush1.bf16.msra.mxu0 %v932
        %1208 = vmatprep.mubr.bf16.mxu0 %v443
        %1209 = vmatmul.mubr.bf16.gmra.mrb[0].mxu0 %v442
        %v1210 = vpop.f32.mrb[0].mxu0
        %v1211 = vadd.f32 %v1170, %v1210
        %v1212 = vpop.f32.mrb[0].mxu0
        %v1213 = vadd.f32 %v1172, %v1212
        %v1214 = vpop.f32.mrb[0].mxu0
        %v1215 = vpop.f32.mrb[0].mxu0
        %1216 = vdwg.mxu0
        %1217 = vmatprep.subr.bf16.mxu0 %v935
        %1218 = vmatpush1.bf16.msra.mxu0 %v934
        %1219 = vmatprep.subr.bf16.mxu0 %v937
        %1220 = vmatpush1.bf16.msra.mxu0 %v936
        %1221 = vmatprep.subr.bf16.mxu0 %v939
        %1222 = vmatpush1.bf16.msra.mxu0 %v938
        %1223 = vmatprep.subr.bf16.mxu0 %v941
        %1224 = vmatpush1.bf16.msra.mxu0 %v940
        %1225 = vmatprep.subr.bf16.mxu0 %v943
        %1226 = vmatpush1.bf16.msra.mxu0 %v942
        %1227 = vmatprep.subr.bf16.mxu0 %v945
        %1228 = vmatpush1.bf16.msra.mxu0 %v944
        %1229 = vmatprep.subr.bf16.mxu0 %v947
        %1230 = vmatpush1.bf16.msra.mxu0 %v946
        %1231 = vmatprep.subr.bf16.mxu0 %v949
        %1232 = vmatpush1.bf16.msra.mxu0 %v948
        %1233 = vmatprep.subr.bf16.mxu0 %v951
        %1234 = vmatpush1.bf16.msra.mxu0 %v950
        %1235 = vmatprep.subr.bf16.mxu0 %v953
        %1236 = vmatpush1.bf16.msra.mxu0 %v952
        %1237 = vmatprep.subr.bf16.mxu0 %v955
        %1238 = vmatpush1.bf16.msra.mxu0 %v954
        %1239 = vmatprep.subr.bf16.mxu0 %v957
        %1240 = vmatpush1.bf16.msra.mxu0 %v956
        %1241 = vmatprep.subr.bf16.mxu0 %v959
        %1242 = vmatpush1.bf16.msra.mxu0 %v958
        %1243 = vmatprep.subr.bf16.mxu0 %v961
        %1244 = vmatpush1.bf16.msra.mxu0 %v960
        %1245 = vmatprep.subr.bf16.mxu0 %v963
        %1246 = vmatpush1.bf16.msra.mxu0 %v962
        %1247 = vmatprep.subr.bf16.mxu0 %v965
        %1248 = vmatpush1.bf16.msra.mxu0 %v964
        %1249 = vmatprep.mubr.bf16.mxu0 %v445
        %1250 = vmatmul.mubr.bf16.gmra.mrb[0].mxu0 %v444
        %v1251 = vpop.f32.mrb[0].mxu0
        %v1252 = vadd.f32 %v1211, %v1251
        %v1253 = vpop.f32.mrb[0].mxu0
        %v1254 = vadd.f32 %v1213, %v1253
        %v1255 = vpop.f32.mrb[0].mxu0
        %v1256 = vpop.f32.mrb[0].mxu0
        %1257 = vdwg.mxu0
        %v1258 = vadd.f32 %v292, %v1252
        %v1259 = vadd.f32 %v293, %v1254
        %1260 = vst [vmem:[%s284] sm:$0xff] %v1258
        %1261 = vst [vmem:[%s284 + $0x8] sm:$0xff] %v1259
        %p1262 = scmp.eq.s32.totalorder %s24, 12
        // Predicated region
        $region41: #{conv1d_base_net_forward.14} parent=31 // pred_check
          %p1263 = pneg %p1262
        $region42: #{conv1d_base_net_forward.14} parent=31 // pred_check_branch
          %1265 = sbr.rel (%p1263) target = $region44
        $region43: #{conv1d_base_net_forward.14} parent=31 // pred_region
          %v1266 = vld [vmem:[%s284] sm:$0xff]
          %v1267 = vld [vmem:[%s284 + $0x8] sm:$0xff]
          %v1268 = vld [vmem:[%s274] ss:$4 sm:$0x3]
          %v1270 = vlaneseq
          %v1271 = vshrl.u32 %v1270, 7
          %v1272 = vsub.s32 0, %v1271
          %v1273 = vrot.slane %v1268, %v1272
          %v1274 = vlaneseq
          %v1275 = vshrl.u32 %v1274, 7
          %v1276 = vsub.s32 1, %v1275
          %v1277 = vrot.slane %v1268, %v1276
          %v1280 = vadd.f32 %v1266, %v1273
          %v1281 = vadd.f32 %v1267, %v1277
          %v1282 = vxor.u32 %v1280, 2147483648
          %v1283 = vxor.u32 %v1281, 2147483648
          %v1284 = vmul.f32 %v1282, 1.442695
          %v1285 = vpow.pop %v1284
          %v1286 = vmul.f32 %v1283, 1.442695
          %v1287 = vpow.pop %v1286
          %v1288 = vadd.f32 %v1285, 1.0
          %v1289 = vadd.f32 %v1287, 1.0
          %v1290 = vrcp.pop %v1288
          %v1291 = vmul.f32 1.0, %v1290
          %v1292 = vrcp.pop %v1289
          %v1293 = vmul.f32 1.0, %v1292
          %s1294 = scalar_lea.vmem %s274, 1
          %v1295 = vld [vmem:[%s1294] ss:$4 sm:$0x3]
          %v1297 = vlaneseq
          %v1298 = vshrl.u32 %v1297, 7
          %v1299 = vsub.s32 0, %v1298
          %v1300 = vrot.slane %v1295, %v1299
          %v1301 = vlaneseq
          %v1302 = vshrl.u32 %v1301, 7
          %v1303 = vsub.s32 1, %v1302
          %v1304 = vrot.slane %v1295, %v1303
          %v1307 = vmul.f32 %v1291, %v1300
          %v1308 = vmul.f32 %v1293, %v1304
          %s1309 = scalar_lea.vmem %s274, 2
          %v1310 = vld [vmem:[%s1309] ss:$4 sm:$0x3]
          %v1312 = vlaneseq
          %v1313 = vshrl.u32 %v1312, 7
          %v1314 = vsub.s32 0, %v1313
          %v1315 = vrot.slane %v1310, %v1314
          %v1316 = vlaneseq
          %v1317 = vshrl.u32 %v1316, 7
          %v1318 = vsub.s32 1, %v1317
          %v1319 = vrot.slane %v1310, %v1318
          %v1322 = vadd.f32 %v1307, %v1315
          %v1323 = vadd.f32 %v1308, %v1319
          %1324 = vst [vmem:[%s284] sm:$0xff] %v1322
          %1325 = vst [vmem:[%s284 + $0x8] sm:$0xff] %v1323
        $region44: #{conv1d_base_net_forward.14} parent=31 // pred_fallthru
          _
        %s1326 = smul.u32 2, %s23
        %p1327 = scmp.lt.s32.totalorder %s22, 0
        %s1328 = scalar_select %p1327, %s22, 0
        %p1329 = scmp.lt.s32.totalorder %s1326, 15
        %s1330 = scalar_select %p1329, %s1326, 15
        %s1331 = smul.addr %s1328, 16
        %s1332 = sadd.s32 %s1330, %s1331
        %s1333 = smul.addr %s1332, 8
        %s1334 = scalar_lea.vmem %s3, %s1333
        // Predicated region
        $region45: #{conv1d_base_net_forward.14} parent=31 // pred_check
          %p1335 = pneg %p138
        $region46: #{conv1d_base_net_forward.14} parent=31 // pred_check_branch
          %1337 = sbr.rel (%p1335) target = $region48
        $region47: #{conv1d_base_net_forward.14} parent=31 // pred_region
          %s1338 = smul.u32 2, %s23
        $region48: #{conv1d_base_net_forward.14} parent=31 // pred_fallthru
          _
      $region32: #{conv1d_base_net_forward.14} parent=5 // pred_fallthru
        _
      %p1339 = scmp.le.s32.totalorder 2, %s12
      // Predicated region
      $region49: #{conv1d_base_net_forward.14} parent=5 // pred_check
        %p1340 = pneg %p1339
      $region50: #{conv1d_base_net_forward.14} parent=5 // pred_check_branch
        %1342 = sbr.rel (%p1340) target = $region52
      $region51: #{conv1d_base_net_forward.14} parent=5 // pred_region
        %s1343 = ssub.s32 %s12, 2
        // Predicated region
        $region53: #{conv1d_base_net_forward.14} parent=51 // pred_check
          %p1344 = pneg %p144
        $region54: #{conv1d_base_net_forward.14} parent=51 // pred_check_branch
          %1346 = sbr.rel (%p1344) target = $region56
        $region55: #{conv1d_base_net_forward.14} parent=51 // pred_region
          %s1347 = smul.u32 2, %s26
          %p1348 = scmp.lt.s32.totalorder %s25, 0
          %s1349 = scalar_select %p1348, %s25, 0
          %p1350 = scmp.lt.s32.totalorder %s1347, 15
          %s1351 = scalar_select %p1350, %s1347, 15
          %s1352 = smul.addr %s1349, 16
          %s1353 = sadd.s32 %s1351, %s1352
          %s1354 = smul.addr %s1353, 8
          %s1355 = scalar_lea.vmem %s3, %s1354
        $region56: #{conv1d_base_net_forward.14} parent=51 // pred_fallthru
          _
      $region52: #{conv1d_base_net_forward.14} parent=5 // pred_fallthru
        _
    $region6: #{conv1d_base_net_forward.14} parent=1 // loop_footer
      %s16 = sadd.s32 1, %s12
    $region7: #{conv1d_base_net_forward.14} parent=1 // loop_footer_branch
      %11 = sbr.rel target = $region3
    $region8: #{conv1d_base_net_forward.14} parent=1 // loop_exit
      _
    %1356 = vsyncpa [#allocation3], 1
    %s1357 = scalar_lea.sflag [#allocation3], 1
    %1358 = vsyncpa %s1357, 1

// kernel: conv1d_base_net_forward.15
$region0: #{conv1d_base_net_forward.15}
  #allocation0 [shape = 'u32[]', space=smem, size = 0x4, offset = 0x4, fixed_abs, tag = 'smem constant byte address 0x4 - core index']
  #allocation1 [shape = 'u32[144,128]{1,0:T(1,128)}', space=vmem, size = 0x12000, scoped, tag = 'internal scratch']
  %s0 = inlined_call_operand.vmem [shape: bf16[8,2048], index: 0, kind: input, shape index: {}]
  %s1 = inlined_call_operand.vmem [shape: bf16[2048,128], index: 1, kind: input, shape index: {}]
  %s2 = inlined_call_operand.vmem [shape: f32[3,128], index: 2, kind: input, shape index: {}]
  %s3 = inlined_call_operand.vmem [shape: f32[8,128], index: 3, kind: output, shape index: {}]
  %s4 = sld [smem:[#allocation0]]
  $region53: #{conv1d_base_net_forward.15} parent=0
    _
  %s6 = ssub.s32 1, %s4
  %s7 = scalar_select 0, %s6, %s4
  loop: start=0, step=1, limit=4
  $region2: #{conv1d_base_net_forward.15} parent=0 // loop_pre_header
    _
  $region3: #{conv1d_base_net_forward.15} parent=0 // loop_header
    %s9 = sphi 0, %s13
    %p10 = scmp.ge.s32.totalorder %s9, 4
    %s16 = sphi 0, %s35
    %s17 = sphi 0, %s31
    %s18 = sphi 0, %s27
    %s19 = sphi 0, %s16
    %s20 = sphi 0, %s17
    %s21 = sphi 0, %s18
    %s22 = sphi 0, %s19
    %s23 = sphi 0, %s20
    %s24 = sphi 0, %s21
    %s40 = sphi 0, %s42
    %s43 = sphi 0, %s40
    %s44 = sphi 0, %s43
    %s60 = sphi 0, %s44
    %s68 = sphi 0, %s70
    %s71 = sphi 0, %s68
    %s72 = sphi 0, %s71
    %s88 = sphi 0, %s72
    %s94 = sphi 0, %s96
    %s97 = sphi 0, %s94
    %s98 = sphi 0, %s97
    %s114 = sphi 0, %s98
    %s122 = sphi 0, %s124
    %s125 = sphi 0, %s122
    %s126 = sphi 0, %s125
    %s142 = sphi 0, %s126
  $region4: #{conv1d_base_net_forward.15} parent=0 // loop_header_branch
    %12 = sbr.rel (%p10) target = $region8
  $region5: #{conv1d_base_net_forward.15} parent=0 // loop_body
    %s14 = ssub.s32 %s9, 1
    %s15 = ssub.s32 %s9, 2
    %s25 = sadd.s32 1, %s18
    %p26 = scmp.ge.s32.totalorder %s25, 2
    %s27 = scalar_select %p26, 0, %s25
    %s28 = sadd.s32 1, %s17
    %s29 = scalar_select %p26, %s28, %s17
    %p30 = scmp.ge.s32.totalorder %s29, 1
    %s31 = scalar_select %p30, 0, %s29
    %s32 = sadd.s32 1, %s16
    %s33 = scalar_select %p30, %s32, %s16
    %p34 = scmp.ge.s32.totalorder %s33, 1
    %s35 = scalar_select %p34, 0, %s33
    %s36 = ssub.s32 %s16, %s35
    %s37 = ssub.s32 %s18, %s27
    %s38 = sor.u32 %s36, %s37
    %p39 = scmp.eq.s32.totalorder %s38, 0
    %s41 = sadd.s32 %s40, 1
    %s42 = scalar_select %p39, %s40, %s41
    %p45 = pneg %p39
    %p46 = scmp.eq.s32.totalorder %s9, 1
    %p47 = por %p45, %p46
    %p48 = scmp.ne.s32.totalorder %s40, %s43
    %p49 = scmp.eq.s32.totalorder %s9, 0
    %p50 = por %p48, %p49
    %p51 = scmp.ne.s32.totalorder %s40, %s43
    %p52 = scmp.eq.s32.totalorder %s14, 1
    %p53 = por %p51, %p52
    %p54 = scmp.ne.s32.totalorder %s43, %s44
    %p55 = scmp.eq.s32.totalorder %s14, 0
    %p56 = por %p54, %p55
    %p57 = scmp.ne.s32.totalorder %s43, %s44
    %p58 = scmp.eq.s32.totalorder %s15, 1
    %p59 = por %p57, %p58
    %p61 = scmp.ne.s32.totalorder %s44, %s60
    %p62 = scmp.eq.s32.totalorder %s15, 0
    %p63 = por %p61, %p62
    %s64 = ssub.s32 %s18, %s27
    %s65 = ssub.s32 %s17, %s31
    %s66 = sor.u32 %s64, %s65
    %p67 = scmp.eq.s32.totalorder %s66, 0
    %s69 = sadd.s32 %s68, 1
    %s70 = scalar_select %p67, %s68, %s69
    %p73 = pneg %p67
    %p74 = scmp.eq.s32.totalorder %s9, 1
    %p75 = por %p73, %p74
    %p76 = scmp.ne.s32.totalorder %s68, %s71
    %p77 = scmp.eq.s32.totalorder %s9, 0
    %p78 = por %p76, %p77
    %p79 = scmp.ne.s32.totalorder %s68, %s71
    %p80 = scmp.eq.s32.totalorder %s14, 1
    %p81 = por %p79, %p80
    %p82 = scmp.ne.s32.totalorder %s71, %s72
    %p83 = scmp.eq.s32.totalorder %s14, 0
    %p84 = por %p82, %p83
    %p85 = scmp.ne.s32.totalorder %s71, %s72
    %p86 = scmp.eq.s32.totalorder %s15, 1
    %p87 = por %p85, %p86
    %p89 = scmp.ne.s32.totalorder %s72, %s88
    %p90 = scmp.eq.s32.totalorder %s15, 0
    %p91 = por %p89, %p90
    %s92 = ssub.s32 %s17, %s31
    %p93 = scmp.eq.s32.totalorder %s92, 0
    %s95 = sadd.s32 %s94, 1
    %s96 = scalar_select %p93, %s94, %s95
    %p99 = pneg %p93
    %p100 = scmp.eq.s32.totalorder %s9, 1
    %p101 = por %p99, %p100
    %p102 = scmp.ne.s32.totalorder %s94, %s97
    %p103 = scmp.eq.s32.totalorder %s9, 0
    %p104 = por %p102, %p103
    %p105 = scmp.ne.s32.totalorder %s94, %s97
    %p106 = scmp.eq.s32.totalorder %s14, 1
    %p107 = por %p105, %p106
    %p108 = scmp.ne.s32.totalorder %s97, %s98
    %p109 = scmp.eq.s32.totalorder %s14, 0
    %p110 = por %p108, %p109
    %p111 = scmp.ne.s32.totalorder %s97, %s98
    %p112 = scmp.eq.s32.totalorder %s15, 1
    %p113 = por %p111, %p112
    %p115 = scmp.ne.s32.totalorder %s98, %s114
    %p116 = scmp.eq.s32.totalorder %s15, 0
    %p117 = por %p115, %p116
    %s118 = ssub.s32 %s16, %s35
    %s119 = ssub.s32 %s17, %s31
    %s120 = sor.u32 %s118, %s119
    %p121 = scmp.eq.s32.totalorder %s120, 0
    %s123 = sadd.s32 %s122, 1
    %s124 = scalar_select %p121, %s122, %s123
    %p127 = pneg %p121
    %p128 = scmp.eq.s32.totalorder %s9, 1
    %p129 = por %p127, %p128
    %p130 = scmp.ne.s32.totalorder %s122, %s125
    %p131 = scmp.eq.s32.totalorder %s9, 0
    %p132 = por %p130, %p131
    %p133 = scmp.ne.s32.totalorder %s122, %s125
    %p134 = scmp.eq.s32.totalorder %s14, 1
    %p135 = por %p133, %p134
    %p136 = scmp.ne.s32.totalorder %s125, %s126
    %p137 = scmp.eq.s32.totalorder %s14, 0
    %p138 = por %p136, %p137
    %p139 = scmp.ne.s32.totalorder %s125, %s126
    %p140 = scmp.eq.s32.totalorder %s15, 1
    %p141 = por %p139, %p140
    %p143 = scmp.ne.s32.totalorder %s126, %s142
    %p144 = scmp.eq.s32.totalorder %s15, 0
    %p145 = por %p143, %p144
    %p146 = scmp.le.s32.totalorder 1, %s9
    %p147 = scmp.lt.s32.totalorder %s9, 3
    %p148 = pnand %p146, %p147
    %p149 = pneg %p148
    // Predicated region
    $region9: #{conv1d_base_net_forward.15} parent=5 // pred_check
      _
    $region10: #{conv1d_base_net_forward.15} parent=5 // pred_check_branch
      %151 = sbr.rel (%p148) target = $region12
    $region11: #{conv1d_base_net_forward.15} parent=5 // pred_region
      %s152 = ssub.s32 %s9, 1
      // Predicated region
      $region13: #{conv1d_base_net_forward.15} parent=11 // pred_check
        %p153 = pneg %p110
      $region14: #{conv1d_base_net_forward.15} parent=11 // pred_check_branch
        %155 = sbr.rel (%p153) target = $region16
      $region15: #{conv1d_base_net_forward.15} parent=11 // pred_region
        %p156 = scmp.lt.s32.totalorder %s20, 0
        %s157 = scalar_select %p156, %s20, 0
        %s158 = smul.addr %s157, 4
        %s159 = scalar_lea.vmem %s2, %s158
      $region16: #{conv1d_base_net_forward.15} parent=11 // pred_fallthru
        _
    $region12: #{conv1d_base_net_forward.15} parent=5 // pred_fallthru
      _
    %p160 = scmp.lt.s32.totalorder %s9, 2
    // Predicated region
    $region17: #{conv1d_base_net_forward.15} parent=5 // pred_check
      %p161 = pneg %p160
    $region18: #{conv1d_base_net_forward.15} parent=5 // pred_check_branch
      %163 = sbr.rel (%p161) target = $region20
    $region19: #{conv1d_base_net_forward.15} parent=5 // pred_region
      // Predicated region
      $region21: #{conv1d_base_net_forward.15} parent=19 // pred_check
        %p164 = pneg %p50
      $region22: #{conv1d_base_net_forward.15} parent=19 // pred_check_branch
        %166 = sbr.rel (%p164) target = $region24
      $region23: #{conv1d_base_net_forward.15} parent=19 // pred_region
        %s167 = smul.u32 8, %s18
        %p168 = scmp.lt.s32.totalorder %s16, 0
        %s169 = scalar_select %p168, %s16, 0
        %p170 = scmp.lt.s32.totalorder %s167, 15
        %s171 = scalar_select %p170, %s167, 15
        %s172 = smul.addr %s169, 16
        %s173 = sadd.s32 %s171, %s172
        %s174 = smul.addr %s173, 4
        %s175 = scalar_lea.vmem %s0, %s174
        %s176 = smul.u32 8, %s18
      $region24: #{conv1d_base_net_forward.15} parent=19 // pred_fallthru
        _
      // Predicated region
      $region25: #{conv1d_base_net_forward.15} parent=19 // pred_check
        %p177 = pneg %p78
      $region26: #{conv1d_base_net_forward.15} parent=19 // pred_check_branch
        %179 = sbr.rel (%p177) target = $region28
      $region27: #{conv1d_base_net_forward.15} parent=19 // pred_region
        %s180 = smul.u32 128, %s18
        %p181 = scmp.lt.s32.totalorder %s180, 255
        %s182 = scalar_select %p181, %s180, 255
        %p183 = scmp.lt.s32.totalorder %s17, 0
        %s184 = scalar_select %p183, %s17, 0
        %s185 = sadd.s32 %s184, %s182
        %s186 = smul.addr %s185, 4
        %s187 = scalar_lea.vmem %s1, %s186
        %s188 = smul.u32 128, %s18
      $region28: #{conv1d_base_net_forward.15} parent=19 // pred_fallthru
        _
    $region20: #{conv1d_base_net_forward.15} parent=5 // pred_fallthru
      _
    %p189 = scmp.le.s32.totalorder 1, %s9
    %p190 = scmp.lt.s32.totalorder %s9, 3
    %p191 = pnand %p189, %p190
    %p192 = pneg %p191
    // Predicated region
    $region29: #{conv1d_base_net_forward.15} parent=5 // pred_check
      _
    $region30: #{conv1d_base_net_forward.15} parent=5 // pred_check_branch
      %194 = sbr.rel (%p191) target = $region32
    $region31: #{conv1d_base_net_forward.15} parent=5 // pred_region
      %s195 = ssub.s32 %s9, 1
      %s196 = smul.u32 8, %s21
      %p197 = scmp.lt.s32.totalorder %s19, 0
      %s198 = scalar_select %p197, %s19, 0
      %p199 = scmp.lt.s32.totalorder %s196, 15
      %s200 = scalar_select %p199, %s196, 15
      %s201 = smul.addr %s198, 16
      %s202 = sadd.s32 %s200, %s201
      %s203 = smul.addr %s202, 4
      %s204 = scalar_lea.vmem %s0, %s203
      %p205 = pneg %p56
      %p206 = pneg %p53
      %s207 = smul.u32 128, %s21
      %p208 = scmp.lt.s32.totalorder %s207, 255
      %s209 = scalar_select %p208, %s207, 255
      %p210 = scmp.lt.s32.totalorder %s20, 0
      %s211 = scalar_select %p210, %s20, 0
      %s212 = sadd.s32 %s211, %s209
      %s213 = smul.addr %s212, 4
      %s214 = scalar_lea.vmem %s1, %s213
      %p215 = pneg %p84
      %p216 = pneg %p81
      %p217 = scmp.lt.s32.totalorder %s20, 0
      %s218 = scalar_select %p217, %s20, 0
      %s219 = smul.addr %s218, 4
      %s220 = scalar_lea.vmem %s2, %s219
      %p221 = pneg %p110
      %p222 = pneg %p107
      %p223 = pneg %p138
      %p224 = pneg %p135
      %p225 = scmp.lt.s32.totalorder %s19, 0
      %s226 = scalar_select %p225, %s19, 0
      %p227 = scmp.lt.s32.totalorder %s20, 0
      %s228 = scalar_select %p227, %s20, 0
      %s229 = sadd.s32 %s228, %s226
      %s230 = smul.addr %s229, 8
      %s231 = scalar_lea.vmem %s3, %s230
      %s232 = smul.u32 8, %s21
      %p233 = scmp.lt.s32.totalorder %s19, 0
      %s234 = scalar_select %p233, %s19, 0
      %p235 = scmp.lt.s32.totalorder %s232, 15
      %s236 = scalar_select %p235, %s232, 15
      %s237 = smul.addr %s234, 16
      %s238 = sadd.s32 %s236, %s237
      %s239 = smul.addr %s238, 4
      %s240 = scalar_lea.vmem %s0, %s239
      %s241 = smul.u32 8, %s21
      %s242 = smul.u32 128, %s21
      %p243 = scmp.lt.s32.totalorder %s242, 255
      %s244 = scalar_select %p243, %s242, 255
      %p245 = scmp.lt.s32.totalorder %s20, 0
      %s246 = scalar_select %p245, %s20, 0
      %s247 = sadd.s32 %s246, %s244
      %s248 = smul.addr %s247, 4
      %s249 = scalar_lea.vmem %s1, %s248
      %s250 = smul.u32 128, %s21
      %p251 = scmp.lt.s32.totalorder %s20, 0
      %s252 = scalar_select %p251, %s20, 0
      %s253 = smul.addr %s252, 4
      %s254 = scalar_lea.vmem %s2, %s253
      %p255 = scmp.lt.s32.totalorder %s19, 0
      %s256 = scalar_select %p255, %s19, 0
      %p257 = scmp.lt.s32.totalorder %s20, 0
      %s258 = scalar_select %p257, %s20, 0
      %s259 = sadd.s32 %s258, %s256
      %s260 = smul.addr %s259, 8
      %s261 = scalar_lea.vmem %s3, %s260
      %p263 = scmp.eq.s32.totalorder %s21, 0
      // Predicated region
      $region33: #{conv1d_base_net_forward.15} parent=31 // pred_check
        %p264 = pneg %p263
      $region34: #{conv1d_base_net_forward.15} parent=31 // pred_check_branch
        %266 = sbr.rel (%p264) target = $region36
      $region35: #{conv1d_base_net_forward.15} parent=31 // pred_region
        %267 = vst [vmem:[%s261] sm:$0xff] 0.0
      $region36: #{conv1d_base_net_forward.15} parent=31 // pred_fallthru
        _
      %v268 = vld [vmem:[%s261] sm:$0xff]
      %v269 = vld [vmem:[%s240] sm:$0xff]
      %v270 = vld [vmem:[%s240 + $0x8] sm:$0xff]
      %v271 = vld [vmem:[%s240 + $0x10] sm:$0xff]
      %v272 = vld [vmem:[%s240 + $0x18] sm:$0xff]
      %v273 = vld [vmem:[%s249] sm:$0xf]
      %v274 = vld [vmem:[%s249 + $0x4] sm:$0xf]
      %v275 = vld [vmem:[%s249 + $0x8] sm:$0xf]
      %v276 = vld [vmem:[%s249 + $0xc] sm:$0xf]
      %v277 = vld [vmem:[%s249 + $0x10] sm:$0xf]
      %v278 = vld [vmem:[%s249 + $0x14] sm:$0xf]
      %v279 = vld [vmem:[%s249 + $0x18] sm:$0xf]
      %v280 = vld [vmem:[%s249 + $0x1c] sm:$0xf]
      %v281 = vld [vmem:[%s249 + $0x20] sm:$0xf]
      %v282 = vld [vmem:[%s249 + $0x24] sm:$0xf]
      %v283 = vld [vmem:[%s249 + $0x28] sm:$0xf]
      %v284 = vld [vmem:[%s249 + $0x2c] sm:$0xf]
      %v285 = vld [vmem:[%s249 + $0x30] sm:$0xf]
      %v286 = vld [vmem:[%s249 + $0x34] sm:$0xf]
      %v287 = vld [vmem:[%s249 + $0x38] sm:$0xf]
      %v288 = vld [vmem:[%s249 + $0x3c] sm:$0xf]
      %v289 = vld [vmem:[%s249 + $0x40] sm:$0xf]
      %v290 = vld [vmem:[%s249 + $0x44] sm:$0xf]
      %v291 = vld [vmem:[%s249 + $0x48] sm:$0xf]
      %v292 = vld [vmem:[%s249 + $0x4c] sm:$0xf]
      %v293 = vld [vmem:[%s249 + $0x50] sm:$0xf]
      %v294 = vld [vmem:[%s249 + $0x54] sm:$0xf]
      %v295 = vld [vmem:[%s249 + $0x58] sm:$0xf]
      %v296 = vld [vmem:[%s249 + $0x5c] sm:$0xf]
      %v297 = vld [vmem:[%s249 + $0x60] sm:$0xf]
      %v298 = vld [vmem:[%s249 + $0x64] sm:$0xf]
      %v299 = vld [vmem:[%s249 + $0x68] sm:$0xf]
      %v300 = vld [vmem:[%s249 + $0x6c] sm:$0xf]
      %v301 = vld [vmem:[%s249 + $0x70] sm:$0xf]
      %v302 = vld [vmem:[%s249 + $0x74] sm:$0xf]
      %v303 = vld [vmem:[%s249 + $0x78] sm:$0xf]
      %v304 = vld [vmem:[%s249 + $0x7c] sm:$0xf]
      %v305 = vld [vmem:[%s249 + $0x80] sm:$0xf]
      %v306 = vld [vmem:[%s249 + $0x84] sm:$0xf]
      %v307 = vld [vmem:[%s249 + $0x88] sm:$0xf]
      %v308 = vld [vmem:[%s249 + $0x8c] sm:$0xf]
      %v309 = vld [vmem:[%s249 + $0x90] sm:$0xf]
      %v310 = vld [vmem:[%s249 + $0x94] sm:$0xf]
      %v311 = vld [vmem:[%s249 + $0x98] sm:$0xf]
      %v312 = vld [vmem:[%s249 + $0x9c] sm:$0xf]
      %v313 = vld [vmem:[%s249 + $0xa0] sm:$0xf]
      %v314 = vld [vmem:[%s249 + $0xa4] sm:$0xf]
      %v315 = vld [vmem:[%s249 + $0xa8] sm:$0xf]
      %v316 = vld [vmem:[%s249 + $0xac] sm:$0xf]
      %v317 = vld [vmem:[%s249 + $0xb0] sm:$0xf]
      %v318 = vld [vmem:[%s249 + $0xb4] sm:$0xf]
      %v319 = vld [vmem:[%s249 + $0xb8] sm:$0xf]
      %v320 = vld [vmem:[%s249 + $0xbc] sm:$0xf]
      %v321 = vld [vmem:[%s249 + $0xc0] sm:$0xf]
      %v322 = vld [vmem:[%s249 + $0xc4] sm:$0xf]
      %v323 = vld [vmem:[%s249 + $0xc8] sm:$0xf]
      %v324 = vld [vmem:[%s249 + $0xcc] sm:$0xf]
      %v325 = vld [vmem:[%s249 + $0xd0] sm:$0xf]
      %v326 = vld [vmem:[%s249 + $0xd4] sm:$0xf]
      %v327 = vld [vmem:[%s249 + $0xd8] sm:$0xf]
      %v328 = vld [vmem:[%s249 + $0xdc] sm:$0xf]
      %v329 = vld [vmem:[%s249 + $0xe0] sm:$0xf]
      %v330 = vld [vmem:[%s249 + $0xe4] sm:$0xf]
      %v331 = vld [vmem:[%s249 + $0xe8] sm:$0xf]
      %v332 = vld [vmem:[%s249 + $0xec] sm:$0xf]
      %v333 = vld [vmem:[%s249 + $0xf0] sm:$0xf]
      %v334 = vld [vmem:[%s249 + $0xf4] sm:$0xf]
      %v335 = vld [vmem:[%s249 + $0xf8] sm:$0xf]
      %v336 = vld [vmem:[%s249 + $0xfc] sm:$0xf]
      %v337 = vld [vmem:[%s249 + $0x100] sm:$0xf]
      %v338 = vld [vmem:[%s249 + $0x104] sm:$0xf]
      %v339 = vld [vmem:[%s249 + $0x108] sm:$0xf]
      %v340 = vld [vmem:[%s249 + $0x10c] sm:$0xf]
      %v341 = vld [vmem:[%s249 + $0x110] sm:$0xf]
      %v342 = vld [vmem:[%s249 + $0x114] sm:$0xf]
      %v343 = vld [vmem:[%s249 + $0x118] sm:$0xf]
      %v344 = vld [vmem:[%s249 + $0x11c] sm:$0xf]
      %v345 = vld [vmem:[%s249 + $0x120] sm:$0xf]
      %v346 = vld [vmem:[%s249 + $0x124] sm:$0xf]
      %v347 = vld [vmem:[%s249 + $0x128] sm:$0xf]
      %v348 = vld [vmem:[%s249 + $0x12c] sm:$0xf]
      %v349 = vld [vmem:[%s249 + $0x130] sm:$0xf]
      %v350 = vld [vmem:[%s249 + $0x134] sm:$0xf]
      %v351 = vld [vmem:[%s249 + $0x138] sm:$0xf]
      %v352 = vld [vmem:[%s249 + $0x13c] sm:$0xf]
      %v353 = vld [vmem:[%s249 + $0x140] sm:$0xf]
      %v354 = vld [vmem:[%s249 + $0x144] sm:$0xf]
      %v355 = vld [vmem:[%s249 + $0x148] sm:$0xf]
      %v356 = vld [vmem:[%s249 + $0x14c] sm:$0xf]
      %v357 = vld [vmem:[%s249 + $0x150] sm:$0xf]
      %v358 = vld [vmem:[%s249 + $0x154] sm:$0xf]
      %v359 = vld [vmem:[%s249 + $0x158] sm:$0xf]
      %v360 = vld [vmem:[%s249 + $0x15c] sm:$0xf]
      %v361 = vld [vmem:[%s249 + $0x160] sm:$0xf]
      %v362 = vld [vmem:[%s249 + $0x164] sm:$0xf]
      %v363 = vld [vmem:[%s249 + $0x168] sm:$0xf]
      %v364 = vld [vmem:[%s249 + $0x16c] sm:$0xf]
      %v365 = vld [vmem:[%s249 + $0x170] sm:$0xf]
      %v366 = vld [vmem:[%s249 + $0x174] sm:$0xf]
      %v367 = vld [vmem:[%s249 + $0x178] sm:$0xf]
      %v368 = vld [vmem:[%s249 + $0x17c] sm:$0xf]
      %v369 = vld [vmem:[%s249 + $0x180] sm:$0xf]
      %v370 = vld [vmem:[%s249 + $0x184] sm:$0xf]
      %v371 = vld [vmem:[%s249 + $0x188] sm:$0xf]
      %v372 = vld [vmem:[%s249 + $0x18c] sm:$0xf]
      %v373 = vld [vmem:[%s249 + $0x190] sm:$0xf]
      %v374 = vld [vmem:[%s249 + $0x194] sm:$0xf]
      %v375 = vld [vmem:[%s249 + $0x198] sm:$0xf]
      %v376 = vld [vmem:[%s249 + $0x19c] sm:$0xf]
      %v377 = vld [vmem:[%s249 + $0x1a0] sm:$0xf]
      %v378 = vld [vmem:[%s249 + $0x1a4] sm:$0xf]
      %v379 = vld [vmem:[%s249 + $0x1a8] sm:$0xf]
      %v380 = vld [vmem:[%s249 + $0x1ac] sm:$0xf]
      %v381 = vld [vmem:[%s249 + $0x1b0] sm:$0xf]
      %v382 = vld [vmem:[%s249 + $0x1b4] sm:$0xf]
      %v383 = vld [vmem:[%s249 + $0x1b8] sm:$0xf]
      %v384 = vld [vmem:[%s249 + $0x1bc] sm:$0xf]
      %v385 = vld [vmem:[%s249 + $0x1c0] sm:$0xf]
      %v386 = vld [vmem:[%s249 + $0x1c4] sm:$0xf]
      %v387 = vld [vmem:[%s249 + $0x1c8] sm:$0xf]
      %v388 = vld [vmem:[%s249 + $0x1cc] sm:$0xf]
      %v389 = vld [vmem:[%s249 + $0x1d0] sm:$0xf]
      %v390 = vld [vmem:[%s249 + $0x1d4] sm:$0xf]
      %v391 = vld [vmem:[%s249 + $0x1d8] sm:$0xf]
      %v392 = vld [vmem:[%s249 + $0x1dc] sm:$0xf]
      %v393 = vld [vmem:[%s249 + $0x1e0] sm:$0xf]
      %v394 = vld [vmem:[%s249 + $0x1e4] sm:$0xf]
      %v395 = vld [vmem:[%s249 + $0x1e8] sm:$0xf]
      %v396 = vld [vmem:[%s249 + $0x1ec] sm:$0xf]
      %v397 = vld [vmem:[%s249 + $0x1f0] sm:$0xf]
      %v398 = vld [vmem:[%s249 + $0x1f4] sm:$0xf]
      %v399 = vld [vmem:[%s249 + $0x1f8] sm:$0xf]
      %v400 = vld [vmem:[%s249 + $0x1fc] sm:$0xf]
      %v405 = vunpack.c.l.b16 %v269
      %v406 = vunpack.c.h.b16 %v269
      %v407 = vunpack.c.l.b16 %v270
      %v408 = vunpack.c.h.b16 %v270
      %v409 = vunpack.c.l.b16 %v271
      %v410 = vunpack.c.h.b16 %v271
      %v411 = vunpack.c.l.b16 %v272
      %v412 = vunpack.c.h.b16 %v272
      %v413 = vpack.c.b16 %v405, %v405
      %v414 = vpack.c.b16 %v406, %v406
      %v415 = vpack.c.b16 %v407, %v407
      %v416 = vpack.c.b16 %v408, %v408
      %v417 = vpack.c.b16 %v409, %v409
      %v418 = vpack.c.b16 %v410, %v410
      %v419 = vpack.c.b16 %v411, %v411
      %v420 = vpack.c.b16 %v412, %v412
      %v557 = vunpack.c.l.b16 %v273
      %v558 = vunpack.c.l.b16 %v274
      %v559 = vunpack.c.l.b16 %v275
      %v560 = vunpack.c.l.b16 %v276
      %v561 = vunpack.c.l.b16 %v277
      %v562 = vunpack.c.l.b16 %v278
      %v563 = vunpack.c.l.b16 %v279
      %v564 = vunpack.c.l.b16 %v280
      %v565 = vunpack.c.l.b16 %v281
      %v566 = vunpack.c.l.b16 %v282
      %v567 = vunpack.c.l.b16 %v283
      %v568 = vunpack.c.l.b16 %v284
      %v569 = vunpack.c.l.b16 %v285
      %v570 = vunpack.c.l.b16 %v286
      %v571 = vunpack.c.l.b16 %v287
      %v572 = vunpack.c.l.b16 %v288
      %v573 = vunpack.c.l.b16 %v289
      %v574 = vunpack.c.l.b16 %v290
      %v575 = vunpack.c.l.b16 %v291
      %v576 = vunpack.c.l.b16 %v292
      %v577 = vunpack.c.l.b16 %v293
      %v578 = vunpack.c.l.b16 %v294
      %v579 = vunpack.c.l.b16 %v295
      %v580 = vunpack.c.l.b16 %v296
      %v581 = vunpack.c.l.b16 %v297
      %v582 = vunpack.c.l.b16 %v298
      %v583 = vunpack.c.l.b16 %v299
      %v584 = vunpack.c.l.b16 %v300
      %v585 = vunpack.c.l.b16 %v301
      %v586 = vunpack.c.l.b16 %v302
      %v587 = vunpack.c.l.b16 %v303
      %v588 = vunpack.c.l.b16 %v304
      %v589 = vunpack.c.l.b16 %v305
      %v590 = vunpack.c.l.b16 %v306
      %v591 = vunpack.c.l.b16 %v307
      %v592 = vunpack.c.l.b16 %v308
      %v593 = vunpack.c.l.b16 %v309
      %v594 = vunpack.c.l.b16 %v310
      %v595 = vunpack.c.l.b16 %v311
      %v596 = vunpack.c.l.b16 %v312
      %v597 = vunpack.c.l.b16 %v313
      %v598 = vunpack.c.l.b16 %v314
      %v599 = vunpack.c.l.b16 %v315
      %v600 = vunpack.c.l.b16 %v316
      %v601 = vunpack.c.l.b16 %v317
      %v602 = vunpack.c.l.b16 %v318
      %v603 = vunpack.c.l.b16 %v319
      %v604 = vunpack.c.l.b16 %v320
      %v605 = vunpack.c.l.b16 %v321
      %v606 = vunpack.c.l.b16 %v322
      %v607 = vunpack.c.l.b16 %v323
      %v608 = vunpack.c.l.b16 %v324
      %v609 = vunpack.c.l.b16 %v325
      %v610 = vunpack.c.l.b16 %v326
      %v611 = vunpack.c.l.b16 %v327
      %v612 = vunpack.c.l.b16 %v328
      %v613 = vunpack.c.l.b16 %v329
      %v614 = vunpack.c.l.b16 %v330
      %v615 = vunpack.c.l.b16 %v331
      %v616 = vunpack.c.l.b16 %v332
      %v617 = vunpack.c.l.b16 %v333
      %v618 = vunpack.c.l.b16 %v334
      %v619 = vunpack.c.l.b16 %v335
      %v620 = vunpack.c.l.b16 %v336
      %v621 = vunpack.c.l.b16 %v337
      %v622 = vunpack.c.l.b16 %v338
      %v623 = vunpack.c.l.b16 %v339
      %v624 = vunpack.c.l.b16 %v340
      %v625 = vunpack.c.l.b16 %v341
      %v626 = vunpack.c.l.b16 %v342
      %v627 = vunpack.c.l.b16 %v343
      %v628 = vunpack.c.l.b16 %v344
      %v629 = vunpack.c.l.b16 %v345
      %v630 = vunpack.c.l.b16 %v346
      %v631 = vunpack.c.l.b16 %v347
      %v632 = vunpack.c.l.b16 %v348
      %v633 = vunpack.c.l.b16 %v349
      %v634 = vunpack.c.l.b16 %v350
      %v635 = vunpack.c.l.b16 %v351
      %v636 = vunpack.c.l.b16 %v352
      %v637 = vunpack.c.l.b16 %v353
      %v638 = vunpack.c.l.b16 %v354
      %v639 = vunpack.c.l.b16 %v355
      %v640 = vunpack.c.l.b16 %v356
      %v641 = vunpack.c.l.b16 %v357
      %v642 = vunpack.c.l.b16 %v358
      %v643 = vunpack.c.l.b16 %v359
      %v644 = vunpack.c.l.b16 %v360
      %v645 = vunpack.c.l.b16 %v361
      %v646 = vunpack.c.l.b16 %v362
      %v647 = vunpack.c.l.b16 %v363
      %v648 = vunpack.c.l.b16 %v364
      %v649 = vunpack.c.l.b16 %v365
      %v650 = vunpack.c.l.b16 %v366
      %v651 = vunpack.c.l.b16 %v367
      %v652 = vunpack.c.l.b16 %v368
      %v653 = vunpack.c.l.b16 %v369
      %v654 = vunpack.c.l.b16 %v370
      %v655 = vunpack.c.l.b16 %v371
      %v656 = vunpack.c.l.b16 %v372
      %v657 = vunpack.c.l.b16 %v373
      %v658 = vunpack.c.l.b16 %v374
      %v659 = vunpack.c.l.b16 %v375
      %v660 = vunpack.c.l.b16 %v376
      %v661 = vunpack.c.l.b16 %v377
      %v662 = vunpack.c.l.b16 %v378
      %v663 = vunpack.c.l.b16 %v379
      %v664 = vunpack.c.l.b16 %v380
      %v665 = vunpack.c.l.b16 %v381
      %v666 = vunpack.c.l.b16 %v382
      %v667 = vunpack.c.l.b16 %v383
      %v668 = vunpack.c.l.b16 %v384
      %v669 = vunpack.c.l.b16 %v385
      %v670 = vunpack.c.l.b16 %v386
      %v671 = vunpack.c.l.b16 %v387
      %v672 = vunpack.c.l.b16 %v388
      %v673 = vunpack.c.l.b16 %v389
      %v674 = vunpack.c.l.b16 %v390
      %v675 = vunpack.c.l.b16 %v391
      %v676 = vunpack.c.l.b16 %v392
      %v677 = vunpack.c.l.b16 %v393
      %v678 = vunpack.c.l.b16 %v394
      %v679 = vunpack.c.l.b16 %v395
      %v680 = vunpack.c.l.b16 %v396
      %v681 = vunpack.c.l.b16 %v397
      %v682 = vunpack.c.l.b16 %v398
      %v683 = vunpack.c.l.b16 %v399
      %v684 = vunpack.c.l.b16 %v400
      %v685 = vpack.c.b16 %v558, %v557
      %v686 = vpack.c.b16 %v560, %v559
      %v687 = vpack.c.b16 %v562, %v561
      %v688 = vpack.c.b16 %v564, %v563
      %v689 = vpack.c.b16 %v566, %v565
      %v690 = vpack.c.b16 %v568, %v567
      %v691 = vpack.c.b16 %v570, %v569
      %v692 = vpack.c.b16 %v572, %v571
      %v693 = vpack.c.b16 %v574, %v573
      %v694 = vpack.c.b16 %v576, %v575
      %v695 = vpack.c.b16 %v578, %v577
      %v696 = vpack.c.b16 %v580, %v579
      %v697 = vpack.c.b16 %v582, %v581
      %v698 = vpack.c.b16 %v584, %v583
      %v699 = vpack.c.b16 %v586, %v585
      %v700 = vpack.c.b16 %v588, %v587
      %v701 = vpack.c.b16 %v590, %v589
      %v702 = vpack.c.b16 %v592, %v591
      %v703 = vpack.c.b16 %v594, %v593
      %v704 = vpack.c.b16 %v596, %v595
      %v705 = vpack.c.b16 %v598, %v597
      %v706 = vpack.c.b16 %v600, %v599
      %v707 = vpack.c.b16 %v602, %v601
      %v708 = vpack.c.b16 %v604, %v603
      %v709 = vpack.c.b16 %v606, %v605
      %v710 = vpack.c.b16 %v608, %v607
      %v711 = vpack.c.b16 %v610, %v609
      %v712 = vpack.c.b16 %v612, %v611
      %v713 = vpack.c.b16 %v614, %v613
      %v714 = vpack.c.b16 %v616, %v615
      %v715 = vpack.c.b16 %v618, %v617
      %v716 = vpack.c.b16 %v620, %v619
      %v717 = vpack.c.b16 %v622, %v621
      %v718 = vpack.c.b16 %v624, %v623
      %v719 = vpack.c.b16 %v626, %v625
      %v720 = vpack.c.b16 %v628, %v627
      %v721 = vpack.c.b16 %v630, %v629
      %v722 = vpack.c.b16 %v632, %v631
      %v723 = vpack.c.b16 %v634, %v633
      %v724 = vpack.c.b16 %v636, %v635
      %v725 = vpack.c.b16 %v638, %v637
      %v726 = vpack.c.b16 %v640, %v639
      %v727 = vpack.c.b16 %v642, %v641
      %v728 = vpack.c.b16 %v644, %v643
      %v729 = vpack.c.b16 %v646, %v645
      %v730 = vpack.c.b16 %v648, %v647
      %v731 = vpack.c.b16 %v650, %v649
      %v732 = vpack.c.b16 %v652, %v651
      %v733 = vpack.c.b16 %v654, %v653
      %v734 = vpack.c.b16 %v656, %v655
      %v735 = vpack.c.b16 %v658, %v657
      %v736 = vpack.c.b16 %v660, %v659
      %v737 = vpack.c.b16 %v662, %v661
      %v738 = vpack.c.b16 %v664, %v663
      %v739 = vpack.c.b16 %v666, %v665
      %v740 = vpack.c.b16 %v668, %v667
      %v741 = vpack.c.b16 %v670, %v669
      %v742 = vpack.c.b16 %v672, %v671
      %v743 = vpack.c.b16 %v674, %v673
      %v744 = vpack.c.b16 %v676, %v675
      %v745 = vpack.c.b16 %v678, %v677
      %v746 = vpack.c.b16 %v680, %v679
      %v747 = vpack.c.b16 %v682, %v681
      %v748 = vpack.c.b16 %v684, %v683
      %813 = vmatprep.subr.bf16.mxu0 0
      %814 = vmatpush1.bf16.msra.mxu0 %v685
      %815 = vmatprep.subr.bf16.mxu0 0
      %816 = vmatpush1.bf16.msra.mxu0 %v686
      %817 = vmatprep.subr.bf16.mxu0 0
      %818 = vmatpush1.bf16.msra.mxu0 %v687
      %819 = vmatprep.subr.bf16.mxu0 0
      %820 = vmatpush1.bf16.msra.mxu0 %v688
      %821 = vmatprep.subr.bf16.mxu0 0
      %822 = vmatpush1.bf16.msra.mxu0 %v689
      %823 = vmatprep.subr.bf16.mxu0 0
      %824 = vmatpush1.bf16.msra.mxu0 %v690
      %825 = vmatprep.subr.bf16.mxu0 0
      %826 = vmatpush1.bf16.msra.mxu0 %v691
      %827 = vmatprep.subr.bf16.mxu0 0
      %828 = vmatpush1.bf16.msra.mxu0 %v692
      %829 = vmatprep.subr.bf16.mxu0 0
      %830 = vmatpush1.bf16.msra.mxu0 %v693
      %831 = vmatprep.subr.bf16.mxu0 0
      %832 = vmatpush1.bf16.msra.mxu0 %v694
      %833 = vmatprep.subr.bf16.mxu0 0
      %834 = vmatpush1.bf16.msra.mxu0 %v695
      %835 = vmatprep.subr.bf16.mxu0 0
      %836 = vmatpush1.bf16.msra.mxu0 %v696
      %837 = vmatprep.subr.bf16.mxu0 0
      %838 = vmatpush1.bf16.msra.mxu0 %v697
      %839 = vmatprep.subr.bf16.mxu0 0
      %840 = vmatpush1.bf16.msra.mxu0 %v698
      %841 = vmatprep.subr.bf16.mxu0 0
      %842 = vmatpush1.bf16.msra.mxu0 %v699
      %843 = vmatprep.subr.bf16.mxu0 0
      %844 = vmatpush1.bf16.msra.mxu0 %v700
      %845 = vmatprep.mubr.bf16.mxu0 %v414
      %846 = vmatmul.mubr.bf16.gmra.mrb[0].mxu0 %v413
      %v847 = vpop.f32.mrb[0].mxu0
      %v848 = vadd.f32 0.0, %v847
      %v849 = vpop.f32.mrb[0].mxu0
      %v850 = vpop.f32.mrb[0].mxu0
      %v851 = vpop.f32.mrb[0].mxu0
      %852 = vdwg.mxu0
      %853 = vmatprep.subr.bf16.mxu0 0
      %854 = vmatpush1.bf16.msra.mxu0 %v701
      %855 = vmatprep.subr.bf16.mxu0 0
      %856 = vmatpush1.bf16.msra.mxu0 %v702
      %857 = vmatprep.subr.bf16.mxu0 0
      %858 = vmatpush1.bf16.msra.mxu0 %v703
      %859 = vmatprep.subr.bf16.mxu0 0
      %860 = vmatpush1.bf16.msra.mxu0 %v704
      %861 = vmatprep.subr.bf16.mxu0 0
      %862 = vmatpush1.bf16.msra.mxu0 %v705
      %863 = vmatprep.subr.bf16.mxu0 0
      %864 = vmatpush1.bf16.msra.mxu0 %v706
      %865 = vmatprep.subr.bf16.mxu0 0
      %866 = vmatpush1.bf16.msra.mxu0 %v707
      %867 = vmatprep.subr.bf16.mxu0 0
      %868 = vmatpush1.bf16.msra.mxu0 %v708
      %869 = vmatprep.subr.bf16.mxu0 0
      %870 = vmatpush1.bf16.msra.mxu0 %v709
      %871 = vmatprep.subr.bf16.mxu0 0
      %872 = vmatpush1.bf16.msra.mxu0 %v710
      %873 = vmatprep.subr.bf16.mxu0 0
      %874 = vmatpush1.bf16.msra.mxu0 %v711
      %875 = vmatprep.subr.bf16.mxu0 0
      %876 = vmatpush1.bf16.msra.mxu0 %v712
      %877 = vmatprep.subr.bf16.mxu0 0
      %878 = vmatpush1.bf16.msra.mxu0 %v713
      %879 = vmatprep.subr.bf16.mxu0 0
      %880 = vmatpush1.bf16.msra.mxu0 %v714
      %881 = vmatprep.subr.bf16.mxu0 0
      %882 = vmatpush1.bf16.msra.mxu0 %v715
      %883 = vmatprep.subr.bf16.mxu0 0
      %884 = vmatpush1.bf16.msra.mxu0 %v716
      %885 = vmatprep.mubr.bf16.mxu0 %v416
      %886 = vmatmul.mubr.bf16.gmra.mrb[0].mxu0 %v415
      %v887 = vpop.f32.mrb[0].mxu0
      %v888 = vadd.f32 %v848, %v887
      %v889 = vpop.f32.mrb[0].mxu0
      %v890 = vpop.f32.mrb[0].mxu0
      %v891 = vpop.f32.mrb[0].mxu0
      %892 = vdwg.mxu0
      %893 = vmatprep.subr.bf16.mxu0 0
      %894 = vmatpush1.bf16.msra.mxu0 %v717
      %895 = vmatprep.subr.bf16.mxu0 0
      %896 = vmatpush1.bf16.msra.mxu0 %v718
      %897 = vmatprep.subr.bf16.mxu0 0
      %898 = vmatpush1.bf16.msra.mxu0 %v719
      %899 = vmatprep.subr.bf16.mxu0 0
      %900 = vmatpush1.bf16.msra.mxu0 %v720
      %901 = vmatprep.subr.bf16.mxu0 0
      %902 = vmatpush1.bf16.msra.mxu0 %v721
      %903 = vmatprep.subr.bf16.mxu0 0
      %904 = vmatpush1.bf16.msra.mxu0 %v722
      %905 = vmatprep.subr.bf16.mxu0 0
      %906 = vmatpush1.bf16.msra.mxu0 %v723
      %907 = vmatprep.subr.bf16.mxu0 0
      %908 = vmatpush1.bf16.msra.mxu0 %v724
      %909 = vmatprep.subr.bf16.mxu0 0
      %910 = vmatpush1.bf16.msra.mxu0 %v725
      %911 = vmatprep.subr.bf16.mxu0 0
      %912 = vmatpush1.bf16.msra.mxu0 %v726
      %913 = vmatprep.subr.bf16.mxu0 0
      %914 = vmatpush1.bf16.msra.mxu0 %v727
      %915 = vmatprep.subr.bf16.mxu0 0
      %916 = vmatpush1.bf16.msra.mxu0 %v728
      %917 = vmatprep.subr.bf16.mxu0 0
      %918 = vmatpush1.bf16.msra.mxu0 %v729
      %919 = vmatprep.subr.bf16.mxu0 0
      %920 = vmatpush1.bf16.msra.mxu0 %v730
      %921 = vmatprep.subr.bf16.mxu0 0
      %922 = vmatpush1.bf16.msra.mxu0 %v731
      %923 = vmatprep.subr.bf16.mxu0 0
      %924 = vmatpush1.bf16.msra.mxu0 %v732
      %925 = vmatprep.mubr.bf16.mxu0 %v418
      %926 = vmatmul.mubr.bf16.gmra.mrb[0].mxu0 %v417
      %v927 = vpop.f32.mrb[0].mxu0
      %v928 = vadd.f32 %v888, %v927
      %v929 = vpop.f32.mrb[0].mxu0
      %v930 = vpop.f32.mrb[0].mxu0
      %v931 = vpop.f32.mrb[0].mxu0
      %932 = vdwg.mxu0
      %933 = vmatprep.subr.bf16.mxu0 0
      %934 = vmatpush1.bf16.msra.mxu0 %v733
      %935 = vmatprep.subr.bf16.mxu0 0
      %936 = vmatpush1.bf16.msra.mxu0 %v734
      %937 = vmatprep.subr.bf16.mxu0 0
      %938 = vmatpush1.bf16.msra.mxu0 %v735
      %939 = vmatprep.subr.bf16.mxu0 0
      %940 = vmatpush1.bf16.msra.mxu0 %v736
      %941 = vmatprep.subr.bf16.mxu0 0
      %942 = vmatpush1.bf16.msra.mxu0 %v737
      %943 = vmatprep.subr.bf16.mxu0 0
      %944 = vmatpush1.bf16.msra.mxu0 %v738
      %945 = vmatprep.subr.bf16.mxu0 0
      %946 = vmatpush1.bf16.msra.mxu0 %v739
      %947 = vmatprep.subr.bf16.mxu0 0
      %948 = vmatpush1.bf16.msra.mxu0 %v740
      %949 = vmatprep.subr.bf16.mxu0 0
      %950 = vmatpush1.bf16.msra.mxu0 %v741
      %951 = vmatprep.subr.bf16.mxu0 0
      %952 = vmatpush1.bf16.msra.mxu0 %v742
      %953 = vmatprep.subr.bf16.mxu0 0
      %954 = vmatpush1.bf16.msra.mxu0 %v743
      %955 = vmatprep.subr.bf16.mxu0 0
      %956 = vmatpush1.bf16.msra.mxu0 %v744
      %957 = vmatprep.subr.bf16.mxu0 0
      %958 = vmatpush1.bf16.msra.mxu0 %v745
      %959 = vmatprep.subr.bf16.mxu0 0
      %960 = vmatpush1.bf16.msra.mxu0 %v746
      %961 = vmatprep.subr.bf16.mxu0 0
      %962 = vmatpush1.bf16.msra.mxu0 %v747
      %963 = vmatprep.subr.bf16.mxu0 0
      %964 = vmatpush1.bf16.msra.mxu0 %v748
      %965 = vmatprep.mubr.bf16.mxu0 %v420
      %966 = vmatmul.mubr.bf16.gmra.mrb[0].mxu0 %v419
      %v967 = vpop.f32.mrb[0].mxu0
      %v968 = vadd.f32 %v928, %v967
      %v969 = vpop.f32.mrb[0].mxu0
      %v970 = vpop.f32.mrb[0].mxu0
      %v971 = vpop.f32.mrb[0].mxu0
      %972 = vdwg.mxu0
      %v973 = vadd.f32 %v268, %v968
      %974 = vst [vmem:[%s261] sm:$0xff] %v973
      %p975 = scmp.eq.s32.totalorder %s21, 1
      // Predicated region
      $region37: #{conv1d_base_net_forward.15} parent=31 // pred_check
        %p976 = pneg %p975
      $region38: #{conv1d_base_net_forward.15} parent=31 // pred_check_branch
        %978 = sbr.rel (%p976) target = $region40
      $region39: #{conv1d_base_net_forward.15} parent=31 // pred_region
        %v979 = vld [vmem:[%s261] sm:$0xff]
        %v980 = vld [vmem:[%s254] sm:$0x1]
        %v981 = vlaneseq
        %v982 = vshrl.u32 %v981, 7
        %v983 = vsub.s32 0, %v982
        %v984 = vrot.slane %v980, %v983
        %v985 = vadd.f32 %v979, %v984
        %v986 = vld [vmem:[%s254 + $0x1] sm:$0x1]
        %v987 = vlaneseq
        %v988 = vshrl.u32 %v987, 7
        %v989 = vsub.s32 0, %v988
        %v990 = vrot.slane %v986, %v989
        %v991 = vmul.f32 %v985, %v990
        %v992 = vld [vmem:[%s254 + $0x2] sm:$0x1]
        %v993 = vlaneseq
        %v994 = vshrl.u32 %v993, 7
        %v995 = vsub.s32 0, %v994
        %v996 = vrot.slane %v992, %v995
        %v997 = vadd.f32 %v991, %v996
        %998 = vst [vmem:[%s261] sm:$0xff] %v997
      $region40: #{conv1d_base_net_forward.15} parent=31 // pred_fallthru
        _
      %p999 = scmp.lt.s32.totalorder %s19, 0
      %s1000 = scalar_select %p999, %s19, 0
      %p1001 = scmp.lt.s32.totalorder %s20, 0
      %s1002 = scalar_select %p1001, %s20, 0
      %s1003 = sadd.s32 %s1002, %s1000
      %s1004 = smul.addr %s1003, 8
      %s1005 = scalar_lea.vmem %s3, %s1004
      // Predicated region
      $region41: #{conv1d_base_net_forward.15} parent=31 // pred_check
        %p1006 = pneg %p135
      $region42: #{conv1d_base_net_forward.15} parent=31 // pred_check_branch
        %1008 = sbr.rel (%p1006) target = $region44
      $region43: #{conv1d_base_net_forward.15} parent=31 // pred_region
        _
      $region44: #{conv1d_base_net_forward.15} parent=31 // pred_fallthru
        _
      // Predicated region
      $region45: #{conv1d_base_net_forward.15} parent=31 // pred_check
        %p1009 = pneg %p135
      $region46: #{conv1d_base_net_forward.15} parent=31 // pred_check_branch
        %1011 = sbr.rel (%p1009) target = $region48
      $region47: #{conv1d_base_net_forward.15} parent=31 // pred_region
        %p1012 = scmp.lt.s32.totalorder %s19, 0
        %s1013 = scalar_select %p1012, %s19, 0
        %p1014 = scmp.lt.s32.totalorder %s20, 0
        %s1015 = scalar_select %p1014, %s20, 0
        %s1016 = sadd.s32 %s1015, %s1013
        %s1017 = smul.addr %s1016, 8
        %s1018 = scalar_lea.vmem %s3, %s1017
      $region48: #{conv1d_base_net_forward.15} parent=31 // pred_fallthru
        _
    $region32: #{conv1d_base_net_forward.15} parent=5 // pred_fallthru
      _
    %p1019 = scmp.le.s32.totalorder 2, %s9
    // Predicated region
    $region49: #{conv1d_base_net_forward.15} parent=5 // pred_check
      %p1020 = pneg %p1019
    $region50: #{conv1d_base_net_forward.15} parent=5 // pred_check_branch
      %1022 = sbr.rel (%p1020) target = $region52
    $region51: #{conv1d_base_net_forward.15} parent=5 // pred_region
      %s1023 = ssub.s32 %s9, 2
    $region52: #{conv1d_base_net_forward.15} parent=5 // pred_fallthru
      _
  $region6: #{conv1d_base_net_forward.15} parent=0 // loop_footer
    %s13 = sadd.s32 1, %s9
  $region7: #{conv1d_base_net_forward.15} parent=0 // loop_footer_branch
    %8 = sbr.rel target = $region3
  $region8: #{conv1d_base_net_forward.15} parent=0 // loop_exit
    _

</llo_original>
